<compile_context>
chip_gen: v5e
topology: v5e:2x2
jax: 0.10.0
libtpu: 0.0.40
codegen_flags: <defaults>
</compile_context>

<pallas_src>
import functools

import jax
import jax.numpy as jnp
from jax.experimental import pallas as pl
from jax.experimental.pallas import tpu as pltpu

BN_EPS = 1e-5


def _round_up(x, m):
    return (x + m - 1) // m * m


def _vmem_limit_bytes():
    """Generation-aware VMEM budget: 3/4 of physical capacity."""
    try:
        return int(pltpu.get_tpu_info().vmem_capacity_bytes) * 3 // 4
    except Exception:
        return 48 * 1024 * 1024  # conservative fallback that fits every generation


# ----------------------------------------------------------------------------
# Fused RefineUnit kernel (one grid step == one batch sample)
# ----------------------------------------------------------------------------
def _refine_unit_kernel(f3xp_ref, f2p_ref, up_ref, w1_ref, s1_ref, b1_ref,
                        w2_ref, s2_ref, b2_ref, o_ref,
                        m2p_ref, im1_ref, im2_ref, *, H3, W3, C2, Cp):
    """NHWC layout, class channel padded to Cp (=128) lanes.

    f3xp_ref : [1, H3+2, 2*W3+3, Cp] bf16  x-stuffed, padded coarse map (f3)
    f2p_ref  : [1, H+2, W+2, C2]     bf16  spatially 1-padded skip features
    up_ref   : [16, Cp]              f32   flipped depthwise ConvTranspose taps
    w1_ref   : [9*C2, Cp]            bf16  conv1 im2col weight; s1/b1 folded BN1
    w2_ref   : [9*Cp, Cp]            bf16  conv2 im2col weight; s2/b2 folded BN2
    o_ref    : [1, H, W, Cp]         bf16  output ReLU(BN(conv2(m2)))
    m2p_ref  : VMEM f32 [H3+1, 2, W+2, Cp]  == zero-bordered m2 [H+2, W+2, Cp]
    im1_ref  : VMEM bf16 [H*W, 9*C2]        conv1 im2col operand
    im2_ref  : VMEM bf16 [H*W, 9*Cp]        conv2 im2col operand
    """
    H, W = 2 * H3, 2 * W3
    HW = H * W

    # ---- conv1: ReLU(BN(conv3x3(f2))) as a single im2col GEMM (K = 9*C2) ----
    for t in range(9):
        dy, dx = divmod(t, 3)
        im1_ref[:, t * C2:(t + 1) * C2] = (
            f2p_ref[0, dy:dy + H, dx:dx + W, :].reshape(HW, C2))
    acc1 = jnp.dot(im1_ref[...], w1_ref[...],
                   preferred_element_type=jnp.float32)
    f2_1 = jnp.maximum(acc1 * s1_ref[...] + b1_ref[...], 0.0)
    # [H*W, Cp] -> [H3, 2(y-phase), W, Cp]  (leading-dim split, W stays sublane)
    f2_1r = f2_1.reshape(H3, 2, W, Cp)

    # ---- m2 scratch border: zero only the 4 strips, every step (core-safe) ----
    zrow = jnp.zeros((W + 2, Cp), jnp.float32)
    m2p_ref[0, 0, :, :] = zrow            # padded row 0
    m2p_ref[H3, 1, :, :] = zrow           # padded row H+1
    zcol = jnp.zeros((H3 + 1, 2, 1, Cp), jnp.float32)
    m2p_ref[:, :, 0:1, :] = zcol          # padded col 0
    m2p_ref[:, :, W + 1:W + 2, :] = zcol  # padded col W+1

    # ---- m1: 4x4 depthwise ConvTranspose (stride 2) in two y-phases --------
    # phase ry: m1[2*py+ry, x, c] = sum_{a,kx} up[(2a+ry)*4+kx, c]
    #                                        * f3xp[py+ry+a, x+kx, c]
    upv = up_ref[...]
    for ry in range(2):
        acc = None
        for a in range(2):
            for kx in range(4):
                t_idx = (2 * a + ry) * 4 + kx
                w = upv[t_idx:t_idx + 1, :].reshape(1, 1, Cp)          # f32
                tap = f3xp_ref[0, ry + a:ry + a + H3, kx:kx + W, :]    # bf16
                term = tap * w                                         # -> f32
                acc = term if acc is None else acc + term
        m2_phase = acc + f2_1r[:, ry, :, :]
        # padded row index r = 2*py + ry + 1 == 2*q + s on the 4-D scratch.
        if ry == 0:
            m2p_ref[0:H3, 1, 1:W + 1, :] = m2_phase
        else:
            m2p_ref[1:H3 + 1, 0, 1:W + 1, :] = m2_phase

    # ---- conv2: ReLU(BN(conv3x3(m2))) as a single im2col GEMM (K = 9*Cp) ----
    # Single bf16 cast pass, then 9 lane-aligned column-block writes.
    m2full = m2p_ref[...].reshape(H + 2, W + 2, Cp).astype(jnp.bfloat16)
    for t in range(9):
        dy, dx = divmod(t, 3)
        im2_ref[:, t * Cp:(t + 1) * Cp] = (
            m2full[dy:dy + H, dx:dx + W, :].reshape(HW, Cp))
    acc2 = jnp.dot(im2_ref[...], w2_ref[...],
                   preferred_element_type=jnp.float32)
    o = jnp.maximum(acc2 * s2_ref[...] + b2_ref[...], 0.0)
    o_ref[0] = o.reshape(H, W, Cp).astype(o_ref.dtype)


# ----------------------------------------------------------------------------
# Wrapper (NCHW in / NCHW out, like the PyTorch module)
# ----------------------------------------------------------------------------
def refine_unit_forward(params, f3_nchw, f2_nchw):
    n, c3, h3, w3 = f3_nchw.shape
    _, c2, h2, w2 = f2_nchw.shape
    nc, cp = params['n_classes'], params['Cp']
    assert c3 == nc and (h2, w2) == (2 * h3, 2 * w3)
    # keeps every in-kernel sublane-merging reshape tile-clean (bf16: 16 rows)
    assert w2 % 16 == 0 and h2 % 2 == 0

    f3 = jnp.transpose(f3_nchw, (0, 2, 3, 1)).astype(jnp.bfloat16)   # NHWC bf16
    f2 = jnp.transpose(f2_nchw, (0, 2, 3, 1)).astype(jnp.bfloat16)

    # One lax.pad does: y halo 1, x zero-stuffing (interior=1) + halo 2, and
    # class-channel padding to 128 lanes.  No scatter pass.
    f3xp = jax.lax.pad(f3, jnp.zeros((), jnp.bfloat16),
                       ((0, 0, 0), (1, 1, 0), (2, 2, 1), (0, cp - nc, 0)))
    # 3x3 / padding=1 halo for the skip features (bf16 -> half the DMA bytes).
    f2p = jnp.pad(f2, ((0, 0), (1, 1), (1, 1), (0, 0)))

    kernel = functools.partial(_refine_unit_kernel, H3=h3, W3=w3, C2=c2, Cp=cp)
    out = pl.pallas_call(
        kernel,
        out_shape=jax.ShapeDtypeStruct((n, h2, w2, cp), jnp.bfloat16),
        grid=(n,),
        in_specs=[
            pl.BlockSpec((1, h3 + 2, 2 * w3 + 3, cp), lambda i: (i, 0, 0, 0)),
            pl.BlockSpec((1, h2 + 2, w2 + 2, c2), lambda i: (i, 0, 0, 0)),
            pl.BlockSpec((16, cp), lambda i: (0, 0)),
            pl.BlockSpec((9 * c2, cp), lambda i: (0, 0)),
            pl.BlockSpec((1, cp), lambda i: (0, 0)),
            pl.BlockSpec((1, cp), lambda i: (0, 0)),
            pl.BlockSpec((9 * cp, cp), lambda i: (0, 0)),
            pl.BlockSpec((1, cp), lambda i: (0, 0)),
            pl.BlockSpec((1, cp), lambda i: (0, 0)),
        ],
        out_specs=pl.BlockSpec((1, h2, w2, cp), lambda i: (i, 0, 0, 0)),
        scratch_shapes=[
            pltpu.VMEM((h3 + 1, 2, w2 + 2, cp), jnp.float32),   # zero-bordered m2
            pltpu.VMEM((h2 * w2, 9 * c2), jnp.bfloat16),        # conv1 im2col
            pltpu.VMEM((h2 * w2, 9 * cp), jnp.bfloat16),        # conv2 im2col
        ],
        compiler_params=pltpu.CompilerParams(
            dimension_semantics=("parallel",),
            vmem_limit_bytes=_vmem_limit_bytes()),
    )(f3xp, f2p, params['up_w'], params['c1_w'], params['c1_scale'],
      params['c1_shift'], params['c2_w'], params['c2_scale'], params['c2_shift'])

    # Single fused epilogue pass: drop lane padding, cast, NHWC -> NCHW.
    return jnp.transpose(out[..., :nc].astype(jnp.float32), (0, 3, 1, 2))


# ----------------------------------------------------------------------------
# Synthetic parameters (deterministic) in PyTorch layouts, pre-arranged for
# the kernel (im2col GEMM weights, lane-padded class channel, bf16 operands).
# ----------------------------------------------------------------------------
def init_params(key, f2_channel=64, n_classes=21, w_std=0.05):
    cp = _round_up(max(n_classes, 128), 128)
    k_up, k1, k2 = jax.random.split(key, 3)
    up_t = w_std * jax.random.normal(k_up, (n_classes, 1, 4, 4), jnp.float32)
    c1_t = w_std * jax.random.normal(k1, (n_classes, f2_channel, 3, 3), jnp.float32)
    c2_t = w_std * jax.random.normal(k2, (n_classes, n_classes, 3, 3), jnp.float32)

    # Depthwise ConvTranspose -> correlation form: flip spatially, [16, Cp].
    up = jnp.transpose(jnp.flip(up_t[:, 0], axis=(1, 2)), (1, 2, 0))
    up = jnp.pad(up.reshape(16, n_classes), ((0, 0), (0, cp - n_classes)))

    # conv1 im2col weight [9*C2, Cp]: row (dy*3+dx)*C2 + cin -> w[cout,cin,dy,dx]
    w1 = jnp.transpose(c1_t, (2, 3, 1, 0)).reshape(9 * f2_channel, n_classes)
    w1 = jnp.pad(w1, ((0, 0), (0, cp - n_classes))).astype(jnp.bfloat16)
    # conv2 im2col weight [9*Cp, Cp] with padded in/out channels kept at zero.
    w2 = jnp.transpose(c2_t, (2, 3, 1, 0))                       # [3,3,nc,nc]
    w2 = jnp.pad(w2, ((0, 0), (0, 0),
                      (0, cp - n_classes), (0, cp - n_classes)))
    w2 = w2.reshape(9 * cp, cp).astype(jnp.bfloat16)

    # Folded BatchNorm (eval mode, init running stats mean=0, var=1, affine 1/0).
    # TODO(synk): training-mode batch statistics are not computed.
    def bn_fold():
        scale = jnp.full((1, cp), 1.0 / jnp.sqrt(1.0 + BN_EPS), jnp.float32)
        shift = jnp.zeros((1, cp), jnp.float32)
        return scale, shift

    s1, b1 = bn_fold()
    s2, b2 = bn_fold()
    return {
        'n_classes': n_classes, 'f2_channel': f2_channel, 'Cp': cp,
        'up_w': up.astype(jnp.float32),
        'c1_w': w1, 'c1_scale': s1, 'c1_shift': b1,
        'c2_w': w2, 'c2_scale': s2, 'c2_shift': b2,
        '_torch': {'up': up_t, 'c1': c1_t, 'c2': c2_t},
    }


# ----------------------------------------------------------------------------
# Pure-JAX reference (matches the kernel's bf16 operands)
# ----------------------------------------------------------------------------
def _reference_forward(params, f3_nchw, f2_nchw):
    t = params['_torch']
    bn_scale = 1.0 / jnp.sqrt(1.0 + BN_EPS)
    bf = lambda a: a.astype(jnp.bfloat16).astype(jnp.float32)

    # Grouped ConvTranspose2d(nc, nc, 4, stride=2, padding=1) via explicit scatter.
    x = bf(f3_nchw)
    n, c, h, w = x.shape
    up = jnp.zeros((n, c, 2 * h + 2, 2 * w + 2), jnp.float32)
    for ky in range(4):
        for kx in range(4):
            wk = t['up'][:, 0, ky, kx][None, :, None, None]
            up = up.at[:, :, ky:ky + 2 * h:2, kx:kx + 2 * w:2].add(x * wk)
    m1 = up[:, :, 1:1 + 2 * h, 1:1 + 2 * w]

    def conv3_bn_relu(inp, w_t):
        y = jax.lax.conv_general_dilated(
            bf(inp), bf(w_t), (1, 1), ((1, 1), (1, 1)),
            dimension_numbers=('NCHW', 'OIHW', 'NCHW'))
        return jnp.maximum(y * bn_scale, 0.0)

    m2 = m1 + conv3_bn_relu(f2_nchw.astype(jnp.float32), t['c1'])
    return conv3_bn_relu(m2, t['c2'])


# ----------------------------------------------------------------------------
if __name__ == "__main__":
    n_classes, f2_channel = 21, 64
    N, H3, W3 = 2, 8, 8            # f3: coarse class map, f2: skip features

    key = jax.random.PRNGKey(0)
    kp, ka, kb = jax.random.split(key, 3)
    params = init_params(kp, f2_channel=f2_channel, n_classes=n_classes)
    f3 = jax.random.normal(ka, (N, n_classes, H3, W3), jnp.float32)          # NCHW
    f2 = jax.random.normal(kb, (N, f2_channel, 2 * H3, 2 * W3), jnp.float32)  # NCHW

    fwd = jax.jit(lambda a, b: refine_unit_forward(params, a, b))
    y = jax.block_until_ready(fwd(f3, f2))

    assert y.shape == (N, n_classes, 2 * H3, 2 * W3), y.shape
    assert bool(jnp.all(jnp.isfinite(y)))

    y_ref = _reference_forward(params, f3, f2)
    assert bool(jnp.allclose(y, y_ref, rtol=2e-2, atol=2e-2)), \
        float(jnp.max(jnp.abs(y - y_ref)))

    print("KERNEL_OK")
</pallas_src>

<mosaic_0001>
module attributes {stable_mosaic.version = 11 : i64} {
  func.func @_refine_unit_kernel(%arg0: i32, %arg1: memref<1x10x19x128xbf16, #tpu.memory_space<vmem>>, %arg2: memref<1x18x18x64xbf16, #tpu.memory_space<vmem>>, %arg3: memref<16x128xf32, #tpu.memory_space<vmem>>, %arg4: memref<576x128xbf16, #tpu.memory_space<vmem>>, %arg5: memref<1x128xf32, #tpu.memory_space<vmem>>, %arg6: memref<1x128xf32, #tpu.memory_space<vmem>>, %arg7: memref<1152x128xbf16, #tpu.memory_space<vmem>>, %arg8: memref<1x128xf32, #tpu.memory_space<vmem>>, %arg9: memref<1x128xf32, #tpu.memory_space<vmem>>, %arg10: memref<1x16x16x128xbf16, #tpu.memory_space<vmem>>, %arg11: memref<9x2x18x128xf32, #tpu.memory_space<vmem>>, %arg12: memref<256x576xbf16, #tpu.memory_space<vmem>>, %arg13: memref<256x1152xbf16, #tpu.memory_space<vmem>>) attributes {dimension_semantics = [#tpu.dimension_semantics<parallel>], iteration_bounds = array<i64: 2>, scalar_prefetch = 0 : i64, scratch_operands = 3 : i64, tpu.core_type = #tpu.core_type<tc>, window_params = [{transform_indices = @transform_0, window_bounds = array<i64: 1, 10, 19, 128>}, {transform_indices = @transform_1, window_bounds = array<i64: 1, 18, 18, 64>}, {pipeline_mode = #tpu.pipeline_mode<synchronous>, transform_indices = @transform_2, window_bounds = array<i64: 16, 128>}, {pipeline_mode = #tpu.pipeline_mode<synchronous>, transform_indices = @transform_3, window_bounds = array<i64: 576, 128>}, {pipeline_mode = #tpu.pipeline_mode<synchronous>, transform_indices = @transform_4, window_bounds = array<i64: 1, 128>}, {pipeline_mode = #tpu.pipeline_mode<synchronous>, transform_indices = @transform_5, window_bounds = array<i64: 1, 128>}, {pipeline_mode = #tpu.pipeline_mode<synchronous>, transform_indices = @transform_6, window_bounds = array<i64: 1152, 128>}, {pipeline_mode = #tpu.pipeline_mode<synchronous>, transform_indices = @transform_7, window_bounds = array<i64: 1, 128>}, {pipeline_mode = #tpu.pipeline_mode<synchronous>, transform_indices = @transform_8, window_bounds = array<i64: 1, 128>}, {transform_indices = @transform_9, window_bounds = array<i64: 1, 16, 16, 128>}]} {
    %c0 = arith.constant 0 : index
    %c0_0 = arith.constant 0 : index
    %c0_1 = arith.constant 0 : index
    %c0_2 = arith.constant 0 : index
    %0 = vector.load %arg2[%c0, %c0_0, %c0_1, %c0_2] : memref<1x18x18x64xbf16, #tpu.memory_space<vmem>>, vector<1x16x16x64xbf16>
    %1 = vector.shape_cast %0 : vector<1x16x16x64xbf16> to vector<16x16x64xbf16>
    %2 = vector.shape_cast %1 : vector<16x16x64xbf16> to vector<256x64xbf16>
    %c0_3 = arith.constant 0 : index
    %c0_4 = arith.constant 0 : index
    %3 = vector.load %arg12[%c0_3, %c0_4] : memref<256x576xbf16, #tpu.memory_space<vmem>>, vector<256x64xbf16>
    tpu.vector_store %arg12[%c0_3, %c0_4], %2 {strides = array<i32>} : memref<256x576xbf16, #tpu.memory_space<vmem>>, vector<256x64xbf16>,
    %c0_5 = arith.constant 0 : index
    %c0_6 = arith.constant 0 : index
    %c1 = arith.constant 1 : index
    %c0_7 = arith.constant 0 : index
    %4 = vector.load %arg2[%c0_5, %c0_6, %c1, %c0_7] : memref<1x18x18x64xbf16, #tpu.memory_space<vmem>>, vector<1x16x16x64xbf16>
    %5 = vector.shape_cast %4 : vector<1x16x16x64xbf16> to vector<16x16x64xbf16>
    %6 = vector.shape_cast %5 : vector<16x16x64xbf16> to vector<256x64xbf16>
    %c0_8 = arith.constant 0 : index
    %c64 = arith.constant 64 : index
    %7 = vector.load %arg12[%c0_8, %c64] : memref<256x576xbf16, #tpu.memory_space<vmem>>, vector<256x64xbf16>
    tpu.vector_store %arg12[%c0_8, %c64], %6 {strides = array<i32>} : memref<256x576xbf16, #tpu.memory_space<vmem>>, vector<256x64xbf16>,
    %c0_9 = arith.constant 0 : index
    %c0_10 = arith.constant 0 : index
    %c2 = arith.constant 2 : index
    %c0_11 = arith.constant 0 : index
    %8 = vector.load %arg2[%c0_9, %c0_10, %c2, %c0_11] : memref<1x18x18x64xbf16, #tpu.memory_space<vmem>>, vector<1x16x16x64xbf16>
    %9 = vector.shape_cast %8 : vector<1x16x16x64xbf16> to vector<16x16x64xbf16>
    %10 = vector.shape_cast %9 : vector<16x16x64xbf16> to vector<256x64xbf16>
    %c0_12 = arith.constant 0 : index
    %c128 = arith.constant 128 : index
    %11 = vector.load %arg12[%c0_12, %c128] : memref<256x576xbf16, #tpu.memory_space<vmem>>, vector<256x64xbf16>
    tpu.vector_store %arg12[%c0_12, %c128], %10 {strides = array<i32>} : memref<256x576xbf16, #tpu.memory_space<vmem>>, vector<256x64xbf16>,
    %c0_13 = arith.constant 0 : index
    %c1_14 = arith.constant 1 : index
    %c0_15 = arith.constant 0 : index
    %c0_16 = arith.constant 0 : index
    %12 = vector.load %arg2[%c0_13, %c1_14, %c0_15, %c0_16] : memref<1x18x18x64xbf16, #tpu.memory_space<vmem>>, vector<1x16x16x64xbf16>
    %13 = vector.shape_cast %12 : vector<1x16x16x64xbf16> to vector<16x16x64xbf16>
    %14 = vector.shape_cast %13 : vector<16x16x64xbf16> to vector<256x64xbf16>
    %c0_17 = arith.constant 0 : index
    %c192 = arith.constant 192 : index
    %15 = vector.load %arg12[%c0_17, %c192] : memref<256x576xbf16, #tpu.memory_space<vmem>>, vector<256x64xbf16>
    tpu.vector_store %arg12[%c0_17, %c192], %14 {strides = array<i32>} : memref<256x576xbf16, #tpu.memory_space<vmem>>, vector<256x64xbf16>,
    %c0_18 = arith.constant 0 : index
    %c1_19 = arith.constant 1 : index
    %c1_20 = arith.constant 1 : index
    %c0_21 = arith.constant 0 : index
    %16 = vector.load %arg2[%c0_18, %c1_19, %c1_20, %c0_21] : memref<1x18x18x64xbf16, #tpu.memory_space<vmem>>, vector<1x16x16x64xbf16>
    %17 = vector.shape_cast %16 : vector<1x16x16x64xbf16> to vector<16x16x64xbf16>
    %18 = vector.shape_cast %17 : vector<16x16x64xbf16> to vector<256x64xbf16>
    %c0_22 = arith.constant 0 : index
    %c256 = arith.constant 256 : index
    %19 = vector.load %arg12[%c0_22, %c256] : memref<256x576xbf16, #tpu.memory_space<vmem>>, vector<256x64xbf16>
    tpu.vector_store %arg12[%c0_22, %c256], %18 {strides = array<i32>} : memref<256x576xbf16, #tpu.memory_space<vmem>>, vector<256x64xbf16>,
    %c0_23 = arith.constant 0 : index
    %c1_24 = arith.constant 1 : index
    %c2_25 = arith.constant 2 : index
    %c0_26 = arith.constant 0 : index
    %20 = vector.load %arg2[%c0_23, %c1_24, %c2_25, %c0_26] : memref<1x18x18x64xbf16, #tpu.memory_space<vmem>>, vector<1x16x16x64xbf16>
    %21 = vector.shape_cast %20 : vector<1x16x16x64xbf16> to vector<16x16x64xbf16>
    %22 = vector.shape_cast %21 : vector<16x16x64xbf16> to vector<256x64xbf16>
    %c0_27 = arith.constant 0 : index
    %c320 = arith.constant 320 : index
    %23 = vector.load %arg12[%c0_27, %c320] : memref<256x576xbf16, #tpu.memory_space<vmem>>, vector<256x64xbf16>
    tpu.vector_store %arg12[%c0_27, %c320], %22 {strides = array<i32>} : memref<256x576xbf16, #tpu.memory_space<vmem>>, vector<256x64xbf16>,
    %c0_28 = arith.constant 0 : index
    %c2_29 = arith.constant 2 : index
    %c0_30 = arith.constant 0 : index
    %c0_31 = arith.constant 0 : index
    %24 = vector.load %arg2[%c0_28, %c2_29, %c0_30, %c0_31] : memref<1x18x18x64xbf16, #tpu.memory_space<vmem>>, vector<1x16x16x64xbf16>
    %25 = vector.shape_cast %24 : vector<1x16x16x64xbf16> to vector<16x16x64xbf16>
    %26 = vector.shape_cast %25 : vector<16x16x64xbf16> to vector<256x64xbf16>
    %c0_32 = arith.constant 0 : index
    %c384 = arith.constant 384 : index
    %27 = vector.load %arg12[%c0_32, %c384] : memref<256x576xbf16, #tpu.memory_space<vmem>>, vector<256x64xbf16>
    tpu.vector_store %arg12[%c0_32, %c384], %26 {strides = array<i32>} : memref<256x576xbf16, #tpu.memory_space<vmem>>, vector<256x64xbf16>,
    %c0_33 = arith.constant 0 : index
    %c2_34 = arith.constant 2 : index
    %c1_35 = arith.constant 1 : index
    %c0_36 = arith.constant 0 : index
    %28 = vector.load %arg2[%c0_33, %c2_34, %c1_35, %c0_36] : memref<1x18x18x64xbf16, #tpu.memory_space<vmem>>, vector<1x16x16x64xbf16>
    %29 = vector.shape_cast %28 : vector<1x16x16x64xbf16> to vector<16x16x64xbf16>
    %30 = vector.shape_cast %29 : vector<16x16x64xbf16> to vector<256x64xbf16>
    %c0_37 = arith.constant 0 : index
    %c448 = arith.constant 448 : index
    %31 = vector.load %arg12[%c0_37, %c448] : memref<256x576xbf16, #tpu.memory_space<vmem>>, vector<256x64xbf16>
    tpu.vector_store %arg12[%c0_37, %c448], %30 {strides = array<i32>} : memref<256x576xbf16, #tpu.memory_space<vmem>>, vector<256x64xbf16>,
    %c0_38 = arith.constant 0 : index
    %c2_39 = arith.constant 2 : index
    %c2_40 = arith.constant 2 : index
    %c0_41 = arith.constant 0 : index
    %32 = vector.load %arg2[%c0_38, %c2_39, %c2_40, %c0_41] : memref<1x18x18x64xbf16, #tpu.memory_space<vmem>>, vector<1x16x16x64xbf16>
    %33 = vector.shape_cast %32 : vector<1x16x16x64xbf16> to vector<16x16x64xbf16>
    %34 = vector.shape_cast %33 : vector<16x16x64xbf16> to vector<256x64xbf16>
    %c0_42 = arith.constant 0 : index
    %c512 = arith.constant 512 : index
    %35 = vector.load %arg12[%c0_42, %c512] : memref<256x576xbf16, #tpu.memory_space<vmem>>, vector<256x64xbf16>
    tpu.vector_store %arg12[%c0_42, %c512], %34 {strides = array<i32>} : memref<256x576xbf16, #tpu.memory_space<vmem>>, vector<256x64xbf16>,
    %c0_43 = arith.constant 0 : index
    %c0_44 = arith.constant 0 : index
    %36 = vector.load %arg12[%c0_43, %c0_44] : memref<256x576xbf16, #tpu.memory_space<vmem>>, vector<256x576xbf16>
    %c0_45 = arith.constant 0 : index
    %c0_46 = arith.constant 0 : index
    %37 = vector.load %arg4[%c0_45, %c0_46] : memref<576x128xbf16, #tpu.memory_space<vmem>>, vector<576x128xbf16>
    %cst = arith.constant dense<0.000000e+00> : vector<256x128xf32>
    %38 = tpu.matmul %36, %37, %cst {dimension_numbers = #tpu.dot_dimension_numbers<[1], [0], [0], [1], [0, 0, 1, 1], [], []>} : vector<256x576xbf16>, vector<576x128xbf16>, vector<256x128xf32> -> vector<256x128xf32>
    %c0_47 = arith.constant 0 : index
    %c0_48 = arith.constant 0 : index
    %39 = vector.load %arg5[%c0_47, %c0_48] : memref<1x128xf32, #tpu.memory_space<vmem>>, vector<1x128xf32>
    %40 = vector.broadcast %39 : vector<1x128xf32> to vector<256x128xf32>
    %41 = arith.mulf %38, %40 : vector<256x128xf32>
    %c0_49 = arith.constant 0 : index
    %c0_50 = arith.constant 0 : index
    %42 = vector.load %arg6[%c0_49, %c0_50] : memref<1x128xf32, #tpu.memory_space<vmem>>, vector<1x128xf32>
    %43 = vector.broadcast %42 : vector<1x128xf32> to vector<256x128xf32>
    %44 = arith.addf %41, %43 : vector<256x128xf32>
    %cst_51 = arith.constant 0.000000e+00 : f32
    %45 = vector.broadcast %cst_51 : f32 to vector<256x128xf32>
    %46 = arith.maximumf %44, %45 : vector<256x128xf32>
    %47 = vector.shape_cast %46 : vector<256x128xf32> to vector<8x2x16x128xf32>
    %cst_52 = arith.constant 0.000000e+00 : f32
    %48 = vector.broadcast %cst_52 : f32 to vector<18x128xf32>
    %c0_53 = arith.constant 0 : index
    %c0_54 = arith.constant 0 : index
    %c0_55 = arith.constant 0 : index
    %c0_56 = arith.constant 0 : index
    %49 = vector.load %arg11[%c0_53, %c0_54, %c0_55, %c0_56] : memref<9x2x18x128xf32, #tpu.memory_space<vmem>>, vector<1x1x18x128xf32>
    %50 = vector.shape_cast %49 : vector<1x1x18x128xf32> to vector<18x128xf32>
    %51 = vector.shape_cast %48 : vector<18x128xf32> to vector<1x1x18x128xf32>
    tpu.vector_store %arg11[%c0_53, %c0_54, %c0_55, %c0_56], %51 {strides = array<i32>} : memref<9x2x18x128xf32, #tpu.memory_space<vmem>>, vector<1x1x18x128xf32>,
    %c8 = arith.constant 8 : index
    %c1_57 = arith.constant 1 : index
    %c0_58 = arith.constant 0 : index
    %c0_59 = arith.constant 0 : index
    %52 = vector.load %arg11[%c8, %c1_57, %c0_58, %c0_59] : memref<9x2x18x128xf32, #tpu.memory_space<vmem>>, vector<1x1x18x128xf32>
    %53 = vector.shape_cast %52 : vector<1x1x18x128xf32> to vector<18x128xf32>
    %54 = vector.shape_cast %48 : vector<18x128xf32> to vector<1x1x18x128xf32>
    tpu.vector_store %arg11[%c8, %c1_57, %c0_58, %c0_59], %54 {strides = array<i32>} : memref<9x2x18x128xf32, #tpu.memory_space<vmem>>, vector<1x1x18x128xf32>,
    %cst_60 = arith.constant 0.000000e+00 : f32
    %55 = vector.broadcast %cst_60 : f32 to vector<9x2x1x128xf32>
    %c0_61 = arith.constant 0 : index
    %c0_62 = arith.constant 0 : index
    %c0_63 = arith.constant 0 : index
    %c0_64 = arith.constant 0 : index
    %56 = vector.load %arg11[%c0_61, %c0_62, %c0_63, %c0_64] : memref<9x2x18x128xf32, #tpu.memory_space<vmem>>, vector<9x2x1x128xf32>
    tpu.vector_store %arg11[%c0_61, %c0_62, %c0_63, %c0_64], %55 {strides = array<i32>} : memref<9x2x18x128xf32, #tpu.memory_space<vmem>>, vector<9x2x1x128xf32>,
    %c0_65 = arith.constant 0 : index
    %c0_66 = arith.constant 0 : index
    %c17 = arith.constant 17 : index
    %c0_67 = arith.constant 0 : index
    %57 = vector.load %arg11[%c0_65, %c0_66, %c17, %c0_67] : memref<9x2x18x128xf32, #tpu.memory_space<vmem>>, vector<9x2x1x128xf32>
    tpu.vector_store %arg11[%c0_65, %c0_66, %c17, %c0_67], %55 {strides = array<i32>} : memref<9x2x18x128xf32, #tpu.memory_space<vmem>>, vector<9x2x1x128xf32>,
    %c0_68 = arith.constant 0 : index
    %c0_69 = arith.constant 0 : index
    %58 = vector.load %arg3[%c0_68, %c0_69] : memref<16x128xf32, #tpu.memory_space<vmem>>, vector<16x128xf32>
    %59 = vector.extract_strided_slice %58 {offsets = [0, 0], sizes = [1, 128], strides = [1, 1]} : vector<16x128xf32> to vector<1x128xf32>
    %60 = vector.shape_cast %59 : vector<1x128xf32> to vector<1x1x128xf32>
    %c0_70 = arith.constant 0 : index
    %c0_71 = arith.constant 0 : index
    %c0_72 = arith.constant 0 : index
    %c0_73 = arith.constant 0 : index
    %61 = vector.load %arg1[%c0_70, %c0_71, %c0_72, %c0_73] : memref<1x10x19x128xbf16, #tpu.memory_space<vmem>>, vector<1x8x16x128xbf16>
    %62 = vector.shape_cast %61 : vector<1x8x16x128xbf16> to vector<8x16x128xbf16>
    %63 = arith.extf %62 : vector<8x16x128xbf16> to vector<8x16x128xf32>
    %64 = vector.broadcast %60 : vector<1x1x128xf32> to vector<8x16x128xf32>
    %65 = arith.mulf %63, %64 : vector<8x16x128xf32>
    %66 = vector.extract_strided_slice %58 {offsets = [1, 0], sizes = [1, 128], strides = [1, 1]} : vector<16x128xf32> to vector<1x128xf32>
    %67 = vector.shape_cast %66 : vector<1x128xf32> to vector<1x1x128xf32>
    %c0_74 = arith.constant 0 : index
    %c0_75 = arith.constant 0 : index
    %c1_76 = arith.constant 1 : index
    %c0_77 = arith.constant 0 : index
    %68 = vector.load %arg1[%c0_74, %c0_75, %c1_76, %c0_77] : memref<1x10x19x128xbf16, #tpu.memory_space<vmem>>, vector<1x8x16x128xbf16>
    %69 = vector.shape_cast %68 : vector<1x8x16x128xbf16> to vector<8x16x128xbf16>
    %70 = arith.extf %69 : vector<8x16x128xbf16> to vector<8x16x128xf32>
    %71 = vector.broadcast %67 : vector<1x1x128xf32> to vector<8x16x128xf32>
    %72 = arith.mulf %70, %71 : vector<8x16x128xf32>
    %73 = arith.addf %65, %72 : vector<8x16x128xf32>
    %74 = vector.extract_strided_slice %58 {offsets = [2, 0], sizes = [1, 128], strides = [1, 1]} : vector<16x128xf32> to vector<1x128xf32>
    %75 = vector.shape_cast %74 : vector<1x128xf32> to vector<1x1x128xf32>
    %c0_78 = arith.constant 0 : index
    %c0_79 = arith.constant 0 : index
    %c2_80 = arith.constant 2 : index
    %c0_81 = arith.constant 0 : index
    %76 = vector.load %arg1[%c0_78, %c0_79, %c2_80, %c0_81] : memref<1x10x19x128xbf16, #tpu.memory_space<vmem>>, vector<1x8x16x128xbf16>
    %77 = vector.shape_cast %76 : vector<1x8x16x128xbf16> to vector<8x16x128xbf16>
    %78 = arith.extf %77 : vector<8x16x128xbf16> to vector<8x16x128xf32>
    %79 = vector.broadcast %75 : vector<1x1x128xf32> to vector<8x16x128xf32>
    %80 = arith.mulf %78, %79 : vector<8x16x128xf32>
    %81 = arith.addf %73, %80 : vector<8x16x128xf32>
    %82 = vector.extract_strided_slice %58 {offsets = [3, 0], sizes = [1, 128], strides = [1, 1]} : vector<16x128xf32> to vector<1x128xf32>
    %83 = vector.shape_cast %82 : vector<1x128xf32> to vector<1x1x128xf32>
    %c0_82 = arith.constant 0 : index
    %c0_83 = arith.constant 0 : index
    %c3 = arith.constant 3 : index
    %c0_84 = arith.constant 0 : index
    %84 = vector.load %arg1[%c0_82, %c0_83, %c3, %c0_84] : memref<1x10x19x128xbf16, #tpu.memory_space<vmem>>, vector<1x8x16x128xbf16>
    %85 = vector.shape_cast %84 : vector<1x8x16x128xbf16> to vector<8x16x128xbf16>
    %86 = arith.extf %85 : vector<8x16x128xbf16> to vector<8x16x128xf32>
    %87 = vector.broadcast %83 : vector<1x1x128xf32> to vector<8x16x128xf32>
    %88 = arith.mulf %86, %87 : vector<8x16x128xf32>
    %89 = arith.addf %81, %88 : vector<8x16x128xf32>
    %90 = vector.extract_strided_slice %58 {offsets = [8, 0], sizes = [1, 128], strides = [1, 1]} : vector<16x128xf32> to vector<1x128xf32>
    %91 = vector.shape_cast %90 : vector<1x128xf32> to vector<1x1x128xf32>
    %c0_85 = arith.constant 0 : index
    %c1_86 = arith.constant 1 : index
    %c0_87 = arith.constant 0 : index
    %c0_88 = arith.constant 0 : index
    %92 = vector.load %arg1[%c0_85, %c1_86, %c0_87, %c0_88] : memref<1x10x19x128xbf16, #tpu.memory_space<vmem>>, vector<1x8x16x128xbf16>
    %93 = vector.shape_cast %92 : vector<1x8x16x128xbf16> to vector<8x16x128xbf16>
    %94 = arith.extf %93 : vector<8x16x128xbf16> to vector<8x16x128xf32>
    %95 = vector.broadcast %91 : vector<1x1x128xf32> to vector<8x16x128xf32>
    %96 = arith.mulf %94, %95 : vector<8x16x128xf32>
    %97 = arith.addf %89, %96 : vector<8x16x128xf32>
    %98 = vector.extract_strided_slice %58 {offsets = [9, 0], sizes = [1, 128], strides = [1, 1]} : vector<16x128xf32> to vector<1x128xf32>
    %99 = vector.shape_cast %98 : vector<1x128xf32> to vector<1x1x128xf32>
    %c0_89 = arith.constant 0 : index
    %c1_90 = arith.constant 1 : index
    %c1_91 = arith.constant 1 : index
    %c0_92 = arith.constant 0 : index
    %100 = vector.load %arg1[%c0_89, %c1_90, %c1_91, %c0_92] : memref<1x10x19x128xbf16, #tpu.memory_space<vmem>>, vector<1x8x16x128xbf16>
    %101 = vector.shape_cast %100 : vector<1x8x16x128xbf16> to vector<8x16x128xbf16>
    %102 = arith.extf %101 : vector<8x16x128xbf16> to vector<8x16x128xf32>
    %103 = vector.broadcast %99 : vector<1x1x128xf32> to vector<8x16x128xf32>
    %104 = arith.mulf %102, %103 : vector<8x16x128xf32>
    %105 = arith.addf %97, %104 : vector<8x16x128xf32>
    %106 = vector.extract_strided_slice %58 {offsets = [10, 0], sizes = [1, 128], strides = [1, 1]} : vector<16x128xf32> to vector<1x128xf32>
    %107 = vector.shape_cast %106 : vector<1x128xf32> to vector<1x1x128xf32>
    %c0_93 = arith.constant 0 : index
    %c1_94 = arith.constant 1 : index
    %c2_95 = arith.constant 2 : index
    %c0_96 = arith.constant 0 : index
    %108 = vector.load %arg1[%c0_93, %c1_94, %c2_95, %c0_96] : memref<1x10x19x128xbf16, #tpu.memory_space<vmem>>, vector<1x8x16x128xbf16>
    %109 = vector.shape_cast %108 : vector<1x8x16x128xbf16> to vector<8x16x128xbf16>
    %110 = arith.extf %109 : vector<8x16x128xbf16> to vector<8x16x128xf32>
    %111 = vector.broadcast %107 : vector<1x1x128xf32> to vector<8x16x128xf32>
    %112 = arith.mulf %110, %111 : vector<8x16x128xf32>
    %113 = arith.addf %105, %112 : vector<8x16x128xf32>
    %114 = vector.extract_strided_slice %58 {offsets = [11, 0], sizes = [1, 128], strides = [1, 1]} : vector<16x128xf32> to vector<1x128xf32>
    %115 = vector.shape_cast %114 : vector<1x128xf32> to vector<1x1x128xf32>
    %c0_97 = arith.constant 0 : index
    %c1_98 = arith.constant 1 : index
    %c3_99 = arith.constant 3 : index
    %c0_100 = arith.constant 0 : index
    %116 = vector.load %arg1[%c0_97, %c1_98, %c3_99, %c0_100] : memref<1x10x19x128xbf16, #tpu.memory_space<vmem>>, vector<1x8x16x128xbf16>
    %117 = vector.shape_cast %116 : vector<1x8x16x128xbf16> to vector<8x16x128xbf16>
    %118 = arith.extf %117 : vector<8x16x128xbf16> to vector<8x16x128xf32>
    %119 = vector.broadcast %115 : vector<1x1x128xf32> to vector<8x16x128xf32>
    %120 = arith.mulf %118, %119 : vector<8x16x128xf32>
    %121 = arith.addf %113, %120 : vector<8x16x128xf32>
    %122 = vector.extract_strided_slice %47 {offsets = [0, 0, 0, 0], sizes = [8, 1, 16, 128], strides = [1, 1, 1, 1]} : vector<8x2x16x128xf32> to vector<8x1x16x128xf32>
    %123 = vector.shape_cast %122 : vector<8x1x16x128xf32> to vector<8x16x128xf32>
    %124 = arith.addf %121, %123 : vector<8x16x128xf32>
    %c0_101 = arith.constant 0 : index
    %c1_102 = arith.constant 1 : index
    %c1_103 = arith.constant 1 : index
    %c0_104 = arith.constant 0 : index
    %125 = vector.load %arg11[%c0_101, %c1_102, %c1_103, %c0_104] : memref<9x2x18x128xf32, #tpu.memory_space<vmem>>, vector<8x1x16x128xf32>
    %126 = vector.shape_cast %125 : vector<8x1x16x128xf32> to vector<8x16x128xf32>
    %127 = vector.shape_cast %124 : vector<8x16x128xf32> to vector<8x1x16x128xf32>
    tpu.vector_store %arg11[%c0_101, %c1_102, %c1_103, %c0_104], %127 {strides = array<i32>} : memref<9x2x18x128xf32, #tpu.memory_space<vmem>>, vector<8x1x16x128xf32>,
    %128 = vector.extract_strided_slice %58 {offsets = [4, 0], sizes = [1, 128], strides = [1, 1]} : vector<16x128xf32> to vector<1x128xf32>
    %129 = vector.shape_cast %128 : vector<1x128xf32> to vector<1x1x128xf32>
    %c0_105 = arith.constant 0 : index
    %c1_106 = arith.constant 1 : index
    %c0_107 = arith.constant 0 : index
    %c0_108 = arith.constant 0 : index
    %130 = vector.load %arg1[%c0_105, %c1_106, %c0_107, %c0_108] : memref<1x10x19x128xbf16, #tpu.memory_space<vmem>>, vector<1x8x16x128xbf16>
    %131 = vector.shape_cast %130 : vector<1x8x16x128xbf16> to vector<8x16x128xbf16>
    %132 = arith.extf %131 : vector<8x16x128xbf16> to vector<8x16x128xf32>
    %133 = vector.broadcast %129 : vector<1x1x128xf32> to vector<8x16x128xf32>
    %134 = arith.mulf %132, %133 : vector<8x16x128xf32>
    %135 = vector.extract_strided_slice %58 {offsets = [5, 0], sizes = [1, 128], strides = [1, 1]} : vector<16x128xf32> to vector<1x128xf32>
    %136 = vector.shape_cast %135 : vector<1x128xf32> to vector<1x1x128xf32>
    %c0_109 = arith.constant 0 : index
    %c1_110 = arith.constant 1 : index
    %c1_111 = arith.constant 1 : index
    %c0_112 = arith.constant 0 : index
    %137 = vector.load %arg1[%c0_109, %c1_110, %c1_111, %c0_112] : memref<1x10x19x128xbf16, #tpu.memory_space<vmem>>, vector<1x8x16x128xbf16>
    %138 = vector.shape_cast %137 : vector<1x8x16x128xbf16> to vector<8x16x128xbf16>
    %139 = arith.extf %138 : vector<8x16x128xbf16> to vector<8x16x128xf32>
    %140 = vector.broadcast %136 : vector<1x1x128xf32> to vector<8x16x128xf32>
    %141 = arith.mulf %139, %140 : vector<8x16x128xf32>
    %142 = arith.addf %134, %141 : vector<8x16x128xf32>
    %143 = vector.extract_strided_slice %58 {offsets = [6, 0], sizes = [1, 128], strides = [1, 1]} : vector<16x128xf32> to vector<1x128xf32>
    %144 = vector.shape_cast %143 : vector<1x128xf32> to vector<1x1x128xf32>
    %c0_113 = arith.constant 0 : index
    %c1_114 = arith.constant 1 : index
    %c2_115 = arith.constant 2 : index
    %c0_116 = arith.constant 0 : index
    %145 = vector.load %arg1[%c0_113, %c1_114, %c2_115, %c0_116] : memref<1x10x19x128xbf16, #tpu.memory_space<vmem>>, vector<1x8x16x128xbf16>
    %146 = vector.shape_cast %145 : vector<1x8x16x128xbf16> to vector<8x16x128xbf16>
    %147 = arith.extf %146 : vector<8x16x128xbf16> to vector<8x16x128xf32>
    %148 = vector.broadcast %144 : vector<1x1x128xf32> to vector<8x16x128xf32>
    %149 = arith.mulf %147, %148 : vector<8x16x128xf32>
    %150 = arith.addf %142, %149 : vector<8x16x128xf32>
    %151 = vector.extract_strided_slice %58 {offsets = [7, 0], sizes = [1, 128], strides = [1, 1]} : vector<16x128xf32> to vector<1x128xf32>
    %152 = vector.shape_cast %151 : vector<1x128xf32> to vector<1x1x128xf32>
    %c0_117 = arith.constant 0 : index
    %c1_118 = arith.constant 1 : index
    %c3_119 = arith.constant 3 : index
    %c0_120 = arith.constant 0 : index
    %153 = vector.load %arg1[%c0_117, %c1_118, %c3_119, %c0_120] : memref<1x10x19x128xbf16, #tpu.memory_space<vmem>>, vector<1x8x16x128xbf16>
    %154 = vector.shape_cast %153 : vector<1x8x16x128xbf16> to vector<8x16x128xbf16>
    %155 = arith.extf %154 : vector<8x16x128xbf16> to vector<8x16x128xf32>
    %156 = vector.broadcast %152 : vector<1x1x128xf32> to vector<8x16x128xf32>
    %157 = arith.mulf %155, %156 : vector<8x16x128xf32>
    %158 = arith.addf %150, %157 : vector<8x16x128xf32>
    %159 = vector.extract_strided_slice %58 {offsets = [12, 0], sizes = [1, 128], strides = [1, 1]} : vector<16x128xf32> to vector<1x128xf32>
    %160 = vector.shape_cast %159 : vector<1x128xf32> to vector<1x1x128xf32>
    %c0_121 = arith.constant 0 : index
    %c2_122 = arith.constant 2 : index
    %c0_123 = arith.constant 0 : index
    %c0_124 = arith.constant 0 : index
    %161 = vector.load %arg1[%c0_121, %c2_122, %c0_123, %c0_124] : memref<1x10x19x128xbf16, #tpu.memory_space<vmem>>, vector<1x8x16x128xbf16>
    %162 = vector.shape_cast %161 : vector<1x8x16x128xbf16> to vector<8x16x128xbf16>
    %163 = arith.extf %162 : vector<8x16x128xbf16> to vector<8x16x128xf32>
    %164 = vector.broadcast %160 : vector<1x1x128xf32> to vector<8x16x128xf32>
    %165 = arith.mulf %163, %164 : vector<8x16x128xf32>
    %166 = arith.addf %158, %165 : vector<8x16x128xf32>
    %167 = vector.extract_strided_slice %58 {offsets = [13, 0], sizes = [1, 128], strides = [1, 1]} : vector<16x128xf32> to vector<1x128xf32>
    %168 = vector.shape_cast %167 : vector<1x128xf32> to vector<1x1x128xf32>
    %c0_125 = arith.constant 0 : index
    %c2_126 = arith.constant 2 : index
    %c1_127 = arith.constant 1 : index
    %c0_128 = arith.constant 0 : index
    %169 = vector.load %arg1[%c0_125, %c2_126, %c1_127, %c0_128] : memref<1x10x19x128xbf16, #tpu.memory_space<vmem>>, vector<1x8x16x128xbf16>
    %170 = vector.shape_cast %169 : vector<1x8x16x128xbf16> to vector<8x16x128xbf16>
    %171 = arith.extf %170 : vector<8x16x128xbf16> to vector<8x16x128xf32>
    %172 = vector.broadcast %168 : vector<1x1x128xf32> to vector<8x16x128xf32>
    %173 = arith.mulf %171, %172 : vector<8x16x128xf32>
    %174 = arith.addf %166, %173 : vector<8x16x128xf32>
    %175 = vector.extract_strided_slice %58 {offsets = [14, 0], sizes = [1, 128], strides = [1, 1]} : vector<16x128xf32> to vector<1x128xf32>
    %176 = vector.shape_cast %175 : vector<1x128xf32> to vector<1x1x128xf32>
    %c0_129 = arith.constant 0 : index
    %c2_130 = arith.constant 2 : index
    %c2_131 = arith.constant 2 : index
    %c0_132 = arith.constant 0 : index
    %177 = vector.load %arg1[%c0_129, %c2_130, %c2_131, %c0_132] : memref<1x10x19x128xbf16, #tpu.memory_space<vmem>>, vector<1x8x16x128xbf16>
    %178 = vector.shape_cast %177 : vector<1x8x16x128xbf16> to vector<8x16x128xbf16>
    %179 = arith.extf %178 : vector<8x16x128xbf16> to vector<8x16x128xf32>
    %180 = vector.broadcast %176 : vector<1x1x128xf32> to vector<8x16x128xf32>
    %181 = arith.mulf %179, %180 : vector<8x16x128xf32>
    %182 = arith.addf %174, %181 : vector<8x16x128xf32>
    %183 = vector.extract_strided_slice %58 {offsets = [15, 0], sizes = [1, 128], strides = [1, 1]} : vector<16x128xf32> to vector<1x128xf32>
    %184 = vector.shape_cast %183 : vector<1x128xf32> to vector<1x1x128xf32>
    %c0_133 = arith.constant 0 : index
    %c2_134 = arith.constant 2 : index
    %c3_135 = arith.constant 3 : index
    %c0_136 = arith.constant 0 : index
    %185 = vector.load %arg1[%c0_133, %c2_134, %c3_135, %c0_136] : memref<1x10x19x128xbf16, #tpu.memory_space<vmem>>, vector<1x8x16x128xbf16>
    %186 = vector.shape_cast %185 : vector<1x8x16x128xbf16> to vector<8x16x128xbf16>
    %187 = arith.extf %186 : vector<8x16x128xbf16> to vector<8x16x128xf32>
    %188 = vector.broadcast %184 : vector<1x1x128xf32> to vector<8x16x128xf32>
    %189 = arith.mulf %187, %188 : vector<8x16x128xf32>
    %190 = arith.addf %182, %189 : vector<8x16x128xf32>
    %191 = vector.extract_strided_slice %47 {offsets = [0, 1, 0, 0], sizes = [8, 1, 16, 128], strides = [1, 1, 1, 1]} : vector<8x2x16x128xf32> to vector<8x1x16x128xf32>
    %192 = vector.shape_cast %191 : vector<8x1x16x128xf32> to vector<8x16x128xf32>
    %193 = arith.addf %190, %192 : vector<8x16x128xf32>
    %c1_137 = arith.constant 1 : index
    %c0_138 = arith.constant 0 : index
    %c1_139 = arith.constant 1 : index
    %c0_140 = arith.constant 0 : index
    %194 = vector.load %arg11[%c1_137, %c0_138, %c1_139, %c0_140] : memref<9x2x18x128xf32, #tpu.memory_space<vmem>>, vector<8x1x16x128xf32>
    %195 = vector.shape_cast %194 : vector<8x1x16x128xf32> to vector<8x16x128xf32>
    %196 = vector.shape_cast %193 : vector<8x16x128xf32> to vector<8x1x16x128xf32>
    tpu.vector_store %arg11[%c1_137, %c0_138, %c1_139, %c0_140], %196 {strides = array<i32>} : memref<9x2x18x128xf32, #tpu.memory_space<vmem>>, vector<8x1x16x128xf32>,
    %c0_141 = arith.constant 0 : index
    %c0_142 = arith.constant 0 : index
    %c0_143 = arith.constant 0 : index
    %c0_144 = arith.constant 0 : index
    %197 = vector.load %arg11[%c0_141, %c0_142, %c0_143, %c0_144] : memref<9x2x18x128xf32, #tpu.memory_space<vmem>>, vector<9x2x18x128xf32>
    %198 = vector.shape_cast %197 : vector<9x2x18x128xf32> to vector<18x18x128xf32>
    %199 = arith.truncf %198 : vector<18x18x128xf32> to vector<18x18x128xbf16>
    %200 = vector.extract_strided_slice %199 {offsets = [0, 0, 0], sizes = [16, 16, 128], strides = [1, 1, 1]} : vector<18x18x128xbf16> to vector<16x16x128xbf16>
    %201 = vector.shape_cast %200 : vector<16x16x128xbf16> to vector<256x128xbf16>
    %c0_145 = arith.constant 0 : index
    %c0_146 = arith.constant 0 : index
    %202 = vector.load %arg13[%c0_145, %c0_146] : memref<256x1152xbf16, #tpu.memory_space<vmem>>, vector<256x128xbf16>
    tpu.vector_store %arg13[%c0_145, %c0_146], %201 {strides = array<i32>} : memref<256x1152xbf16, #tpu.memory_space<vmem>>, vector<256x128xbf16>,
    %203 = vector.extract_strided_slice %199 {offsets = [0, 1, 0], sizes = [16, 16, 128], strides = [1, 1, 1]} : vector<18x18x128xbf16> to vector<16x16x128xbf16>
    %204 = vector.shape_cast %203 : vector<16x16x128xbf16> to vector<256x128xbf16>
    %c0_147 = arith.constant 0 : index
    %c128_148 = arith.constant 128 : index
    %205 = vector.load %arg13[%c0_147, %c128_148] : memref<256x1152xbf16, #tpu.memory_space<vmem>>, vector<256x128xbf16>
    tpu.vector_store %arg13[%c0_147, %c128_148], %204 {strides = array<i32>} : memref<256x1152xbf16, #tpu.memory_space<vmem>>, vector<256x128xbf16>,
    %206 = vector.extract_strided_slice %199 {offsets = [0, 2, 0], sizes = [16, 16, 128], strides = [1, 1, 1]} : vector<18x18x128xbf16> to vector<16x16x128xbf16>
    %207 = vector.shape_cast %206 : vector<16x16x128xbf16> to vector<256x128xbf16>
    %c0_149 = arith.constant 0 : index
    %c256_150 = arith.constant 256 : index
    %208 = vector.load %arg13[%c0_149, %c256_150] : memref<256x1152xbf16, #tpu.memory_space<vmem>>, vector<256x128xbf16>
    tpu.vector_store %arg13[%c0_149, %c256_150], %207 {strides = array<i32>} : memref<256x1152xbf16, #tpu.memory_space<vmem>>, vector<256x128xbf16>,
    %209 = vector.extract_strided_slice %199 {offsets = [1, 0, 0], sizes = [16, 16, 128], strides = [1, 1, 1]} : vector<18x18x128xbf16> to vector<16x16x128xbf16>
    %210 = vector.shape_cast %209 : vector<16x16x128xbf16> to vector<256x128xbf16>
    %c0_151 = arith.constant 0 : index
    %c384_152 = arith.constant 384 : index
    %211 = vector.load %arg13[%c0_151, %c384_152] : memref<256x1152xbf16, #tpu.memory_space<vmem>>, vector<256x128xbf16>
    tpu.vector_store %arg13[%c0_151, %c384_152], %210 {strides = array<i32>} : memref<256x1152xbf16, #tpu.memory_space<vmem>>, vector<256x128xbf16>,
    %212 = vector.extract_strided_slice %199 {offsets = [1, 1, 0], sizes = [16, 16, 128], strides = [1, 1, 1]} : vector<18x18x128xbf16> to vector<16x16x128xbf16>
    %213 = vector.shape_cast %212 : vector<16x16x128xbf16> to vector<256x128xbf16>
    %c0_153 = arith.constant 0 : index
    %c512_154 = arith.constant 512 : index
    %214 = vector.load %arg13[%c0_153, %c512_154] : memref<256x1152xbf16, #tpu.memory_space<vmem>>, vector<256x128xbf16>
    tpu.vector_store %arg13[%c0_153, %c512_154], %213 {strides = array<i32>} : memref<256x1152xbf16, #tpu.memory_space<vmem>>, vector<256x128xbf16>,
    %215 = vector.extract_strided_slice %199 {offsets = [1, 2, 0], sizes = [16, 16, 128], strides = [1, 1, 1]} : vector<18x18x128xbf16> to vector<16x16x128xbf16>
    %216 = vector.shape_cast %215 : vector<16x16x128xbf16> to vector<256x128xbf16>
    %c0_155 = arith.constant 0 : index
    %c640 = arith.constant 640 : index
    %217 = vector.load %arg13[%c0_155, %c640] : memref<256x1152xbf16, #tpu.memory_space<vmem>>, vector<256x128xbf16>
    tpu.vector_store %arg13[%c0_155, %c640], %216 {strides = array<i32>} : memref<256x1152xbf16, #tpu.memory_space<vmem>>, vector<256x128xbf16>,
    %218 = vector.extract_strided_slice %199 {offsets = [2, 0, 0], sizes = [16, 16, 128], strides = [1, 1, 1]} : vector<18x18x128xbf16> to vector<16x16x128xbf16>
    %219 = vector.shape_cast %218 : vector<16x16x128xbf16> to vector<256x128xbf16>
    %c0_156 = arith.constant 0 : index
    %c768 = arith.constant 768 : index
    %220 = vector.load %arg13[%c0_156, %c768] : memref<256x1152xbf16, #tpu.memory_space<vmem>>, vector<256x128xbf16>
    tpu.vector_store %arg13[%c0_156, %c768], %219 {strides = array<i32>} : memref<256x1152xbf16, #tpu.memory_space<vmem>>, vector<256x128xbf16>,
    %221 = vector.extract_strided_slice %199 {offsets = [2, 1, 0], sizes = [16, 16, 128], strides = [1, 1, 1]} : vector<18x18x128xbf16> to vector<16x16x128xbf16>
    %222 = vector.shape_cast %221 : vector<16x16x128xbf16> to vector<256x128xbf16>
    %c0_157 = arith.constant 0 : index
    %c896 = arith.constant 896 : index
    %223 = vector.load %arg13[%c0_157, %c896] : memref<256x1152xbf16, #tpu.memory_space<vmem>>, vector<256x128xbf16>
    tpu.vector_store %arg13[%c0_157, %c896], %222 {strides = array<i32>} : memref<256x1152xbf16, #tpu.memory_space<vmem>>, vector<256x128xbf16>,
    %224 = vector.extract_strided_slice %199 {offsets = [2, 2, 0], sizes = [16, 16, 128], strides = [1, 1, 1]} : vector<18x18x128xbf16> to vector<16x16x128xbf16>
    %225 = vector.shape_cast %224 : vector<16x16x128xbf16> to vector<256x128xbf16>
    %c0_158 = arith.constant 0 : index
    %c1024 = arith.constant 1024 : index
    %226 = vector.load %arg13[%c0_158, %c1024] : memref<256x1152xbf16, #tpu.memory_space<vmem>>, vector<256x128xbf16>
    tpu.vector_store %arg13[%c0_158, %c1024], %225 {strides = array<i32>} : memref<256x1152xbf16, #tpu.memory_space<vmem>>, vector<256x128xbf16>,
    %c0_159 = arith.constant 0 : index
    %c0_160 = arith.constant 0 : index
    %227 = vector.load %arg13[%c0_159, %c0_160] : memref<256x1152xbf16, #tpu.memory_space<vmem>>, vector<256x1152xbf16>
    %c0_161 = arith.constant 0 : index
    %c0_162 = arith.constant 0 : index
    %228 = vector.load %arg7[%c0_161, %c0_162] : memref<1152x128xbf16, #tpu.memory_space<vmem>>, vector<1152x128xbf16>
    %cst_163 = arith.constant dense<0.000000e+00> : vector<256x128xf32>
    %229 = tpu.matmul %227, %228, %cst_163 {dimension_numbers = #tpu.dot_dimension_numbers<[1], [0], [0], [1], [0, 0, 1, 1], [], []>} : vector<256x1152xbf16>, vector<1152x128xbf16>, vector<256x128xf32> -> vector<256x128xf32>
    %c0_164 = arith.constant 0 : index
    %c0_165 = arith.constant 0 : index
    %230 = vector.load %arg8[%c0_164, %c0_165] : memref<1x128xf32, #tpu.memory_space<vmem>>, vector<1x128xf32>
    %231 = vector.broadcast %230 : vector<1x128xf32> to vector<256x128xf32>
    %232 = arith.mulf %229, %231 : vector<256x128xf32>
    %c0_166 = arith.constant 0 : index
    %c0_167 = arith.constant 0 : index
    %233 = vector.load %arg9[%c0_166, %c0_167] : memref<1x128xf32, #tpu.memory_space<vmem>>, vector<1x128xf32>
    %234 = vector.broadcast %233 : vector<1x128xf32> to vector<256x128xf32>
    %235 = arith.addf %232, %234 : vector<256x128xf32>
    %cst_168 = arith.constant 0.000000e+00 : f32
    %236 = vector.broadcast %cst_168 : f32 to vector<256x128xf32>
    %237 = arith.maximumf %235, %236 : vector<256x128xf32>
    %238 = vector.shape_cast %237 : vector<256x128xf32> to vector<16x16x128xf32>
    %239 = arith.truncf %238 : vector<16x16x128xf32> to vector<16x16x128xbf16>
    %c0_169 = arith.constant 0 : index
    %c0_170 = arith.constant 0 : index
    %c0_171 = arith.constant 0 : index
    %c0_172 = arith.constant 0 : index
    %240 = vector.load %arg10[%c0_169, %c0_170, %c0_171, %c0_172] : memref<1x16x16x128xbf16, #tpu.memory_space<vmem>>, vector<1x16x16x128xbf16>
    %241 = vector.shape_cast %240 : vector<1x16x16x128xbf16> to vector<16x16x128xbf16>
    %242 = vector.shape_cast %239 : vector<16x16x128xbf16> to vector<1x16x16x128xbf16>
    tpu.vector_store %arg10[%c0_169, %c0_170, %c0_171, %c0_172], %242 {strides = array<i32>} : memref<1x16x16x128xbf16, #tpu.memory_space<vmem>>, vector<1x16x16x128xbf16>,
    return
  }
  func.func @transform_0(%arg0: i32) -> (i32, i32, i32, i32) {
    %c0_i32 = arith.constant 0 : i32
    %c0_i32_0 = arith.constant 0 : i32
    %c0_i32_1 = arith.constant 0 : i32
    %c0_i32_2 = arith.constant 0 : i32
    return %arg0, %c0_i32, %c0_i32_0, %c0_i32_1 : i32, i32, i32, i32
  }
  func.func @transform_1(%arg0: i32) -> (i32, i32, i32, i32) {
    %c0_i32 = arith.constant 0 : i32
    %c0_i32_0 = arith.constant 0 : i32
    %c0_i32_1 = arith.constant 0 : i32
    %c0_i32_2 = arith.constant 0 : i32
    return %arg0, %c0_i32, %c0_i32_0, %c0_i32_1 : i32, i32, i32, i32
  }
  func.func @transform_2(%arg0: i32) -> (i32, i32) {
    %c0_i32 = arith.constant 0 : i32
    %c0_i32_0 = arith.constant 0 : i32
    %c0_i32_1 = arith.constant 0 : i32
    return %c0_i32, %c0_i32_0 : i32, i32
  }
  func.func @transform_3(%arg0: i32) -> (i32, i32) {
    %c0_i32 = arith.constant 0 : i32
    %c0_i32_0 = arith.constant 0 : i32
    %c0_i32_1 = arith.constant 0 : i32
    return %c0_i32, %c0_i32_0 : i32, i32
  }
  func.func @transform_4(%arg0: i32) -> (i32, i32) {
    %c0_i32 = arith.constant 0 : i32
    %c0_i32_0 = arith.constant 0 : i32
    %c0_i32_1 = arith.constant 0 : i32
    return %c0_i32, %c0_i32_0 : i32, i32
  }
  func.func @transform_5(%arg0: i32) -> (i32, i32) {
    %c0_i32 = arith.constant 0 : i32
    %c0_i32_0 = arith.constant 0 : i32
    %c0_i32_1 = arith.constant 0 : i32
    return %c0_i32, %c0_i32_0 : i32, i32
  }
  func.func @transform_6(%arg0: i32) -> (i32, i32) {
    %c0_i32 = arith.constant 0 : i32
    %c0_i32_0 = arith.constant 0 : i32
    %c0_i32_1 = arith.constant 0 : i32
    return %c0_i32, %c0_i32_0 : i32, i32
  }
  func.func @transform_7(%arg0: i32) -> (i32, i32) {
    %c0_i32 = arith.constant 0 : i32
    %c0_i32_0 = arith.constant 0 : i32
    %c0_i32_1 = arith.constant 0 : i32
    return %c0_i32, %c0_i32_0 : i32, i32
  }
  func.func @transform_8(%arg0: i32) -> (i32, i32) {
    %c0_i32 = arith.constant 0 : i32
    %c0_i32_0 = arith.constant 0 : i32
    %c0_i32_1 = arith.constant 0 : i32
    return %c0_i32, %c0_i32_0 : i32, i32
  }
  func.func @transform_9(%arg0: i32) -> (i32, i32, i32, i32) {
    %c0_i32 = arith.constant 0 : i32
    %c0_i32_0 = arith.constant 0 : i32
    %c0_i32_1 = arith.constant 0 : i32
    %c0_i32_2 = arith.constant 0 : i32
    return %arg0, %c0_i32, %c0_i32_0, %c0_i32_1 : i32, i32, i32, i32
  }
}

</mosaic_0001>

<llo_original>
// kernel: _lambda_.1
$region0: #{_lambda_.1}
  #allocation0 [shape = 'u32[]', space=smem, size = 0x4, offset = 0x4, fixed_abs, tag = 'smem constant byte address 0x4 - core index']
  #allocation1 [shape = 'u32[72,128]{1,0:T(1,128)}', space=vmem, size = 0x9000, scoped, tag = 'internal scratch']
  #allocation2 [shape = 'f32[9,2,18,128]{3,2,1,0:T(8,128)}', space=vmem, size = 0x36000, scoped, tag = 'scratch operand']
  #allocation3 [shape = 'bf16[256,576]{1,0:T(8,128)(2,1)}', space=vmem, size = 0x50000, scoped, tag = 'scratch operand']
  #allocation4 [shape = 'bf16[256,1152]{1,0:T(8,128)(2,1)}', space=vmem, size = 0x90000, scoped, tag = 'scratch operand']
  %s0 = inlined_call_operand.vmem [shape: bf16[2,10,19,128], index: 0, kind: input, shape index: {}]
  %s1 = inlined_call_operand.vmem [shape: bf16[2,18,18,64], index: 1, kind: input, shape index: {}]
  %s2 = inlined_call_operand.vmem [shape: f32[16,128], index: 2, kind: input, shape index: {}]
  %s3 = inlined_call_operand.vmem [shape: bf16[576,128], index: 3, kind: input, shape index: {}]
  %s4 = inlined_call_operand.vmem [shape: f32[1,128], index: 4, kind: input, shape index: {}, may-alias: {4,7}]
  %s5 = inlined_call_operand.vmem [shape: f32[1,128], index: 5, kind: input, shape index: {}, may-alias: {5,8}]
  %s6 = inlined_call_operand.vmem [shape: bf16[1152,128], index: 6, kind: input, shape index: {}]
  %s7 = inlined_call_operand.vmem [shape: f32[1,128], index: 7, kind: input, shape index: {}, may-alias: {4,7}]
  %s8 = inlined_call_operand.vmem [shape: f32[1,128], index: 8, kind: input, shape index: {}, may-alias: {5,8}]
  %s9 = inlined_call_operand.vmem [shape: bf16[2,16,16,128], index: 9, kind: output, shape index: {}]
  %s10 = sld [smem:[#allocation0]]
  $region69: #{_lambda_.1} parent=0
    _
  %s12 = ssub.s32 1, %s10
  %s13 = scalar_select 0, %s12, %s10
  loop: start=0, step=1, limit=4
  $region2: #{_lambda_.1} parent=0 // loop_pre_header
    _
  $region3: #{_lambda_.1} parent=0 // loop_header
    %s15 = sphi 0, %s19
    %p16 = scmp.ge.s32.totalorder %s15, 4
    %s25 = sphi 0, %s27
    %s28 = sphi 0, %s25
    %s29 = sphi 0, %s28
    %s45 = sphi 0, %s29
    %s51 = sphi 0, %s53
    %s54 = sphi 0, %s51
    %s55 = sphi 0, %s54
    %s71 = sphi 0, %s55
    %s75 = sphi 0, %s75
    %s77 = sphi 0, %s75
    %s78 = sphi 0, %s77
    %s92 = sphi 0, %s78
    %s96 = sphi 0, %s96
    %s98 = sphi 0, %s96
    %s99 = sphi 0, %s98
    %s113 = sphi 0, %s99
    %s117 = sphi 0, %s117
    %s119 = sphi 0, %s117
    %s120 = sphi 0, %s119
    %s134 = sphi 0, %s120
    %s138 = sphi 0, %s138
    %s140 = sphi 0, %s138
    %s141 = sphi 0, %s140
    %s155 = sphi 0, %s141
    %s159 = sphi 0, %s159
    %s161 = sphi 0, %s159
    %s162 = sphi 0, %s161
    %s176 = sphi 0, %s162
    %s180 = sphi 0, %s180
    %s182 = sphi 0, %s180
    %s183 = sphi 0, %s182
    %s197 = sphi 0, %s183
    %s201 = sphi 0, %s201
    %s203 = sphi 0, %s201
    %s204 = sphi 0, %s203
    %s218 = sphi 0, %s204
    %s224 = sphi 0, %s226
    %s227 = sphi 0, %s224
    %s228 = sphi 0, %s227
    %s244 = sphi 0, %s228
  $region4: #{_lambda_.1} parent=0 // loop_header_branch
    %18 = sbr.rel (%p16) target = $region8
  $region5: #{_lambda_.1} parent=0 // loop_body
    %s20 = ssub.s32 %s15, 1
    %s21 = ssub.s32 %s15, 2
    %s22 = sadd.s32 %s15, 1
    %s23 = ssub.s32 %s15, %s22
    %p24 = scmp.eq.s32.totalorder %s23, 0
    %s26 = sadd.s32 %s25, 1
    %s27 = scalar_select %p24, %s25, %s26
    %p30 = pneg %p24
    %p31 = scmp.eq.s32.totalorder %s15, 1
    %p32 = por %p30, %p31
    %p33 = scmp.ne.s32.totalorder %s25, %s28
    %p34 = scmp.eq.s32.totalorder %s15, 0
    %p35 = por %p33, %p34
    %p36 = scmp.ne.s32.totalorder %s25, %s28
    %p37 = scmp.eq.s32.totalorder %s20, 1
    %p38 = por %p36, %p37
    %p39 = scmp.ne.s32.totalorder %s28, %s29
    %p40 = scmp.eq.s32.totalorder %s20, 0
    %p41 = por %p39, %p40
    %p42 = scmp.ne.s32.totalorder %s28, %s29
    %p43 = scmp.eq.s32.totalorder %s21, 1
    %p44 = por %p42, %p43
    %p46 = scmp.ne.s32.totalorder %s29, %s45
    %p47 = scmp.eq.s32.totalorder %s21, 0
    %p48 = por %p46, %p47
    %s49 = ssub.s32 %s15, %s22
    %p50 = scmp.eq.s32.totalorder %s49, 0
    %s52 = sadd.s32 %s51, 1
    %s53 = scalar_select %p50, %s51, %s52
    %p56 = pneg %p50
    %p57 = scmp.eq.s32.totalorder %s15, 1
    %p58 = por %p56, %p57
    %p59 = scmp.ne.s32.totalorder %s51, %s54
    %p60 = scmp.eq.s32.totalorder %s15, 0
    %p61 = por %p59, %p60
    %p62 = scmp.ne.s32.totalorder %s51, %s54
    %p63 = scmp.eq.s32.totalorder %s20, 1
    %p64 = por %p62, %p63
    %p65 = scmp.ne.s32.totalorder %s54, %s55
    %p66 = scmp.eq.s32.totalorder %s20, 0
    %p67 = por %p65, %p66
    %p68 = scmp.ne.s32.totalorder %s54, %s55
    %p69 = scmp.eq.s32.totalorder %s21, 1
    %p70 = por %p68, %p69
    %p72 = scmp.ne.s32.totalorder %s55, %s71
    %p73 = scmp.eq.s32.totalorder %s21, 0
    %p74 = por %p72, %p73
    %s76 = sadd.s32 %s75, 1
    %p79 = scmp.eq.s32.totalorder %s15, 1
    %p80 = scmp.ne.s32.totalorder %s75, %s77
    %p81 = scmp.eq.s32.totalorder %s15, 0
    %p82 = por %p80, %p81
    %p83 = scmp.ne.s32.totalorder %s75, %s77
    %p84 = scmp.eq.s32.totalorder %s20, 1
    %p85 = por %p83, %p84
    %p86 = scmp.ne.s32.totalorder %s77, %s78
    %p87 = scmp.eq.s32.totalorder %s20, 0
    %p88 = por %p86, %p87
    %p89 = scmp.ne.s32.totalorder %s77, %s78
    %p90 = scmp.eq.s32.totalorder %s21, 1
    %p91 = por %p89, %p90
    %p93 = scmp.ne.s32.totalorder %s78, %s92
    %p94 = scmp.eq.s32.totalorder %s21, 0
    %p95 = por %p93, %p94
    %s97 = sadd.s32 %s96, 1
    %p100 = scmp.eq.s32.totalorder %s15, 1
    %p101 = scmp.ne.s32.totalorder %s96, %s98
    %p102 = scmp.eq.s32.totalorder %s15, 0
    %p103 = por %p101, %p102
    %p104 = scmp.ne.s32.totalorder %s96, %s98
    %p105 = scmp.eq.s32.totalorder %s20, 1
    %p106 = por %p104, %p105
    %p107 = scmp.ne.s32.totalorder %s98, %s99
    %p108 = scmp.eq.s32.totalorder %s20, 0
    %p109 = por %p107, %p108
    %p110 = scmp.ne.s32.totalorder %s98, %s99
    %p111 = scmp.eq.s32.totalorder %s21, 1
    %p112 = por %p110, %p111
    %p114 = scmp.ne.s32.totalorder %s99, %s113
    %p115 = scmp.eq.s32.totalorder %s21, 0
    %p116 = por %p114, %p115
    %s118 = sadd.s32 %s117, 1
    %p121 = scmp.eq.s32.totalorder %s15, 1
    %p122 = scmp.ne.s32.totalorder %s117, %s119
    %p123 = scmp.eq.s32.totalorder %s15, 0
    %p124 = por %p122, %p123
    %p125 = scmp.ne.s32.totalorder %s117, %s119
    %p126 = scmp.eq.s32.totalorder %s20, 1
    %p127 = por %p125, %p126
    %p128 = scmp.ne.s32.totalorder %s119, %s120
    %p129 = scmp.eq.s32.totalorder %s20, 0
    %p130 = por %p128, %p129
    %p131 = scmp.ne.s32.totalorder %s119, %s120
    %p132 = scmp.eq.s32.totalorder %s21, 1
    %p133 = por %p131, %p132
    %p135 = scmp.ne.s32.totalorder %s120, %s134
    %p136 = scmp.eq.s32.totalorder %s21, 0
    %p137 = por %p135, %p136
    %s139 = sadd.s32 %s138, 1
    %p142 = scmp.eq.s32.totalorder %s15, 1
    %p143 = scmp.ne.s32.totalorder %s138, %s140
    %p144 = scmp.eq.s32.totalorder %s15, 0
    %p145 = por %p143, %p144
    %p146 = scmp.ne.s32.totalorder %s138, %s140
    %p147 = scmp.eq.s32.totalorder %s20, 1
    %p148 = por %p146, %p147
    %p149 = scmp.ne.s32.totalorder %s140, %s141
    %p150 = scmp.eq.s32.totalorder %s20, 0
    %p151 = por %p149, %p150
    %p152 = scmp.ne.s32.totalorder %s140, %s141
    %p153 = scmp.eq.s32.totalorder %s21, 1
    %p154 = por %p152, %p153
    %p156 = scmp.ne.s32.totalorder %s141, %s155
    %p157 = scmp.eq.s32.totalorder %s21, 0
    %p158 = por %p156, %p157
    %s160 = sadd.s32 %s159, 1
    %p163 = scmp.eq.s32.totalorder %s15, 1
    %p164 = scmp.ne.s32.totalorder %s159, %s161
    %p165 = scmp.eq.s32.totalorder %s15, 0
    %p166 = por %p164, %p165
    %p167 = scmp.ne.s32.totalorder %s159, %s161
    %p168 = scmp.eq.s32.totalorder %s20, 1
    %p169 = por %p167, %p168
    %p170 = scmp.ne.s32.totalorder %s161, %s162
    %p171 = scmp.eq.s32.totalorder %s20, 0
    %p172 = por %p170, %p171
    %p173 = scmp.ne.s32.totalorder %s161, %s162
    %p174 = scmp.eq.s32.totalorder %s21, 1
    %p175 = por %p173, %p174
    %p177 = scmp.ne.s32.totalorder %s162, %s176
    %p178 = scmp.eq.s32.totalorder %s21, 0
    %p179 = por %p177, %p178
    %s181 = sadd.s32 %s180, 1
    %p184 = scmp.eq.s32.totalorder %s15, 1
    %p185 = scmp.ne.s32.totalorder %s180, %s182
    %p186 = scmp.eq.s32.totalorder %s15, 0
    %p187 = por %p185, %p186
    %p188 = scmp.ne.s32.totalorder %s180, %s182
    %p189 = scmp.eq.s32.totalorder %s20, 1
    %p190 = por %p188, %p189
    %p191 = scmp.ne.s32.totalorder %s182, %s183
    %p192 = scmp.eq.s32.totalorder %s20, 0
    %p193 = por %p191, %p192
    %p194 = scmp.ne.s32.totalorder %s182, %s183
    %p195 = scmp.eq.s32.totalorder %s21, 1
    %p196 = por %p194, %p195
    %p198 = scmp.ne.s32.totalorder %s183, %s197
    %p199 = scmp.eq.s32.totalorder %s21, 0
    %p200 = por %p198, %p199
    %s202 = sadd.s32 %s201, 1
    %p205 = scmp.eq.s32.totalorder %s15, 1
    %p206 = scmp.ne.s32.totalorder %s201, %s203
    %p207 = scmp.eq.s32.totalorder %s15, 0
    %p208 = por %p206, %p207
    %p209 = scmp.ne.s32.totalorder %s201, %s203
    %p210 = scmp.eq.s32.totalorder %s20, 1
    %p211 = por %p209, %p210
    %p212 = scmp.ne.s32.totalorder %s203, %s204
    %p213 = scmp.eq.s32.totalorder %s20, 0
    %p214 = por %p212, %p213
    %p215 = scmp.ne.s32.totalorder %s203, %s204
    %p216 = scmp.eq.s32.totalorder %s21, 1
    %p217 = por %p215, %p216
    %p219 = scmp.ne.s32.totalorder %s204, %s218
    %p220 = scmp.eq.s32.totalorder %s21, 0
    %p221 = por %p219, %p220
    %s222 = ssub.s32 %s15, %s22
    %p223 = scmp.eq.s32.totalorder %s222, 0
    %s225 = sadd.s32 %s224, 1
    %s226 = scalar_select %p223, %s224, %s225
    %p229 = pneg %p223
    %p230 = scmp.eq.s32.totalorder %s15, 1
    %p231 = por %p229, %p230
    %p232 = scmp.ne.s32.totalorder %s224, %s227
    %p233 = scmp.eq.s32.totalorder %s15, 0
    %p234 = por %p232, %p233
    %p235 = scmp.ne.s32.totalorder %s224, %s227
    %p236 = scmp.eq.s32.totalorder %s20, 1
    %p237 = por %p235, %p236
    %p238 = scmp.ne.s32.totalorder %s227, %s228
    %p239 = scmp.eq.s32.totalorder %s20, 0
    %p240 = por %p238, %p239
    %p241 = scmp.ne.s32.totalorder %s227, %s228
    %p242 = scmp.eq.s32.totalorder %s21, 1
    %p243 = por %p241, %p242
    %p245 = scmp.ne.s32.totalorder %s228, %s244
    %p246 = scmp.eq.s32.totalorder %s21, 0
    %p247 = por %p245, %p246
    %p248 = scmp.le.s32.totalorder 1, %s15
    %p249 = scmp.lt.s32.totalorder %s15, 3
    %p250 = pnand %p248, %p249
    %p251 = pneg %p250
    // Predicated region
    $region9: #{_lambda_.1} parent=5 // pred_check
      _
    $region10: #{_lambda_.1} parent=5 // pred_check_branch
      %253 = sbr.rel (%p250) target = $region12
    $region11: #{_lambda_.1} parent=5 // pred_region
      %s254 = ssub.s32 %s15, 1
      // Predicated region
      $region13: #{_lambda_.1} parent=11 // pred_check
        %p255 = pneg %p88
      $region14: #{_lambda_.1} parent=11 // pred_check_branch
        %257 = sbr.rel (%p255) target = $region16
      $region15: #{_lambda_.1} parent=11 // pred_region
        _
      $region16: #{_lambda_.1} parent=11 // pred_fallthru
        _
      // Predicated region
      $region17: #{_lambda_.1} parent=11 // pred_check
        %p258 = pneg %p109
      $region18: #{_lambda_.1} parent=11 // pred_check_branch
        %260 = sbr.rel (%p258) target = $region20
      $region19: #{_lambda_.1} parent=11 // pred_region
        _
      $region20: #{_lambda_.1} parent=11 // pred_fallthru
        _
      // Predicated region
      $region21: #{_lambda_.1} parent=11 // pred_check
        %p261 = pneg %p130
      $region22: #{_lambda_.1} parent=11 // pred_check_branch
        %263 = sbr.rel (%p261) target = $region24
      $region23: #{_lambda_.1} parent=11 // pred_region
        _
      $region24: #{_lambda_.1} parent=11 // pred_fallthru
        _
      // Predicated region
      $region25: #{_lambda_.1} parent=11 // pred_check
        %p264 = pneg %p151
      $region26: #{_lambda_.1} parent=11 // pred_check_branch
        %266 = sbr.rel (%p264) target = $region28
      $region27: #{_lambda_.1} parent=11 // pred_region
        _
      $region28: #{_lambda_.1} parent=11 // pred_fallthru
        _
      // Predicated region
      $region29: #{_lambda_.1} parent=11 // pred_check
        %p267 = pneg %p172
      $region30: #{_lambda_.1} parent=11 // pred_check_branch
        %269 = sbr.rel (%p267) target = $region32
      $region31: #{_lambda_.1} parent=11 // pred_region
        _
      $region32: #{_lambda_.1} parent=11 // pred_fallthru
        _
      // Predicated region
      $region33: #{_lambda_.1} parent=11 // pred_check
        %p270 = pneg %p193
      $region34: #{_lambda_.1} parent=11 // pred_check_branch
        %272 = sbr.rel (%p270) target = $region36
      $region35: #{_lambda_.1} parent=11 // pred_region
        _
      $region36: #{_lambda_.1} parent=11 // pred_fallthru
        _
      // Predicated region
      $region37: #{_lambda_.1} parent=11 // pred_check
        %p273 = pneg %p214
      $region38: #{_lambda_.1} parent=11 // pred_check_branch
        %275 = sbr.rel (%p273) target = $region40
      $region39: #{_lambda_.1} parent=11 // pred_region
        _
      $region40: #{_lambda_.1} parent=11 // pred_fallthru
        _
    $region12: #{_lambda_.1} parent=5 // pred_fallthru
      _
    %p276 = scmp.lt.s32.totalorder %s15, 2
    // Predicated region
    $region41: #{_lambda_.1} parent=5 // pred_check
      %p277 = pneg %p276
    $region42: #{_lambda_.1} parent=5 // pred_check_branch
      %279 = sbr.rel (%p277) target = $region44
    $region43: #{_lambda_.1} parent=5 // pred_region
      // Predicated region
      $region45: #{_lambda_.1} parent=43 // pred_check
        %p280 = pneg %p35
      $region46: #{_lambda_.1} parent=43 // pred_check_branch
        %282 = sbr.rel (%p280) target = $region48
      $region47: #{_lambda_.1} parent=43 // pred_region
        %p283 = scmp.lt.s32.totalorder %s15, 1
        %s284 = scalar_select %p283, %s15, 1
        %s285 = smul.addr %s284, 30
        %s286 = smul.addr %s285, 4
        %s287 = scalar_lea.vmem %s0, %s286
      $region48: #{_lambda_.1} parent=43 // pred_fallthru
        _
      // Predicated region
      $region49: #{_lambda_.1} parent=43 // pred_check
        %p288 = pneg %p61
      $region50: #{_lambda_.1} parent=43 // pred_check_branch
        %290 = sbr.rel (%p288) target = $region52
      $region51: #{_lambda_.1} parent=43 // pred_region
        %p291 = scmp.lt.s32.totalorder %s15, 1
        %s292 = scalar_select %p291, %s15, 1
        %s293 = smul.addr %s292, 54
        %s294 = smul.addr %s293, 4
        %s295 = scalar_lea.vmem %s1, %s294
      $region52: #{_lambda_.1} parent=43 // pred_fallthru
        _
    $region44: #{_lambda_.1} parent=5 // pred_fallthru
      _
    %p296 = scmp.le.s32.totalorder 1, %s15
    %p297 = scmp.lt.s32.totalorder %s15, 3
    %p298 = pnand %p296, %p297
    %p299 = pneg %p298
    // Predicated region
    $region53: #{_lambda_.1} parent=5 // pred_check
      _
    $region54: #{_lambda_.1} parent=5 // pred_check_branch
      %301 = sbr.rel (%p298) target = $region56
    $region55: #{_lambda_.1} parent=5 // pred_region
      %s302 = ssub.s32 %s15, 1
      %p303 = scmp.lt.s32.totalorder %s20, 1
      %s304 = scalar_select %p303, %s20, 1
      %s305 = smul.addr %s304, 30
      %s306 = smul.addr %s305, 4
      %s307 = scalar_lea.vmem %s0, %s306
      %p308 = pneg %p41
      %p309 = pneg %p38
      %p310 = scmp.lt.s32.totalorder %s20, 1
      %s311 = scalar_select %p310, %s20, 1
      %s312 = smul.addr %s311, 54
      %s313 = smul.addr %s312, 4
      %s314 = scalar_lea.vmem %s1, %s313
      %p315 = pneg %p67
      %p316 = pneg %p64
      %p317 = pneg %p88
      %p318 = pneg %p85
      %p319 = pneg %p109
      %p320 = pneg %p106
      %p321 = pneg %p130
      %p322 = pneg %p127
      %p323 = pneg %p151
      %p324 = pneg %p148
      %p325 = pneg %p172
      %p326 = pneg %p169
      %p327 = pneg %p193
      %p328 = pneg %p190
      %p329 = pneg %p214
      %p330 = pneg %p211
      %p331 = pneg %p240
      %p332 = pneg %p237
      %p333 = scmp.lt.s32.totalorder %s20, 1
      %s334 = scalar_select %p333, %s20, 1
      %s335 = smul.addr %s334, 32
      %s336 = smul.addr %s335, 4
      %s337 = scalar_lea.vmem %s9, %s336
      %p338 = scmp.lt.s32.totalorder %s20, 1
      %s339 = scalar_select %p338, %s20, 1
      %s340 = smul.addr %s339, 30
      %s341 = smul.addr %s340, 4
      %s342 = scalar_lea.vmem %s0, %s341
      %p343 = scmp.lt.s32.totalorder %s20, 1
      %s344 = scalar_select %p343, %s20, 1
      %s345 = smul.addr %s344, 54
      %s346 = smul.addr %s345, 4
      %s347 = scalar_lea.vmem %s1, %s346
      %p348 = scmp.lt.s32.totalorder %s20, 1
      %s349 = scalar_select %p348, %s20, 1
      %s350 = smul.addr %s349, 32
      %s351 = smul.addr %s350, 4
      %s352 = scalar_lea.vmem %s9, %s351
      %v354 = vld [vmem:[%s347] sm:$0xf]
      %v355 = vld [vmem:[%s347 + $0x4] sm:$0xf]
      %v356 = vld [vmem:[%s347 + $0xc] sm:$0xf]
      %v357 = vld [vmem:[%s347 + $0x10] sm:$0xf]
      %v358 = vld [vmem:[%s347 + $0x18] sm:$0xf]
      %v359 = vld [vmem:[%s347 + $0x1c] sm:$0xf]
      %v360 = vld [vmem:[%s347 + $0x24] sm:$0xf]
      %v361 = vld [vmem:[%s347 + $0x28] sm:$0xf]
      %v362 = vld [vmem:[%s347 + $0x30] sm:$0xf]
      %v363 = vld [vmem:[%s347 + $0x34] sm:$0xf]
      %v364 = vld [vmem:[%s347 + $0x3c] sm:$0xf]
      %v365 = vld [vmem:[%s347 + $0x40] sm:$0xf]
      %v366 = vld [vmem:[%s347 + $0x48] sm:$0xf]
      %v367 = vld [vmem:[%s347 + $0x4c] sm:$0xf]
      %v368 = vld [vmem:[%s347 + $0x54] sm:$0xf]
      %v369 = vld [vmem:[%s347 + $0x58] sm:$0xf]
      %v370 = vld [vmem:[%s347 + $0x60] sm:$0xf]
      %v371 = vld [vmem:[%s347 + $0x64] sm:$0xf]
      %v372 = vld [vmem:[%s347 + $0x6c] sm:$0xf]
      %v373 = vld [vmem:[%s347 + $0x70] sm:$0xf]
      %v374 = vld [vmem:[%s347 + $0x78] sm:$0xf]
      %v375 = vld [vmem:[%s347 + $0x7c] sm:$0xf]
      %v376 = vld [vmem:[%s347 + $0x84] sm:$0xf]
      %v377 = vld [vmem:[%s347 + $0x88] sm:$0xf]
      %v378 = vld [vmem:[%s347 + $0x90] sm:$0xf]
      %v379 = vld [vmem:[%s347 + $0x94] sm:$0xf]
      %v380 = vld [vmem:[%s347 + $0x9c] sm:$0xf]
      %v381 = vld [vmem:[%s347 + $0xa0] sm:$0xf]
      %v382 = vld [vmem:[%s347 + $0xa8] sm:$0xf]
      %v383 = vld [vmem:[%s347 + $0xac] sm:$0xf]
      %v384 = vld [vmem:[%s347 + $0xb4] sm:$0xf]
      %v385 = vld [vmem:[%s347 + $0xb8] sm:$0xf]
      %vm386 = vcmask 519168
      %387 = vst.msk [vmem:[#allocation3] sm:$0xf] %vm386, %v354
      %388 = vst.msk [vmem:[#allocation3 + $0x14] sm:$0xf] %vm386, %v355
      %389 = vst.msk [vmem:[#allocation3 + $0x28] sm:$0xf] %vm386, %v356
      %390 = vst.msk [vmem:[#allocation3 + $0x3c] sm:$0xf] %vm386, %v357
      %391 = vst.msk [vmem:[#allocation3 + $0x50] sm:$0xf] %vm386, %v358
      %392 = vst.msk [vmem:[#allocation3 + $0x64] sm:$0xf] %vm386, %v359
      %393 = vst.msk [vmem:[#allocation3 + $0x78] sm:$0xf] %vm386, %v360
      %394 = vst.msk [vmem:[#allocation3 + $0x8c] sm:$0xf] %vm386, %v361
      %395 = vst.msk [vmem:[#allocation3 + $0xa0] sm:$0xf] %vm386, %v362
      %396 = vst.msk [vmem:[#allocation3 + $0xb4] sm:$0xf] %vm386, %v363
      %397 = vst.msk [vmem:[#allocation3 + $0xc8] sm:$0xf] %vm386, %v364
      %398 = vst.msk [vmem:[#allocation3 + $0xdc] sm:$0xf] %vm386, %v365
      %399 = vst.msk [vmem:[#allocation3 + $0xf0] sm:$0xf] %vm386, %v366
      %400 = vst.msk [vmem:[#allocation3 + $0x104] sm:$0xf] %vm386, %v367
      %401 = vst.msk [vmem:[#allocation3 + $0x118] sm:$0xf] %vm386, %v368
      %402 = vst.msk [vmem:[#allocation3 + $0x12c] sm:$0xf] %vm386, %v369
      %403 = vst.msk [vmem:[#allocation3 + $0x140] sm:$0xf] %vm386, %v370
      %404 = vst.msk [vmem:[#allocation3 + $0x154] sm:$0xf] %vm386, %v371
      %405 = vst.msk [vmem:[#allocation3 + $0x168] sm:$0xf] %vm386, %v372
      %406 = vst.msk [vmem:[#allocation3 + $0x17c] sm:$0xf] %vm386, %v373
      %407 = vst.msk [vmem:[#allocation3 + $0x190] sm:$0xf] %vm386, %v374
      %408 = vst.msk [vmem:[#allocation3 + $0x1a4] sm:$0xf] %vm386, %v375
      %409 = vst.msk [vmem:[#allocation3 + $0x1b8] sm:$0xf] %vm386, %v376
      %410 = vst.msk [vmem:[#allocation3 + $0x1cc] sm:$0xf] %vm386, %v377
      %411 = vst.msk [vmem:[#allocation3 + $0x1e0] sm:$0xf] %vm386, %v378
      %412 = vst.msk [vmem:[#allocation3 + $0x1f4] sm:$0xf] %vm386, %v379
      %413 = vst.msk [vmem:[#allocation3 + $0x208] sm:$0xf] %vm386, %v380
      %414 = vst.msk [vmem:[#allocation3 + $0x21c] sm:$0xf] %vm386, %v381
      %415 = vst.msk [vmem:[#allocation3 + $0x230] sm:$0xf] %vm386, %v382
      %416 = vst.msk [vmem:[#allocation3 + $0x244] sm:$0xf] %vm386, %v383
      %417 = vst.msk [vmem:[#allocation3 + $0x258] sm:$0xf] %vm386, %v384
      %418 = vst.msk [vmem:[#allocation3 + $0x26c] sm:$0xf] %vm386, %v385
      %v419 = vld [vmem:[%s347] sm:$0xf]
      %v420 = vld [vmem:[%s347 + $0x4] sm:$0xf]
      %v421 = vld [vmem:[%s347 + $0x8] sm:$0x1]
      %v422 = vld [vmem:[%s347 + $0xc] sm:$0xf]
      %v423 = vld [vmem:[%s347 + $0x10] sm:$0xf]
      %v424 = vld [vmem:[%s347 + $0x14] sm:$0x1]
      %v425 = vld [vmem:[%s347 + $0x18] sm:$0xf]
      %v426 = vld [vmem:[%s347 + $0x1c] sm:$0xf]
      %v427 = vld [vmem:[%s347 + $0x20] sm:$0x1]
      %v428 = vld [vmem:[%s347 + $0x24] sm:$0xf]
      %v429 = vld [vmem:[%s347 + $0x28] sm:$0xf]
      %v430 = vld [vmem:[%s347 + $0x2c] sm:$0x1]
      %v431 = vld [vmem:[%s347 + $0x30] sm:$0xf]
      %v432 = vld [vmem:[%s347 + $0x34] sm:$0xf]
      %v433 = vld [vmem:[%s347 + $0x38] sm:$0x1]
      %v434 = vld [vmem:[%s347 + $0x3c] sm:$0xf]
      %v435 = vld [vmem:[%s347 + $0x40] sm:$0xf]
      %v436 = vld [vmem:[%s347 + $0x44] sm:$0x1]
      %v437 = vld [vmem:[%s347 + $0x48] sm:$0xf]
      %v438 = vld [vmem:[%s347 + $0x4c] sm:$0xf]
      %v439 = vld [vmem:[%s347 + $0x50] sm:$0x1]
      %v440 = vld [vmem:[%s347 + $0x54] sm:$0xf]
      %v441 = vld [vmem:[%s347 + $0x58] sm:$0xf]
      %v442 = vld [vmem:[%s347 + $0x5c] sm:$0x1]
      %v443 = vld [vmem:[%s347 + $0x60] sm:$0xf]
      %v444 = vld [vmem:[%s347 + $0x64] sm:$0xf]
      %v445 = vld [vmem:[%s347 + $0x68] sm:$0x1]
      %v446 = vld [vmem:[%s347 + $0x6c] sm:$0xf]
      %v447 = vld [vmem:[%s347 + $0x70] sm:$0xf]
      %v448 = vld [vmem:[%s347 + $0x74] sm:$0x1]
      %v449 = vld [vmem:[%s347 + $0x78] sm:$0xf]
      %v450 = vld [vmem:[%s347 + $0x7c] sm:$0xf]
      %v451 = vld [vmem:[%s347 + $0x80] sm:$0x1]
      %v452 = vld [vmem:[%s347 + $0x84] sm:$0xf]
      %v453 = vld [vmem:[%s347 + $0x88] sm:$0xf]
      %v454 = vld [vmem:[%s347 + $0x8c] sm:$0x1]
      %v455 = vld [vmem:[%s347 + $0x90] sm:$0xf]
      %v456 = vld [vmem:[%s347 + $0x94] sm:$0xf]
      %v457 = vld [vmem:[%s347 + $0x98] sm:$0x1]
      %v458 = vld [vmem:[%s347 + $0x9c] sm:$0xf]
      %v459 = vld [vmem:[%s347 + $0xa0] sm:$0xf]
      %v460 = vld [vmem:[%s347 + $0xa4] sm:$0x1]
      %v461 = vld [vmem:[%s347 + $0xa8] sm:$0xf]
      %v462 = vld [vmem:[%s347 + $0xac] sm:$0xf]
      %v463 = vld [vmem:[%s347 + $0xb0] sm:$0x1]
      %v464 = vld [vmem:[%s347 + $0xb4] sm:$0xf]
      %v465 = vld [vmem:[%s347 + $0xb8] sm:$0xf]
      %v466 = vld [vmem:[%s347 + $0xbc] sm:$0x1]
      %vm467 = vsmask.f32 3328
      %vm468 = vsmask.f32 7440
      %vm469 = vmor %vm467, %vm468
      %v471 = vshrl.u32 %v419, 16
      %v473 = vrot.slane %v471, 4
      %v474 = vshll.u32 %v419, 16
      %v476 = vrot.slane %v474, 5
      %v477 = vor.u32 %v473, %v476
      %v478 = vrot.slane %v477, 4
      %v480 = vshll.u32 %v420, 16
      %v482 = vrot.slane %v480, 5
      %v483 = vsel %vm469, %v478, %v482
      %v484 = vshrl.u32 %v420, 16
      %v486 = vrot.slane %v484, 4
      %v487 = vor.u32 %v486, %v482
      %v488 = vrot.slane %v487, 4
      %v490 = vshll.u32 %v421, 16
      %v492 = vrot.slane %v490, 5
      %v493 = vsel %vm469, %v488, %v492
      %v495 = vshrl.u32 %v422, 16
      %v497 = vrot.slane %v495, 4
      %v498 = vshll.u32 %v422, 16
      %v500 = vrot.slane %v498, 5
      %v501 = vor.u32 %v497, %v500
      %v502 = vrot.slane %v501, 4
      %v504 = vshll.u32 %v423, 16
      %v506 = vrot.slane %v504, 5
      %v507 = vsel %vm469, %v502, %v506
      %v508 = vshrl.u32 %v423, 16
      %v510 = vrot.slane %v508, 4
      %v511 = vor.u32 %v510, %v506
      %v512 = vrot.slane %v511, 4
      %v514 = vshll.u32 %v424, 16
      %v516 = vrot.slane %v514, 5
      %v517 = vsel %vm469, %v512, %v516
      %v519 = vshrl.u32 %v425, 16
      %v521 = vrot.slane %v519, 4
      %v522 = vshll.u32 %v425, 16
      %v524 = vrot.slane %v522, 5
      %v525 = vor.u32 %v521, %v524
      %v526 = vrot.slane %v525, 4
      %v528 = vshll.u32 %v426, 16
      %v530 = vrot.slane %v528, 5
      %v531 = vsel %vm469, %v526, %v530
      %v532 = vshrl.u32 %v426, 16
      %v534 = vrot.slane %v532, 4
      %v535 = vor.u32 %v534, %v530
      %v536 = vrot.slane %v535, 4
      %v538 = vshll.u32 %v427, 16
      %v540 = vrot.slane %v538, 5
      %v541 = vsel %vm469, %v536, %v540
      %v543 = vshrl.u32 %v428, 16
      %v545 = vrot.slane %v543, 4
      %v546 = vshll.u32 %v428, 16
      %v548 = vrot.slane %v546, 5
      %v549 = vor.u32 %v545, %v548
      %v550 = vrot.slane %v549, 4
      %v552 = vshll.u32 %v429, 16
      %v554 = vrot.slane %v552, 5
      %v555 = vsel %vm469, %v550, %v554
      %v556 = vshrl.u32 %v429, 16
      %v558 = vrot.slane %v556, 4
      %v559 = vor.u32 %v558, %v554
      %v560 = vrot.slane %v559, 4
      %v562 = vshll.u32 %v430, 16
      %v564 = vrot.slane %v562, 5
      %v565 = vsel %vm469, %v560, %v564
      %v567 = vshrl.u32 %v431, 16
      %v569 = vrot.slane %v567, 4
      %v570 = vshll.u32 %v431, 16
      %v572 = vrot.slane %v570, 5
      %v573 = vor.u32 %v569, %v572
      %v574 = vrot.slane %v573, 4
      %v576 = vshll.u32 %v432, 16
      %v578 = vrot.slane %v576, 5
      %v579 = vsel %vm469, %v574, %v578
      %v580 = vshrl.u32 %v432, 16
      %v582 = vrot.slane %v580, 4
      %v583 = vor.u32 %v582, %v578
      %v584 = vrot.slane %v583, 4
      %v586 = vshll.u32 %v433, 16
      %v588 = vrot.slane %v586, 5
      %v589 = vsel %vm469, %v584, %v588
      %v591 = vshrl.u32 %v434, 16
      %v593 = vrot.slane %v591, 4
      %v594 = vshll.u32 %v434, 16
      %v596 = vrot.slane %v594, 5
      %v597 = vor.u32 %v593, %v596
      %v598 = vrot.slane %v597, 4
      %v600 = vshll.u32 %v435, 16
      %v602 = vrot.slane %v600, 5
      %v603 = vsel %vm469, %v598, %v602
      %v604 = vshrl.u32 %v435, 16
      %v606 = vrot.slane %v604, 4
      %v607 = vor.u32 %v606, %v602
      %v608 = vrot.slane %v607, 4
      %v610 = vshll.u32 %v436, 16
      %v612 = vrot.slane %v610, 5
      %v613 = vsel %vm469, %v608, %v612
      %v615 = vshrl.u32 %v437, 16
      %v617 = vrot.slane %v615, 4
      %v618 = vshll.u32 %v437, 16
      %v620 = vrot.slane %v618, 5
      %v621 = vor.u32 %v617, %v620
      %v622 = vrot.slane %v621, 4
      %v624 = vshll.u32 %v438, 16
      %v626 = vrot.slane %v624, 5
      %v627 = vsel %vm469, %v622, %v626
      %v628 = vshrl.u32 %v438, 16
      %v630 = vrot.slane %v628, 4
      %v631 = vor.u32 %v630, %v626
      %v632 = vrot.slane %v631, 4
      %v634 = vshll.u32 %v439, 16
      %v636 = vrot.slane %v634, 5
      %v637 = vsel %vm469, %v632, %v636
      %v639 = vshrl.u32 %v440, 16
      %v641 = vrot.slane %v639, 4
      %v642 = vshll.u32 %v440, 16
      %v644 = vrot.slane %v642, 5
      %v645 = vor.u32 %v641, %v644
      %v646 = vrot.slane %v645, 4
      %v648 = vshll.u32 %v441, 16
      %v650 = vrot.slane %v648, 5
      %v651 = vsel %vm469, %v646, %v650
      %v652 = vshrl.u32 %v441, 16
      %v654 = vrot.slane %v652, 4
      %v655 = vor.u32 %v654, %v650
      %v656 = vrot.slane %v655, 4
      %v658 = vshll.u32 %v442, 16
      %v660 = vrot.slane %v658, 5
      %v661 = vsel %vm469, %v656, %v660
      %v663 = vshrl.u32 %v443, 16
      %v665 = vrot.slane %v663, 4
      %v666 = vshll.u32 %v443, 16
      %v668 = vrot.slane %v666, 5
      %v669 = vor.u32 %v665, %v668
      %v670 = vrot.slane %v669, 4
      %v672 = vshll.u32 %v444, 16
      %v674 = vrot.slane %v672, 5
      %v675 = vsel %vm469, %v670, %v674
      %v676 = vshrl.u32 %v444, 16
      %v678 = vrot.slane %v676, 4
      %v679 = vor.u32 %v678, %v674
      %v680 = vrot.slane %v679, 4
      %v682 = vshll.u32 %v445, 16
      %v684 = vrot.slane %v682, 5
      %v685 = vsel %vm469, %v680, %v684
      %v687 = vshrl.u32 %v446, 16
      %v689 = vrot.slane %v687, 4
      %v690 = vshll.u32 %v446, 16
      %v692 = vrot.slane %v690, 5
      %v693 = vor.u32 %v689, %v692
      %v694 = vrot.slane %v693, 4
      %v696 = vshll.u32 %v447, 16
      %v698 = vrot.slane %v696, 5
      %v699 = vsel %vm469, %v694, %v698
      %v700 = vshrl.u32 %v447, 16
      %v702 = vrot.slane %v700, 4
      %v703 = vor.u32 %v702, %v698
      %v704 = vrot.slane %v703, 4
      %v706 = vshll.u32 %v448, 16
      %v708 = vrot.slane %v706, 5
      %v709 = vsel %vm469, %v704, %v708
      %v711 = vshrl.u32 %v449, 16
      %v713 = vrot.slane %v711, 4
      %v714 = vshll.u32 %v449, 16
      %v716 = vrot.slane %v714, 5
      %v717 = vor.u32 %v713, %v716
      %v718 = vrot.slane %v717, 4
      %v720 = vshll.u32 %v450, 16
      %v722 = vrot.slane %v720, 5
      %v723 = vsel %vm469, %v718, %v722
      %v724 = vshrl.u32 %v450, 16
      %v726 = vrot.slane %v724, 4
      %v727 = vor.u32 %v726, %v722
      %v728 = vrot.slane %v727, 4
      %v730 = vshll.u32 %v451, 16
      %v732 = vrot.slane %v730, 5
      %v733 = vsel %vm469, %v728, %v732
      %v735 = vshrl.u32 %v452, 16
      %v737 = vrot.slane %v735, 4
      %v738 = vshll.u32 %v452, 16
      %v740 = vrot.slane %v738, 5
      %v741 = vor.u32 %v737, %v740
      %v742 = vrot.slane %v741, 4
      %v744 = vshll.u32 %v453, 16
      %v746 = vrot.slane %v744, 5
      %v747 = vsel %vm469, %v742, %v746
      %v748 = vshrl.u32 %v453, 16
      %v750 = vrot.slane %v748, 4
      %v751 = vor.u32 %v750, %v746
      %v752 = vrot.slane %v751, 4
      %v754 = vshll.u32 %v454, 16
      %v756 = vrot.slane %v754, 5
      %v757 = vsel %vm469, %v752, %v756
      %v759 = vshrl.u32 %v455, 16
      %v761 = vrot.slane %v759, 4
      %v762 = vshll.u32 %v455, 16
      %v764 = vrot.slane %v762, 5
      %v765 = vor.u32 %v761, %v764
      %v766 = vrot.slane %v765, 4
      %v768 = vshll.u32 %v456, 16
      %v770 = vrot.slane %v768, 5
      %v771 = vsel %vm469, %v766, %v770
      %v772 = vshrl.u32 %v456, 16
      %v774 = vrot.slane %v772, 4
      %v775 = vor.u32 %v774, %v770
      %v776 = vrot.slane %v775, 4
      %v778 = vshll.u32 %v457, 16
      %v780 = vrot.slane %v778, 5
      %v781 = vsel %vm469, %v776, %v780
      %v783 = vshrl.u32 %v458, 16
      %v785 = vrot.slane %v783, 4
      %v786 = vshll.u32 %v458, 16
      %v788 = vrot.slane %v786, 5
      %v789 = vor.u32 %v785, %v788
      %v790 = vrot.slane %v789, 4
      %v792 = vshll.u32 %v459, 16
      %v794 = vrot.slane %v792, 5
      %v795 = vsel %vm469, %v790, %v794
      %v796 = vshrl.u32 %v459, 16
      %v798 = vrot.slane %v796, 4
      %v799 = vor.u32 %v798, %v794
      %v800 = vrot.slane %v799, 4
      %v802 = vshll.u32 %v460, 16
      %v804 = vrot.slane %v802, 5
      %v805 = vsel %vm469, %v800, %v804
      %v807 = vshrl.u32 %v461, 16
      %v809 = vrot.slane %v807, 4
      %v810 = vshll.u32 %v461, 16
      %v812 = vrot.slane %v810, 5
      %v813 = vor.u32 %v809, %v812
      %v814 = vrot.slane %v813, 4
      %v816 = vshll.u32 %v462, 16
      %v818 = vrot.slane %v816, 5
      %v819 = vsel %vm469, %v814, %v818
      %v820 = vshrl.u32 %v462, 16
      %v822 = vrot.slane %v820, 4
      %v823 = vor.u32 %v822, %v818
      %v824 = vrot.slane %v823, 4
      %v826 = vshll.u32 %v463, 16
      %v828 = vrot.slane %v826, 5
      %v829 = vsel %vm469, %v824, %v828
      %v831 = vshrl.u32 %v464, 16
      %v833 = vrot.slane %v831, 4
      %v834 = vshll.u32 %v464, 16
      %v836 = vrot.slane %v834, 5
      %v837 = vor.u32 %v833, %v836
      %v838 = vrot.slane %v837, 4
      %v840 = vshll.u32 %v465, 16
      %v842 = vrot.slane %v840, 5
      %v843 = vsel %vm469, %v838, %v842
      %v844 = vshrl.u32 %v465, 16
      %v846 = vrot.slane %v844, 4
      %v847 = vor.u32 %v846, %v842
      %v848 = vrot.slane %v847, 4
      %v850 = vshll.u32 %v466, 16
      %v852 = vrot.slane %v850, 5
      %v853 = vsel %vm469, %v848, %v852
      %854 = vrot.lane.b32.xlu0 %v483, 64
      %v855 = vpop.permute.xlu0 %854
      %856 = vrot.lane.b32.xlu0 %v493, 64
      %v857 = vpop.permute.xlu0 %856
      %858 = vrot.lane.b32.xlu0 %v507, 64
      %v859 = vpop.permute.xlu0 %858
      %860 = vrot.lane.b32.xlu0 %v517, 64
      %v861 = vpop.permute.xlu0 %860
      %862 = vrot.lane.b32.xlu0 %v531, 64
      %v863 = vpop.permute.xlu0 %862
      %864 = vrot.lane.b32.xlu0 %v541, 64
      %v865 = vpop.permute.xlu0 %864
      %866 = vrot.lane.b32.xlu0 %v555, 64
      %v867 = vpop.permute.xlu0 %866
      %868 = vrot.lane.b32.xlu0 %v565, 64
      %v869 = vpop.permute.xlu0 %868
      %870 = vrot.lane.b32.xlu0 %v579, 64
      %v871 = vpop.permute.xlu0 %870
      %872 = vrot.lane.b32.xlu0 %v589, 64
      %v873 = vpop.permute.xlu0 %872
      %874 = vrot.lane.b32.xlu0 %v603, 64
      %v875 = vpop.permute.xlu0 %874
      %876 = vrot.lane.b32.xlu0 %v613, 64
      %v877 = vpop.permute.xlu0 %876
      %878 = vrot.lane.b32.xlu0 %v627, 64
      %v879 = vpop.permute.xlu0 %878
      %880 = vrot.lane.b32.xlu0 %v637, 64
      %v881 = vpop.permute.xlu0 %880
      %882 = vrot.lane.b32.xlu0 %v651, 64
      %v883 = vpop.permute.xlu0 %882
      %884 = vrot.lane.b32.xlu0 %v661, 64
      %v885 = vpop.permute.xlu0 %884
      %886 = vrot.lane.b32.xlu0 %v675, 64
      %v887 = vpop.permute.xlu0 %886
      %888 = vrot.lane.b32.xlu0 %v685, 64
      %v889 = vpop.permute.xlu0 %888
      %890 = vrot.lane.b32.xlu0 %v699, 64
      %v891 = vpop.permute.xlu0 %890
      %892 = vrot.lane.b32.xlu0 %v709, 64
      %v893 = vpop.permute.xlu0 %892
      %894 = vrot.lane.b32.xlu0 %v723, 64
      %v895 = vpop.permute.xlu0 %894
      %896 = vrot.lane.b32.xlu0 %v733, 64
      %v897 = vpop.permute.xlu0 %896
      %898 = vrot.lane.b32.xlu0 %v747, 64
      %v899 = vpop.permute.xlu0 %898
      %900 = vrot.lane.b32.xlu0 %v757, 64
      %v901 = vpop.permute.xlu0 %900
      %902 = vrot.lane.b32.xlu0 %v771, 64
      %v903 = vpop.permute.xlu0 %902
      %904 = vrot.lane.b32.xlu0 %v781, 64
      %v905 = vpop.permute.xlu0 %904
      %906 = vrot.lane.b32.xlu0 %v795, 64
      %v907 = vpop.permute.xlu0 %906
      %908 = vrot.lane.b32.xlu0 %v805, 64
      %v909 = vpop.permute.xlu0 %908
      %910 = vrot.lane.b32.xlu0 %v819, 64
      %v911 = vpop.permute.xlu0 %910
      %912 = vrot.lane.b32.xlu0 %v829, 64
      %v913 = vpop.permute.xlu0 %912
      %914 = vrot.lane.b32.xlu0 %v843, 64
      %v915 = vpop.permute.xlu0 %914
      %916 = vrot.lane.b32.xlu0 %v853, 64
      %v917 = vpop.permute.xlu0 %916
      %vm950 = vcmask 1043968
      %951 = vst.msk [vmem:[#allocation3] sm:$0xf] %vm950, %v855
      %952 = vst.msk [vmem:[#allocation3 + $0x14] sm:$0xf] %vm950, %v857
      %953 = vst.msk [vmem:[#allocation3 + $0x28] sm:$0xf] %vm950, %v859
      %954 = vst.msk [vmem:[#allocation3 + $0x3c] sm:$0xf] %vm950, %v861
      %955 = vst.msk [vmem:[#allocation3 + $0x50] sm:$0xf] %vm950, %v863
      %956 = vst.msk [vmem:[#allocation3 + $0x64] sm:$0xf] %vm950, %v865
      %957 = vst.msk [vmem:[#allocation3 + $0x78] sm:$0xf] %vm950, %v867
      %958 = vst.msk [vmem:[#allocation3 + $0x8c] sm:$0xf] %vm950, %v869
      %959 = vst.msk [vmem:[#allocation3 + $0xa0] sm:$0xf] %vm950, %v871
      %960 = vst.msk [vmem:[#allocation3 + $0xb4] sm:$0xf] %vm950, %v873
      %961 = vst.msk [vmem:[#allocation3 + $0xc8] sm:$0xf] %vm950, %v875
      %962 = vst.msk [vmem:[#allocation3 + $0xdc] sm:$0xf] %vm950, %v877
      %963 = vst.msk [vmem:[#allocation3 + $0xf0] sm:$0xf] %vm950, %v879
      %964 = vst.msk [vmem:[#allocation3 + $0x104] sm:$0xf] %vm950, %v881
      %965 = vst.msk [vmem:[#allocation3 + $0x118] sm:$0xf] %vm950, %v883
      %966 = vst.msk [vmem:[#allocation3 + $0x12c] sm:$0xf] %vm950, %v885
      %967 = vst.msk [vmem:[#allocation3 + $0x140] sm:$0xf] %vm950, %v887
      %968 = vst.msk [vmem:[#allocation3 + $0x154] sm:$0xf] %vm950, %v889
      %969 = vst.msk [vmem:[#allocation3 + $0x168] sm:$0xf] %vm950, %v891
      %970 = vst.msk [vmem:[#allocation3 + $0x17c] sm:$0xf] %vm950, %v893
      %971 = vst.msk [vmem:[#allocation3 + $0x190] sm:$0xf] %vm950, %v895
      %972 = vst.msk [vmem:[#allocation3 + $0x1a4] sm:$0xf] %vm950, %v897
      %973 = vst.msk [vmem:[#allocation3 + $0x1b8] sm:$0xf] %vm950, %v899
      %974 = vst.msk [vmem:[#allocation3 + $0x1cc] sm:$0xf] %vm950, %v901
      %975 = vst.msk [vmem:[#allocation3 + $0x1e0] sm:$0xf] %vm950, %v903
      %976 = vst.msk [vmem:[#allocation3 + $0x1f4] sm:$0xf] %vm950, %v905
      %977 = vst.msk [vmem:[#allocation3 + $0x208] sm:$0xf] %vm950, %v907
      %978 = vst.msk [vmem:[#allocation3 + $0x21c] sm:$0xf] %vm950, %v909
      %979 = vst.msk [vmem:[#allocation3 + $0x230] sm:$0xf] %vm950, %v911
      %980 = vst.msk [vmem:[#allocation3 + $0x244] sm:$0xf] %vm950, %v913
      %981 = vst.msk [vmem:[#allocation3 + $0x258] sm:$0xf] %vm950, %v915
      %982 = vst.msk [vmem:[#allocation3 + $0x26c] sm:$0xf] %vm950, %v917
      %v983 = vld [vmem:[%s347] sm:$0xe]
      %v984 = vld [vmem:[%s347 + $0x4] sm:$0xf]
      %v985 = vld [vmem:[%s347 + $0x8] sm:$0x1]
      %v986 = vld [vmem:[%s347 + $0xc] sm:$0xe]
      %v987 = vld [vmem:[%s347 + $0x10] sm:$0xf]
      %v988 = vld [vmem:[%s347 + $0x14] sm:$0x1]
      %v989 = vld [vmem:[%s347 + $0x18] sm:$0xe]
      %v990 = vld [vmem:[%s347 + $0x1c] sm:$0xf]
      %v991 = vld [vmem:[%s347 + $0x20] sm:$0x1]
      %v992 = vld [vmem:[%s347 + $0x24] sm:$0xe]
      %v993 = vld [vmem:[%s347 + $0x28] sm:$0xf]
      %v994 = vld [vmem:[%s347 + $0x2c] sm:$0x1]
      %v995 = vld [vmem:[%s347 + $0x30] sm:$0xe]
      %v996 = vld [vmem:[%s347 + $0x34] sm:$0xf]
      %v997 = vld [vmem:[%s347 + $0x38] sm:$0x1]
      %v998 = vld [vmem:[%s347 + $0x3c] sm:$0xe]
      %v999 = vld [vmem:[%s347 + $0x40] sm:$0xf]
      %v1000 = vld [vmem:[%s347 + $0x44] sm:$0x1]
      %v1001 = vld [vmem:[%s347 + $0x48] sm:$0xe]
      %v1002 = vld [vmem:[%s347 + $0x4c] sm:$0xf]
      %v1003 = vld [vmem:[%s347 + $0x50] sm:$0x1]
      %v1004 = vld [vmem:[%s347 + $0x54] sm:$0xe]
      %v1005 = vld [vmem:[%s347 + $0x58] sm:$0xf]
      %v1006 = vld [vmem:[%s347 + $0x5c] sm:$0x1]
      %v1007 = vld [vmem:[%s347 + $0x60] sm:$0xe]
      %v1008 = vld [vmem:[%s347 + $0x64] sm:$0xf]
      %v1009 = vld [vmem:[%s347 + $0x68] sm:$0x1]
      %v1010 = vld [vmem:[%s347 + $0x6c] sm:$0xe]
      %v1011 = vld [vmem:[%s347 + $0x70] sm:$0xf]
      %v1012 = vld [vmem:[%s347 + $0x74] sm:$0x1]
      %v1013 = vld [vmem:[%s347 + $0x78] sm:$0xe]
      %v1014 = vld [vmem:[%s347 + $0x7c] sm:$0xf]
      %v1015 = vld [vmem:[%s347 + $0x80] sm:$0x1]
      %v1016 = vld [vmem:[%s347 + $0x84] sm:$0xe]
      %v1017 = vld [vmem:[%s347 + $0x88] sm:$0xf]
      %v1018 = vld [vmem:[%s347 + $0x8c] sm:$0x1]
      %v1019 = vld [vmem:[%s347 + $0x90] sm:$0xe]
      %v1020 = vld [vmem:[%s347 + $0x94] sm:$0xf]
      %v1021 = vld [vmem:[%s347 + $0x98] sm:$0x1]
      %v1022 = vld [vmem:[%s347 + $0x9c] sm:$0xe]
      %v1023 = vld [vmem:[%s347 + $0xa0] sm:$0xf]
      %v1024 = vld [vmem:[%s347 + $0xa4] sm:$0x1]
      %v1025 = vld [vmem:[%s347 + $0xa8] sm:$0xe]
      %v1026 = vld [vmem:[%s347 + $0xac] sm:$0xf]
      %v1027 = vld [vmem:[%s347 + $0xb0] sm:$0x1]
      %v1028 = vld [vmem:[%s347 + $0xb4] sm:$0xe]
      %v1029 = vld [vmem:[%s347 + $0xb8] sm:$0xf]
      %v1030 = vld [vmem:[%s347 + $0xbc] sm:$0x1]
      %vm1079 = vcmask 1042432
      %vm1080 = vcmask 1046532
      %vm1081 = vmor %vm1079, %vm1080
      %v1082 = vrot.slane %v983, 5
      %v1083 = vrot.slane %v1082, 4
      %v1084 = vrot.slane %v984, 5
      %v1085 = vsel %vm1081, %v1083, %v1084
      %v1086 = vrot.slane %v1084, 4
      %v1087 = vrot.slane %v985, 5
      %v1088 = vsel %vm1081, %v1086, %v1087
      %v1089 = vrot.slane %v986, 5
      %v1090 = vrot.slane %v1089, 4
      %v1091 = vrot.slane %v987, 5
      %v1092 = vsel %vm1081, %v1090, %v1091
      %v1093 = vrot.slane %v1091, 4
      %v1094 = vrot.slane %v988, 5
      %v1095 = vsel %vm1081, %v1093, %v1094
      %v1096 = vrot.slane %v989, 5
      %v1097 = vrot.slane %v1096, 4
      %v1098 = vrot.slane %v990, 5
      %v1099 = vsel %vm1081, %v1097, %v1098
      %v1100 = vrot.slane %v1098, 4
      %v1101 = vrot.slane %v991, 5
      %v1102 = vsel %vm1081, %v1100, %v1101
      %v1103 = vrot.slane %v992, 5
      %v1104 = vrot.slane %v1103, 4
      %v1105 = vrot.slane %v993, 5
      %v1106 = vsel %vm1081, %v1104, %v1105
      %v1107 = vrot.slane %v1105, 4
      %v1108 = vrot.slane %v994, 5
      %v1109 = vsel %vm1081, %v1107, %v1108
      %v1110 = vrot.slane %v995, 5
      %v1111 = vrot.slane %v1110, 4
      %v1112 = vrot.slane %v996, 5
      %v1113 = vsel %vm1081, %v1111, %v1112
      %v1114 = vrot.slane %v1112, 4
      %v1115 = vrot.slane %v997, 5
      %v1116 = vsel %vm1081, %v1114, %v1115
      %v1117 = vrot.slane %v998, 5
      %v1118 = vrot.slane %v1117, 4
      %v1119 = vrot.slane %v999, 5
      %v1120 = vsel %vm1081, %v1118, %v1119
      %v1121 = vrot.slane %v1119, 4
      %v1122 = vrot.slane %v1000, 5
      %v1123 = vsel %vm1081, %v1121, %v1122
      %v1124 = vrot.slane %v1001, 5
      %v1125 = vrot.slane %v1124, 4
      %v1126 = vrot.slane %v1002, 5
      %v1127 = vsel %vm1081, %v1125, %v1126
      %v1128 = vrot.slane %v1126, 4
      %v1129 = vrot.slane %v1003, 5
      %v1130 = vsel %vm1081, %v1128, %v1129
      %v1131 = vrot.slane %v1004, 5
      %v1132 = vrot.slane %v1131, 4
      %v1133 = vrot.slane %v1005, 5
      %v1134 = vsel %vm1081, %v1132, %v1133
      %v1135 = vrot.slane %v1133, 4
      %v1136 = vrot.slane %v1006, 5
      %v1137 = vsel %vm1081, %v1135, %v1136
      %v1138 = vrot.slane %v1007, 5
      %v1139 = vrot.slane %v1138, 4
      %v1140 = vrot.slane %v1008, 5
      %v1141 = vsel %vm1081, %v1139, %v1140
      %v1142 = vrot.slane %v1140, 4
      %v1143 = vrot.slane %v1009, 5
      %v1144 = vsel %vm1081, %v1142, %v1143
      %v1145 = vrot.slane %v1010, 5
      %v1146 = vrot.slane %v1145, 4
      %v1147 = vrot.slane %v1011, 5
      %v1148 = vsel %vm1081, %v1146, %v1147
      %v1149 = vrot.slane %v1147, 4
      %v1150 = vrot.slane %v1012, 5
      %v1151 = vsel %vm1081, %v1149, %v1150
      %v1152 = vrot.slane %v1013, 5
      %v1153 = vrot.slane %v1152, 4
      %v1154 = vrot.slane %v1014, 5
      %v1155 = vsel %vm1081, %v1153, %v1154
      %v1156 = vrot.slane %v1154, 4
      %v1157 = vrot.slane %v1015, 5
      %v1158 = vsel %vm1081, %v1156, %v1157
      %v1159 = vrot.slane %v1016, 5
      %v1160 = vrot.slane %v1159, 4
      %v1161 = vrot.slane %v1017, 5
      %v1162 = vsel %vm1081, %v1160, %v1161
      %v1163 = vrot.slane %v1161, 4
      %v1164 = vrot.slane %v1018, 5
      %v1165 = vsel %vm1081, %v1163, %v1164
      %v1166 = vrot.slane %v1019, 5
      %v1167 = vrot.slane %v1166, 4
      %v1168 = vrot.slane %v1020, 5
      %v1169 = vsel %vm1081, %v1167, %v1168
      %v1170 = vrot.slane %v1168, 4
      %v1171 = vrot.slane %v1021, 5
      %v1172 = vsel %vm1081, %v1170, %v1171
      %v1173 = vrot.slane %v1022, 5
      %v1174 = vrot.slane %v1173, 4
      %v1175 = vrot.slane %v1023, 5
      %v1176 = vsel %vm1081, %v1174, %v1175
      %v1177 = vrot.slane %v1175, 4
      %v1178 = vrot.slane %v1024, 5
      %v1179 = vsel %vm1081, %v1177, %v1178
      %v1180 = vrot.slane %v1025, 5
      %v1181 = vrot.slane %v1180, 4
      %v1182 = vrot.slane %v1026, 5
      %v1183 = vsel %vm1081, %v1181, %v1182
      %v1184 = vrot.slane %v1182, 4
      %v1185 = vrot.slane %v1027, 5
      %v1186 = vsel %vm1081, %v1184, %v1185
      %v1187 = vrot.slane %v1028, 5
      %v1188 = vrot.slane %v1187, 4
      %v1189 = vrot.slane %v1029, 5
      %v1190 = vsel %vm1081, %v1188, %v1189
      %v1191 = vrot.slane %v1189, 4
      %v1192 = vrot.slane %v1030, 5
      %v1193 = vsel %vm1081, %v1191, %v1192
      %1226 = vst.msk [vmem:[#allocation3 + $0x4] sm:$0xf] %vm386, %v1085
      %1227 = vst.msk [vmem:[#allocation3 + $0x18] sm:$0xf] %vm386, %v1088
      %1228 = vst.msk [vmem:[#allocation3 + $0x2c] sm:$0xf] %vm386, %v1092
      %1229 = vst.msk [vmem:[#allocation3 + $0x40] sm:$0xf] %vm386, %v1095
      %1230 = vst.msk [vmem:[#allocation3 + $0x54] sm:$0xf] %vm386, %v1099
      %1231 = vst.msk [vmem:[#allocation3 + $0x68] sm:$0xf] %vm386, %v1102
      %1232 = vst.msk [vmem:[#allocation3 + $0x7c] sm:$0xf] %vm386, %v1106
      %1233 = vst.msk [vmem:[#allocation3 + $0x90] sm:$0xf] %vm386, %v1109
      %1234 = vst.msk [vmem:[#allocation3 + $0xa4] sm:$0xf] %vm386, %v1113
      %1235 = vst.msk [vmem:[#allocation3 + $0xb8] sm:$0xf] %vm386, %v1116
      %1236 = vst.msk [vmem:[#allocation3 + $0xcc] sm:$0xf] %vm386, %v1120
      %1237 = vst.msk [vmem:[#allocation3 + $0xe0] sm:$0xf] %vm386, %v1123
      %1238 = vst.msk [vmem:[#allocation3 + $0xf4] sm:$0xf] %vm386, %v1127
      %1239 = vst.msk [vmem:[#allocation3 + $0x108] sm:$0xf] %vm386, %v1130
      %1240 = vst.msk [vmem:[#allocation3 + $0x11c] sm:$0xf] %vm386, %v1134
      %1241 = vst.msk [vmem:[#allocation3 + $0x130] sm:$0xf] %vm386, %v1137
      %1242 = vst.msk [vmem:[#allocation3 + $0x144] sm:$0xf] %vm386, %v1141
      %1243 = vst.msk [vmem:[#allocation3 + $0x158] sm:$0xf] %vm386, %v1144
      %1244 = vst.msk [vmem:[#allocation3 + $0x16c] sm:$0xf] %vm386, %v1148
      %1245 = vst.msk [vmem:[#allocation3 + $0x180] sm:$0xf] %vm386, %v1151
      %1246 = vst.msk [vmem:[#allocation3 + $0x194] sm:$0xf] %vm386, %v1155
      %1247 = vst.msk [vmem:[#allocation3 + $0x1a8] sm:$0xf] %vm386, %v1158
      %1248 = vst.msk [vmem:[#allocation3 + $0x1bc] sm:$0xf] %vm386, %v1162
      %1249 = vst.msk [vmem:[#allocation3 + $0x1d0] sm:$0xf] %vm386, %v1165
      %1250 = vst.msk [vmem:[#allocation3 + $0x1e4] sm:$0xf] %vm386, %v1169
      %1251 = vst.msk [vmem:[#allocation3 + $0x1f8] sm:$0xf] %vm386, %v1172
      %1252 = vst.msk [vmem:[#allocation3 + $0x20c] sm:$0xf] %vm386, %v1176
      %1253 = vst.msk [vmem:[#allocation3 + $0x220] sm:$0xf] %vm386, %v1179
      %1254 = vst.msk [vmem:[#allocation3 + $0x234] sm:$0xf] %vm386, %v1183
      %1255 = vst.msk [vmem:[#allocation3 + $0x248] sm:$0xf] %vm386, %v1186
      %1256 = vst.msk [vmem:[#allocation3 + $0x25c] sm:$0xf] %vm386, %v1190
      %1257 = vst.msk [vmem:[#allocation3 + $0x270] sm:$0xf] %vm386, %v1193
      %s1258 = scalar_lea.vmem %s347, 12
      %v1259 = vld [vmem:[%s1258] sm:$0xf]
      %v1260 = vld [vmem:[%s1258 + $0x4] sm:$0xf]
      %v1261 = vld [vmem:[%s1258 + $0xc] sm:$0xf]
      %v1262 = vld [vmem:[%s1258 + $0x10] sm:$0xf]
      %v1263 = vld [vmem:[%s1258 + $0x18] sm:$0xf]
      %v1264 = vld [vmem:[%s1258 + $0x1c] sm:$0xf]
      %v1265 = vld [vmem:[%s1258 + $0x24] sm:$0xf]
      %v1266 = vld [vmem:[%s1258 + $0x28] sm:$0xf]
      %v1267 = vld [vmem:[%s1258 + $0x30] sm:$0xf]
      %v1268 = vld [vmem:[%s1258 + $0x34] sm:$0xf]
      %v1269 = vld [vmem:[%s1258 + $0x3c] sm:$0xf]
      %v1270 = vld [vmem:[%s1258 + $0x40] sm:$0xf]
      %v1271 = vld [vmem:[%s1258 + $0x48] sm:$0xf]
      %v1272 = vld [vmem:[%s1258 + $0x4c] sm:$0xf]
      %v1273 = vld [vmem:[%s1258 + $0x54] sm:$0xf]
      %v1274 = vld [vmem:[%s1258 + $0x58] sm:$0xf]
      %v1275 = vld [vmem:[%s1258 + $0x60] sm:$0xf]
      %v1276 = vld [vmem:[%s1258 + $0x64] sm:$0xf]
      %v1277 = vld [vmem:[%s1258 + $0x6c] sm:$0xf]
      %v1278 = vld [vmem:[%s1258 + $0x70] sm:$0xf]
      %v1279 = vld [vmem:[%s1258 + $0x78] sm:$0xf]
      %v1280 = vld [vmem:[%s1258 + $0x7c] sm:$0xf]
      %v1281 = vld [vmem:[%s1258 + $0x84] sm:$0xf]
      %v1282 = vld [vmem:[%s1258 + $0x88] sm:$0xf]
      %v1283 = vld [vmem:[%s1258 + $0x90] sm:$0xf]
      %v1284 = vld [vmem:[%s1258 + $0x94] sm:$0xf]
      %v1285 = vld [vmem:[%s1258 + $0x9c] sm:$0xf]
      %v1286 = vld [vmem:[%s1258 + $0xa0] sm:$0xf]
      %v1287 = vld [vmem:[%s1258 + $0xa8] sm:$0xf]
      %v1288 = vld [vmem:[%s1258 + $0xac] sm:$0xf]
      %v1289 = vld [vmem:[%s1258 + $0xb4] sm:$0xf]
      %v1290 = vld [vmem:[%s1258 + $0xb8] sm:$0xf]
      %1323 = vrot.lane.b32.xlu0 %v1259, 64
      %v1324 = vpop.permute.xlu0 %1323
      %1325 = vrot.lane.b32.xlu0 %v1260, 64
      %v1326 = vpop.permute.xlu0 %1325
      %1327 = vrot.lane.b32.xlu0 %v1261, 64
      %v1328 = vpop.permute.xlu0 %1327
      %1329 = vrot.lane.b32.xlu0 %v1262, 64
      %v1330 = vpop.permute.xlu0 %1329
      %1331 = vrot.lane.b32.xlu0 %v1263, 64
      %v1332 = vpop.permute.xlu0 %1331
      %1333 = vrot.lane.b32.xlu0 %v1264, 64
      %v1334 = vpop.permute.xlu0 %1333
      %1335 = vrot.lane.b32.xlu0 %v1265, 64
      %v1336 = vpop.permute.xlu0 %1335
      %1337 = vrot.lane.b32.xlu0 %v1266, 64
      %v1338 = vpop.permute.xlu0 %1337
      %1339 = vrot.lane.b32.xlu0 %v1267, 64
      %v1340 = vpop.permute.xlu0 %1339
      %1341 = vrot.lane.b32.xlu0 %v1268, 64
      %v1342 = vpop.permute.xlu0 %1341
      %1343 = vrot.lane.b32.xlu0 %v1269, 64
      %v1344 = vpop.permute.xlu0 %1343
      %1345 = vrot.lane.b32.xlu0 %v1270, 64
      %v1346 = vpop.permute.xlu0 %1345
      %1347 = vrot.lane.b32.xlu0 %v1271, 64
      %v1348 = vpop.permute.xlu0 %1347
      %1349 = vrot.lane.b32.xlu0 %v1272, 64
      %v1350 = vpop.permute.xlu0 %1349
      %1351 = vrot.lane.b32.xlu0 %v1273, 64
      %v1352 = vpop.permute.xlu0 %1351
      %1353 = vrot.lane.b32.xlu0 %v1274, 64
      %v1354 = vpop.permute.xlu0 %1353
      %1355 = vrot.lane.b32.xlu0 %v1275, 64
      %v1356 = vpop.permute.xlu0 %1355
      %1357 = vrot.lane.b32.xlu0 %v1276, 64
      %v1358 = vpop.permute.xlu0 %1357
      %1359 = vrot.lane.b32.xlu0 %v1277, 64
      %v1360 = vpop.permute.xlu0 %1359
      %1361 = vrot.lane.b32.xlu0 %v1278, 64
      %v1362 = vpop.permute.xlu0 %1361
      %1363 = vrot.lane.b32.xlu0 %v1279, 64
      %v1364 = vpop.permute.xlu0 %1363
      %1365 = vrot.lane.b32.xlu0 %v1280, 64
      %v1366 = vpop.permute.xlu0 %1365
      %1367 = vrot.lane.b32.xlu0 %v1281, 64
      %v1368 = vpop.permute.xlu0 %1367
      %1369 = vrot.lane.b32.xlu0 %v1282, 64
      %v1370 = vpop.permute.xlu0 %1369
      %1371 = vrot.lane.b32.xlu0 %v1283, 64
      %v1372 = vpop.permute.xlu0 %1371
      %1373 = vrot.lane.b32.xlu0 %v1284, 64
      %v1374 = vpop.permute.xlu0 %1373
      %1375 = vrot.lane.b32.xlu0 %v1285, 64
      %v1376 = vpop.permute.xlu0 %1375
      %1377 = vrot.lane.b32.xlu0 %v1286, 64
      %v1378 = vpop.permute.xlu0 %1377
      %1379 = vrot.lane.b32.xlu0 %v1287, 64
      %v1380 = vpop.permute.xlu0 %1379
      %1381 = vrot.lane.b32.xlu0 %v1288, 64
      %v1382 = vpop.permute.xlu0 %1381
      %1383 = vrot.lane.b32.xlu0 %v1289, 64
      %v1384 = vpop.permute.xlu0 %1383
      %1385 = vrot.lane.b32.xlu0 %v1290, 64
      %v1386 = vpop.permute.xlu0 %1385
      %1419 = vst.msk [vmem:[#allocation3 + $0x4] sm:$0xf] %vm950, %v1324
      %1420 = vst.msk [vmem:[#allocation3 + $0x18] sm:$0xf] %vm950, %v1326
      %1421 = vst.msk [vmem:[#allocation3 + $0x2c] sm:$0xf] %vm950, %v1328
      %1422 = vst.msk [vmem:[#allocation3 + $0x40] sm:$0xf] %vm950, %v1330
      %1423 = vst.msk [vmem:[#allocation3 + $0x54] sm:$0xf] %vm950, %v1332
      %1424 = vst.msk [vmem:[#allocation3 + $0x68] sm:$0xf] %vm950, %v1334
      %1425 = vst.msk [vmem:[#allocation3 + $0x7c] sm:$0xf] %vm950, %v1336
      %1426 = vst.msk [vmem:[#allocation3 + $0x90] sm:$0xf] %vm950, %v1338
      %1427 = vst.msk [vmem:[#allocation3 + $0xa4] sm:$0xf] %vm950, %v1340
      %1428 = vst.msk [vmem:[#allocation3 + $0xb8] sm:$0xf] %vm950, %v1342
      %1429 = vst.msk [vmem:[#allocation3 + $0xcc] sm:$0xf] %vm950, %v1344
      %1430 = vst.msk [vmem:[#allocation3 + $0xe0] sm:$0xf] %vm950, %v1346
      %1431 = vst.msk [vmem:[#allocation3 + $0xf4] sm:$0xf] %vm950, %v1348
      %1432 = vst.msk [vmem:[#allocation3 + $0x108] sm:$0xf] %vm950, %v1350
      %1433 = vst.msk [vmem:[#allocation3 + $0x11c] sm:$0xf] %vm950, %v1352
      %1434 = vst.msk [vmem:[#allocation3 + $0x130] sm:$0xf] %vm950, %v1354
      %1435 = vst.msk [vmem:[#allocation3 + $0x144] sm:$0xf] %vm950, %v1356
      %1436 = vst.msk [vmem:[#allocation3 + $0x158] sm:$0xf] %vm950, %v1358
      %1437 = vst.msk [vmem:[#allocation3 + $0x16c] sm:$0xf] %vm950, %v1360
      %1438 = vst.msk [vmem:[#allocation3 + $0x180] sm:$0xf] %vm950, %v1362
      %1439 = vst.msk [vmem:[#allocation3 + $0x194] sm:$0xf] %vm950, %v1364
      %1440 = vst.msk [vmem:[#allocation3 + $0x1a8] sm:$0xf] %vm950, %v1366
      %1441 = vst.msk [vmem:[#allocation3 + $0x1bc] sm:$0xf] %vm950, %v1368
      %1442 = vst.msk [vmem:[#allocation3 + $0x1d0] sm:$0xf] %vm950, %v1370
      %1443 = vst.msk [vmem:[#allocation3 + $0x1e4] sm:$0xf] %vm950, %v1372
      %1444 = vst.msk [vmem:[#allocation3 + $0x1f8] sm:$0xf] %vm950, %v1374
      %1445 = vst.msk [vmem:[#allocation3 + $0x20c] sm:$0xf] %vm950, %v1376
      %1446 = vst.msk [vmem:[#allocation3 + $0x220] sm:$0xf] %vm950, %v1378
      %1447 = vst.msk [vmem:[#allocation3 + $0x234] sm:$0xf] %vm950, %v1380
      %1448 = vst.msk [vmem:[#allocation3 + $0x248] sm:$0xf] %vm950, %v1382
      %1449 = vst.msk [vmem:[#allocation3 + $0x25c] sm:$0xf] %vm950, %v1384
      %1450 = vst.msk [vmem:[#allocation3 + $0x270] sm:$0xf] %vm950, %v1386
      %v1451 = vld [vmem:[%s1258] sm:$0xf]
      %v1452 = vld [vmem:[%s1258 + $0x4] sm:$0xf]
      %v1453 = vld [vmem:[%s1258 + $0x8] sm:$0x1]
      %v1454 = vld [vmem:[%s1258 + $0xc] sm:$0xf]
      %v1455 = vld [vmem:[%s1258 + $0x10] sm:$0xf]
      %v1456 = vld [vmem:[%s1258 + $0x14] sm:$0x1]
      %v1457 = vld [vmem:[%s1258 + $0x18] sm:$0xf]
      %v1458 = vld [vmem:[%s1258 + $0x1c] sm:$0xf]
      %v1459 = vld [vmem:[%s1258 + $0x20] sm:$0x1]
      %v1460 = vld [vmem:[%s1258 + $0x24] sm:$0xf]
      %v1461 = vld [vmem:[%s1258 + $0x28] sm:$0xf]
      %v1462 = vld [vmem:[%s1258 + $0x2c] sm:$0x1]
      %v1463 = vld [vmem:[%s1258 + $0x30] sm:$0xf]
      %v1464 = vld [vmem:[%s1258 + $0x34] sm:$0xf]
      %v1465 = vld [vmem:[%s1258 + $0x38] sm:$0x1]
      %v1466 = vld [vmem:[%s1258 + $0x3c] sm:$0xf]
      %v1467 = vld [vmem:[%s1258 + $0x40] sm:$0xf]
      %v1468 = vld [vmem:[%s1258 + $0x44] sm:$0x1]
      %v1469 = vld [vmem:[%s1258 + $0x48] sm:$0xf]
      %v1470 = vld [vmem:[%s1258 + $0x4c] sm:$0xf]
      %v1471 = vld [vmem:[%s1258 + $0x50] sm:$0x1]
      %v1472 = vld [vmem:[%s1258 + $0x54] sm:$0xf]
      %v1473 = vld [vmem:[%s1258 + $0x58] sm:$0xf]
      %v1474 = vld [vmem:[%s1258 + $0x5c] sm:$0x1]
      %v1475 = vld [vmem:[%s1258 + $0x60] sm:$0xf]
      %v1476 = vld [vmem:[%s1258 + $0x64] sm:$0xf]
      %v1477 = vld [vmem:[%s1258 + $0x68] sm:$0x1]
      %v1478 = vld [vmem:[%s1258 + $0x6c] sm:$0xf]
      %v1479 = vld [vmem:[%s1258 + $0x70] sm:$0xf]
      %v1480 = vld [vmem:[%s1258 + $0x74] sm:$0x1]
      %v1481 = vld [vmem:[%s1258 + $0x78] sm:$0xf]
      %v1482 = vld [vmem:[%s1258 + $0x7c] sm:$0xf]
      %v1483 = vld [vmem:[%s1258 + $0x80] sm:$0x1]
      %v1484 = vld [vmem:[%s1258 + $0x84] sm:$0xf]
      %v1485 = vld [vmem:[%s1258 + $0x88] sm:$0xf]
      %v1486 = vld [vmem:[%s1258 + $0x8c] sm:$0x1]
      %v1487 = vld [vmem:[%s1258 + $0x90] sm:$0xf]
      %v1488 = vld [vmem:[%s1258 + $0x94] sm:$0xf]
      %v1489 = vld [vmem:[%s1258 + $0x98] sm:$0x1]
      %v1490 = vld [vmem:[%s1258 + $0x9c] sm:$0xf]
      %v1491 = vld [vmem:[%s1258 + $0xa0] sm:$0xf]
      %v1492 = vld [vmem:[%s1258 + $0xa4] sm:$0x1]
      %v1493 = vld [vmem:[%s1258 + $0xa8] sm:$0xf]
      %v1494 = vld [vmem:[%s1258 + $0xac] sm:$0xf]
      %v1495 = vld [vmem:[%s1258 + $0xb0] sm:$0x1]
      %v1496 = vld [vmem:[%s1258 + $0xb4] sm:$0xf]
      %v1497 = vld [vmem:[%s1258 + $0xb8] sm:$0xf]
      %v1498 = vld [vmem:[%s1258 + $0xbc] sm:$0x1]
      %v1500 = vshrl.u32 %v1451, 16
      %v1502 = vrot.slane %v1500, 4
      %v1503 = vshll.u32 %v1451, 16
      %v1505 = vrot.slane %v1503, 5
      %v1506 = vor.u32 %v1502, %v1505
      %v1507 = vrot.slane %v1506, 4
      %v1509 = vshll.u32 %v1452, 16
      %v1511 = vrot.slane %v1509, 5
      %v1512 = vsel %vm469, %v1507, %v1511
      %v1513 = vshrl.u32 %v1452, 16
      %v1515 = vrot.slane %v1513, 4
      %v1516 = vor.u32 %v1515, %v1511
      %v1517 = vrot.slane %v1516, 4
      %v1519 = vshll.u32 %v1453, 16
      %v1521 = vrot.slane %v1519, 5
      %v1522 = vsel %vm469, %v1517, %v1521
      %v1524 = vshrl.u32 %v1454, 16
      %v1526 = vrot.slane %v1524, 4
      %v1527 = vshll.u32 %v1454, 16
      %v1529 = vrot.slane %v1527, 5
      %v1530 = vor.u32 %v1526, %v1529
      %v1531 = vrot.slane %v1530, 4
      %v1533 = vshll.u32 %v1455, 16
      %v1535 = vrot.slane %v1533, 5
      %v1536 = vsel %vm469, %v1531, %v1535
      %v1537 = vshrl.u32 %v1455, 16
      %v1539 = vrot.slane %v1537, 4
      %v1540 = vor.u32 %v1539, %v1535
      %v1541 = vrot.slane %v1540, 4
      %v1543 = vshll.u32 %v1456, 16
      %v1545 = vrot.slane %v1543, 5
      %v1546 = vsel %vm469, %v1541, %v1545
      %v1548 = vshrl.u32 %v1457, 16
      %v1550 = vrot.slane %v1548, 4
      %v1551 = vshll.u32 %v1457, 16
      %v1553 = vrot.slane %v1551, 5
      %v1554 = vor.u32 %v1550, %v1553
      %v1555 = vrot.slane %v1554, 4
      %v1557 = vshll.u32 %v1458, 16
      %v1559 = vrot.slane %v1557, 5
      %v1560 = vsel %vm469, %v1555, %v1559
      %v1561 = vshrl.u32 %v1458, 16
      %v1563 = vrot.slane %v1561, 4
      %v1564 = vor.u32 %v1563, %v1559
      %v1565 = vrot.slane %v1564, 4
      %v1567 = vshll.u32 %v1459, 16
      %v1569 = vrot.slane %v1567, 5
      %v1570 = vsel %vm469, %v1565, %v1569
      %v1572 = vshrl.u32 %v1460, 16
      %v1574 = vrot.slane %v1572, 4
      %v1575 = vshll.u32 %v1460, 16
      %v1577 = vrot.slane %v1575, 5
      %v1578 = vor.u32 %v1574, %v1577
      %v1579 = vrot.slane %v1578, 4
      %v1581 = vshll.u32 %v1461, 16
      %v1583 = vrot.slane %v1581, 5
      %v1584 = vsel %vm469, %v1579, %v1583
      %v1585 = vshrl.u32 %v1461, 16
      %v1587 = vrot.slane %v1585, 4
      %v1588 = vor.u32 %v1587, %v1583
      %v1589 = vrot.slane %v1588, 4
      %v1591 = vshll.u32 %v1462, 16
      %v1593 = vrot.slane %v1591, 5
      %v1594 = vsel %vm469, %v1589, %v1593
      %v1596 = vshrl.u32 %v1463, 16
      %v1598 = vrot.slane %v1596, 4
      %v1599 = vshll.u32 %v1463, 16
      %v1601 = vrot.slane %v1599, 5
      %v1602 = vor.u32 %v1598, %v1601
      %v1603 = vrot.slane %v1602, 4
      %v1605 = vshll.u32 %v1464, 16
      %v1607 = vrot.slane %v1605, 5
      %v1608 = vsel %vm469, %v1603, %v1607
      %v1609 = vshrl.u32 %v1464, 16
      %v1611 = vrot.slane %v1609, 4
      %v1612 = vor.u32 %v1611, %v1607
      %v1613 = vrot.slane %v1612, 4
      %v1615 = vshll.u32 %v1465, 16
      %v1617 = vrot.slane %v1615, 5
      %v1618 = vsel %vm469, %v1613, %v1617
      %v1620 = vshrl.u32 %v1466, 16
      %v1622 = vrot.slane %v1620, 4
      %v1623 = vshll.u32 %v1466, 16
      %v1625 = vrot.slane %v1623, 5
      %v1626 = vor.u32 %v1622, %v1625
      %v1627 = vrot.slane %v1626, 4
      %v1629 = vshll.u32 %v1467, 16
      %v1631 = vrot.slane %v1629, 5
      %v1632 = vsel %vm469, %v1627, %v1631
      %v1633 = vshrl.u32 %v1467, 16
      %v1635 = vrot.slane %v1633, 4
      %v1636 = vor.u32 %v1635, %v1631
      %v1637 = vrot.slane %v1636, 4
      %v1639 = vshll.u32 %v1468, 16
      %v1641 = vrot.slane %v1639, 5
      %v1642 = vsel %vm469, %v1637, %v1641
      %v1644 = vshrl.u32 %v1469, 16
      %v1646 = vrot.slane %v1644, 4
      %v1647 = vshll.u32 %v1469, 16
      %v1649 = vrot.slane %v1647, 5
      %v1650 = vor.u32 %v1646, %v1649
      %v1651 = vrot.slane %v1650, 4
      %v1653 = vshll.u32 %v1470, 16
      %v1655 = vrot.slane %v1653, 5
      %v1656 = vsel %vm469, %v1651, %v1655
      %v1657 = vshrl.u32 %v1470, 16
      %v1659 = vrot.slane %v1657, 4
      %v1660 = vor.u32 %v1659, %v1655
      %v1661 = vrot.slane %v1660, 4
      %v1663 = vshll.u32 %v1471, 16
      %v1665 = vrot.slane %v1663, 5
      %v1666 = vsel %vm469, %v1661, %v1665
      %v1668 = vshrl.u32 %v1472, 16
      %v1670 = vrot.slane %v1668, 4
      %v1671 = vshll.u32 %v1472, 16
      %v1673 = vrot.slane %v1671, 5
      %v1674 = vor.u32 %v1670, %v1673
      %v1675 = vrot.slane %v1674, 4
      %v1677 = vshll.u32 %v1473, 16
      %v1679 = vrot.slane %v1677, 5
      %v1680 = vsel %vm469, %v1675, %v1679
      %v1681 = vshrl.u32 %v1473, 16
      %v1683 = vrot.slane %v1681, 4
      %v1684 = vor.u32 %v1683, %v1679
      %v1685 = vrot.slane %v1684, 4
      %v1687 = vshll.u32 %v1474, 16
      %v1689 = vrot.slane %v1687, 5
      %v1690 = vsel %vm469, %v1685, %v1689
      %v1692 = vshrl.u32 %v1475, 16
      %v1694 = vrot.slane %v1692, 4
      %v1695 = vshll.u32 %v1475, 16
      %v1697 = vrot.slane %v1695, 5
      %v1698 = vor.u32 %v1694, %v1697
      %v1699 = vrot.slane %v1698, 4
      %v1701 = vshll.u32 %v1476, 16
      %v1703 = vrot.slane %v1701, 5
      %v1704 = vsel %vm469, %v1699, %v1703
      %v1705 = vshrl.u32 %v1476, 16
      %v1707 = vrot.slane %v1705, 4
      %v1708 = vor.u32 %v1707, %v1703
      %v1709 = vrot.slane %v1708, 4
      %v1711 = vshll.u32 %v1477, 16
      %v1713 = vrot.slane %v1711, 5
      %v1714 = vsel %vm469, %v1709, %v1713
      %v1716 = vshrl.u32 %v1478, 16
      %v1718 = vrot.slane %v1716, 4
      %v1719 = vshll.u32 %v1478, 16
      %v1721 = vrot.slane %v1719, 5
      %v1722 = vor.u32 %v1718, %v1721
      %v1723 = vrot.slane %v1722, 4
      %v1725 = vshll.u32 %v1479, 16
      %v1727 = vrot.slane %v1725, 5
      %v1728 = vsel %vm469, %v1723, %v1727
      %v1729 = vshrl.u32 %v1479, 16
      %v1731 = vrot.slane %v1729, 4
      %v1732 = vor.u32 %v1731, %v1727
      %v1733 = vrot.slane %v1732, 4
      %v1735 = vshll.u32 %v1480, 16
      %v1737 = vrot.slane %v1735, 5
      %v1738 = vsel %vm469, %v1733, %v1737
      %v1740 = vshrl.u32 %v1481, 16
      %v1742 = vrot.slane %v1740, 4
      %v1743 = vshll.u32 %v1481, 16
      %v1745 = vrot.slane %v1743, 5
      %v1746 = vor.u32 %v1742, %v1745
      %v1747 = vrot.slane %v1746, 4
      %v1749 = vshll.u32 %v1482, 16
      %v1751 = vrot.slane %v1749, 5
      %v1752 = vsel %vm469, %v1747, %v1751
      %v1753 = vshrl.u32 %v1482, 16
      %v1755 = vrot.slane %v1753, 4
      %v1756 = vor.u32 %v1755, %v1751
      %v1757 = vrot.slane %v1756, 4
      %v1759 = vshll.u32 %v1483, 16
      %v1761 = vrot.slane %v1759, 5
      %v1762 = vsel %vm469, %v1757, %v1761
      %v1764 = vshrl.u32 %v1484, 16
      %v1766 = vrot.slane %v1764, 4
      %v1767 = vshll.u32 %v1484, 16
      %v1769 = vrot.slane %v1767, 5
      %v1770 = vor.u32 %v1766, %v1769
      %v1771 = vrot.slane %v1770, 4
      %v1773 = vshll.u32 %v1485, 16
      %v1775 = vrot.slane %v1773, 5
      %v1776 = vsel %vm469, %v1771, %v1775
      %v1777 = vshrl.u32 %v1485, 16
      %v1779 = vrot.slane %v1777, 4
      %v1780 = vor.u32 %v1779, %v1775
      %v1781 = vrot.slane %v1780, 4
      %v1783 = vshll.u32 %v1486, 16
      %v1785 = vrot.slane %v1783, 5
      %v1786 = vsel %vm469, %v1781, %v1785
      %v1788 = vshrl.u32 %v1487, 16
      %v1790 = vrot.slane %v1788, 4
      %v1791 = vshll.u32 %v1487, 16
      %v1793 = vrot.slane %v1791, 5
      %v1794 = vor.u32 %v1790, %v1793
      %v1795 = vrot.slane %v1794, 4
      %v1797 = vshll.u32 %v1488, 16
      %v1799 = vrot.slane %v1797, 5
      %v1800 = vsel %vm469, %v1795, %v1799
      %v1801 = vshrl.u32 %v1488, 16
      %v1803 = vrot.slane %v1801, 4
      %v1804 = vor.u32 %v1803, %v1799
      %v1805 = vrot.slane %v1804, 4
      %v1807 = vshll.u32 %v1489, 16
      %v1809 = vrot.slane %v1807, 5
      %v1810 = vsel %vm469, %v1805, %v1809
      %v1812 = vshrl.u32 %v1490, 16
      %v1814 = vrot.slane %v1812, 4
      %v1815 = vshll.u32 %v1490, 16
      %v1817 = vrot.slane %v1815, 5
      %v1818 = vor.u32 %v1814, %v1817
      %v1819 = vrot.slane %v1818, 4
      %v1821 = vshll.u32 %v1491, 16
      %v1823 = vrot.slane %v1821, 5
      %v1824 = vsel %vm469, %v1819, %v1823
      %v1825 = vshrl.u32 %v1491, 16
      %v1827 = vrot.slane %v1825, 4
      %v1828 = vor.u32 %v1827, %v1823
      %v1829 = vrot.slane %v1828, 4
      %v1831 = vshll.u32 %v1492, 16
      %v1833 = vrot.slane %v1831, 5
      %v1834 = vsel %vm469, %v1829, %v1833
      %v1836 = vshrl.u32 %v1493, 16
      %v1838 = vrot.slane %v1836, 4
      %v1839 = vshll.u32 %v1493, 16
      %v1841 = vrot.slane %v1839, 5
      %v1842 = vor.u32 %v1838, %v1841
      %v1843 = vrot.slane %v1842, 4
      %v1845 = vshll.u32 %v1494, 16
      %v1847 = vrot.slane %v1845, 5
      %v1848 = vsel %vm469, %v1843, %v1847
      %v1849 = vshrl.u32 %v1494, 16
      %v1851 = vrot.slane %v1849, 4
      %v1852 = vor.u32 %v1851, %v1847
      %v1853 = vrot.slane %v1852, 4
      %v1855 = vshll.u32 %v1495, 16
      %v1857 = vrot.slane %v1855, 5
      %v1858 = vsel %vm469, %v1853, %v1857
      %v1860 = vshrl.u32 %v1496, 16
      %v1862 = vrot.slane %v1860, 4
      %v1863 = vshll.u32 %v1496, 16
      %v1865 = vrot.slane %v1863, 5
      %v1866 = vor.u32 %v1862, %v1865
      %v1867 = vrot.slane %v1866, 4
      %v1869 = vshll.u32 %v1497, 16
      %v1871 = vrot.slane %v1869, 5
      %v1872 = vsel %vm469, %v1867, %v1871
      %v1873 = vshrl.u32 %v1497, 16
      %v1875 = vrot.slane %v1873, 4
      %v1876 = vor.u32 %v1875, %v1871
      %v1877 = vrot.slane %v1876, 4
      %v1879 = vshll.u32 %v1498, 16
      %v1881 = vrot.slane %v1879, 5
      %v1882 = vsel %vm469, %v1877, %v1881
      %1915 = vst.msk [vmem:[#allocation3 + $0x8] sm:$0xf] %vm386, %v1512
      %1916 = vst.msk [vmem:[#allocation3 + $0x1c] sm:$0xf] %vm386, %v1522
      %1917 = vst.msk [vmem:[#allocation3 + $0x30] sm:$0xf] %vm386, %v1536
      %1918 = vst.msk [vmem:[#allocation3 + $0x44] sm:$0xf] %vm386, %v1546
      %1919 = vst.msk [vmem:[#allocation3 + $0x58] sm:$0xf] %vm386, %v1560
      %1920 = vst.msk [vmem:[#allocation3 + $0x6c] sm:$0xf] %vm386, %v1570
      %1921 = vst.msk [vmem:[#allocation3 + $0x80] sm:$0xf] %vm386, %v1584
      %1922 = vst.msk [vmem:[#allocation3 + $0x94] sm:$0xf] %vm386, %v1594
      %1923 = vst.msk [vmem:[#allocation3 + $0xa8] sm:$0xf] %vm386, %v1608
      %1924 = vst.msk [vmem:[#allocation3 + $0xbc] sm:$0xf] %vm386, %v1618
      %1925 = vst.msk [vmem:[#allocation3 + $0xd0] sm:$0xf] %vm386, %v1632
      %1926 = vst.msk [vmem:[#allocation3 + $0xe4] sm:$0xf] %vm386, %v1642
      %1927 = vst.msk [vmem:[#allocation3 + $0xf8] sm:$0xf] %vm386, %v1656
      %1928 = vst.msk [vmem:[#allocation3 + $0x10c] sm:$0xf] %vm386, %v1666
      %1929 = vst.msk [vmem:[#allocation3 + $0x120] sm:$0xf] %vm386, %v1680
      %1930 = vst.msk [vmem:[#allocation3 + $0x134] sm:$0xf] %vm386, %v1690
      %1931 = vst.msk [vmem:[#allocation3 + $0x148] sm:$0xf] %vm386, %v1704
      %1932 = vst.msk [vmem:[#allocation3 + $0x15c] sm:$0xf] %vm386, %v1714
      %1933 = vst.msk [vmem:[#allocation3 + $0x170] sm:$0xf] %vm386, %v1728
      %1934 = vst.msk [vmem:[#allocation3 + $0x184] sm:$0xf] %vm386, %v1738
      %1935 = vst.msk [vmem:[#allocation3 + $0x198] sm:$0xf] %vm386, %v1752
      %1936 = vst.msk [vmem:[#allocation3 + $0x1ac] sm:$0xf] %vm386, %v1762
      %1937 = vst.msk [vmem:[#allocation3 + $0x1c0] sm:$0xf] %vm386, %v1776
      %1938 = vst.msk [vmem:[#allocation3 + $0x1d4] sm:$0xf] %vm386, %v1786
      %1939 = vst.msk [vmem:[#allocation3 + $0x1e8] sm:$0xf] %vm386, %v1800
      %1940 = vst.msk [vmem:[#allocation3 + $0x1fc] sm:$0xf] %vm386, %v1810
      %1941 = vst.msk [vmem:[#allocation3 + $0x210] sm:$0xf] %vm386, %v1824
      %1942 = vst.msk [vmem:[#allocation3 + $0x224] sm:$0xf] %vm386, %v1834
      %1943 = vst.msk [vmem:[#allocation3 + $0x238] sm:$0xf] %vm386, %v1848
      %1944 = vst.msk [vmem:[#allocation3 + $0x24c] sm:$0xf] %vm386, %v1858
      %1945 = vst.msk [vmem:[#allocation3 + $0x260] sm:$0xf] %vm386, %v1872
      %1946 = vst.msk [vmem:[#allocation3 + $0x274] sm:$0xf] %vm386, %v1882
      %v1947 = vld [vmem:[%s1258] sm:$0xe]
      %v1948 = vld [vmem:[%s1258 + $0x4] sm:$0xf]
      %v1949 = vld [vmem:[%s1258 + $0x8] sm:$0x1]
      %v1950 = vld [vmem:[%s1258 + $0xc] sm:$0xe]
      %v1951 = vld [vmem:[%s1258 + $0x10] sm:$0xf]
      %v1952 = vld [vmem:[%s1258 + $0x14] sm:$0x1]
      %v1953 = vld [vmem:[%s1258 + $0x18] sm:$0xe]
      %v1954 = vld [vmem:[%s1258 + $0x1c] sm:$0xf]
      %v1955 = vld [vmem:[%s1258 + $0x20] sm:$0x1]
      %v1956 = vld [vmem:[%s1258 + $0x24] sm:$0xe]
      %v1957 = vld [vmem:[%s1258 + $0x28] sm:$0xf]
      %v1958 = vld [vmem:[%s1258 + $0x2c] sm:$0x1]
      %v1959 = vld [vmem:[%s1258 + $0x30] sm:$0xe]
      %v1960 = vld [vmem:[%s1258 + $0x34] sm:$0xf]
      %v1961 = vld [vmem:[%s1258 + $0x38] sm:$0x1]
      %v1962 = vld [vmem:[%s1258 + $0x3c] sm:$0xe]
      %v1963 = vld [vmem:[%s1258 + $0x40] sm:$0xf]
      %v1964 = vld [vmem:[%s1258 + $0x44] sm:$0x1]
      %v1965 = vld [vmem:[%s1258 + $0x48] sm:$0xe]
      %v1966 = vld [vmem:[%s1258 + $0x4c] sm:$0xf]
      %v1967 = vld [vmem:[%s1258 + $0x50] sm:$0x1]
      %v1968 = vld [vmem:[%s1258 + $0x54] sm:$0xe]
      %v1969 = vld [vmem:[%s1258 + $0x58] sm:$0xf]
      %v1970 = vld [vmem:[%s1258 + $0x5c] sm:$0x1]
      %v1971 = vld [vmem:[%s1258 + $0x60] sm:$0xe]
      %v1972 = vld [vmem:[%s1258 + $0x64] sm:$0xf]
      %v1973 = vld [vmem:[%s1258 + $0x68] sm:$0x1]
      %v1974 = vld [vmem:[%s1258 + $0x6c] sm:$0xe]
      %v1975 = vld [vmem:[%s1258 + $0x70] sm:$0xf]
      %v1976 = vld [vmem:[%s1258 + $0x74] sm:$0x1]
      %v1977 = vld [vmem:[%s1258 + $0x78] sm:$0xe]
      %v1978 = vld [vmem:[%s1258 + $0x7c] sm:$0xf]
      %v1979 = vld [vmem:[%s1258 + $0x80] sm:$0x1]
      %v1980 = vld [vmem:[%s1258 + $0x84] sm:$0xe]
      %v1981 = vld [vmem:[%s1258 + $0x88] sm:$0xf]
      %v1982 = vld [vmem:[%s1258 + $0x8c] sm:$0x1]
      %v1983 = vld [vmem:[%s1258 + $0x90] sm:$0xe]
      %v1984 = vld [vmem:[%s1258 + $0x94] sm:$0xf]
      %v1985 = vld [vmem:[%s1258 + $0x98] sm:$0x1]
      %v1986 = vld [vmem:[%s1258 + $0x9c] sm:$0xe]
      %v1987 = vld [vmem:[%s1258 + $0xa0] sm:$0xf]
      %v1988 = vld [vmem:[%s1258 + $0xa4] sm:$0x1]
      %v1989 = vld [vmem:[%s1258 + $0xa8] sm:$0xe]
      %v1990 = vld [vmem:[%s1258 + $0xac] sm:$0xf]
      %v1991 = vld [vmem:[%s1258 + $0xb0] sm:$0x1]
      %v1992 = vld [vmem:[%s1258 + $0xb4] sm:$0xe]
      %v1993 = vld [vmem:[%s1258 + $0xb8] sm:$0xf]
      %v1994 = vld [vmem:[%s1258 + $0xbc] sm:$0x1]
      %v2043 = vrot.slane %v1947, 5
      %v2044 = vrot.slane %v2043, 4
      %v2045 = vrot.slane %v1948, 5
      %v2046 = vsel %vm1081, %v2044, %v2045
      %v2047 = vrot.slane %v2045, 4
      %v2048 = vrot.slane %v1949, 5
      %v2049 = vsel %vm1081, %v2047, %v2048
      %v2050 = vrot.slane %v1950, 5
      %v2051 = vrot.slane %v2050, 4
      %v2052 = vrot.slane %v1951, 5
      %v2053 = vsel %vm1081, %v2051, %v2052
      %v2054 = vrot.slane %v2052, 4
      %v2055 = vrot.slane %v1952, 5
      %v2056 = vsel %vm1081, %v2054, %v2055
      %v2057 = vrot.slane %v1953, 5
      %v2058 = vrot.slane %v2057, 4
      %v2059 = vrot.slane %v1954, 5
      %v2060 = vsel %vm1081, %v2058, %v2059
      %v2061 = vrot.slane %v2059, 4
      %v2062 = vrot.slane %v1955, 5
      %v2063 = vsel %vm1081, %v2061, %v2062
      %v2064 = vrot.slane %v1956, 5
      %v2065 = vrot.slane %v2064, 4
      %v2066 = vrot.slane %v1957, 5
      %v2067 = vsel %vm1081, %v2065, %v2066
      %v2068 = vrot.slane %v2066, 4
      %v2069 = vrot.slane %v1958, 5
      %v2070 = vsel %vm1081, %v2068, %v2069
      %v2071 = vrot.slane %v1959, 5
      %v2072 = vrot.slane %v2071, 4
      %v2073 = vrot.slane %v1960, 5
      %v2074 = vsel %vm1081, %v2072, %v2073
      %v2075 = vrot.slane %v2073, 4
      %v2076 = vrot.slane %v1961, 5
      %v2077 = vsel %vm1081, %v2075, %v2076
      %v2078 = vrot.slane %v1962, 5
      %v2079 = vrot.slane %v2078, 4
      %v2080 = vrot.slane %v1963, 5
      %v2081 = vsel %vm1081, %v2079, %v2080
      %v2082 = vrot.slane %v2080, 4
      %v2083 = vrot.slane %v1964, 5
      %v2084 = vsel %vm1081, %v2082, %v2083
      %v2085 = vrot.slane %v1965, 5
      %v2086 = vrot.slane %v2085, 4
      %v2087 = vrot.slane %v1966, 5
      %v2088 = vsel %vm1081, %v2086, %v2087
      %v2089 = vrot.slane %v2087, 4
      %v2090 = vrot.slane %v1967, 5
      %v2091 = vsel %vm1081, %v2089, %v2090
      %v2092 = vrot.slane %v1968, 5
      %v2093 = vrot.slane %v2092, 4
      %v2094 = vrot.slane %v1969, 5
      %v2095 = vsel %vm1081, %v2093, %v2094
      %v2096 = vrot.slane %v2094, 4
      %v2097 = vrot.slane %v1970, 5
      %v2098 = vsel %vm1081, %v2096, %v2097
      %v2099 = vrot.slane %v1971, 5
      %v2100 = vrot.slane %v2099, 4
      %v2101 = vrot.slane %v1972, 5
      %v2102 = vsel %vm1081, %v2100, %v2101
      %v2103 = vrot.slane %v2101, 4
      %v2104 = vrot.slane %v1973, 5
      %v2105 = vsel %vm1081, %v2103, %v2104
      %v2106 = vrot.slane %v1974, 5
      %v2107 = vrot.slane %v2106, 4
      %v2108 = vrot.slane %v1975, 5
      %v2109 = vsel %vm1081, %v2107, %v2108
      %v2110 = vrot.slane %v2108, 4
      %v2111 = vrot.slane %v1976, 5
      %v2112 = vsel %vm1081, %v2110, %v2111
      %v2113 = vrot.slane %v1977, 5
      %v2114 = vrot.slane %v2113, 4
      %v2115 = vrot.slane %v1978, 5
      %v2116 = vsel %vm1081, %v2114, %v2115
      %v2117 = vrot.slane %v2115, 4
      %v2118 = vrot.slane %v1979, 5
      %v2119 = vsel %vm1081, %v2117, %v2118
      %v2120 = vrot.slane %v1980, 5
      %v2121 = vrot.slane %v2120, 4
      %v2122 = vrot.slane %v1981, 5
      %v2123 = vsel %vm1081, %v2121, %v2122
      %v2124 = vrot.slane %v2122, 4
      %v2125 = vrot.slane %v1982, 5
      %v2126 = vsel %vm1081, %v2124, %v2125
      %v2127 = vrot.slane %v1983, 5
      %v2128 = vrot.slane %v2127, 4
      %v2129 = vrot.slane %v1984, 5
      %v2130 = vsel %vm1081, %v2128, %v2129
      %v2131 = vrot.slane %v2129, 4
      %v2132 = vrot.slane %v1985, 5
      %v2133 = vsel %vm1081, %v2131, %v2132
      %v2134 = vrot.slane %v1986, 5
      %v2135 = vrot.slane %v2134, 4
      %v2136 = vrot.slane %v1987, 5
      %v2137 = vsel %vm1081, %v2135, %v2136
      %v2138 = vrot.slane %v2136, 4
      %v2139 = vrot.slane %v1988, 5
      %v2140 = vsel %vm1081, %v2138, %v2139
      %v2141 = vrot.slane %v1989, 5
      %v2142 = vrot.slane %v2141, 4
      %v2143 = vrot.slane %v1990, 5
      %v2144 = vsel %vm1081, %v2142, %v2143
      %v2145 = vrot.slane %v2143, 4
      %v2146 = vrot.slane %v1991, 5
      %v2147 = vsel %vm1081, %v2145, %v2146
      %v2148 = vrot.slane %v1992, 5
      %v2149 = vrot.slane %v2148, 4
      %v2150 = vrot.slane %v1993, 5
      %v2151 = vsel %vm1081, %v2149, %v2150
      %v2152 = vrot.slane %v2150, 4
      %v2153 = vrot.slane %v1994, 5
      %v2154 = vsel %vm1081, %v2152, %v2153
      %2155 = vrot.lane.b32.xlu0 %v2046, 64
      %v2156 = vpop.permute.xlu0 %2155
      %2157 = vrot.lane.b32.xlu0 %v2049, 64
      %v2158 = vpop.permute.xlu0 %2157
      %2159 = vrot.lane.b32.xlu0 %v2053, 64
      %v2160 = vpop.permute.xlu0 %2159
      %2161 = vrot.lane.b32.xlu0 %v2056, 64
      %v2162 = vpop.permute.xlu0 %2161
      %2163 = vrot.lane.b32.xlu0 %v2060, 64
      %v2164 = vpop.permute.xlu0 %2163
      %2165 = vrot.lane.b32.xlu0 %v2063, 64
      %v2166 = vpop.permute.xlu0 %2165
      %2167 = vrot.lane.b32.xlu0 %v2067, 64
      %v2168 = vpop.permute.xlu0 %2167
      %2169 = vrot.lane.b32.xlu0 %v2070, 64
      %v2170 = vpop.permute.xlu0 %2169
      %2171 = vrot.lane.b32.xlu0 %v2074, 64
      %v2172 = vpop.permute.xlu0 %2171
      %2173 = vrot.lane.b32.xlu0 %v2077, 64
      %v2174 = vpop.permute.xlu0 %2173
      %2175 = vrot.lane.b32.xlu0 %v2081, 64
      %v2176 = vpop.permute.xlu0 %2175
      %2177 = vrot.lane.b32.xlu0 %v2084, 64
      %v2178 = vpop.permute.xlu0 %2177
      %2179 = vrot.lane.b32.xlu0 %v2088, 64
      %v2180 = vpop.permute.xlu0 %2179
      %2181 = vrot.lane.b32.xlu0 %v2091, 64
      %v2182 = vpop.permute.xlu0 %2181
      %2183 = vrot.lane.b32.xlu0 %v2095, 64
      %v2184 = vpop.permute.xlu0 %2183
      %2185 = vrot.lane.b32.xlu0 %v2098, 64
      %v2186 = vpop.permute.xlu0 %2185
      %2187 = vrot.lane.b32.xlu0 %v2102, 64
      %v2188 = vpop.permute.xlu0 %2187
      %2189 = vrot.lane.b32.xlu0 %v2105, 64
      %v2190 = vpop.permute.xlu0 %2189
      %2191 = vrot.lane.b32.xlu0 %v2109, 64
      %v2192 = vpop.permute.xlu0 %2191
      %2193 = vrot.lane.b32.xlu0 %v2112, 64
      %v2194 = vpop.permute.xlu0 %2193
      %2195 = vrot.lane.b32.xlu0 %v2116, 64
      %v2196 = vpop.permute.xlu0 %2195
      %2197 = vrot.lane.b32.xlu0 %v2119, 64
      %v2198 = vpop.permute.xlu0 %2197
      %2199 = vrot.lane.b32.xlu0 %v2123, 64
      %v2200 = vpop.permute.xlu0 %2199
      %2201 = vrot.lane.b32.xlu0 %v2126, 64
      %v2202 = vpop.permute.xlu0 %2201
      %2203 = vrot.lane.b32.xlu0 %v2130, 64
      %v2204 = vpop.permute.xlu0 %2203
      %2205 = vrot.lane.b32.xlu0 %v2133, 64
      %v2206 = vpop.permute.xlu0 %2205
      %2207 = vrot.lane.b32.xlu0 %v2137, 64
      %v2208 = vpop.permute.xlu0 %2207
      %2209 = vrot.lane.b32.xlu0 %v2140, 64
      %v2210 = vpop.permute.xlu0 %2209
      %2211 = vrot.lane.b32.xlu0 %v2144, 64
      %v2212 = vpop.permute.xlu0 %2211
      %2213 = vrot.lane.b32.xlu0 %v2147, 64
      %v2214 = vpop.permute.xlu0 %2213
      %2215 = vrot.lane.b32.xlu0 %v2151, 64
      %v2216 = vpop.permute.xlu0 %2215
      %2217 = vrot.lane.b32.xlu0 %v2154, 64
      %v2218 = vpop.permute.xlu0 %2217
      %2251 = vst.msk [vmem:[#allocation3 + $0x8] sm:$0xf] %vm950, %v2156
      %2252 = vst.msk [vmem:[#allocation3 + $0x1c] sm:$0xf] %vm950, %v2158
      %2253 = vst.msk [vmem:[#allocation3 + $0x30] sm:$0xf] %vm950, %v2160
      %2254 = vst.msk [vmem:[#allocation3 + $0x44] sm:$0xf] %vm950, %v2162
      %2255 = vst.msk [vmem:[#allocation3 + $0x58] sm:$0xf] %vm950, %v2164
      %2256 = vst.msk [vmem:[#allocation3 + $0x6c] sm:$0xf] %vm950, %v2166
      %2257 = vst.msk [vmem:[#allocation3 + $0x80] sm:$0xf] %vm950, %v2168
      %2258 = vst.msk [vmem:[#allocation3 + $0x94] sm:$0xf] %vm950, %v2170
      %2259 = vst.msk [vmem:[#allocation3 + $0xa8] sm:$0xf] %vm950, %v2172
      %2260 = vst.msk [vmem:[#allocation3 + $0xbc] sm:$0xf] %vm950, %v2174
      %2261 = vst.msk [vmem:[#allocation3 + $0xd0] sm:$0xf] %vm950, %v2176
      %2262 = vst.msk [vmem:[#allocation3 + $0xe4] sm:$0xf] %vm950, %v2178
      %2263 = vst.msk [vmem:[#allocation3 + $0xf8] sm:$0xf] %vm950, %v2180
      %2264 = vst.msk [vmem:[#allocation3 + $0x10c] sm:$0xf] %vm950, %v2182
      %2265 = vst.msk [vmem:[#allocation3 + $0x120] sm:$0xf] %vm950, %v2184
      %2266 = vst.msk [vmem:[#allocation3 + $0x134] sm:$0xf] %vm950, %v2186
      %2267 = vst.msk [vmem:[#allocation3 + $0x148] sm:$0xf] %vm950, %v2188
      %2268 = vst.msk [vmem:[#allocation3 + $0x15c] sm:$0xf] %vm950, %v2190
      %2269 = vst.msk [vmem:[#allocation3 + $0x170] sm:$0xf] %vm950, %v2192
      %2270 = vst.msk [vmem:[#allocation3 + $0x184] sm:$0xf] %vm950, %v2194
      %2271 = vst.msk [vmem:[#allocation3 + $0x198] sm:$0xf] %vm950, %v2196
      %2272 = vst.msk [vmem:[#allocation3 + $0x1ac] sm:$0xf] %vm950, %v2198
      %2273 = vst.msk [vmem:[#allocation3 + $0x1c0] sm:$0xf] %vm950, %v2200
      %2274 = vst.msk [vmem:[#allocation3 + $0x1d4] sm:$0xf] %vm950, %v2202
      %2275 = vst.msk [vmem:[#allocation3 + $0x1e8] sm:$0xf] %vm950, %v2204
      %2276 = vst.msk [vmem:[#allocation3 + $0x1fc] sm:$0xf] %vm950, %v2206
      %2277 = vst.msk [vmem:[#allocation3 + $0x210] sm:$0xf] %vm950, %v2208
      %2278 = vst.msk [vmem:[#allocation3 + $0x224] sm:$0xf] %vm950, %v2210
      %2279 = vst.msk [vmem:[#allocation3 + $0x238] sm:$0xf] %vm950, %v2212
      %2280 = vst.msk [vmem:[#allocation3 + $0x24c] sm:$0xf] %vm950, %v2214
      %2281 = vst.msk [vmem:[#allocation3 + $0x260] sm:$0xf] %vm950, %v2216
      %2282 = vst.msk [vmem:[#allocation3 + $0x274] sm:$0xf] %vm950, %v2218
      %s2283 = scalar_lea.vmem %s347, 24
      %v2284 = vld [vmem:[%s2283] sm:$0xf]
      %v2285 = vld [vmem:[%s2283 + $0x4] sm:$0xf]
      %v2286 = vld [vmem:[%s2283 + $0xc] sm:$0xf]
      %v2287 = vld [vmem:[%s2283 + $0x10] sm:$0xf]
      %v2288 = vld [vmem:[%s2283 + $0x18] sm:$0xf]
      %v2289 = vld [vmem:[%s2283 + $0x1c] sm:$0xf]
      %v2290 = vld [vmem:[%s2283 + $0x24] sm:$0xf]
      %v2291 = vld [vmem:[%s2283 + $0x28] sm:$0xf]
      %v2292 = vld [vmem:[%s2283 + $0x30] sm:$0xf]
      %v2293 = vld [vmem:[%s2283 + $0x34] sm:$0xf]
      %v2294 = vld [vmem:[%s2283 + $0x3c] sm:$0xf]
      %v2295 = vld [vmem:[%s2283 + $0x40] sm:$0xf]
      %v2296 = vld [vmem:[%s2283 + $0x48] sm:$0xf]
      %v2297 = vld [vmem:[%s2283 + $0x4c] sm:$0xf]
      %v2298 = vld [vmem:[%s2283 + $0x54] sm:$0xf]
      %v2299 = vld [vmem:[%s2283 + $0x58] sm:$0xf]
      %v2300 = vld [vmem:[%s2283 + $0x60] sm:$0xf]
      %v2301 = vld [vmem:[%s2283 + $0x64] sm:$0xf]
      %v2302 = vld [vmem:[%s2283 + $0x6c] sm:$0xf]
      %v2303 = vld [vmem:[%s2283 + $0x70] sm:$0xf]
      %v2304 = vld [vmem:[%s2283 + $0x78] sm:$0xf]
      %v2305 = vld [vmem:[%s2283 + $0x7c] sm:$0xf]
      %v2306 = vld [vmem:[%s2283 + $0x84] sm:$0xf]
      %v2307 = vld [vmem:[%s2283 + $0x88] sm:$0xf]
      %v2308 = vld [vmem:[%s2283 + $0x90] sm:$0xf]
      %v2309 = vld [vmem:[%s2283 + $0x94] sm:$0xf]
      %v2310 = vld [vmem:[%s2283 + $0x9c] sm:$0xf]
      %v2311 = vld [vmem:[%s2283 + $0xa0] sm:$0xf]
      %v2312 = vld [vmem:[%s2283 + $0xa8] sm:$0xf]
      %v2313 = vld [vmem:[%s2283 + $0xac] sm:$0xf]
      %v2314 = vld [vmem:[%s2283 + $0xb4] sm:$0xf]
      %v2315 = vld [vmem:[%s2283 + $0xb8] sm:$0xf]
      %2316 = vst.msk [vmem:[#allocation3 + $0xc] sm:$0xf] %vm386, %v2284
      %2317 = vst.msk [vmem:[#allocation3 + $0x20] sm:$0xf] %vm386, %v2285
      %2318 = vst.msk [vmem:[#allocation3 + $0x34] sm:$0xf] %vm386, %v2286
      %2319 = vst.msk [vmem:[#allocation3 + $0x48] sm:$0xf] %vm386, %v2287
      %2320 = vst.msk [vmem:[#allocation3 + $0x5c] sm:$0xf] %vm386, %v2288
      %2321 = vst.msk [vmem:[#allocation3 + $0x70] sm:$0xf] %vm386, %v2289
      %2322 = vst.msk [vmem:[#allocation3 + $0x84] sm:$0xf] %vm386, %v2290
      %2323 = vst.msk [vmem:[#allocation3 + $0x98] sm:$0xf] %vm386, %v2291
      %2324 = vst.msk [vmem:[#allocation3 + $0xac] sm:$0xf] %vm386, %v2292
      %2325 = vst.msk [vmem:[#allocation3 + $0xc0] sm:$0xf] %vm386, %v2293
      %2326 = vst.msk [vmem:[#allocation3 + $0xd4] sm:$0xf] %vm386, %v2294
      %2327 = vst.msk [vmem:[#allocation3 + $0xe8] sm:$0xf] %vm386, %v2295
      %2328 = vst.msk [vmem:[#allocation3 + $0xfc] sm:$0xf] %vm386, %v2296
      %2329 = vst.msk [vmem:[#allocation3 + $0x110] sm:$0xf] %vm386, %v2297
      %2330 = vst.msk [vmem:[#allocation3 + $0x124] sm:$0xf] %vm386, %v2298
      %2331 = vst.msk [vmem:[#allocation3 + $0x138] sm:$0xf] %vm386, %v2299
      %2332 = vst.msk [vmem:[#allocation3 + $0x14c] sm:$0xf] %vm386, %v2300
      %2333 = vst.msk [vmem:[#allocation3 + $0x160] sm:$0xf] %vm386, %v2301
      %2334 = vst.msk [vmem:[#allocation3 + $0x174] sm:$0xf] %vm386, %v2302
      %2335 = vst.msk [vmem:[#allocation3 + $0x188] sm:$0xf] %vm386, %v2303
      %2336 = vst.msk [vmem:[#allocation3 + $0x19c] sm:$0xf] %vm386, %v2304
      %2337 = vst.msk [vmem:[#allocation3 + $0x1b0] sm:$0xf] %vm386, %v2305
      %2338 = vst.msk [vmem:[#allocation3 + $0x1c4] sm:$0xf] %vm386, %v2306
      %2339 = vst.msk [vmem:[#allocation3 + $0x1d8] sm:$0xf] %vm386, %v2307
      %2340 = vst.msk [vmem:[#allocation3 + $0x1ec] sm:$0xf] %vm386, %v2308
      %2341 = vst.msk [vmem:[#allocation3 + $0x200] sm:$0xf] %vm386, %v2309
      %2342 = vst.msk [vmem:[#allocation3 + $0x214] sm:$0xf] %vm386, %v2310
      %2343 = vst.msk [vmem:[#allocation3 + $0x228] sm:$0xf] %vm386, %v2311
      %2344 = vst.msk [vmem:[#allocation3 + $0x23c] sm:$0xf] %vm386, %v2312
      %2345 = vst.msk [vmem:[#allocation3 + $0x250] sm:$0xf] %vm386, %v2313
      %2346 = vst.msk [vmem:[#allocation3 + $0x264] sm:$0xf] %vm386, %v2314
      %2347 = vst.msk [vmem:[#allocation3 + $0x278] sm:$0xf] %vm386, %v2315
      %v2348 = vld [vmem:[%s2283] sm:$0xf]
      %v2349 = vld [vmem:[%s2283 + $0x4] sm:$0xf]
      %v2350 = vld [vmem:[%s2283 + $0x8] sm:$0x1]
      %v2351 = vld [vmem:[%s2283 + $0xc] sm:$0xf]
      %v2352 = vld [vmem:[%s2283 + $0x10] sm:$0xf]
      %v2353 = vld [vmem:[%s2283 + $0x14] sm:$0x1]
      %v2354 = vld [vmem:[%s2283 + $0x18] sm:$0xf]
      %v2355 = vld [vmem:[%s2283 + $0x1c] sm:$0xf]
      %v2356 = vld [vmem:[%s2283 + $0x20] sm:$0x1]
      %v2357 = vld [vmem:[%s2283 + $0x24] sm:$0xf]
      %v2358 = vld [vmem:[%s2283 + $0x28] sm:$0xf]
      %v2359 = vld [vmem:[%s2283 + $0x2c] sm:$0x1]
      %v2360 = vld [vmem:[%s2283 + $0x30] sm:$0xf]
      %v2361 = vld [vmem:[%s2283 + $0x34] sm:$0xf]
      %v2362 = vld [vmem:[%s2283 + $0x38] sm:$0x1]
      %v2363 = vld [vmem:[%s2283 + $0x3c] sm:$0xf]
      %v2364 = vld [vmem:[%s2283 + $0x40] sm:$0xf]
      %v2365 = vld [vmem:[%s2283 + $0x44] sm:$0x1]
      %v2366 = vld [vmem:[%s2283 + $0x48] sm:$0xf]
      %v2367 = vld [vmem:[%s2283 + $0x4c] sm:$0xf]
      %v2368 = vld [vmem:[%s2283 + $0x50] sm:$0x1]
      %v2369 = vld [vmem:[%s2283 + $0x54] sm:$0xf]
      %v2370 = vld [vmem:[%s2283 + $0x58] sm:$0xf]
      %v2371 = vld [vmem:[%s2283 + $0x5c] sm:$0x1]
      %v2372 = vld [vmem:[%s2283 + $0x60] sm:$0xf]
      %v2373 = vld [vmem:[%s2283 + $0x64] sm:$0xf]
      %v2374 = vld [vmem:[%s2283 + $0x68] sm:$0x1]
      %v2375 = vld [vmem:[%s2283 + $0x6c] sm:$0xf]
      %v2376 = vld [vmem:[%s2283 + $0x70] sm:$0xf]
      %v2377 = vld [vmem:[%s2283 + $0x74] sm:$0x1]
      %v2378 = vld [vmem:[%s2283 + $0x78] sm:$0xf]
      %v2379 = vld [vmem:[%s2283 + $0x7c] sm:$0xf]
      %v2380 = vld [vmem:[%s2283 + $0x80] sm:$0x1]
      %v2381 = vld [vmem:[%s2283 + $0x84] sm:$0xf]
      %v2382 = vld [vmem:[%s2283 + $0x88] sm:$0xf]
      %v2383 = vld [vmem:[%s2283 + $0x8c] sm:$0x1]
      %v2384 = vld [vmem:[%s2283 + $0x90] sm:$0xf]
      %v2385 = vld [vmem:[%s2283 + $0x94] sm:$0xf]
      %v2386 = vld [vmem:[%s2283 + $0x98] sm:$0x1]
      %v2387 = vld [vmem:[%s2283 + $0x9c] sm:$0xf]
      %v2388 = vld [vmem:[%s2283 + $0xa0] sm:$0xf]
      %v2389 = vld [vmem:[%s2283 + $0xa4] sm:$0x1]
      %v2390 = vld [vmem:[%s2283 + $0xa8] sm:$0xf]
      %v2391 = vld [vmem:[%s2283 + $0xac] sm:$0xf]
      %v2392 = vld [vmem:[%s2283 + $0xb0] sm:$0x1]
      %v2393 = vld [vmem:[%s2283 + $0xb4] sm:$0xf]
      %v2394 = vld [vmem:[%s2283 + $0xb8] sm:$0xf]
      %v2395 = vld [vmem:[%s2283 + $0xbc] sm:$0x1]
      %v2397 = vshrl.u32 %v2348, 16
      %v2399 = vrot.slane %v2397, 4
      %v2400 = vshll.u32 %v2348, 16
      %v2402 = vrot.slane %v2400, 5
      %v2403 = vor.u32 %v2399, %v2402
      %v2404 = vrot.slane %v2403, 4
      %v2406 = vshll.u32 %v2349, 16
      %v2408 = vrot.slane %v2406, 5
      %v2409 = vsel %vm469, %v2404, %v2408
      %v2410 = vshrl.u32 %v2349, 16
      %v2412 = vrot.slane %v2410, 4
      %v2413 = vor.u32 %v2412, %v2408
      %v2414 = vrot.slane %v2413, 4
      %v2416 = vshll.u32 %v2350, 16
      %v2418 = vrot.slane %v2416, 5
      %v2419 = vsel %vm469, %v2414, %v2418
      %v2421 = vshrl.u32 %v2351, 16
      %v2423 = vrot.slane %v2421, 4
      %v2424 = vshll.u32 %v2351, 16
      %v2426 = vrot.slane %v2424, 5
      %v2427 = vor.u32 %v2423, %v2426
      %v2428 = vrot.slane %v2427, 4
      %v2430 = vshll.u32 %v2352, 16
      %v2432 = vrot.slane %v2430, 5
      %v2433 = vsel %vm469, %v2428, %v2432
      %v2434 = vshrl.u32 %v2352, 16
      %v2436 = vrot.slane %v2434, 4
      %v2437 = vor.u32 %v2436, %v2432
      %v2438 = vrot.slane %v2437, 4
      %v2440 = vshll.u32 %v2353, 16
      %v2442 = vrot.slane %v2440, 5
      %v2443 = vsel %vm469, %v2438, %v2442
      %v2445 = vshrl.u32 %v2354, 16
      %v2447 = vrot.slane %v2445, 4
      %v2448 = vshll.u32 %v2354, 16
      %v2450 = vrot.slane %v2448, 5
      %v2451 = vor.u32 %v2447, %v2450
      %v2452 = vrot.slane %v2451, 4
      %v2454 = vshll.u32 %v2355, 16
      %v2456 = vrot.slane %v2454, 5
      %v2457 = vsel %vm469, %v2452, %v2456
      %v2458 = vshrl.u32 %v2355, 16
      %v2460 = vrot.slane %v2458, 4
      %v2461 = vor.u32 %v2460, %v2456
      %v2462 = vrot.slane %v2461, 4
      %v2464 = vshll.u32 %v2356, 16
      %v2466 = vrot.slane %v2464, 5
      %v2467 = vsel %vm469, %v2462, %v2466
      %v2469 = vshrl.u32 %v2357, 16
      %v2471 = vrot.slane %v2469, 4
      %v2472 = vshll.u32 %v2357, 16
      %v2474 = vrot.slane %v2472, 5
      %v2475 = vor.u32 %v2471, %v2474
      %v2476 = vrot.slane %v2475, 4
      %v2478 = vshll.u32 %v2358, 16
      %v2480 = vrot.slane %v2478, 5
      %v2481 = vsel %vm469, %v2476, %v2480
      %v2482 = vshrl.u32 %v2358, 16
      %v2484 = vrot.slane %v2482, 4
      %v2485 = vor.u32 %v2484, %v2480
      %v2486 = vrot.slane %v2485, 4
      %v2488 = vshll.u32 %v2359, 16
      %v2490 = vrot.slane %v2488, 5
      %v2491 = vsel %vm469, %v2486, %v2490
      %v2493 = vshrl.u32 %v2360, 16
      %v2495 = vrot.slane %v2493, 4
      %v2496 = vshll.u32 %v2360, 16
      %v2498 = vrot.slane %v2496, 5
      %v2499 = vor.u32 %v2495, %v2498
      %v2500 = vrot.slane %v2499, 4
      %v2502 = vshll.u32 %v2361, 16
      %v2504 = vrot.slane %v2502, 5
      %v2505 = vsel %vm469, %v2500, %v2504
      %v2506 = vshrl.u32 %v2361, 16
      %v2508 = vrot.slane %v2506, 4
      %v2509 = vor.u32 %v2508, %v2504
      %v2510 = vrot.slane %v2509, 4
      %v2512 = vshll.u32 %v2362, 16
      %v2514 = vrot.slane %v2512, 5
      %v2515 = vsel %vm469, %v2510, %v2514
      %v2517 = vshrl.u32 %v2363, 16
      %v2519 = vrot.slane %v2517, 4
      %v2520 = vshll.u32 %v2363, 16
      %v2522 = vrot.slane %v2520, 5
      %v2523 = vor.u32 %v2519, %v2522
      %v2524 = vrot.slane %v2523, 4
      %v2526 = vshll.u32 %v2364, 16
      %v2528 = vrot.slane %v2526, 5
      %v2529 = vsel %vm469, %v2524, %v2528
      %v2530 = vshrl.u32 %v2364, 16
      %v2532 = vrot.slane %v2530, 4
      %v2533 = vor.u32 %v2532, %v2528
      %v2534 = vrot.slane %v2533, 4
      %v2536 = vshll.u32 %v2365, 16
      %v2538 = vrot.slane %v2536, 5
      %v2539 = vsel %vm469, %v2534, %v2538
      %v2541 = vshrl.u32 %v2366, 16
      %v2543 = vrot.slane %v2541, 4
      %v2544 = vshll.u32 %v2366, 16
      %v2546 = vrot.slane %v2544, 5
      %v2547 = vor.u32 %v2543, %v2546
      %v2548 = vrot.slane %v2547, 4
      %v2550 = vshll.u32 %v2367, 16
      %v2552 = vrot.slane %v2550, 5
      %v2553 = vsel %vm469, %v2548, %v2552
      %v2554 = vshrl.u32 %v2367, 16
      %v2556 = vrot.slane %v2554, 4
      %v2557 = vor.u32 %v2556, %v2552
      %v2558 = vrot.slane %v2557, 4
      %v2560 = vshll.u32 %v2368, 16
      %v2562 = vrot.slane %v2560, 5
      %v2563 = vsel %vm469, %v2558, %v2562
      %v2565 = vshrl.u32 %v2369, 16
      %v2567 = vrot.slane %v2565, 4
      %v2568 = vshll.u32 %v2369, 16
      %v2570 = vrot.slane %v2568, 5
      %v2571 = vor.u32 %v2567, %v2570
      %v2572 = vrot.slane %v2571, 4
      %v2574 = vshll.u32 %v2370, 16
      %v2576 = vrot.slane %v2574, 5
      %v2577 = vsel %vm469, %v2572, %v2576
      %v2578 = vshrl.u32 %v2370, 16
      %v2580 = vrot.slane %v2578, 4
      %v2581 = vor.u32 %v2580, %v2576
      %v2582 = vrot.slane %v2581, 4
      %v2584 = vshll.u32 %v2371, 16
      %v2586 = vrot.slane %v2584, 5
      %v2587 = vsel %vm469, %v2582, %v2586
      %v2589 = vshrl.u32 %v2372, 16
      %v2591 = vrot.slane %v2589, 4
      %v2592 = vshll.u32 %v2372, 16
      %v2594 = vrot.slane %v2592, 5
      %v2595 = vor.u32 %v2591, %v2594
      %v2596 = vrot.slane %v2595, 4
      %v2598 = vshll.u32 %v2373, 16
      %v2600 = vrot.slane %v2598, 5
      %v2601 = vsel %vm469, %v2596, %v2600
      %v2602 = vshrl.u32 %v2373, 16
      %v2604 = vrot.slane %v2602, 4
      %v2605 = vor.u32 %v2604, %v2600
      %v2606 = vrot.slane %v2605, 4
      %v2608 = vshll.u32 %v2374, 16
      %v2610 = vrot.slane %v2608, 5
      %v2611 = vsel %vm469, %v2606, %v2610
      %v2613 = vshrl.u32 %v2375, 16
      %v2615 = vrot.slane %v2613, 4
      %v2616 = vshll.u32 %v2375, 16
      %v2618 = vrot.slane %v2616, 5
      %v2619 = vor.u32 %v2615, %v2618
      %v2620 = vrot.slane %v2619, 4
      %v2622 = vshll.u32 %v2376, 16
      %v2624 = vrot.slane %v2622, 5
      %v2625 = vsel %vm469, %v2620, %v2624
      %v2626 = vshrl.u32 %v2376, 16
      %v2628 = vrot.slane %v2626, 4
      %v2629 = vor.u32 %v2628, %v2624
      %v2630 = vrot.slane %v2629, 4
      %v2632 = vshll.u32 %v2377, 16
      %v2634 = vrot.slane %v2632, 5
      %v2635 = vsel %vm469, %v2630, %v2634
      %v2637 = vshrl.u32 %v2378, 16
      %v2639 = vrot.slane %v2637, 4
      %v2640 = vshll.u32 %v2378, 16
      %v2642 = vrot.slane %v2640, 5
      %v2643 = vor.u32 %v2639, %v2642
      %v2644 = vrot.slane %v2643, 4
      %v2646 = vshll.u32 %v2379, 16
      %v2648 = vrot.slane %v2646, 5
      %v2649 = vsel %vm469, %v2644, %v2648
      %v2650 = vshrl.u32 %v2379, 16
      %v2652 = vrot.slane %v2650, 4
      %v2653 = vor.u32 %v2652, %v2648
      %v2654 = vrot.slane %v2653, 4
      %v2656 = vshll.u32 %v2380, 16
      %v2658 = vrot.slane %v2656, 5
      %v2659 = vsel %vm469, %v2654, %v2658
      %v2661 = vshrl.u32 %v2381, 16
      %v2663 = vrot.slane %v2661, 4
      %v2664 = vshll.u32 %v2381, 16
      %v2666 = vrot.slane %v2664, 5
      %v2667 = vor.u32 %v2663, %v2666
      %v2668 = vrot.slane %v2667, 4
      %v2670 = vshll.u32 %v2382, 16
      %v2672 = vrot.slane %v2670, 5
      %v2673 = vsel %vm469, %v2668, %v2672
      %v2674 = vshrl.u32 %v2382, 16
      %v2676 = vrot.slane %v2674, 4
      %v2677 = vor.u32 %v2676, %v2672
      %v2678 = vrot.slane %v2677, 4
      %v2680 = vshll.u32 %v2383, 16
      %v2682 = vrot.slane %v2680, 5
      %v2683 = vsel %vm469, %v2678, %v2682
      %v2685 = vshrl.u32 %v2384, 16
      %v2687 = vrot.slane %v2685, 4
      %v2688 = vshll.u32 %v2384, 16
      %v2690 = vrot.slane %v2688, 5
      %v2691 = vor.u32 %v2687, %v2690
      %v2692 = vrot.slane %v2691, 4
      %v2694 = vshll.u32 %v2385, 16
      %v2696 = vrot.slane %v2694, 5
      %v2697 = vsel %vm469, %v2692, %v2696
      %v2698 = vshrl.u32 %v2385, 16
      %v2700 = vrot.slane %v2698, 4
      %v2701 = vor.u32 %v2700, %v2696
      %v2702 = vrot.slane %v2701, 4
      %v2704 = vshll.u32 %v2386, 16
      %v2706 = vrot.slane %v2704, 5
      %v2707 = vsel %vm469, %v2702, %v2706
      %v2709 = vshrl.u32 %v2387, 16
      %v2711 = vrot.slane %v2709, 4
      %v2712 = vshll.u32 %v2387, 16
      %v2714 = vrot.slane %v2712, 5
      %v2715 = vor.u32 %v2711, %v2714
      %v2716 = vrot.slane %v2715, 4
      %v2718 = vshll.u32 %v2388, 16
      %v2720 = vrot.slane %v2718, 5
      %v2721 = vsel %vm469, %v2716, %v2720
      %v2722 = vshrl.u32 %v2388, 16
      %v2724 = vrot.slane %v2722, 4
      %v2725 = vor.u32 %v2724, %v2720
      %v2726 = vrot.slane %v2725, 4
      %v2728 = vshll.u32 %v2389, 16
      %v2730 = vrot.slane %v2728, 5
      %v2731 = vsel %vm469, %v2726, %v2730
      %v2733 = vshrl.u32 %v2390, 16
      %v2735 = vrot.slane %v2733, 4
      %v2736 = vshll.u32 %v2390, 16
      %v2738 = vrot.slane %v2736, 5
      %v2739 = vor.u32 %v2735, %v2738
      %v2740 = vrot.slane %v2739, 4
      %v2742 = vshll.u32 %v2391, 16
      %v2744 = vrot.slane %v2742, 5
      %v2745 = vsel %vm469, %v2740, %v2744
      %v2746 = vshrl.u32 %v2391, 16
      %v2748 = vrot.slane %v2746, 4
      %v2749 = vor.u32 %v2748, %v2744
      %v2750 = vrot.slane %v2749, 4
      %v2752 = vshll.u32 %v2392, 16
      %v2754 = vrot.slane %v2752, 5
      %v2755 = vsel %vm469, %v2750, %v2754
      %v2757 = vshrl.u32 %v2393, 16
      %v2759 = vrot.slane %v2757, 4
      %v2760 = vshll.u32 %v2393, 16
      %v2762 = vrot.slane %v2760, 5
      %v2763 = vor.u32 %v2759, %v2762
      %v2764 = vrot.slane %v2763, 4
      %v2766 = vshll.u32 %v2394, 16
      %v2768 = vrot.slane %v2766, 5
      %v2769 = vsel %vm469, %v2764, %v2768
      %v2770 = vshrl.u32 %v2394, 16
      %v2772 = vrot.slane %v2770, 4
      %v2773 = vor.u32 %v2772, %v2768
      %v2774 = vrot.slane %v2773, 4
      %v2776 = vshll.u32 %v2395, 16
      %v2778 = vrot.slane %v2776, 5
      %v2779 = vsel %vm469, %v2774, %v2778
      %2780 = vrot.lane.b32.xlu0 %v2409, 64
      %v2781 = vpop.permute.xlu0 %2780
      %2782 = vrot.lane.b32.xlu0 %v2419, 64
      %v2783 = vpop.permute.xlu0 %2782
      %2784 = vrot.lane.b32.xlu0 %v2433, 64
      %v2785 = vpop.permute.xlu0 %2784
      %2786 = vrot.lane.b32.xlu0 %v2443, 64
      %v2787 = vpop.permute.xlu0 %2786
      %2788 = vrot.lane.b32.xlu0 %v2457, 64
      %v2789 = vpop.permute.xlu0 %2788
      %2790 = vrot.lane.b32.xlu0 %v2467, 64
      %v2791 = vpop.permute.xlu0 %2790
      %2792 = vrot.lane.b32.xlu0 %v2481, 64
      %v2793 = vpop.permute.xlu0 %2792
      %2794 = vrot.lane.b32.xlu0 %v2491, 64
      %v2795 = vpop.permute.xlu0 %2794
      %2796 = vrot.lane.b32.xlu0 %v2505, 64
      %v2797 = vpop.permute.xlu0 %2796
      %2798 = vrot.lane.b32.xlu0 %v2515, 64
      %v2799 = vpop.permute.xlu0 %2798
      %2800 = vrot.lane.b32.xlu0 %v2529, 64
      %v2801 = vpop.permute.xlu0 %2800
      %2802 = vrot.lane.b32.xlu0 %v2539, 64
      %v2803 = vpop.permute.xlu0 %2802
      %2804 = vrot.lane.b32.xlu0 %v2553, 64
      %v2805 = vpop.permute.xlu0 %2804
      %2806 = vrot.lane.b32.xlu0 %v2563, 64
      %v2807 = vpop.permute.xlu0 %2806
      %2808 = vrot.lane.b32.xlu0 %v2577, 64
      %v2809 = vpop.permute.xlu0 %2808
      %2810 = vrot.lane.b32.xlu0 %v2587, 64
      %v2811 = vpop.permute.xlu0 %2810
      %2812 = vrot.lane.b32.xlu0 %v2601, 64
      %v2813 = vpop.permute.xlu0 %2812
      %2814 = vrot.lane.b32.xlu0 %v2611, 64
      %v2815 = vpop.permute.xlu0 %2814
      %2816 = vrot.lane.b32.xlu0 %v2625, 64
      %v2817 = vpop.permute.xlu0 %2816
      %2818 = vrot.lane.b32.xlu0 %v2635, 64
      %v2819 = vpop.permute.xlu0 %2818
      %2820 = vrot.lane.b32.xlu0 %v2649, 64
      %v2821 = vpop.permute.xlu0 %2820
      %2822 = vrot.lane.b32.xlu0 %v2659, 64
      %v2823 = vpop.permute.xlu0 %2822
      %2824 = vrot.lane.b32.xlu0 %v2673, 64
      %v2825 = vpop.permute.xlu0 %2824
      %2826 = vrot.lane.b32.xlu0 %v2683, 64
      %v2827 = vpop.permute.xlu0 %2826
      %2828 = vrot.lane.b32.xlu0 %v2697, 64
      %v2829 = vpop.permute.xlu0 %2828
      %2830 = vrot.lane.b32.xlu0 %v2707, 64
      %v2831 = vpop.permute.xlu0 %2830
      %2832 = vrot.lane.b32.xlu0 %v2721, 64
      %v2833 = vpop.permute.xlu0 %2832
      %2834 = vrot.lane.b32.xlu0 %v2731, 64
      %v2835 = vpop.permute.xlu0 %2834
      %2836 = vrot.lane.b32.xlu0 %v2745, 64
      %v2837 = vpop.permute.xlu0 %2836
      %2838 = vrot.lane.b32.xlu0 %v2755, 64
      %v2839 = vpop.permute.xlu0 %2838
      %2840 = vrot.lane.b32.xlu0 %v2769, 64
      %v2841 = vpop.permute.xlu0 %2840
      %2842 = vrot.lane.b32.xlu0 %v2779, 64
      %v2843 = vpop.permute.xlu0 %2842
      %2876 = vst.msk [vmem:[#allocation3 + $0xc] sm:$0xf] %vm950, %v2781
      %2877 = vst.msk [vmem:[#allocation3 + $0x20] sm:$0xf] %vm950, %v2783
      %2878 = vst.msk [vmem:[#allocation3 + $0x34] sm:$0xf] %vm950, %v2785
      %2879 = vst.msk [vmem:[#allocation3 + $0x48] sm:$0xf] %vm950, %v2787
      %2880 = vst.msk [vmem:[#allocation3 + $0x5c] sm:$0xf] %vm950, %v2789
      %2881 = vst.msk [vmem:[#allocation3 + $0x70] sm:$0xf] %vm950, %v2791
      %2882 = vst.msk [vmem:[#allocation3 + $0x84] sm:$0xf] %vm950, %v2793
      %2883 = vst.msk [vmem:[#allocation3 + $0x98] sm:$0xf] %vm950, %v2795
      %2884 = vst.msk [vmem:[#allocation3 + $0xac] sm:$0xf] %vm950, %v2797
      %2885 = vst.msk [vmem:[#allocation3 + $0xc0] sm:$0xf] %vm950, %v2799
      %2886 = vst.msk [vmem:[#allocation3 + $0xd4] sm:$0xf] %vm950, %v2801
      %2887 = vst.msk [vmem:[#allocation3 + $0xe8] sm:$0xf] %vm950, %v2803
      %2888 = vst.msk [vmem:[#allocation3 + $0xfc] sm:$0xf] %vm950, %v2805
      %2889 = vst.msk [vmem:[#allocation3 + $0x110] sm:$0xf] %vm950, %v2807
      %2890 = vst.msk [vmem:[#allocation3 + $0x124] sm:$0xf] %vm950, %v2809
      %2891 = vst.msk [vmem:[#allocation3 + $0x138] sm:$0xf] %vm950, %v2811
      %2892 = vst.msk [vmem:[#allocation3 + $0x14c] sm:$0xf] %vm950, %v2813
      %2893 = vst.msk [vmem:[#allocation3 + $0x160] sm:$0xf] %vm950, %v2815
      %2894 = vst.msk [vmem:[#allocation3 + $0x174] sm:$0xf] %vm950, %v2817
      %2895 = vst.msk [vmem:[#allocation3 + $0x188] sm:$0xf] %vm950, %v2819
      %2896 = vst.msk [vmem:[#allocation3 + $0x19c] sm:$0xf] %vm950, %v2821
      %2897 = vst.msk [vmem:[#allocation3 + $0x1b0] sm:$0xf] %vm950, %v2823
      %2898 = vst.msk [vmem:[#allocation3 + $0x1c4] sm:$0xf] %vm950, %v2825
      %2899 = vst.msk [vmem:[#allocation3 + $0x1d8] sm:$0xf] %vm950, %v2827
      %2900 = vst.msk [vmem:[#allocation3 + $0x1ec] sm:$0xf] %vm950, %v2829
      %2901 = vst.msk [vmem:[#allocation3 + $0x200] sm:$0xf] %vm950, %v2831
      %2902 = vst.msk [vmem:[#allocation3 + $0x214] sm:$0xf] %vm950, %v2833
      %2903 = vst.msk [vmem:[#allocation3 + $0x228] sm:$0xf] %vm950, %v2835
      %2904 = vst.msk [vmem:[#allocation3 + $0x23c] sm:$0xf] %vm950, %v2837
      %2905 = vst.msk [vmem:[#allocation3 + $0x250] sm:$0xf] %vm950, %v2839
      %2906 = vst.msk [vmem:[#allocation3 + $0x264] sm:$0xf] %vm950, %v2841
      %2907 = vst.msk [vmem:[#allocation3 + $0x278] sm:$0xf] %vm950, %v2843
      %v2908 = vld [vmem:[%s2283] sm:$0xe]
      %v2909 = vld [vmem:[%s2283 + $0x4] sm:$0xf]
      %v2910 = vld [vmem:[%s2283 + $0x8] sm:$0x1]
      %v2911 = vld [vmem:[%s2283 + $0xc] sm:$0xe]
      %v2912 = vld [vmem:[%s2283 + $0x10] sm:$0xf]
      %v2913 = vld [vmem:[%s2283 + $0x14] sm:$0x1]
      %v2914 = vld [vmem:[%s2283 + $0x18] sm:$0xe]
      %v2915 = vld [vmem:[%s2283 + $0x1c] sm:$0xf]
      %v2916 = vld [vmem:[%s2283 + $0x20] sm:$0x1]
      %v2917 = vld [vmem:[%s2283 + $0x24] sm:$0xe]
      %v2918 = vld [vmem:[%s2283 + $0x28] sm:$0xf]
      %v2919 = vld [vmem:[%s2283 + $0x2c] sm:$0x1]
      %v2920 = vld [vmem:[%s2283 + $0x30] sm:$0xe]
      %v2921 = vld [vmem:[%s2283 + $0x34] sm:$0xf]
      %v2922 = vld [vmem:[%s2283 + $0x38] sm:$0x1]
      %v2923 = vld [vmem:[%s2283 + $0x3c] sm:$0xe]
      %v2924 = vld [vmem:[%s2283 + $0x40] sm:$0xf]
      %v2925 = vld [vmem:[%s2283 + $0x44] sm:$0x1]
      %v2926 = vld [vmem:[%s2283 + $0x48] sm:$0xe]
      %v2927 = vld [vmem:[%s2283 + $0x4c] sm:$0xf]
      %v2928 = vld [vmem:[%s2283 + $0x50] sm:$0x1]
      %v2929 = vld [vmem:[%s2283 + $0x54] sm:$0xe]
      %v2930 = vld [vmem:[%s2283 + $0x58] sm:$0xf]
      %v2931 = vld [vmem:[%s2283 + $0x5c] sm:$0x1]
      %v2932 = vld [vmem:[%s2283 + $0x60] sm:$0xe]
      %v2933 = vld [vmem:[%s2283 + $0x64] sm:$0xf]
      %v2934 = vld [vmem:[%s2283 + $0x68] sm:$0x1]
      %v2935 = vld [vmem:[%s2283 + $0x6c] sm:$0xe]
      %v2936 = vld [vmem:[%s2283 + $0x70] sm:$0xf]
      %v2937 = vld [vmem:[%s2283 + $0x74] sm:$0x1]
      %v2938 = vld [vmem:[%s2283 + $0x78] sm:$0xe]
      %v2939 = vld [vmem:[%s2283 + $0x7c] sm:$0xf]
      %v2940 = vld [vmem:[%s2283 + $0x80] sm:$0x1]
      %v2941 = vld [vmem:[%s2283 + $0x84] sm:$0xe]
      %v2942 = vld [vmem:[%s2283 + $0x88] sm:$0xf]
      %v2943 = vld [vmem:[%s2283 + $0x8c] sm:$0x1]
      %v2944 = vld [vmem:[%s2283 + $0x90] sm:$0xe]
      %v2945 = vld [vmem:[%s2283 + $0x94] sm:$0xf]
      %v2946 = vld [vmem:[%s2283 + $0x98] sm:$0x1]
      %v2947 = vld [vmem:[%s2283 + $0x9c] sm:$0xe]
      %v2948 = vld [vmem:[%s2283 + $0xa0] sm:$0xf]
      %v2949 = vld [vmem:[%s2283 + $0xa4] sm:$0x1]
      %v2950 = vld [vmem:[%s2283 + $0xa8] sm:$0xe]
      %v2951 = vld [vmem:[%s2283 + $0xac] sm:$0xf]
      %v2952 = vld [vmem:[%s2283 + $0xb0] sm:$0x1]
      %v2953 = vld [vmem:[%s2283 + $0xb4] sm:$0xe]
      %v2954 = vld [vmem:[%s2283 + $0xb8] sm:$0xf]
      %v2955 = vld [vmem:[%s2283 + $0xbc] sm:$0x1]
      %v3004 = vrot.slane %v2908, 5
      %v3005 = vrot.slane %v3004, 4
      %v3006 = vrot.slane %v2909, 5
      %v3007 = vsel %vm1081, %v3005, %v3006
      %v3008 = vrot.slane %v3006, 4
      %v3009 = vrot.slane %v2910, 5
      %v3010 = vsel %vm1081, %v3008, %v3009
      %v3011 = vrot.slane %v2911, 5
      %v3012 = vrot.slane %v3011, 4
      %v3013 = vrot.slane %v2912, 5
      %v3014 = vsel %vm1081, %v3012, %v3013
      %v3015 = vrot.slane %v3013, 4
      %v3016 = vrot.slane %v2913, 5
      %v3017 = vsel %vm1081, %v3015, %v3016
      %v3018 = vrot.slane %v2914, 5
      %v3019 = vrot.slane %v3018, 4
      %v3020 = vrot.slane %v2915, 5
      %v3021 = vsel %vm1081, %v3019, %v3020
      %v3022 = vrot.slane %v3020, 4
      %v3023 = vrot.slane %v2916, 5
      %v3024 = vsel %vm1081, %v3022, %v3023
      %v3025 = vrot.slane %v2917, 5
      %v3026 = vrot.slane %v3025, 4
      %v3027 = vrot.slane %v2918, 5
      %v3028 = vsel %vm1081, %v3026, %v3027
      %v3029 = vrot.slane %v3027, 4
      %v3030 = vrot.slane %v2919, 5
      %v3031 = vsel %vm1081, %v3029, %v3030
      %v3032 = vrot.slane %v2920, 5
      %v3033 = vrot.slane %v3032, 4
      %v3034 = vrot.slane %v2921, 5
      %v3035 = vsel %vm1081, %v3033, %v3034
      %v3036 = vrot.slane %v3034, 4
      %v3037 = vrot.slane %v2922, 5
      %v3038 = vsel %vm1081, %v3036, %v3037
      %v3039 = vrot.slane %v2923, 5
      %v3040 = vrot.slane %v3039, 4
      %v3041 = vrot.slane %v2924, 5
      %v3042 = vsel %vm1081, %v3040, %v3041
      %v3043 = vrot.slane %v3041, 4
      %v3044 = vrot.slane %v2925, 5
      %v3045 = vsel %vm1081, %v3043, %v3044
      %v3046 = vrot.slane %v2926, 5
      %v3047 = vrot.slane %v3046, 4
      %v3048 = vrot.slane %v2927, 5
      %v3049 = vsel %vm1081, %v3047, %v3048
      %v3050 = vrot.slane %v3048, 4
      %v3051 = vrot.slane %v2928, 5
      %v3052 = vsel %vm1081, %v3050, %v3051
      %v3053 = vrot.slane %v2929, 5
      %v3054 = vrot.slane %v3053, 4
      %v3055 = vrot.slane %v2930, 5
      %v3056 = vsel %vm1081, %v3054, %v3055
      %v3057 = vrot.slane %v3055, 4
      %v3058 = vrot.slane %v2931, 5
      %v3059 = vsel %vm1081, %v3057, %v3058
      %v3060 = vrot.slane %v2932, 5
      %v3061 = vrot.slane %v3060, 4
      %v3062 = vrot.slane %v2933, 5
      %v3063 = vsel %vm1081, %v3061, %v3062
      %v3064 = vrot.slane %v3062, 4
      %v3065 = vrot.slane %v2934, 5
      %v3066 = vsel %vm1081, %v3064, %v3065
      %v3067 = vrot.slane %v2935, 5
      %v3068 = vrot.slane %v3067, 4
      %v3069 = vrot.slane %v2936, 5
      %v3070 = vsel %vm1081, %v3068, %v3069
      %v3071 = vrot.slane %v3069, 4
      %v3072 = vrot.slane %v2937, 5
      %v3073 = vsel %vm1081, %v3071, %v3072
      %v3074 = vrot.slane %v2938, 5
      %v3075 = vrot.slane %v3074, 4
      %v3076 = vrot.slane %v2939, 5
      %v3077 = vsel %vm1081, %v3075, %v3076
      %v3078 = vrot.slane %v3076, 4
      %v3079 = vrot.slane %v2940, 5
      %v3080 = vsel %vm1081, %v3078, %v3079
      %v3081 = vrot.slane %v2941, 5
      %v3082 = vrot.slane %v3081, 4
      %v3083 = vrot.slane %v2942, 5
      %v3084 = vsel %vm1081, %v3082, %v3083
      %v3085 = vrot.slane %v3083, 4
      %v3086 = vrot.slane %v2943, 5
      %v3087 = vsel %vm1081, %v3085, %v3086
      %v3088 = vrot.slane %v2944, 5
      %v3089 = vrot.slane %v3088, 4
      %v3090 = vrot.slane %v2945, 5
      %v3091 = vsel %vm1081, %v3089, %v3090
      %v3092 = vrot.slane %v3090, 4
      %v3093 = vrot.slane %v2946, 5
      %v3094 = vsel %vm1081, %v3092, %v3093
      %v3095 = vrot.slane %v2947, 5
      %v3096 = vrot.slane %v3095, 4
      %v3097 = vrot.slane %v2948, 5
      %v3098 = vsel %vm1081, %v3096, %v3097
      %v3099 = vrot.slane %v3097, 4
      %v3100 = vrot.slane %v2949, 5
      %v3101 = vsel %vm1081, %v3099, %v3100
      %v3102 = vrot.slane %v2950, 5
      %v3103 = vrot.slane %v3102, 4
      %v3104 = vrot.slane %v2951, 5
      %v3105 = vsel %vm1081, %v3103, %v3104
      %v3106 = vrot.slane %v3104, 4
      %v3107 = vrot.slane %v2952, 5
      %v3108 = vsel %vm1081, %v3106, %v3107
      %v3109 = vrot.slane %v2953, 5
      %v3110 = vrot.slane %v3109, 4
      %v3111 = vrot.slane %v2954, 5
      %v3112 = vsel %vm1081, %v3110, %v3111
      %v3113 = vrot.slane %v3111, 4
      %v3114 = vrot.slane %v2955, 5
      %v3115 = vsel %vm1081, %v3113, %v3114
      %3148 = vst.msk [vmem:[#allocation3 + $0x10] sm:$0xf] %vm386, %v3007
      %3149 = vst.msk [vmem:[#allocation3 + $0x24] sm:$0xf] %vm386, %v3010
      %3150 = vst.msk [vmem:[#allocation3 + $0x38] sm:$0xf] %vm386, %v3014
      %3151 = vst.msk [vmem:[#allocation3 + $0x4c] sm:$0xf] %vm386, %v3017
      %3152 = vst.msk [vmem:[#allocation3 + $0x60] sm:$0xf] %vm386, %v3021
      %3153 = vst.msk [vmem:[#allocation3 + $0x74] sm:$0xf] %vm386, %v3024
      %3154 = vst.msk [vmem:[#allocation3 + $0x88] sm:$0xf] %vm386, %v3028
      %3155 = vst.msk [vmem:[#allocation3 + $0x9c] sm:$0xf] %vm386, %v3031
      %3156 = vst.msk [vmem:[#allocation3 + $0xb0] sm:$0xf] %vm386, %v3035
      %3157 = vst.msk [vmem:[#allocation3 + $0xc4] sm:$0xf] %vm386, %v3038
      %3158 = vst.msk [vmem:[#allocation3 + $0xd8] sm:$0xf] %vm386, %v3042
      %3159 = vst.msk [vmem:[#allocation3 + $0xec] sm:$0xf] %vm386, %v3045
      %3160 = vst.msk [vmem:[#allocation3 + $0x100] sm:$0xf] %vm386, %v3049
      %3161 = vst.msk [vmem:[#allocation3 + $0x114] sm:$0xf] %vm386, %v3052
      %3162 = vst.msk [vmem:[#allocation3 + $0x128] sm:$0xf] %vm386, %v3056
      %3163 = vst.msk [vmem:[#allocation3 + $0x13c] sm:$0xf] %vm386, %v3059
      %3164 = vst.msk [vmem:[#allocation3 + $0x150] sm:$0xf] %vm386, %v3063
      %3165 = vst.msk [vmem:[#allocation3 + $0x164] sm:$0xf] %vm386, %v3066
      %3166 = vst.msk [vmem:[#allocation3 + $0x178] sm:$0xf] %vm386, %v3070
      %3167 = vst.msk [vmem:[#allocation3 + $0x18c] sm:$0xf] %vm386, %v3073
      %3168 = vst.msk [vmem:[#allocation3 + $0x1a0] sm:$0xf] %vm386, %v3077
      %3169 = vst.msk [vmem:[#allocation3 + $0x1b4] sm:$0xf] %vm386, %v3080
      %3170 = vst.msk [vmem:[#allocation3 + $0x1c8] sm:$0xf] %vm386, %v3084
      %3171 = vst.msk [vmem:[#allocation3 + $0x1dc] sm:$0xf] %vm386, %v3087
      %3172 = vst.msk [vmem:[#allocation3 + $0x1f0] sm:$0xf] %vm386, %v3091
      %3173 = vst.msk [vmem:[#allocation3 + $0x204] sm:$0xf] %vm386, %v3094
      %3174 = vst.msk [vmem:[#allocation3 + $0x218] sm:$0xf] %vm386, %v3098
      %3175 = vst.msk [vmem:[#allocation3 + $0x22c] sm:$0xf] %vm386, %v3101
      %3176 = vst.msk [vmem:[#allocation3 + $0x240] sm:$0xf] %vm386, %v3105
      %3177 = vst.msk [vmem:[#allocation3 + $0x254] sm:$0xf] %vm386, %v3108
      %3178 = vst.msk [vmem:[#allocation3 + $0x268] sm:$0xf] %vm386, %v3112
      %3179 = vst.msk [vmem:[#allocation3 + $0x27c] sm:$0xf] %vm386, %v3115
      %v3180 = vld [vmem:[#allocation3] sm:$0xff]
      %v3181 = vld [vmem:[#allocation3 + $0x8] sm:$0xff]
      %v3182 = vld [vmem:[#allocation3 + $0x10] sm:$0xf]
      %v3183 = vld [vmem:[#allocation3 + $0x14] sm:$0xff]
      %v3184 = vld [vmem:[#allocation3 + $0x1c] sm:$0xff]
      %v3185 = vld [vmem:[#allocation3 + $0x24] sm:$0xf]
      %v3186 = vld [vmem:[#allocation3 + $0x28] sm:$0xff]
      %v3187 = vld [vmem:[#allocation3 + $0x30] sm:$0xff]
      %v3188 = vld [vmem:[#allocation3 + $0x38] sm:$0xf]
      %v3189 = vld [vmem:[#allocation3 + $0x3c] sm:$0xff]
      %v3190 = vld [vmem:[#allocation3 + $0x44] sm:$0xff]
      %v3191 = vld [vmem:[#allocation3 + $0x4c] sm:$0xf]
      %v3192 = vld [vmem:[#allocation3 + $0x50] sm:$0xff]
      %v3193 = vld [vmem:[#allocation3 + $0x58] sm:$0xff]
      %v3194 = vld [vmem:[#allocation3 + $0x60] sm:$0xf]
      %v3195 = vld [vmem:[#allocation3 + $0x64] sm:$0xff]
      %v3196 = vld [vmem:[#allocation3 + $0x6c] sm:$0xff]
      %v3197 = vld [vmem:[#allocation3 + $0x74] sm:$0xf]
      %v3198 = vld [vmem:[#allocation3 + $0x78] sm:$0xff]
      %v3199 = vld [vmem:[#allocation3 + $0x80] sm:$0xff]
      %v3200 = vld [vmem:[#allocation3 + $0x88] sm:$0xf]
      %v3201 = vld [vmem:[#allocation3 + $0x8c] sm:$0xff]
      %v3202 = vld [vmem:[#allocation3 + $0x94] sm:$0xff]
      %v3203 = vld [vmem:[#allocation3 + $0x9c] sm:$0xf]
      %v3204 = vld [vmem:[#allocation3 + $0xa0] sm:$0xff]
      %v3205 = vld [vmem:[#allocation3 + $0xa8] sm:$0xff]
      %v3206 = vld [vmem:[#allocation3 + $0xb0] sm:$0xf]
      %v3207 = vld [vmem:[#allocation3 + $0xb4] sm:$0xff]
      %v3208 = vld [vmem:[#allocation3 + $0xbc] sm:$0xff]
      %v3209 = vld [vmem:[#allocation3 + $0xc4] sm:$0xf]
      %v3210 = vld [vmem:[#allocation3 + $0xc8] sm:$0xff]
      %v3211 = vld [vmem:[#allocation3 + $0xd0] sm:$0xff]
      %v3212 = vld [vmem:[#allocation3 + $0xd8] sm:$0xf]
      %v3213 = vld [vmem:[#allocation3 + $0xdc] sm:$0xff]
      %v3214 = vld [vmem:[#allocation3 + $0xe4] sm:$0xff]
      %v3215 = vld [vmem:[#allocation3 + $0xec] sm:$0xf]
      %v3216 = vld [vmem:[#allocation3 + $0xf0] sm:$0xff]
      %v3217 = vld [vmem:[#allocation3 + $0xf8] sm:$0xff]
      %v3218 = vld [vmem:[#allocation3 + $0x100] sm:$0xf]
      %v3219 = vld [vmem:[#allocation3 + $0x104] sm:$0xff]
      %v3220 = vld [vmem:[#allocation3 + $0x10c] sm:$0xff]
      %v3221 = vld [vmem:[#allocation3 + $0x114] sm:$0xf]
      %v3222 = vld [vmem:[#allocation3 + $0x118] sm:$0xff]
      %v3223 = vld [vmem:[#allocation3 + $0x120] sm:$0xff]
      %v3224 = vld [vmem:[#allocation3 + $0x128] sm:$0xf]
      %v3225 = vld [vmem:[#allocation3 + $0x12c] sm:$0xff]
      %v3226 = vld [vmem:[#allocation3 + $0x134] sm:$0xff]
      %v3227 = vld [vmem:[#allocation3 + $0x13c] sm:$0xf]
      %v3228 = vld [vmem:[#allocation3 + $0x140] sm:$0xff]
      %v3229 = vld [vmem:[#allocation3 + $0x148] sm:$0xff]
      %v3230 = vld [vmem:[#allocation3 + $0x150] sm:$0xf]
      %v3231 = vld [vmem:[#allocation3 + $0x154] sm:$0xff]
      %v3232 = vld [vmem:[#allocation3 + $0x15c] sm:$0xff]
      %v3233 = vld [vmem:[#allocation3 + $0x164] sm:$0xf]
      %v3234 = vld [vmem:[#allocation3 + $0x168] sm:$0xff]
      %v3235 = vld [vmem:[#allocation3 + $0x170] sm:$0xff]
      %v3236 = vld [vmem:[#allocation3 + $0x178] sm:$0xf]
      %v3237 = vld [vmem:[#allocation3 + $0x17c] sm:$0xff]
      %v3238 = vld [vmem:[#allocation3 + $0x184] sm:$0xff]
      %v3239 = vld [vmem:[#allocation3 + $0x18c] sm:$0xf]
      %v3240 = vld [vmem:[#allocation3 + $0x190] sm:$0xff]
      %v3241 = vld [vmem:[#allocation3 + $0x198] sm:$0xff]
      %v3242 = vld [vmem:[#allocation3 + $0x1a0] sm:$0xf]
      %v3243 = vld [vmem:[#allocation3 + $0x1a4] sm:$0xff]
      %v3244 = vld [vmem:[#allocation3 + $0x1ac] sm:$0xff]
      %v3245 = vld [vmem:[#allocation3 + $0x1b4] sm:$0xf]
      %v3246 = vld [vmem:[#allocation3 + $0x1b8] sm:$0xff]
      %v3247 = vld [vmem:[#allocation3 + $0x1c0] sm:$0xff]
      %v3248 = vld [vmem:[#allocation3 + $0x1c8] sm:$0xf]
      %v3249 = vld [vmem:[#allocation3 + $0x1cc] sm:$0xff]
      %v3250 = vld [vmem:[#allocation3 + $0x1d4] sm:$0xff]
      %v3251 = vld [vmem:[#allocation3 + $0x1dc] sm:$0xf]
      %v3252 = vld [vmem:[#allocation3 + $0x1e0] sm:$0xff]
      %v3253 = vld [vmem:[#allocation3 + $0x1e8] sm:$0xff]
      %v3254 = vld [vmem:[#allocation3 + $0x1f0] sm:$0xf]
      %v3255 = vld [vmem:[#allocation3 + $0x1f4] sm:$0xff]
      %v3256 = vld [vmem:[#allocation3 + $0x1fc] sm:$0xff]
      %v3257 = vld [vmem:[#allocation3 + $0x204] sm:$0xf]
      %v3258 = vld [vmem:[#allocation3 + $0x208] sm:$0xff]
      %v3259 = vld [vmem:[#allocation3 + $0x210] sm:$0xff]
      %v3260 = vld [vmem:[#allocation3 + $0x218] sm:$0xf]
      %v3261 = vld [vmem:[#allocation3 + $0x21c] sm:$0xff]
      %v3262 = vld [vmem:[#allocation3 + $0x224] sm:$0xff]
      %v3263 = vld [vmem:[#allocation3 + $0x22c] sm:$0xf]
      %v3264 = vld [vmem:[#allocation3 + $0x230] sm:$0xff]
      %v3265 = vld [vmem:[#allocation3 + $0x238] sm:$0xff]
      %v3266 = vld [vmem:[#allocation3 + $0x240] sm:$0xf]
      %v3267 = vld [vmem:[#allocation3 + $0x244] sm:$0xff]
      %v3268 = vld [vmem:[#allocation3 + $0x24c] sm:$0xff]
      %v3269 = vld [vmem:[#allocation3 + $0x254] sm:$0xf]
      %v3270 = vld [vmem:[#allocation3 + $0x258] sm:$0xff]
      %v3271 = vld [vmem:[#allocation3 + $0x260] sm:$0xff]
      %v3272 = vld [vmem:[#allocation3 + $0x268] sm:$0xf]
      %v3273 = vld [vmem:[#allocation3 + $0x26c] sm:$0xff]
      %v3274 = vld [vmem:[#allocation3 + $0x274] sm:$0xff]
      %v3275 = vld [vmem:[#allocation3 + $0x27c] sm:$0xf]
      %v3276 = vld [vmem:[%s3] sm:$0xf]
      %v3277 = vld [vmem:[%s3 + $0x4] sm:$0xf]
      %v3278 = vld [vmem:[%s3 + $0x8] sm:$0xf]
      %v3279 = vld [vmem:[%s3 + $0xc] sm:$0xf]
      %v3280 = vld [vmem:[%s3 + $0x10] sm:$0xf]
      %v3281 = vld [vmem:[%s3 + $0x14] sm:$0xf]
      %v3282 = vld [vmem:[%s3 + $0x18] sm:$0xf]
      %v3283 = vld [vmem:[%s3 + $0x1c] sm:$0xf]
      %v3284 = vld [vmem:[%s3 + $0x20] sm:$0xf]
      %v3285 = vld [vmem:[%s3 + $0x24] sm:$0xf]
      %v3286 = vld [vmem:[%s3 + $0x28] sm:$0xf]
      %v3287 = vld [vmem:[%s3 + $0x2c] sm:$0xf]
      %v3288 = vld [vmem:[%s3 + $0x30] sm:$0xf]
      %v3289 = vld [vmem:[%s3 + $0x34] sm:$0xf]
      %v3290 = vld [vmem:[%s3 + $0x38] sm:$0xf]
      %v3291 = vld [vmem:[%s3 + $0x3c] sm:$0xf]
      %v3292 = vld [vmem:[%s3 + $0x40] sm:$0xf]
      %v3293 = vld [vmem:[%s3 + $0x44] sm:$0xf]
      %v3294 = vld [vmem:[%s3 + $0x48] sm:$0xf]
      %v3295 = vld [vmem:[%s3 + $0x4c] sm:$0xf]
      %v3296 = vld [vmem:[%s3 + $0x50] sm:$0xf]
      %v3297 = vld [vmem:[%s3 + $0x54] sm:$0xf]
      %v3298 = vld [vmem:[%s3 + $0x58] sm:$0xf]
      %v3299 = vld [vmem:[%s3 + $0x5c] sm:$0xf]
      %v3300 = vld [vmem:[%s3 + $0x60] sm:$0xf]
      %v3301 = vld [vmem:[%s3 + $0x64] sm:$0xf]
      %v3302 = vld [vmem:[%s3 + $0x68] sm:$0xf]
      %v3303 = vld [vmem:[%s3 + $0x6c] sm:$0xf]
      %v3304 = vld [vmem:[%s3 + $0x70] sm:$0xf]
      %v3305 = vld [vmem:[%s3 + $0x74] sm:$0xf]
      %v3306 = vld [vmem:[%s3 + $0x78] sm:$0xf]
      %v3307 = vld [vmem:[%s3 + $0x7c] sm:$0xf]
      %v3308 = vld [vmem:[%s3 + $0x80] sm:$0xf]
      %v3309 = vld [vmem:[%s3 + $0x84] sm:$0xf]
      %v3310 = vld [vmem:[%s3 + $0x88] sm:$0xf]
      %v3311 = vld [vmem:[%s3 + $0x8c] sm:$0xf]
      %v3312 = vld [vmem:[%s3 + $0x90] sm:$0xf]
      %v3313 = vld [vmem:[%s3 + $0x94] sm:$0xf]
      %v3314 = vld [vmem:[%s3 + $0x98] sm:$0xf]
      %v3315 = vld [vmem:[%s3 + $0x9c] sm:$0xf]
      %v3316 = vld [vmem:[%s3 + $0xa0] sm:$0xf]
      %v3317 = vld [vmem:[%s3 + $0xa4] sm:$0xf]
      %v3318 = vld [vmem:[%s3 + $0xa8] sm:$0xf]
      %v3319 = vld [vmem:[%s3 + $0xac] sm:$0xf]
      %v3320 = vld [vmem:[%s3 + $0xb0] sm:$0xf]
      %v3321 = vld [vmem:[%s3 + $0xb4] sm:$0xf]
      %v3322 = vld [vmem:[%s3 + $0xb8] sm:$0xf]
      %v3323 = vld [vmem:[%s3 + $0xbc] sm:$0xf]
      %v3324 = vld [vmem:[%s3 + $0xc0] sm:$0xf]
      %v3325 = vld [vmem:[%s3 + $0xc4] sm:$0xf]
      %v3326 = vld [vmem:[%s3 + $0xc8] sm:$0xf]
      %v3327 = vld [vmem:[%s3 + $0xcc] sm:$0xf]
      %v3328 = vld [vmem:[%s3 + $0xd0] sm:$0xf]
      %v3329 = vld [vmem:[%s3 + $0xd4] sm:$0xf]
      %v3330 = vld [vmem:[%s3 + $0xd8] sm:$0xf]
      %v3331 = vld [vmem:[%s3 + $0xdc] sm:$0xf]
      %v3332 = vld [vmem:[%s3 + $0xe0] sm:$0xf]
      %v3333 = vld [vmem:[%s3 + $0xe4] sm:$0xf]
      %v3334 = vld [vmem:[%s3 + $0xe8] sm:$0xf]
      %v3335 = vld [vmem:[%s3 + $0xec] sm:$0xf]
      %v3336 = vld [vmem:[%s3 + $0xf0] sm:$0xf]
      %v3337 = vld [vmem:[%s3 + $0xf4] sm:$0xf]
      %v3338 = vld [vmem:[%s3 + $0xf8] sm:$0xf]
      %v3339 = vld [vmem:[%s3 + $0xfc] sm:$0xf]
      %v3340 = vld [vmem:[%s3 + $0x100] sm:$0xf]
      %v3341 = vld [vmem:[%s3 + $0x104] sm:$0xf]
      %v3342 = vld [vmem:[%s3 + $0x108] sm:$0xf]
      %v3343 = vld [vmem:[%s3 + $0x10c] sm:$0xf]
      %v3344 = vld [vmem:[%s3 + $0x110] sm:$0xf]
      %v3345 = vld [vmem:[%s3 + $0x114] sm:$0xf]
      %v3346 = vld [vmem:[%s3 + $0x118] sm:$0xf]
      %v3347 = vld [vmem:[%s3 + $0x11c] sm:$0xf]
      %v3444 = vunpack.c.l.b16 %v3180
      %v3445 = vunpack.c.h.b16 %v3180
      %v3446 = vunpack.c.l.b16 %v3181
      %v3447 = vunpack.c.h.b16 %v3181
      %v3448 = vunpack.c.l.b16 %v3182
      %v3449 = vunpack.c.l.b16 %v3183
      %v3450 = vunpack.c.h.b16 %v3183
      %v3451 = vunpack.c.l.b16 %v3184
      %v3452 = vunpack.c.h.b16 %v3184
      %v3453 = vunpack.c.l.b16 %v3185
      %v3454 = vunpack.c.l.b16 %v3186
      %v3455 = vunpack.c.h.b16 %v3186
      %v3456 = vunpack.c.l.b16 %v3187
      %v3457 = vunpack.c.h.b16 %v3187
      %v3458 = vunpack.c.l.b16 %v3188
      %v3459 = vunpack.c.l.b16 %v3189
      %v3460 = vunpack.c.h.b16 %v3189
      %v3461 = vunpack.c.l.b16 %v3190
      %v3462 = vunpack.c.h.b16 %v3190
      %v3463 = vunpack.c.l.b16 %v3191
      %v3464 = vunpack.c.l.b16 %v3192
      %v3465 = vunpack.c.h.b16 %v3192
      %v3466 = vunpack.c.l.b16 %v3193
      %v3467 = vunpack.c.h.b16 %v3193
      %v3468 = vunpack.c.l.b16 %v3194
      %v3469 = vunpack.c.l.b16 %v3195
      %v3470 = vunpack.c.h.b16 %v3195
      %v3471 = vunpack.c.l.b16 %v3196
      %v3472 = vunpack.c.h.b16 %v3196
      %v3473 = vunpack.c.l.b16 %v3197
      %v3474 = vunpack.c.l.b16 %v3198
      %v3475 = vunpack.c.h.b16 %v3198
      %v3476 = vunpack.c.l.b16 %v3199
      %v3477 = vunpack.c.h.b16 %v3199
      %v3478 = vunpack.c.l.b16 %v3200
      %v3479 = vunpack.c.l.b16 %v3201
      %v3480 = vunpack.c.h.b16 %v3201
      %v3481 = vunpack.c.l.b16 %v3202
      %v3482 = vunpack.c.h.b16 %v3202
      %v3483 = vunpack.c.l.b16 %v3203
      %v3484 = vunpack.c.l.b16 %v3204
      %v3485 = vunpack.c.h.b16 %v3204
      %v3486 = vunpack.c.l.b16 %v3205
      %v3487 = vunpack.c.h.b16 %v3205
      %v3488 = vunpack.c.l.b16 %v3206
      %v3489 = vunpack.c.l.b16 %v3207
      %v3490 = vunpack.c.h.b16 %v3207
      %v3491 = vunpack.c.l.b16 %v3208
      %v3492 = vunpack.c.h.b16 %v3208
      %v3493 = vunpack.c.l.b16 %v3209
      %v3494 = vunpack.c.l.b16 %v3210
      %v3495 = vunpack.c.h.b16 %v3210
      %v3496 = vunpack.c.l.b16 %v3211
      %v3497 = vunpack.c.h.b16 %v3211
      %v3498 = vunpack.c.l.b16 %v3212
      %v3499 = vunpack.c.l.b16 %v3213
      %v3500 = vunpack.c.h.b16 %v3213
      %v3501 = vunpack.c.l.b16 %v3214
      %v3502 = vunpack.c.h.b16 %v3214
      %v3503 = vunpack.c.l.b16 %v3215
      %v3504 = vunpack.c.l.b16 %v3216
      %v3505 = vunpack.c.h.b16 %v3216
      %v3506 = vunpack.c.l.b16 %v3217
      %v3507 = vunpack.c.h.b16 %v3217
      %v3508 = vunpack.c.l.b16 %v3218
      %v3509 = vunpack.c.l.b16 %v3219
      %v3510 = vunpack.c.h.b16 %v3219
      %v3511 = vunpack.c.l.b16 %v3220
      %v3512 = vunpack.c.h.b16 %v3220
      %v3513 = vunpack.c.l.b16 %v3221
      %v3514 = vunpack.c.l.b16 %v3222
      %v3515 = vunpack.c.h.b16 %v3222
      %v3516 = vunpack.c.l.b16 %v3223
      %v3517 = vunpack.c.h.b16 %v3223
      %v3518 = vunpack.c.l.b16 %v3224
      %v3519 = vunpack.c.l.b16 %v3225
      %v3520 = vunpack.c.h.b16 %v3225
      %v3521 = vunpack.c.l.b16 %v3226
      %v3522 = vunpack.c.h.b16 %v3226
      %v3523 = vunpack.c.l.b16 %v3227
      %v3524 = vunpack.c.l.b16 %v3228
      %v3525 = vunpack.c.h.b16 %v3228
      %v3526 = vunpack.c.l.b16 %v3229
      %v3527 = vunpack.c.h.b16 %v3229
      %v3528 = vunpack.c.l.b16 %v3230
      %v3529 = vunpack.c.l.b16 %v3231
      %v3530 = vunpack.c.h.b16 %v3231
      %v3531 = vunpack.c.l.b16 %v3232
      %v3532 = vunpack.c.h.b16 %v3232
      %v3533 = vunpack.c.l.b16 %v3233
      %v3534 = vunpack.c.l.b16 %v3234
      %v3535 = vunpack.c.h.b16 %v3234
      %v3536 = vunpack.c.l.b16 %v3235
      %v3537 = vunpack.c.h.b16 %v3235
      %v3538 = vunpack.c.l.b16 %v3236
      %v3539 = vunpack.c.l.b16 %v3237
      %v3540 = vunpack.c.h.b16 %v3237
      %v3541 = vunpack.c.l.b16 %v3238
      %v3542 = vunpack.c.h.b16 %v3238
      %v3543 = vunpack.c.l.b16 %v3239
      %v3544 = vunpack.c.l.b16 %v3240
      %v3545 = vunpack.c.h.b16 %v3240
      %v3546 = vunpack.c.l.b16 %v3241
      %v3547 = vunpack.c.h.b16 %v3241
      %v3548 = vunpack.c.l.b16 %v3242
      %v3549 = vunpack.c.l.b16 %v3243
      %v3550 = vunpack.c.h.b16 %v3243
      %v3551 = vunpack.c.l.b16 %v3244
      %v3552 = vunpack.c.h.b16 %v3244
      %v3553 = vunpack.c.l.b16 %v3245
      %v3554 = vunpack.c.l.b16 %v3246
      %v3555 = vunpack.c.h.b16 %v3246
      %v3556 = vunpack.c.l.b16 %v3247
      %v3557 = vunpack.c.h.b16 %v3247
      %v3558 = vunpack.c.l.b16 %v3248
      %v3559 = vunpack.c.l.b16 %v3249
      %v3560 = vunpack.c.h.b16 %v3249
      %v3561 = vunpack.c.l.b16 %v3250
      %v3562 = vunpack.c.h.b16 %v3250
      %v3563 = vunpack.c.l.b16 %v3251
      %v3564 = vunpack.c.l.b16 %v3252
      %v3565 = vunpack.c.h.b16 %v3252
      %v3566 = vunpack.c.l.b16 %v3253
      %v3567 = vunpack.c.h.b16 %v3253
      %v3568 = vunpack.c.l.b16 %v3254
      %v3569 = vunpack.c.l.b16 %v3255
      %v3570 = vunpack.c.h.b16 %v3255
      %v3571 = vunpack.c.l.b16 %v3256
      %v3572 = vunpack.c.h.b16 %v3256
      %v3573 = vunpack.c.l.b16 %v3257
      %v3574 = vunpack.c.l.b16 %v3258
      %v3575 = vunpack.c.h.b16 %v3258
      %v3576 = vunpack.c.l.b16 %v3259
      %v3577 = vunpack.c.h.b16 %v3259
      %v3578 = vunpack.c.l.b16 %v3260
      %v3579 = vunpack.c.l.b16 %v3261
      %v3580 = vunpack.c.h.b16 %v3261
      %v3581 = vunpack.c.l.b16 %v3262
      %v3582 = vunpack.c.h.b16 %v3262
      %v3583 = vunpack.c.l.b16 %v3263
      %v3584 = vunpack.c.l.b16 %v3264
      %v3585 = vunpack.c.h.b16 %v3264
      %v3586 = vunpack.c.l.b16 %v3265
      %v3587 = vunpack.c.h.b16 %v3265
      %v3588 = vunpack.c.l.b16 %v3266
      %v3589 = vunpack.c.l.b16 %v3267
      %v3590 = vunpack.c.h.b16 %v3267
      %v3591 = vunpack.c.l.b16 %v3268
      %v3592 = vunpack.c.h.b16 %v3268
      %v3593 = vunpack.c.l.b16 %v3269
      %v3594 = vunpack.c.l.b16 %v3270
      %v3595 = vunpack.c.h.b16 %v3270
      %v3596 = vunpack.c.l.b16 %v3271
      %v3597 = vunpack.c.h.b16 %v3271
      %v3598 = vunpack.c.l.b16 %v3272
      %v3599 = vunpack.c.l.b16 %v3273
      %v3600 = vunpack.c.h.b16 %v3273
      %v3601 = vunpack.c.l.b16 %v3274
      %v3602 = vunpack.c.h.b16 %v3274
      %v3603 = vunpack.c.l.b16 %v3275
      %v3604 = vpack.c.b16 %v3449, %v3444
      %v3605 = vpack.c.b16 %v3450, %v3445
      %v3606 = vpack.c.b16 %v3451, %v3446
      %v3607 = vpack.c.b16 %v3452, %v3447
      %v3608 = vpack.c.b16 %v3453, %v3448
      %v3609 = vpack.c.b16 %v3459, %v3454
      %v3610 = vpack.c.b16 %v3460, %v3455
      %v3611 = vpack.c.b16 %v3461, %v3456
      %v3612 = vpack.c.b16 %v3462, %v3457
      %v3613 = vpack.c.b16 %v3463, %v3458
      %v3614 = vpack.c.b16 %v3469, %v3464
      %v3615 = vpack.c.b16 %v3470, %v3465
      %v3616 = vpack.c.b16 %v3471, %v3466
      %v3617 = vpack.c.b16 %v3472, %v3467
      %v3618 = vpack.c.b16 %v3473, %v3468
      %v3619 = vpack.c.b16 %v3479, %v3474
      %v3620 = vpack.c.b16 %v3480, %v3475
      %v3621 = vpack.c.b16 %v3481, %v3476
      %v3622 = vpack.c.b16 %v3482, %v3477
      %v3623 = vpack.c.b16 %v3483, %v3478
      %v3624 = vpack.c.b16 %v3489, %v3484
      %v3625 = vpack.c.b16 %v3490, %v3485
      %v3626 = vpack.c.b16 %v3491, %v3486
      %v3627 = vpack.c.b16 %v3492, %v3487
      %v3628 = vpack.c.b16 %v3493, %v3488
      %v3629 = vpack.c.b16 %v3499, %v3494
      %v3630 = vpack.c.b16 %v3500, %v3495
      %v3631 = vpack.c.b16 %v3501, %v3496
      %v3632 = vpack.c.b16 %v3502, %v3497
      %v3633 = vpack.c.b16 %v3503, %v3498
      %v3634 = vpack.c.b16 %v3509, %v3504
      %v3635 = vpack.c.b16 %v3510, %v3505
      %v3636 = vpack.c.b16 %v3511, %v3506
      %v3637 = vpack.c.b16 %v3512, %v3507
      %v3638 = vpack.c.b16 %v3513, %v3508
      %v3639 = vpack.c.b16 %v3519, %v3514
      %v3640 = vpack.c.b16 %v3520, %v3515
      %v3641 = vpack.c.b16 %v3521, %v3516
      %v3642 = vpack.c.b16 %v3522, %v3517
      %v3643 = vpack.c.b16 %v3523, %v3518
      %v3644 = vpack.c.b16 %v3529, %v3524
      %v3645 = vpack.c.b16 %v3530, %v3525
      %v3646 = vpack.c.b16 %v3531, %v3526
      %v3647 = vpack.c.b16 %v3532, %v3527
      %v3648 = vpack.c.b16 %v3533, %v3528
      %v3649 = vpack.c.b16 %v3539, %v3534
      %v3650 = vpack.c.b16 %v3540, %v3535
      %v3651 = vpack.c.b16 %v3541, %v3536
      %v3652 = vpack.c.b16 %v3542, %v3537
      %v3653 = vpack.c.b16 %v3543, %v3538
      %v3654 = vpack.c.b16 %v3549, %v3544
      %v3655 = vpack.c.b16 %v3550, %v3545
      %v3656 = vpack.c.b16 %v3551, %v3546
      %v3657 = vpack.c.b16 %v3552, %v3547
      %v3658 = vpack.c.b16 %v3553, %v3548
      %v3659 = vpack.c.b16 %v3559, %v3554
      %v3660 = vpack.c.b16 %v3560, %v3555
      %v3661 = vpack.c.b16 %v3561, %v3556
      %v3662 = vpack.c.b16 %v3562, %v3557
      %v3663 = vpack.c.b16 %v3563, %v3558
      %v3664 = vpack.c.b16 %v3569, %v3564
      %v3665 = vpack.c.b16 %v3570, %v3565
      %v3666 = vpack.c.b16 %v3571, %v3566
      %v3667 = vpack.c.b16 %v3572, %v3567
      %v3668 = vpack.c.b16 %v3573, %v3568
      %v3669 = vpack.c.b16 %v3579, %v3574
      %v3670 = vpack.c.b16 %v3580, %v3575
      %v3671 = vpack.c.b16 %v3581, %v3576
      %v3672 = vpack.c.b16 %v3582, %v3577
      %v3673 = vpack.c.b16 %v3583, %v3578
      %v3674 = vpack.c.b16 %v3589, %v3584
      %v3675 = vpack.c.b16 %v3590, %v3585
      %v3676 = vpack.c.b16 %v3591, %v3586
      %v3677 = vpack.c.b16 %v3592, %v3587
      %v3678 = vpack.c.b16 %v3593, %v3588
      %v3679 = vpack.c.b16 %v3599, %v3594
      %v3680 = vpack.c.b16 %v3600, %v3595
      %v3681 = vpack.c.b16 %v3601, %v3596
      %v3682 = vpack.c.b16 %v3602, %v3597
      %v3683 = vpack.c.b16 %v3603, %v3598
      %v3820 = vunpack.c.l.b16 %v3276
      %v3821 = vunpack.c.l.b16 %v3277
      %v3822 = vunpack.c.l.b16 %v3278
      %v3823 = vunpack.c.l.b16 %v3279
      %v3824 = vunpack.c.l.b16 %v3280
      %v3825 = vunpack.c.l.b16 %v3281
      %v3826 = vunpack.c.l.b16 %v3282
      %v3827 = vunpack.c.l.b16 %v3283
      %v3828 = vunpack.c.l.b16 %v3284
      %v3829 = vunpack.c.l.b16 %v3285
      %v3830 = vunpack.c.l.b16 %v3286
      %v3831 = vunpack.c.l.b16 %v3287
      %v3832 = vunpack.c.l.b16 %v3288
      %v3833 = vunpack.c.l.b16 %v3289
      %v3834 = vunpack.c.l.b16 %v3290
      %v3835 = vunpack.c.l.b16 %v3291
      %v3836 = vunpack.c.l.b16 %v3292
      %v3837 = vunpack.c.l.b16 %v3293
      %v3838 = vunpack.c.l.b16 %v3294
      %v3839 = vunpack.c.l.b16 %v3295
      %v3840 = vunpack.c.l.b16 %v3296
      %v3841 = vunpack.c.l.b16 %v3297
      %v3842 = vunpack.c.l.b16 %v3298
      %v3843 = vunpack.c.l.b16 %v3299
      %v3844 = vunpack.c.l.b16 %v3300
      %v3845 = vunpack.c.l.b16 %v3301
      %v3846 = vunpack.c.l.b16 %v3302
      %v3847 = vunpack.c.l.b16 %v3303
      %v3848 = vunpack.c.l.b16 %v3304
      %v3849 = vunpack.c.l.b16 %v3305
      %v3850 = vunpack.c.l.b16 %v3306
      %v3851 = vunpack.c.l.b16 %v3307
      %v3852 = vunpack.c.l.b16 %v3308
      %v3853 = vunpack.c.l.b16 %v3309
      %v3854 = vunpack.c.l.b16 %v3310
      %v3855 = vunpack.c.l.b16 %v3311
      %v3856 = vunpack.c.l.b16 %v3312
      %v3857 = vunpack.c.l.b16 %v3313
      %v3858 = vunpack.c.l.b16 %v3314
      %v3859 = vunpack.c.l.b16 %v3315
      %v3860 = vunpack.c.l.b16 %v3316
      %v3861 = vunpack.c.l.b16 %v3317
      %v3862 = vunpack.c.l.b16 %v3318
      %v3863 = vunpack.c.l.b16 %v3319
      %v3864 = vunpack.c.l.b16 %v3320
      %v3865 = vunpack.c.l.b16 %v3321
      %v3866 = vunpack.c.l.b16 %v3322
      %v3867 = vunpack.c.l.b16 %v3323
      %v3868 = vunpack.c.l.b16 %v3324
      %v3869 = vunpack.c.l.b16 %v3325
      %v3870 = vunpack.c.l.b16 %v3326
      %v3871 = vunpack.c.l.b16 %v3327
      %v3872 = vunpack.c.l.b16 %v3328
      %v3873 = vunpack.c.l.b16 %v3329
      %v3874 = vunpack.c.l.b16 %v3330
      %v3875 = vunpack.c.l.b16 %v3331
      %v3876 = vunpack.c.l.b16 %v3332
      %v3877 = vunpack.c.l.b16 %v3333
      %v3878 = vunpack.c.l.b16 %v3334
      %v3879 = vunpack.c.l.b16 %v3335
      %v3880 = vunpack.c.l.b16 %v3336
      %v3881 = vunpack.c.l.b16 %v3337
      %v3882 = vunpack.c.l.b16 %v3338
      %v3883 = vunpack.c.l.b16 %v3339
      %v3884 = vunpack.c.l.b16 %v3340
      %v3885 = vunpack.c.l.b16 %v3341
      %v3886 = vunpack.c.l.b16 %v3342
      %v3887 = vunpack.c.l.b16 %v3343
      %v3888 = vunpack.c.l.b16 %v3344
      %v3889 = vunpack.c.l.b16 %v3345
      %v3890 = vunpack.c.l.b16 %v3346
      %v3891 = vunpack.c.l.b16 %v3347
      %v3892 = vpack.c.b16 %v3821, %v3820
      %v3893 = vpack.c.b16 %v3823, %v3822
      %v3894 = vpack.c.b16 %v3825, %v3824
      %v3895 = vpack.c.b16 %v3827, %v3826
      %v3896 = vpack.c.b16 %v3829, %v3828
      %v3897 = vpack.c.b16 %v3831, %v3830
      %v3898 = vpack.c.b16 %v3833, %v3832
      %v3899 = vpack.c.b16 %v3835, %v3834
      %v3900 = vpack.c.b16 %v3837, %v3836
      %v3901 = vpack.c.b16 %v3839, %v3838
      %v3902 = vpack.c.b16 %v3841, %v3840
      %v3903 = vpack.c.b16 %v3843, %v3842
      %v3904 = vpack.c.b16 %v3845, %v3844
      %v3905 = vpack.c.b16 %v3847, %v3846
      %v3906 = vpack.c.b16 %v3849, %v3848
      %v3907 = vpack.c.b16 %v3851, %v3850
      %v3908 = vpack.c.b16 %v3853, %v3852
      %v3909 = vpack.c.b16 %v3855, %v3854
      %v3910 = vpack.c.b16 %v3857, %v3856
      %v3911 = vpack.c.b16 %v3859, %v3858
      %v3912 = vpack.c.b16 %v3861, %v3860
      %v3913 = vpack.c.b16 %v3863, %v3862
      %v3914 = vpack.c.b16 %v3865, %v3864
      %v3915 = vpack.c.b16 %v3867, %v3866
      %v3916 = vpack.c.b16 %v3869, %v3868
      %v3917 = vpack.c.b16 %v3871, %v3870
      %v3918 = vpack.c.b16 %v3873, %v3872
      %v3919 = vpack.c.b16 %v3875, %v3874
      %v3920 = vpack.c.b16 %v3877, %v3876
      %v3921 = vpack.c.b16 %v3879, %v3878
      %v3922 = vpack.c.b16 %v3881, %v3880
      %v3923 = vpack.c.b16 %v3883, %v3882
      %v3924 = vpack.c.b16 %v3885, %v3884
      %v3925 = vpack.c.b16 %v3887, %v3886
      %v3926 = vpack.c.b16 %v3889, %v3888
      %v3927 = vpack.c.b16 %v3891, %v3890
      %vm3964 = vcmask 523264
      %v3966 = vsel %vm3964, %v3608, 0
      %v3969 = vsel %vm3964, %v3613, 0
      %v3972 = vsel %vm3964, %v3618, 0
      %v3975 = vsel %vm3964, %v3623, 0
      %v3978 = vsel %vm3964, %v3628, 0
      %v3981 = vsel %vm3964, %v3633, 0
      %v3984 = vsel %vm3964, %v3638, 0
      %v3987 = vsel %vm3964, %v3643, 0
      %v3990 = vsel %vm3964, %v3648, 0
      %v3993 = vsel %vm3964, %v3653, 0
      %v3996 = vsel %vm3964, %v3658, 0
      %v3999 = vsel %vm3964, %v3663, 0
      %v4002 = vsel %vm3964, %v3668, 0
      %v4005 = vsel %vm3964, %v3673, 0
      %v4008 = vsel %vm3964, %v3678, 0
      %v4011 = vsel %vm3964, %v3683, 0
      %4013 = vmatpush.bf16.msra.mxu0 %v3899
      %4014 = vmatpush.bf16.msra.mxu0 %v3898
      %4015 = vmatpush.bf16.msra.mxu0 %v3897
      %4016 = vmatpush.bf16.msra.mxu0 %v3896
      %4017 = vmatpush.bf16.msra.mxu0 %v3895
      %4018 = vmatpush.bf16.msra.mxu0 %v3894
      %4019 = vmatpush.bf16.msra.mxu0 %v3893
      %4020 = vmatpush.bf16.msra.mxu0 %v3892
      %4021 = vmatmul.bf16.gmra.mxu0 %v3604
      %v4022 = vpop.f32.mrf.mxu0
      %v4023 = vadd.f32 0.0, %v4022
      %v4024 = vpop.f32.mrf.mxu0
      %v4025 = vadd.f32 0.0, %v4024
      %4026 = vmatmul.bf16.gmra.mxu0 %v3609
      %v4027 = vpop.f32.mrf.mxu0
      %v4028 = vadd.f32 0.0, %v4027
      %v4029 = vpop.f32.mrf.mxu0
      %v4030 = vadd.f32 0.0, %v4029
      %4031 = vmatmul.bf16.gmra.mxu0 %v3614
      %v4032 = vpop.f32.mrf.mxu0
      %v4033 = vadd.f32 0.0, %v4032
      %v4034 = vpop.f32.mrf.mxu0
      %v4035 = vadd.f32 0.0, %v4034
      %4036 = vmatmul.bf16.gmra.mxu0 %v3619
      %v4037 = vpop.f32.mrf.mxu0
      %v4038 = vadd.f32 0.0, %v4037
      %v4039 = vpop.f32.mrf.mxu0
      %v4040 = vadd.f32 0.0, %v4039
      %4041 = vmatmul.bf16.gmra.mxu0 %v3624
      %v4042 = vpop.f32.mrf.mxu0
      %v4043 = vadd.f32 0.0, %v4042
      %v4044 = vpop.f32.mrf.mxu0
      %v4045 = vadd.f32 0.0, %v4044
      %4046 = vmatmul.bf16.gmra.mxu0 %v3629
      %v4047 = vpop.f32.mrf.mxu0
      %v4048 = vadd.f32 0.0, %v4047
      %v4049 = vpop.f32.mrf.mxu0
      %v4050 = vadd.f32 0.0, %v4049
      %4051 = vmatmul.bf16.gmra.mxu0 %v3634
      %v4052 = vpop.f32.mrf.mxu0
      %v4053 = vadd.f32 0.0, %v4052
      %v4054 = vpop.f32.mrf.mxu0
      %v4055 = vadd.f32 0.0, %v4054
      %4056 = vmatmul.bf16.gmra.mxu0 %v3639
      %v4057 = vpop.f32.mrf.mxu0
      %v4058 = vadd.f32 0.0, %v4057
      %v4059 = vpop.f32.mrf.mxu0
      %v4060 = vadd.f32 0.0, %v4059
      %4061 = vmatmul.bf16.gmra.mxu0 %v3644
      %v4062 = vpop.f32.mrf.mxu0
      %v4063 = vadd.f32 0.0, %v4062
      %v4064 = vpop.f32.mrf.mxu0
      %v4065 = vadd.f32 0.0, %v4064
      %4066 = vmatmul.bf16.gmra.mxu0 %v3649
      %v4067 = vpop.f32.mrf.mxu0
      %v4068 = vadd.f32 0.0, %v4067
      %v4069 = vpop.f32.mrf.mxu0
      %v4070 = vadd.f32 0.0, %v4069
      %4071 = vmatmul.bf16.gmra.mxu0 %v3654
      %v4072 = vpop.f32.mrf.mxu0
      %v4073 = vadd.f32 0.0, %v4072
      %v4074 = vpop.f32.mrf.mxu0
      %v4075 = vadd.f32 0.0, %v4074
      %4076 = vmatmul.bf16.gmra.mxu0 %v3659
      %v4077 = vpop.f32.mrf.mxu0
      %v4078 = vadd.f32 0.0, %v4077
      %v4079 = vpop.f32.mrf.mxu0
      %v4080 = vadd.f32 0.0, %v4079
      %4081 = vmatmul.bf16.gmra.mxu0 %v3664
      %v4082 = vpop.f32.mrf.mxu0
      %v4083 = vadd.f32 0.0, %v4082
      %v4084 = vpop.f32.mrf.mxu0
      %v4085 = vadd.f32 0.0, %v4084
      %4086 = vmatmul.bf16.gmra.mxu0 %v3669
      %v4087 = vpop.f32.mrf.mxu0
      %v4088 = vadd.f32 0.0, %v4087
      %v4089 = vpop.f32.mrf.mxu0
      %v4090 = vadd.f32 0.0, %v4089
      %4091 = vmatmul.bf16.gmra.mxu0 %v3674
      %v4092 = vpop.f32.mrf.mxu0
      %v4093 = vadd.f32 0.0, %v4092
      %v4094 = vpop.f32.mrf.mxu0
      %v4095 = vadd.f32 0.0, %v4094
      %4096 = vmatmul.bf16.gmra.mxu0 %v3679
      %v4097 = vpop.f32.mrf.mxu0
      %v4098 = vadd.f32 0.0, %v4097
      %v4099 = vpop.f32.mrf.mxu0
      %v4100 = vadd.f32 0.0, %v4099
      %4101 = vdwg.mxu0
      %4102 = vmatpush.bf16.msra.mxu0 %v3907
      %4103 = vmatpush.bf16.msra.mxu0 %v3906
      %4104 = vmatpush.bf16.msra.mxu0 %v3905
      %4105 = vmatpush.bf16.msra.mxu0 %v3904
      %4106 = vmatpush.bf16.msra.mxu0 %v3903
      %4107 = vmatpush.bf16.msra.mxu0 %v3902
      %4108 = vmatpush.bf16.msra.mxu0 %v3901
      %4109 = vmatpush.bf16.msra.mxu0 %v3900
      %4110 = vmatmul.bf16.gmra.mxu0 %v3605
      %v4111 = vpop.f32.mrf.mxu0
      %v4112 = vadd.f32 %v4023, %v4111
      %v4113 = vpop.f32.mrf.mxu0
      %v4114 = vadd.f32 %v4025, %v4113
      %4115 = vmatmul.bf16.gmra.mxu0 %v3610
      %v4116 = vpop.f32.mrf.mxu0
      %v4117 = vadd.f32 %v4028, %v4116
      %v4118 = vpop.f32.mrf.mxu0
      %v4119 = vadd.f32 %v4030, %v4118
      %4120 = vmatmul.bf16.gmra.mxu0 %v3615
      %v4121 = vpop.f32.mrf.mxu0
      %v4122 = vadd.f32 %v4033, %v4121
      %v4123 = vpop.f32.mrf.mxu0
      %v4124 = vadd.f32 %v4035, %v4123
      %4125 = vmatmul.bf16.gmra.mxu0 %v3620
      %v4126 = vpop.f32.mrf.mxu0
      %v4127 = vadd.f32 %v4038, %v4126
      %v4128 = vpop.f32.mrf.mxu0
      %v4129 = vadd.f32 %v4040, %v4128
      %4130 = vmatmul.bf16.gmra.mxu0 %v3625
      %v4131 = vpop.f32.mrf.mxu0
      %v4132 = vadd.f32 %v4043, %v4131
      %v4133 = vpop.f32.mrf.mxu0
      %v4134 = vadd.f32 %v4045, %v4133
      %4135 = vmatmul.bf16.gmra.mxu0 %v3630
      %v4136 = vpop.f32.mrf.mxu0
      %v4137 = vadd.f32 %v4048, %v4136
      %v4138 = vpop.f32.mrf.mxu0
      %v4139 = vadd.f32 %v4050, %v4138
      %4140 = vmatmul.bf16.gmra.mxu0 %v3635
      %v4141 = vpop.f32.mrf.mxu0
      %v4142 = vadd.f32 %v4053, %v4141
      %v4143 = vpop.f32.mrf.mxu0
      %v4144 = vadd.f32 %v4055, %v4143
      %4145 = vmatmul.bf16.gmra.mxu0 %v3640
      %v4146 = vpop.f32.mrf.mxu0
      %v4147 = vadd.f32 %v4058, %v4146
      %v4148 = vpop.f32.mrf.mxu0
      %v4149 = vadd.f32 %v4060, %v4148
      %4150 = vmatmul.bf16.gmra.mxu0 %v3645
      %v4151 = vpop.f32.mrf.mxu0
      %v4152 = vadd.f32 %v4063, %v4151
      %v4153 = vpop.f32.mrf.mxu0
      %v4154 = vadd.f32 %v4065, %v4153
      %4155 = vmatmul.bf16.gmra.mxu0 %v3650
      %v4156 = vpop.f32.mrf.mxu0
      %v4157 = vadd.f32 %v4068, %v4156
      %v4158 = vpop.f32.mrf.mxu0
      %v4159 = vadd.f32 %v4070, %v4158
      %4160 = vmatmul.bf16.gmra.mxu0 %v3655
      %v4161 = vpop.f32.mrf.mxu0
      %v4162 = vadd.f32 %v4073, %v4161
      %v4163 = vpop.f32.mrf.mxu0
      %v4164 = vadd.f32 %v4075, %v4163
      %4165 = vmatmul.bf16.gmra.mxu0 %v3660
      %v4166 = vpop.f32.mrf.mxu0
      %v4167 = vadd.f32 %v4078, %v4166
      %v4168 = vpop.f32.mrf.mxu0
      %v4169 = vadd.f32 %v4080, %v4168
      %4170 = vmatmul.bf16.gmra.mxu0 %v3665
      %v4171 = vpop.f32.mrf.mxu0
      %v4172 = vadd.f32 %v4083, %v4171
      %v4173 = vpop.f32.mrf.mxu0
      %v4174 = vadd.f32 %v4085, %v4173
      %4175 = vmatmul.bf16.gmra.mxu0 %v3670
      %v4176 = vpop.f32.mrf.mxu0
      %v4177 = vadd.f32 %v4088, %v4176
      %v4178 = vpop.f32.mrf.mxu0
      %v4179 = vadd.f32 %v4090, %v4178
      %4180 = vmatmul.bf16.gmra.mxu0 %v3675
      %v4181 = vpop.f32.mrf.mxu0
      %v4182 = vadd.f32 %v4093, %v4181
      %v4183 = vpop.f32.mrf.mxu0
      %v4184 = vadd.f32 %v4095, %v4183
      %4185 = vmatmul.bf16.gmra.mxu0 %v3680
      %v4186 = vpop.f32.mrf.mxu0
      %v4187 = vadd.f32 %v4098, %v4186
      %v4188 = vpop.f32.mrf.mxu0
      %v4189 = vadd.f32 %v4100, %v4188
      %4190 = vdwg.mxu0
      %4191 = vmatpush.bf16.msra.mxu0 %v3915
      %4192 = vmatpush.bf16.msra.mxu0 %v3914
      %4193 = vmatpush.bf16.msra.mxu0 %v3913
      %4194 = vmatpush.bf16.msra.mxu0 %v3912
      %4195 = vmatpush.bf16.msra.mxu0 %v3911
      %4196 = vmatpush.bf16.msra.mxu0 %v3910
      %4197 = vmatpush.bf16.msra.mxu0 %v3909
      %4198 = vmatpush.bf16.msra.mxu0 %v3908
      %4199 = vmatmul.bf16.gmra.mxu0 %v3606
      %v4200 = vpop.f32.mrf.mxu0
      %v4201 = vadd.f32 %v4112, %v4200
      %v4202 = vpop.f32.mrf.mxu0
      %v4203 = vadd.f32 %v4114, %v4202
      %4204 = vmatmul.bf16.gmra.mxu0 %v3611
      %v4205 = vpop.f32.mrf.mxu0
      %v4206 = vadd.f32 %v4117, %v4205
      %v4207 = vpop.f32.mrf.mxu0
      %v4208 = vadd.f32 %v4119, %v4207
      %4209 = vmatmul.bf16.gmra.mxu0 %v3616
      %v4210 = vpop.f32.mrf.mxu0
      %v4211 = vadd.f32 %v4122, %v4210
      %v4212 = vpop.f32.mrf.mxu0
      %v4213 = vadd.f32 %v4124, %v4212
      %4214 = vmatmul.bf16.gmra.mxu0 %v3621
      %v4215 = vpop.f32.mrf.mxu0
      %v4216 = vadd.f32 %v4127, %v4215
      %v4217 = vpop.f32.mrf.mxu0
      %v4218 = vadd.f32 %v4129, %v4217
      %4219 = vmatmul.bf16.gmra.mxu0 %v3626
      %v4220 = vpop.f32.mrf.mxu0
      %v4221 = vadd.f32 %v4132, %v4220
      %v4222 = vpop.f32.mrf.mxu0
      %v4223 = vadd.f32 %v4134, %v4222
      %4224 = vmatmul.bf16.gmra.mxu0 %v3631
      %v4225 = vpop.f32.mrf.mxu0
      %v4226 = vadd.f32 %v4137, %v4225
      %v4227 = vpop.f32.mrf.mxu0
      %v4228 = vadd.f32 %v4139, %v4227
      %4229 = vmatmul.bf16.gmra.mxu0 %v3636
      %v4230 = vpop.f32.mrf.mxu0
      %v4231 = vadd.f32 %v4142, %v4230
      %v4232 = vpop.f32.mrf.mxu0
      %v4233 = vadd.f32 %v4144, %v4232
      %4234 = vmatmul.bf16.gmra.mxu0 %v3641
      %v4235 = vpop.f32.mrf.mxu0
      %v4236 = vadd.f32 %v4147, %v4235
      %v4237 = vpop.f32.mrf.mxu0
      %v4238 = vadd.f32 %v4149, %v4237
      %4239 = vmatmul.bf16.gmra.mxu0 %v3646
      %v4240 = vpop.f32.mrf.mxu0
      %v4241 = vadd.f32 %v4152, %v4240
      %v4242 = vpop.f32.mrf.mxu0
      %v4243 = vadd.f32 %v4154, %v4242
      %4244 = vmatmul.bf16.gmra.mxu0 %v3651
      %v4245 = vpop.f32.mrf.mxu0
      %v4246 = vadd.f32 %v4157, %v4245
      %v4247 = vpop.f32.mrf.mxu0
      %v4248 = vadd.f32 %v4159, %v4247
      %4249 = vmatmul.bf16.gmra.mxu0 %v3656
      %v4250 = vpop.f32.mrf.mxu0
      %v4251 = vadd.f32 %v4162, %v4250
      %v4252 = vpop.f32.mrf.mxu0
      %v4253 = vadd.f32 %v4164, %v4252
      %4254 = vmatmul.bf16.gmra.mxu0 %v3661
      %v4255 = vpop.f32.mrf.mxu0
      %v4256 = vadd.f32 %v4167, %v4255
      %v4257 = vpop.f32.mrf.mxu0
      %v4258 = vadd.f32 %v4169, %v4257
      %4259 = vmatmul.bf16.gmra.mxu0 %v3666
      %v4260 = vpop.f32.mrf.mxu0
      %v4261 = vadd.f32 %v4172, %v4260
      %v4262 = vpop.f32.mrf.mxu0
      %v4263 = vadd.f32 %v4174, %v4262
      %4264 = vmatmul.bf16.gmra.mxu0 %v3671
      %v4265 = vpop.f32.mrf.mxu0
      %v4266 = vadd.f32 %v4177, %v4265
      %v4267 = vpop.f32.mrf.mxu0
      %v4268 = vadd.f32 %v4179, %v4267
      %4269 = vmatmul.bf16.gmra.mxu0 %v3676
      %v4270 = vpop.f32.mrf.mxu0
      %v4271 = vadd.f32 %v4182, %v4270
      %v4272 = vpop.f32.mrf.mxu0
      %v4273 = vadd.f32 %v4184, %v4272
      %4274 = vmatmul.bf16.gmra.mxu0 %v3681
      %v4275 = vpop.f32.mrf.mxu0
      %v4276 = vadd.f32 %v4187, %v4275
      %v4277 = vpop.f32.mrf.mxu0
      %v4278 = vadd.f32 %v4189, %v4277
      %4279 = vdwg.mxu0
      %4280 = vmatpush.bf16.msra.mxu0 %v3923
      %4281 = vmatpush.bf16.msra.mxu0 %v3922
      %4282 = vmatpush.bf16.msra.mxu0 %v3921
      %4283 = vmatpush.bf16.msra.mxu0 %v3920
      %4284 = vmatpush.bf16.msra.mxu0 %v3919
      %4285 = vmatpush.bf16.msra.mxu0 %v3918
      %4286 = vmatpush.bf16.msra.mxu0 %v3917
      %4287 = vmatpush.bf16.msra.mxu0 %v3916
      %4288 = vmatmul.bf16.gmra.mxu0 %v3607
      %v4289 = vpop.f32.mrf.mxu0
      %v4290 = vadd.f32 %v4201, %v4289
      %v4291 = vpop.f32.mrf.mxu0
      %v4292 = vadd.f32 %v4203, %v4291
      %4293 = vmatmul.bf16.gmra.mxu0 %v3612
      %v4294 = vpop.f32.mrf.mxu0
      %v4295 = vadd.f32 %v4206, %v4294
      %v4296 = vpop.f32.mrf.mxu0
      %v4297 = vadd.f32 %v4208, %v4296
      %4298 = vmatmul.bf16.gmra.mxu0 %v3617
      %v4299 = vpop.f32.mrf.mxu0
      %v4300 = vadd.f32 %v4211, %v4299
      %v4301 = vpop.f32.mrf.mxu0
      %v4302 = vadd.f32 %v4213, %v4301
      %4303 = vmatmul.bf16.gmra.mxu0 %v3622
      %v4304 = vpop.f32.mrf.mxu0
      %v4305 = vadd.f32 %v4216, %v4304
      %v4306 = vpop.f32.mrf.mxu0
      %v4307 = vadd.f32 %v4218, %v4306
      %4308 = vmatmul.bf16.gmra.mxu0 %v3627
      %v4309 = vpop.f32.mrf.mxu0
      %v4310 = vadd.f32 %v4221, %v4309
      %v4311 = vpop.f32.mrf.mxu0
      %v4312 = vadd.f32 %v4223, %v4311
      %4313 = vmatmul.bf16.gmra.mxu0 %v3632
      %v4314 = vpop.f32.mrf.mxu0
      %v4315 = vadd.f32 %v4226, %v4314
      %v4316 = vpop.f32.mrf.mxu0
      %v4317 = vadd.f32 %v4228, %v4316
      %4318 = vmatmul.bf16.gmra.mxu0 %v3637
      %v4319 = vpop.f32.mrf.mxu0
      %v4320 = vadd.f32 %v4231, %v4319
      %v4321 = vpop.f32.mrf.mxu0
      %v4322 = vadd.f32 %v4233, %v4321
      %4323 = vmatmul.bf16.gmra.mxu0 %v3642
      %v4324 = vpop.f32.mrf.mxu0
      %v4325 = vadd.f32 %v4236, %v4324
      %v4326 = vpop.f32.mrf.mxu0
      %v4327 = vadd.f32 %v4238, %v4326
      %4328 = vmatmul.bf16.gmra.mxu0 %v3647
      %v4329 = vpop.f32.mrf.mxu0
      %v4330 = vadd.f32 %v4241, %v4329
      %v4331 = vpop.f32.mrf.mxu0
      %v4332 = vadd.f32 %v4243, %v4331
      %4333 = vmatmul.bf16.gmra.mxu0 %v3652
      %v4334 = vpop.f32.mrf.mxu0
      %v4335 = vadd.f32 %v4246, %v4334
      %v4336 = vpop.f32.mrf.mxu0
      %v4337 = vadd.f32 %v4248, %v4336
      %4338 = vmatmul.bf16.gmra.mxu0 %v3657
      %v4339 = vpop.f32.mrf.mxu0
      %v4340 = vadd.f32 %v4251, %v4339
      %v4341 = vpop.f32.mrf.mxu0
      %v4342 = vadd.f32 %v4253, %v4341
      %4343 = vmatmul.bf16.gmra.mxu0 %v3662
      %v4344 = vpop.f32.mrf.mxu0
      %v4345 = vadd.f32 %v4256, %v4344
      %v4346 = vpop.f32.mrf.mxu0
      %v4347 = vadd.f32 %v4258, %v4346
      %4348 = vmatmul.bf16.gmra.mxu0 %v3667
      %v4349 = vpop.f32.mrf.mxu0
      %v4350 = vadd.f32 %v4261, %v4349
      %v4351 = vpop.f32.mrf.mxu0
      %v4352 = vadd.f32 %v4263, %v4351
      %4353 = vmatmul.bf16.gmra.mxu0 %v3672
      %v4354 = vpop.f32.mrf.mxu0
      %v4355 = vadd.f32 %v4266, %v4354
      %v4356 = vpop.f32.mrf.mxu0
      %v4357 = vadd.f32 %v4268, %v4356
      %4358 = vmatmul.bf16.gmra.mxu0 %v3677
      %v4359 = vpop.f32.mrf.mxu0
      %v4360 = vadd.f32 %v4271, %v4359
      %v4361 = vpop.f32.mrf.mxu0
      %v4362 = vadd.f32 %v4273, %v4361
      %4363 = vmatmul.bf16.gmra.mxu0 %v3682
      %v4364 = vpop.f32.mrf.mxu0
      %v4365 = vadd.f32 %v4276, %v4364
      %v4366 = vpop.f32.mrf.mxu0
      %v4367 = vadd.f32 %v4278, %v4366
      %4368 = vdwg.mxu0
      %4369 = vmatpush.bf16.msra.mxu0 0
      %4370 = vmatpush.bf16.msra.mxu0 0
      %4371 = vmatpush.bf16.msra.mxu0 0
      %4372 = vmatpush.bf16.msra.mxu0 0
      %4373 = vmatpush.bf16.msra.mxu0 %v3927
      %4374 = vmatpush.bf16.msra.mxu0 %v3926
      %4375 = vmatpush.bf16.msra.mxu0 %v3925
      %4376 = vmatpush.bf16.msra.mxu0 %v3924
      %4377 = vmatmul.bf16.gmra.mxu0 %v3966
      %v4378 = vpop.f32.mrf.mxu0
      %v4379 = vadd.f32 %v4290, %v4378
      %v4380 = vpop.f32.mrf.mxu0
      %v4381 = vadd.f32 %v4292, %v4380
      %4382 = vmatmul.bf16.gmra.mxu0 %v3969
      %v4383 = vpop.f32.mrf.mxu0
      %v4384 = vadd.f32 %v4295, %v4383
      %v4385 = vpop.f32.mrf.mxu0
      %v4386 = vadd.f32 %v4297, %v4385
      %4387 = vmatmul.bf16.gmra.mxu0 %v3972
      %v4388 = vpop.f32.mrf.mxu0
      %v4389 = vadd.f32 %v4300, %v4388
      %v4390 = vpop.f32.mrf.mxu0
      %v4391 = vadd.f32 %v4302, %v4390
      %4392 = vmatmul.bf16.gmra.mxu0 %v3975
      %v4393 = vpop.f32.mrf.mxu0
      %v4394 = vadd.f32 %v4305, %v4393
      %v4395 = vpop.f32.mrf.mxu0
      %v4396 = vadd.f32 %v4307, %v4395
      %4397 = vmatmul.bf16.gmra.mxu0 %v3978
      %v4398 = vpop.f32.mrf.mxu0
      %v4399 = vadd.f32 %v4310, %v4398
      %v4400 = vpop.f32.mrf.mxu0
      %v4401 = vadd.f32 %v4312, %v4400
      %4402 = vmatmul.bf16.gmra.mxu0 %v3981
      %v4403 = vpop.f32.mrf.mxu0
      %v4404 = vadd.f32 %v4315, %v4403
      %v4405 = vpop.f32.mrf.mxu0
      %v4406 = vadd.f32 %v4317, %v4405
      %4407 = vmatmul.bf16.gmra.mxu0 %v3984
      %v4408 = vpop.f32.mrf.mxu0
      %v4409 = vadd.f32 %v4320, %v4408
      %v4410 = vpop.f32.mrf.mxu0
      %v4411 = vadd.f32 %v4322, %v4410
      %4412 = vmatmul.bf16.gmra.mxu0 %v3987
      %v4413 = vpop.f32.mrf.mxu0
      %v4414 = vadd.f32 %v4325, %v4413
      %v4415 = vpop.f32.mrf.mxu0
      %v4416 = vadd.f32 %v4327, %v4415
      %4417 = vmatmul.bf16.gmra.mxu0 %v3990
      %v4418 = vpop.f32.mrf.mxu0
      %v4419 = vadd.f32 %v4330, %v4418
      %v4420 = vpop.f32.mrf.mxu0
      %v4421 = vadd.f32 %v4332, %v4420
      %4422 = vmatmul.bf16.gmra.mxu0 %v3993
      %v4423 = vpop.f32.mrf.mxu0
      %v4424 = vadd.f32 %v4335, %v4423
      %v4425 = vpop.f32.mrf.mxu0
      %v4426 = vadd.f32 %v4337, %v4425
      %4427 = vmatmul.bf16.gmra.mxu0 %v3996
      %v4428 = vpop.f32.mrf.mxu0
      %v4429 = vadd.f32 %v4340, %v4428
      %v4430 = vpop.f32.mrf.mxu0
      %v4431 = vadd.f32 %v4342, %v4430
      %4432 = vmatmul.bf16.gmra.mxu0 %v3999
      %v4433 = vpop.f32.mrf.mxu0
      %v4434 = vadd.f32 %v4345, %v4433
      %v4435 = vpop.f32.mrf.mxu0
      %v4436 = vadd.f32 %v4347, %v4435
      %4437 = vmatmul.bf16.gmra.mxu0 %v4002
      %v4438 = vpop.f32.mrf.mxu0
      %v4439 = vadd.f32 %v4350, %v4438
      %v4440 = vpop.f32.mrf.mxu0
      %v4441 = vadd.f32 %v4352, %v4440
      %4442 = vmatmul.bf16.gmra.mxu0 %v4005
      %v4443 = vpop.f32.mrf.mxu0
      %v4444 = vadd.f32 %v4355, %v4443
      %v4445 = vpop.f32.mrf.mxu0
      %v4446 = vadd.f32 %v4357, %v4445
      %4447 = vmatmul.bf16.gmra.mxu0 %v4008
      %v4448 = vpop.f32.mrf.mxu0
      %v4449 = vadd.f32 %v4360, %v4448
      %v4450 = vpop.f32.mrf.mxu0
      %v4451 = vadd.f32 %v4362, %v4450
      %4452 = vmatmul.bf16.gmra.mxu0 %v4011
      %v4453 = vpop.f32.mrf.mxu0
      %v4454 = vadd.f32 %v4365, %v4453
      %v4455 = vpop.f32.mrf.mxu0
      %v4456 = vadd.f32 %v4367, %v4455
      %4457 = vdwg.mxu0
      %v4458 = vld [vmem:[%s4] sm:$0x1]
      %v4460 = vperm.slane %v4458, 0
      %v4462 = vmul.f32 %v4379, %v4460
      %v4463 = vmul.f32 %v4381, %v4460
      %v4464 = vmul.f32 %v4384, %v4460
      %v4465 = vmul.f32 %v4386, %v4460
      %v4466 = vmul.f32 %v4389, %v4460
      %v4467 = vmul.f32 %v4391, %v4460
      %v4468 = vmul.f32 %v4394, %v4460
      %v4469 = vmul.f32 %v4396, %v4460
      %v4470 = vmul.f32 %v4399, %v4460
      %v4471 = vmul.f32 %v4401, %v4460
      %v4472 = vmul.f32 %v4404, %v4460
      %v4473 = vmul.f32 %v4406, %v4460
      %v4474 = vmul.f32 %v4409, %v4460
      %v4475 = vmul.f32 %v4411, %v4460
      %v4476 = vmul.f32 %v4414, %v4460
      %v4477 = vmul.f32 %v4416, %v4460
      %v4478 = vmul.f32 %v4419, %v4460
      %v4479 = vmul.f32 %v4421, %v4460
      %v4480 = vmul.f32 %v4424, %v4460
      %v4481 = vmul.f32 %v4426, %v4460
      %v4482 = vmul.f32 %v4429, %v4460
      %v4483 = vmul.f32 %v4431, %v4460
      %v4484 = vmul.f32 %v4434, %v4460
      %v4485 = vmul.f32 %v4436, %v4460
      %v4486 = vmul.f32 %v4439, %v4460
      %v4487 = vmul.f32 %v4441, %v4460
      %v4488 = vmul.f32 %v4444, %v4460
      %v4489 = vmul.f32 %v4446, %v4460
      %v4490 = vmul.f32 %v4449, %v4460
      %v4491 = vmul.f32 %v4451, %v4460
      %v4492 = vmul.f32 %v4454, %v4460
      %v4493 = vmul.f32 %v4456, %v4460
      %v4494 = vld [vmem:[%s5] sm:$0x1]
      %v4496 = vperm.slane %v4494, 0
      %v4498 = vadd.f32 %v4462, %v4496
      %v4499 = vadd.f32 %v4463, %v4496
      %v4500 = vadd.f32 %v4464, %v4496
      %v4501 = vadd.f32 %v4465, %v4496
      %v4502 = vadd.f32 %v4466, %v4496
      %v4503 = vadd.f32 %v4467, %v4496
      %v4504 = vadd.f32 %v4468, %v4496
      %v4505 = vadd.f32 %v4469, %v4496
      %v4506 = vadd.f32 %v4470, %v4496
      %v4507 = vadd.f32 %v4471, %v4496
      %v4508 = vadd.f32 %v4472, %v4496
      %v4509 = vadd.f32 %v4473, %v4496
      %v4510 = vadd.f32 %v4474, %v4496
      %v4511 = vadd.f32 %v4475, %v4496
      %v4512 = vadd.f32 %v4476, %v4496
      %v4513 = vadd.f32 %v4477, %v4496
      %v4514 = vadd.f32 %v4478, %v4496
      %v4515 = vadd.f32 %v4479, %v4496
      %v4516 = vadd.f32 %v4480, %v4496
      %v4517 = vadd.f32 %v4481, %v4496
      %v4518 = vadd.f32 %v4482, %v4496
      %v4519 = vadd.f32 %v4483, %v4496
      %v4520 = vadd.f32 %v4484, %v4496
      %v4521 = vadd.f32 %v4485, %v4496
      %v4522 = vadd.f32 %v4486, %v4496
      %v4523 = vadd.f32 %v4487, %v4496
      %v4524 = vadd.f32 %v4488, %v4496
      %v4525 = vadd.f32 %v4489, %v4496
      %v4526 = vadd.f32 %v4490, %v4496
      %v4527 = vadd.f32 %v4491, %v4496
      %v4528 = vadd.f32 %v4492, %v4496
      %v4529 = vadd.f32 %v4493, %v4496
      %v4530 = vmax.f32 %v4498, 0.0
      %v4531 = vmax.f32 %v4499, 0.0
      %v4532 = vmax.f32 %v4500, 0.0
      %v4533 = vmax.f32 %v4501, 0.0
      %v4534 = vmax.f32 %v4502, 0.0
      %v4535 = vmax.f32 %v4503, 0.0
      %v4536 = vmax.f32 %v4504, 0.0
      %v4537 = vmax.f32 %v4505, 0.0
      %v4538 = vmax.f32 %v4506, 0.0
      %v4539 = vmax.f32 %v4507, 0.0
      %v4540 = vmax.f32 %v4508, 0.0
      %v4541 = vmax.f32 %v4509, 0.0
      %v4542 = vmax.f32 %v4510, 0.0
      %v4543 = vmax.f32 %v4511, 0.0
      %v4544 = vmax.f32 %v4512, 0.0
      %v4545 = vmax.f32 %v4513, 0.0
      %v4546 = vmax.f32 %v4514, 0.0
      %v4547 = vmax.f32 %v4515, 0.0
      %v4548 = vmax.f32 %v4516, 0.0
      %v4549 = vmax.f32 %v4517, 0.0
      %v4550 = vmax.f32 %v4518, 0.0
      %v4551 = vmax.f32 %v4519, 0.0
      %v4552 = vmax.f32 %v4520, 0.0
      %v4553 = vmax.f32 %v4521, 0.0
      %v4554 = vmax.f32 %v4522, 0.0
      %v4555 = vmax.f32 %v4523, 0.0
      %v4556 = vmax.f32 %v4524, 0.0
      %v4557 = vmax.f32 %v4525, 0.0
      %v4558 = vmax.f32 %v4526, 0.0
      %v4559 = vmax.f32 %v4527, 0.0
      %v4560 = vmax.f32 %v4528, 0.0
      %v4561 = vmax.f32 %v4529, 0.0
      %4562 = vst [vmem:[#allocation2] sm:$0xff] 0.0
      %4563 = vst [vmem:[#allocation2 + $0x8] sm:$0xff] 0.0
      %4564 = vst [vmem:[#allocation2 + $0x10] sm:$0x3] 0.0
      %s4565 = scalar_lea.vmem [#allocation2], 408
      %4566 = vst [vmem:[%s4565] sm:$0xff] 0.0
      %4567 = vst [vmem:[%s4565 + $0x8] sm:$0xff] 0.0
      %4568 = vst [vmem:[%s4565 + $0x10] sm:$0x3] 0.0
      %4569 = vst [vmem:[#allocation2] sm:$0x1] 0.0
      %4570 = vst [vmem:[#allocation2 + $0x18] sm:$0x1] 0.0
      %4571 = vst [vmem:[#allocation2 + $0x30] sm:$0x1] 0.0
      %4572 = vst [vmem:[#allocation2 + $0x48] sm:$0x1] 0.0
      %4573 = vst [vmem:[#allocation2 + $0x60] sm:$0x1] 0.0
      %4574 = vst [vmem:[#allocation2 + $0x78] sm:$0x1] 0.0
      %4575 = vst [vmem:[#allocation2 + $0x90] sm:$0x1] 0.0
      %4576 = vst [vmem:[#allocation2 + $0xa8] sm:$0x1] 0.0
      %4577 = vst [vmem:[#allocation2 + $0xc0] sm:$0x1] 0.0
      %4578 = vst [vmem:[#allocation2 + $0xd8] sm:$0x1] 0.0
      %4579 = vst [vmem:[#allocation2 + $0xf0] sm:$0x1] 0.0
      %4580 = vst [vmem:[#allocation2 + $0x108] sm:$0x1] 0.0
      %4581 = vst [vmem:[#allocation2 + $0x120] sm:$0x1] 0.0
      %4582 = vst [vmem:[#allocation2 + $0x138] sm:$0x1] 0.0
      %4583 = vst [vmem:[#allocation2 + $0x150] sm:$0x1] 0.0
      %4584 = vst [vmem:[#allocation2 + $0x168] sm:$0x1] 0.0
      %4585 = vst [vmem:[#allocation2 + $0x180] sm:$0x1] 0.0
      %4586 = vst [vmem:[#allocation2 + $0x198] sm:$0x1] 0.0
      %4587 = vst [vmem:[#allocation2 + $0x11] sm:$0x1] 0.0
      %4588 = vst [vmem:[#allocation2 + $0x29] sm:$0x1] 0.0
      %4589 = vst [vmem:[#allocation2 + $0x41] sm:$0x1] 0.0
      %4590 = vst [vmem:[#allocation2 + $0x59] sm:$0x1] 0.0
      %4591 = vst [vmem:[#allocation2 + $0x71] sm:$0x1] 0.0
      %4592 = vst [vmem:[#allocation2 + $0x89] sm:$0x1] 0.0
      %4593 = vst [vmem:[#allocation2 + $0xa1] sm:$0x1] 0.0
      %4594 = vst [vmem:[#allocation2 + $0xb9] sm:$0x1] 0.0
      %4595 = vst [vmem:[#allocation2 + $0xd1] sm:$0x1] 0.0
      %4596 = vst [vmem:[#allocation2 + $0xe9] sm:$0x1] 0.0
      %4597 = vst [vmem:[#allocation2 + $0x101] sm:$0x1] 0.0
      %4598 = vst [vmem:[#allocation2 + $0x119] sm:$0x1] 0.0
      %4599 = vst [vmem:[#allocation2 + $0x131] sm:$0x1] 0.0
      %4600 = vst [vmem:[#allocation2 + $0x149] sm:$0x1] 0.0
      %4601 = vst [vmem:[#allocation2 + $0x161] sm:$0x1] 0.0
      %4602 = vst [vmem:[#allocation2 + $0x179] sm:$0x1] 0.0
      %4603 = vst [vmem:[#allocation2 + $0x191] sm:$0x1] 0.0
      %4604 = vst [vmem:[#allocation2 + $0x1a9] sm:$0x1] 0.0
      %v4605 = vld [vmem:[%s2] sm:$0xff]
      %v4606 = vld [vmem:[%s2 + $0x8] sm:$0xff]
      %v4607 = vld [vmem:[%s342] sm:$0xf]
      %v4608 = vld [vmem:[%s342 + $0x4] sm:$0xf]
      %v4609 = vld [vmem:[%s342 + $0xc] sm:$0xf]
      %v4610 = vld [vmem:[%s342 + $0x10] sm:$0xf]
      %v4611 = vld [vmem:[%s342 + $0x18] sm:$0xf]
      %v4612 = vld [vmem:[%s342 + $0x1c] sm:$0xf]
      %v4613 = vld [vmem:[%s342 + $0x24] sm:$0xf]
      %v4614 = vld [vmem:[%s342 + $0x28] sm:$0xf]
      %v4615 = vld [vmem:[%s342 + $0x30] sm:$0xf]
      %v4616 = vld [vmem:[%s342 + $0x34] sm:$0xf]
      %v4617 = vld [vmem:[%s342 + $0x3c] sm:$0xf]
      %v4618 = vld [vmem:[%s342 + $0x40] sm:$0xf]
      %v4619 = vld [vmem:[%s342 + $0x48] sm:$0xf]
      %v4620 = vld [vmem:[%s342 + $0x4c] sm:$0xf]
      %v4621 = vld [vmem:[%s342 + $0x54] sm:$0xf]
      %v4622 = vld [vmem:[%s342 + $0x58] sm:$0xf]
      %v4623 = vunpack.c.l.bf16 %v4607
      %v4624 = vunpack.c.l.bf16 %v4608
      %v4625 = vunpack.c.l.bf16 %v4609
      %v4626 = vunpack.c.l.bf16 %v4610
      %v4627 = vunpack.c.l.bf16 %v4611
      %v4628 = vunpack.c.l.bf16 %v4612
      %v4629 = vunpack.c.l.bf16 %v4613
      %v4630 = vunpack.c.l.bf16 %v4614
      %v4631 = vunpack.c.l.bf16 %v4615
      %v4632 = vunpack.c.l.bf16 %v4616
      %v4633 = vunpack.c.l.bf16 %v4617
      %v4634 = vunpack.c.l.bf16 %v4618
      %v4635 = vunpack.c.l.bf16 %v4619
      %v4636 = vunpack.c.l.bf16 %v4620
      %v4637 = vunpack.c.l.bf16 %v4621
      %v4638 = vunpack.c.l.bf16 %v4622
      %v4639 = vperm.slane %v4605, 0
      %v4640 = vmul.f32 %v4623, %v4639
      %v4641 = vmul.f32 %v4624, %v4639
      %v4642 = vmul.f32 %v4625, %v4639
      %v4643 = vmul.f32 %v4626, %v4639
      %v4644 = vmul.f32 %v4627, %v4639
      %v4645 = vmul.f32 %v4628, %v4639
      %v4646 = vmul.f32 %v4629, %v4639
      %v4647 = vmul.f32 %v4630, %v4639
      %v4648 = vmul.f32 %v4631, %v4639
      %v4649 = vmul.f32 %v4632, %v4639
      %v4650 = vmul.f32 %v4633, %v4639
      %v4651 = vmul.f32 %v4634, %v4639
      %v4652 = vmul.f32 %v4635, %v4639
      %v4653 = vmul.f32 %v4636, %v4639
      %v4654 = vmul.f32 %v4637, %v4639
      %v4655 = vmul.f32 %v4638, %v4639
      %v4656 = vld [vmem:[%s342 + $0x8] sm:$0x1]
      %v4657 = vld [vmem:[%s342 + $0x14] sm:$0x1]
      %v4658 = vld [vmem:[%s342 + $0x20] sm:$0x1]
      %v4659 = vld [vmem:[%s342 + $0x2c] sm:$0x1]
      %v4660 = vld [vmem:[%s342 + $0x38] sm:$0x1]
      %v4661 = vld [vmem:[%s342 + $0x44] sm:$0x1]
      %v4662 = vld [vmem:[%s342 + $0x50] sm:$0x1]
      %v4663 = vld [vmem:[%s342 + $0x5c] sm:$0x1]
      %v4664 = vunpack.c.l.bf16 %v4656
      %v4665 = vunpack.c.l.bf16 %v4657
      %v4666 = vunpack.c.l.bf16 %v4658
      %v4667 = vunpack.c.l.bf16 %v4659
      %v4668 = vunpack.c.l.bf16 %v4660
      %v4669 = vunpack.c.l.bf16 %v4661
      %v4670 = vunpack.c.l.bf16 %v4662
      %v4671 = vunpack.c.l.bf16 %v4663
      %v4672 = vperm.slane %v4605, 1
      %v4673 = vmul.f32 %v4623, %v4672
      %v4674 = vmul.f32 %v4624, %v4672
      %v4675 = vmul.f32 %v4664, %v4672
      %v4676 = vmul.f32 %v4625, %v4672
      %v4677 = vmul.f32 %v4626, %v4672
      %v4678 = vmul.f32 %v4665, %v4672
      %v4679 = vmul.f32 %v4627, %v4672
      %v4680 = vmul.f32 %v4628, %v4672
      %v4681 = vmul.f32 %v4666, %v4672
      %v4682 = vmul.f32 %v4629, %v4672
      %v4683 = vmul.f32 %v4630, %v4672
      %v4684 = vmul.f32 %v4667, %v4672
      %v4685 = vmul.f32 %v4631, %v4672
      %v4686 = vmul.f32 %v4632, %v4672
      %v4687 = vmul.f32 %v4668, %v4672
      %v4688 = vmul.f32 %v4633, %v4672
      %v4689 = vmul.f32 %v4634, %v4672
      %v4690 = vmul.f32 %v4669, %v4672
      %v4691 = vmul.f32 %v4635, %v4672
      %v4692 = vmul.f32 %v4636, %v4672
      %v4693 = vmul.f32 %v4670, %v4672
      %v4694 = vmul.f32 %v4637, %v4672
      %v4695 = vmul.f32 %v4638, %v4672
      %v4696 = vmul.f32 %v4671, %v4672
      %vm4721 = vcmask 1046528
      %v4722 = vrot.slane %v4673, 1
      %v4723 = vrot.slane %v4674, 1
      %v4724 = vsel %vm4721, %v4722, %v4723
      %v4725 = vrot.slane %v4675, 1
      %v4726 = vsel %vm4721, %v4723, %v4725
      %v4727 = vrot.slane %v4676, 1
      %v4728 = vrot.slane %v4677, 1
      %v4729 = vsel %vm4721, %v4727, %v4728
      %v4730 = vrot.slane %v4678, 1
      %v4731 = vsel %vm4721, %v4728, %v4730
      %v4732 = vrot.slane %v4679, 1
      %v4733 = vrot.slane %v4680, 1
      %v4734 = vsel %vm4721, %v4732, %v4733
      %v4735 = vrot.slane %v4681, 1
      %v4736 = vsel %vm4721, %v4733, %v4735
      %v4737 = vrot.slane %v4682, 1
      %v4738 = vrot.slane %v4683, 1
      %v4739 = vsel %vm4721, %v4737, %v4738
      %v4740 = vrot.slane %v4684, 1
      %v4741 = vsel %vm4721, %v4738, %v4740
      %v4742 = vrot.slane %v4685, 1
      %v4743 = vrot.slane %v4686, 1
      %v4744 = vsel %vm4721, %v4742, %v4743
      %v4745 = vrot.slane %v4687, 1
      %v4746 = vsel %vm4721, %v4743, %v4745
      %v4747 = vrot.slane %v4688, 1
      %v4748 = vrot.slane %v4689, 1
      %v4749 = vsel %vm4721, %v4747, %v4748
      %v4750 = vrot.slane %v4690, 1
      %v4751 = vsel %vm4721, %v4748, %v4750
      %v4752 = vrot.slane %v4691, 1
      %v4753 = vrot.slane %v4692, 1
      %v4754 = vsel %vm4721, %v4752, %v4753
      %v4755 = vrot.slane %v4693, 1
      %v4756 = vsel %vm4721, %v4753, %v4755
      %v4757 = vrot.slane %v4694, 1
      %v4758 = vrot.slane %v4695, 1
      %v4759 = vsel %vm4721, %v4757, %v4758
      %v4760 = vrot.slane %v4696, 1
      %v4761 = vsel %vm4721, %v4758, %v4760
      %v4778 = vadd.f32 %v4640, %v4724
      %v4779 = vadd.f32 %v4641, %v4726
      %v4780 = vadd.f32 %v4642, %v4729
      %v4781 = vadd.f32 %v4643, %v4731
      %v4782 = vadd.f32 %v4644, %v4734
      %v4783 = vadd.f32 %v4645, %v4736
      %v4784 = vadd.f32 %v4646, %v4739
      %v4785 = vadd.f32 %v4647, %v4741
      %v4786 = vadd.f32 %v4648, %v4744
      %v4787 = vadd.f32 %v4649, %v4746
      %v4788 = vadd.f32 %v4650, %v4749
      %v4789 = vadd.f32 %v4651, %v4751
      %v4790 = vadd.f32 %v4652, %v4754
      %v4791 = vadd.f32 %v4653, %v4756
      %v4792 = vadd.f32 %v4654, %v4759
      %v4793 = vadd.f32 %v4655, %v4761
      %v4794 = vld [vmem:[%s342] sm:$0xe]
      %v4795 = vld [vmem:[%s342 + $0xc] sm:$0xe]
      %v4796 = vld [vmem:[%s342 + $0x18] sm:$0xe]
      %v4797 = vld [vmem:[%s342 + $0x24] sm:$0xe]
      %v4798 = vld [vmem:[%s342 + $0x30] sm:$0xe]
      %v4799 = vld [vmem:[%s342 + $0x3c] sm:$0xe]
      %v4800 = vld [vmem:[%s342 + $0x48] sm:$0xe]
      %v4801 = vld [vmem:[%s342 + $0x54] sm:$0xe]
      %v4802 = vunpack.c.l.bf16 %v4794
      %v4803 = vunpack.c.l.bf16 %v4795
      %v4804 = vunpack.c.l.bf16 %v4796
      %v4805 = vunpack.c.l.bf16 %v4797
      %v4806 = vunpack.c.l.bf16 %v4798
      %v4807 = vunpack.c.l.bf16 %v4799
      %v4808 = vunpack.c.l.bf16 %v4800
      %v4809 = vunpack.c.l.bf16 %v4801
      %v4810 = vperm.slane %v4605, 2
      %v4811 = vmul.f32 %v4802, %v4810
      %v4812 = vmul.f32 %v4624, %v4810
      %v4813 = vmul.f32 %v4664, %v4810
      %v4814 = vmul.f32 %v4803, %v4810
      %v4815 = vmul.f32 %v4626, %v4810
      %v4816 = vmul.f32 %v4665, %v4810
      %v4817 = vmul.f32 %v4804, %v4810
      %v4818 = vmul.f32 %v4628, %v4810
      %v4819 = vmul.f32 %v4666, %v4810
      %v4820 = vmul.f32 %v4805, %v4810
      %v4821 = vmul.f32 %v4630, %v4810
      %v4822 = vmul.f32 %v4667, %v4810
      %v4823 = vmul.f32 %v4806, %v4810
      %v4824 = vmul.f32 %v4632, %v4810
      %v4825 = vmul.f32 %v4668, %v4810
      %v4826 = vmul.f32 %v4807, %v4810
      %v4827 = vmul.f32 %v4634, %v4810
      %v4828 = vmul.f32 %v4669, %v4810
      %v4829 = vmul.f32 %v4808, %v4810
      %v4830 = vmul.f32 %v4636, %v4810
      %v4831 = vmul.f32 %v4670, %v4810
      %v4832 = vmul.f32 %v4809, %v4810
      %v4833 = vmul.f32 %v4638, %v4810
      %v4834 = vmul.f32 %v4671, %v4810
      %vm4859 = vcmask 1045504
      %v4860 = vrot.slane %v4811, 2
      %v4861 = vrot.slane %v4812, 2
      %v4862 = vsel %vm4859, %v4860, %v4861
      %v4863 = vrot.slane %v4813, 2
      %v4864 = vsel %vm4859, %v4861, %v4863
      %v4865 = vrot.slane %v4814, 2
      %v4866 = vrot.slane %v4815, 2
      %v4867 = vsel %vm4859, %v4865, %v4866
      %v4868 = vrot.slane %v4816, 2
      %v4869 = vsel %vm4859, %v4866, %v4868
      %v4870 = vrot.slane %v4817, 2
      %v4871 = vrot.slane %v4818, 2
      %v4872 = vsel %vm4859, %v4870, %v4871
      %v4873 = vrot.slane %v4819, 2
      %v4874 = vsel %vm4859, %v4871, %v4873
      %v4875 = vrot.slane %v4820, 2
      %v4876 = vrot.slane %v4821, 2
      %v4877 = vsel %vm4859, %v4875, %v4876
      %v4878 = vrot.slane %v4822, 2
      %v4879 = vsel %vm4859, %v4876, %v4878
      %v4880 = vrot.slane %v4823, 2
      %v4881 = vrot.slane %v4824, 2
      %v4882 = vsel %vm4859, %v4880, %v4881
      %v4883 = vrot.slane %v4825, 2
      %v4884 = vsel %vm4859, %v4881, %v4883
      %v4885 = vrot.slane %v4826, 2
      %v4886 = vrot.slane %v4827, 2
      %v4887 = vsel %vm4859, %v4885, %v4886
      %v4888 = vrot.slane %v4828, 2
      %v4889 = vsel %vm4859, %v4886, %v4888
      %v4890 = vrot.slane %v4829, 2
      %v4891 = vrot.slane %v4830, 2
      %v4892 = vsel %vm4859, %v4890, %v4891
      %v4893 = vrot.slane %v4831, 2
      %v4894 = vsel %vm4859, %v4891, %v4893
      %v4895 = vrot.slane %v4832, 2
      %v4896 = vrot.slane %v4833, 2
      %v4897 = vsel %vm4859, %v4895, %v4896
      %v4898 = vrot.slane %v4834, 2
      %v4899 = vsel %vm4859, %v4896, %v4898
      %v4916 = vadd.f32 %v4778, %v4862
      %v4917 = vadd.f32 %v4779, %v4864
      %v4918 = vadd.f32 %v4780, %v4867
      %v4919 = vadd.f32 %v4781, %v4869
      %v4920 = vadd.f32 %v4782, %v4872
      %v4921 = vadd.f32 %v4783, %v4874
      %v4922 = vadd.f32 %v4784, %v4877
      %v4923 = vadd.f32 %v4785, %v4879
      %v4924 = vadd.f32 %v4786, %v4882
      %v4925 = vadd.f32 %v4787, %v4884
      %v4926 = vadd.f32 %v4788, %v4887
      %v4927 = vadd.f32 %v4789, %v4889
      %v4928 = vadd.f32 %v4790, %v4892
      %v4929 = vadd.f32 %v4791, %v4894
      %v4930 = vadd.f32 %v4792, %v4897
      %v4931 = vadd.f32 %v4793, %v4899
      %v4932 = vld [vmem:[%s342 + $0x8] sm:$0x3]
      %v4933 = vld [vmem:[%s342 + $0x14] sm:$0x3]
      %v4934 = vld [vmem:[%s342 + $0x20] sm:$0x3]
      %v4935 = vld [vmem:[%s342 + $0x2c] sm:$0x3]
      %v4936 = vld [vmem:[%s342 + $0x38] sm:$0x3]
      %v4937 = vld [vmem:[%s342 + $0x44] sm:$0x3]
      %v4938 = vld [vmem:[%s342 + $0x50] sm:$0x3]
      %v4939 = vld [vmem:[%s342 + $0x5c] sm:$0x3]
      %v4940 = vunpack.c.l.bf16 %v4932
      %v4941 = vunpack.c.l.bf16 %v4933
      %v4942 = vunpack.c.l.bf16 %v4934
      %v4943 = vunpack.c.l.bf16 %v4935
      %v4944 = vunpack.c.l.bf16 %v4936
      %v4945 = vunpack.c.l.bf16 %v4937
      %v4946 = vunpack.c.l.bf16 %v4938
      %v4947 = vunpack.c.l.bf16 %v4939
      %v4948 = vperm.slane %v4605, 3
      %v4949 = vmul.f32 %v4802, %v4948
      %v4950 = vmul.f32 %v4624, %v4948
      %v4951 = vmul.f32 %v4940, %v4948
      %v4952 = vmul.f32 %v4803, %v4948
      %v4953 = vmul.f32 %v4626, %v4948
      %v4954 = vmul.f32 %v4941, %v4948
      %v4955 = vmul.f32 %v4804, %v4948
      %v4956 = vmul.f32 %v4628, %v4948
      %v4957 = vmul.f32 %v4942, %v4948
      %v4958 = vmul.f32 %v4805, %v4948
      %v4959 = vmul.f32 %v4630, %v4948
      %v4960 = vmul.f32 %v4943, %v4948
      %v4961 = vmul.f32 %v4806, %v4948
      %v4962 = vmul.f32 %v4632, %v4948
      %v4963 = vmul.f32 %v4944, %v4948
      %v4964 = vmul.f32 %v4807, %v4948
      %v4965 = vmul.f32 %v4634, %v4948
      %v4966 = vmul.f32 %v4945, %v4948
      %v4967 = vmul.f32 %v4808, %v4948
      %v4968 = vmul.f32 %v4636, %v4948
      %v4969 = vmul.f32 %v4946, %v4948
      %v4970 = vmul.f32 %v4809, %v4948
      %v4971 = vmul.f32 %v4638, %v4948
      %v4972 = vmul.f32 %v4947, %v4948
      %vm4997 = vcmask 1044480
      %v4998 = vrot.slane %v4949, 3
      %v4999 = vrot.slane %v4950, 3
      %v5000 = vsel %vm4997, %v4998, %v4999
      %v5001 = vrot.slane %v4951, 3
      %v5002 = vsel %vm4997, %v4999, %v5001
      %v5003 = vrot.slane %v4952, 3
      %v5004 = vrot.slane %v4953, 3
      %v5005 = vsel %vm4997, %v5003, %v5004
      %v5006 = vrot.slane %v4954, 3
      %v5007 = vsel %vm4997, %v5004, %v5006
      %v5008 = vrot.slane %v4955, 3
      %v5009 = vrot.slane %v4956, 3
      %v5010 = vsel %vm4997, %v5008, %v5009
      %v5011 = vrot.slane %v4957, 3
      %v5012 = vsel %vm4997, %v5009, %v5011
      %v5013 = vrot.slane %v4958, 3
      %v5014 = vrot.slane %v4959, 3
      %v5015 = vsel %vm4997, %v5013, %v5014
      %v5016 = vrot.slane %v4960, 3
      %v5017 = vsel %vm4997, %v5014, %v5016
      %v5018 = vrot.slane %v4961, 3
      %v5019 = vrot.slane %v4962, 3
      %v5020 = vsel %vm4997, %v5018, %v5019
      %v5021 = vrot.slane %v4963, 3
      %v5022 = vsel %vm4997, %v5019, %v5021
      %v5023 = vrot.slane %v4964, 3
      %v5024 = vrot.slane %v4965, 3
      %v5025 = vsel %vm4997, %v5023, %v5024
      %v5026 = vrot.slane %v4966, 3
      %v5027 = vsel %vm4997, %v5024, %v5026
      %v5028 = vrot.slane %v4967, 3
      %v5029 = vrot.slane %v4968, 3
      %v5030 = vsel %vm4997, %v5028, %v5029
      %v5031 = vrot.slane %v4969, 3
      %v5032 = vsel %vm4997, %v5029, %v5031
      %v5033 = vrot.slane %v4970, 3
      %v5034 = vrot.slane %v4971, 3
      %v5035 = vsel %vm4997, %v5033, %v5034
      %v5036 = vrot.slane %v4972, 3
      %v5037 = vsel %vm4997, %v5034, %v5036
      %v5054 = vadd.f32 %v4916, %v5000
      %v5055 = vadd.f32 %v4917, %v5002
      %v5056 = vadd.f32 %v4918, %v5005
      %v5057 = vadd.f32 %v4919, %v5007
      %v5058 = vadd.f32 %v4920, %v5010
      %v5059 = vadd.f32 %v4921, %v5012
      %v5060 = vadd.f32 %v4922, %v5015
      %v5061 = vadd.f32 %v4923, %v5017
      %v5062 = vadd.f32 %v4924, %v5020
      %v5063 = vadd.f32 %v4925, %v5022
      %v5064 = vadd.f32 %v4926, %v5025
      %v5065 = vadd.f32 %v4927, %v5027
      %v5066 = vadd.f32 %v4928, %v5030
      %v5067 = vadd.f32 %v4929, %v5032
      %v5068 = vadd.f32 %v4930, %v5035
      %v5069 = vadd.f32 %v4931, %v5037
      %s5070 = scalar_lea.vmem %s342, 12
      %v5071 = vld [vmem:[%s5070] sm:$0xf]
      %v5072 = vld [vmem:[%s5070 + $0x4] sm:$0xf]
      %v5073 = vld [vmem:[%s5070 + $0xc] sm:$0xf]
      %v5074 = vld [vmem:[%s5070 + $0x10] sm:$0xf]
      %v5075 = vld [vmem:[%s5070 + $0x18] sm:$0xf]
      %v5076 = vld [vmem:[%s5070 + $0x1c] sm:$0xf]
      %v5077 = vld [vmem:[%s5070 + $0x24] sm:$0xf]
      %v5078 = vld [vmem:[%s5070 + $0x28] sm:$0xf]
      %v5079 = vld [vmem:[%s5070 + $0x30] sm:$0xf]
      %v5080 = vld [vmem:[%s5070 + $0x34] sm:$0xf]
      %v5081 = vld [vmem:[%s5070 + $0x3c] sm:$0xf]
      %v5082 = vld [vmem:[%s5070 + $0x40] sm:$0xf]
      %v5083 = vld [vmem:[%s5070 + $0x48] sm:$0xf]
      %v5084 = vld [vmem:[%s5070 + $0x4c] sm:$0xf]
      %v5085 = vld [vmem:[%s5070 + $0x54] sm:$0xf]
      %v5086 = vld [vmem:[%s5070 + $0x58] sm:$0xf]
      %v5087 = vunpack.c.l.bf16 %v5071
      %v5088 = vunpack.c.l.bf16 %v5072
      %v5089 = vunpack.c.l.bf16 %v5073
      %v5090 = vunpack.c.l.bf16 %v5074
      %v5091 = vunpack.c.l.bf16 %v5075
      %v5092 = vunpack.c.l.bf16 %v5076
      %v5093 = vunpack.c.l.bf16 %v5077
      %v5094 = vunpack.c.l.bf16 %v5078
      %v5095 = vunpack.c.l.bf16 %v5079
      %v5096 = vunpack.c.l.bf16 %v5080
      %v5097 = vunpack.c.l.bf16 %v5081
      %v5098 = vunpack.c.l.bf16 %v5082
      %v5099 = vunpack.c.l.bf16 %v5083
      %v5100 = vunpack.c.l.bf16 %v5084
      %v5101 = vunpack.c.l.bf16 %v5085
      %v5102 = vunpack.c.l.bf16 %v5086
      %v5103 = vperm.slane %v4606, 0
      %v5104 = vmul.f32 %v5087, %v5103
      %v5105 = vmul.f32 %v5088, %v5103
      %v5106 = vmul.f32 %v5089, %v5103
      %v5107 = vmul.f32 %v5090, %v5103
      %v5108 = vmul.f32 %v5091, %v5103
      %v5109 = vmul.f32 %v5092, %v5103
      %v5110 = vmul.f32 %v5093, %v5103
      %v5111 = vmul.f32 %v5094, %v5103
      %v5112 = vmul.f32 %v5095, %v5103
      %v5113 = vmul.f32 %v5096, %v5103
      %v5114 = vmul.f32 %v5097, %v5103
      %v5115 = vmul.f32 %v5098, %v5103
      %v5116 = vmul.f32 %v5099, %v5103
      %v5117 = vmul.f32 %v5100, %v5103
      %v5118 = vmul.f32 %v5101, %v5103
      %v5119 = vmul.f32 %v5102, %v5103
      %v5120 = vadd.f32 %v5054, %v5104
      %v5121 = vadd.f32 %v5055, %v5105
      %v5122 = vadd.f32 %v5056, %v5106
      %v5123 = vadd.f32 %v5057, %v5107
      %v5124 = vadd.f32 %v5058, %v5108
      %v5125 = vadd.f32 %v5059, %v5109
      %v5126 = vadd.f32 %v5060, %v5110
      %v5127 = vadd.f32 %v5061, %v5111
      %v5128 = vadd.f32 %v5062, %v5112
      %v5129 = vadd.f32 %v5063, %v5113
      %v5130 = vadd.f32 %v5064, %v5114
      %v5131 = vadd.f32 %v5065, %v5115
      %v5132 = vadd.f32 %v5066, %v5116
      %v5133 = vadd.f32 %v5067, %v5117
      %v5134 = vadd.f32 %v5068, %v5118
      %v5135 = vadd.f32 %v5069, %v5119
      %v5136 = vld [vmem:[%s5070 + $0x8] sm:$0x1]
      %v5137 = vld [vmem:[%s5070 + $0x14] sm:$0x1]
      %v5138 = vld [vmem:[%s5070 + $0x20] sm:$0x1]
      %v5139 = vld [vmem:[%s5070 + $0x2c] sm:$0x1]
      %v5140 = vld [vmem:[%s5070 + $0x38] sm:$0x1]
      %v5141 = vld [vmem:[%s5070 + $0x44] sm:$0x1]
      %v5142 = vld [vmem:[%s5070 + $0x50] sm:$0x1]
      %v5143 = vld [vmem:[%s5070 + $0x5c] sm:$0x1]
      %v5144 = vunpack.c.l.bf16 %v5136
      %v5145 = vunpack.c.l.bf16 %v5137
      %v5146 = vunpack.c.l.bf16 %v5138
      %v5147 = vunpack.c.l.bf16 %v5139
      %v5148 = vunpack.c.l.bf16 %v5140
      %v5149 = vunpack.c.l.bf16 %v5141
      %v5150 = vunpack.c.l.bf16 %v5142
      %v5151 = vunpack.c.l.bf16 %v5143
      %v5152 = vperm.slane %v4606, 1
      %v5153 = vmul.f32 %v5087, %v5152
      %v5154 = vmul.f32 %v5088, %v5152
      %v5155 = vmul.f32 %v5144, %v5152
      %v5156 = vmul.f32 %v5089, %v5152
      %v5157 = vmul.f32 %v5090, %v5152
      %v5158 = vmul.f32 %v5145, %v5152
      %v5159 = vmul.f32 %v5091, %v5152
      %v5160 = vmul.f32 %v5092, %v5152
      %v5161 = vmul.f32 %v5146, %v5152
      %v5162 = vmul.f32 %v5093, %v5152
      %v5163 = vmul.f32 %v5094, %v5152
      %v5164 = vmul.f32 %v5147, %v5152
      %v5165 = vmul.f32 %v5095, %v5152
      %v5166 = vmul.f32 %v5096, %v5152
      %v5167 = vmul.f32 %v5148, %v5152
      %v5168 = vmul.f32 %v5097, %v5152
      %v5169 = vmul.f32 %v5098, %v5152
      %v5170 = vmul.f32 %v5149, %v5152
      %v5171 = vmul.f32 %v5099, %v5152
      %v5172 = vmul.f32 %v5100, %v5152
      %v5173 = vmul.f32 %v5150, %v5152
      %v5174 = vmul.f32 %v5101, %v5152
      %v5175 = vmul.f32 %v5102, %v5152
      %v5176 = vmul.f32 %v5151, %v5152
      %v5201 = vrot.slane %v5153, 1
      %v5202 = vrot.slane %v5154, 1
      %v5203 = vsel %vm4721, %v5201, %v5202
      %v5204 = vrot.slane %v5155, 1
      %v5205 = vsel %vm4721, %v5202, %v5204
      %v5206 = vrot.slane %v5156, 1
      %v5207 = vrot.slane %v5157, 1
      %v5208 = vsel %vm4721, %v5206, %v5207
      %v5209 = vrot.slane %v5158, 1
      %v5210 = vsel %vm4721, %v5207, %v5209
      %v5211 = vrot.slane %v5159, 1
      %v5212 = vrot.slane %v5160, 1
      %v5213 = vsel %vm4721, %v5211, %v5212
      %v5214 = vrot.slane %v5161, 1
      %v5215 = vsel %vm4721, %v5212, %v5214
      %v5216 = vrot.slane %v5162, 1
      %v5217 = vrot.slane %v5163, 1
      %v5218 = vsel %vm4721, %v5216, %v5217
      %v5219 = vrot.slane %v5164, 1
      %v5220 = vsel %vm4721, %v5217, %v5219
      %v5221 = vrot.slane %v5165, 1
      %v5222 = vrot.slane %v5166, 1
      %v5223 = vsel %vm4721, %v5221, %v5222
      %v5224 = vrot.slane %v5167, 1
      %v5225 = vsel %vm4721, %v5222, %v5224
      %v5226 = vrot.slane %v5168, 1
      %v5227 = vrot.slane %v5169, 1
      %v5228 = vsel %vm4721, %v5226, %v5227
      %v5229 = vrot.slane %v5170, 1
      %v5230 = vsel %vm4721, %v5227, %v5229
      %v5231 = vrot.slane %v5171, 1
      %v5232 = vrot.slane %v5172, 1
      %v5233 = vsel %vm4721, %v5231, %v5232
      %v5234 = vrot.slane %v5173, 1
      %v5235 = vsel %vm4721, %v5232, %v5234
      %v5236 = vrot.slane %v5174, 1
      %v5237 = vrot.slane %v5175, 1
      %v5238 = vsel %vm4721, %v5236, %v5237
      %v5239 = vrot.slane %v5176, 1
      %v5240 = vsel %vm4721, %v5237, %v5239
      %v5257 = vadd.f32 %v5120, %v5203
      %v5258 = vadd.f32 %v5121, %v5205
      %v5259 = vadd.f32 %v5122, %v5208
      %v5260 = vadd.f32 %v5123, %v5210
      %v5261 = vadd.f32 %v5124, %v5213
      %v5262 = vadd.f32 %v5125, %v5215
      %v5263 = vadd.f32 %v5126, %v5218
      %v5264 = vadd.f32 %v5127, %v5220
      %v5265 = vadd.f32 %v5128, %v5223
      %v5266 = vadd.f32 %v5129, %v5225
      %v5267 = vadd.f32 %v5130, %v5228
      %v5268 = vadd.f32 %v5131, %v5230
      %v5269 = vadd.f32 %v5132, %v5233
      %v5270 = vadd.f32 %v5133, %v5235
      %v5271 = vadd.f32 %v5134, %v5238
      %v5272 = vadd.f32 %v5135, %v5240
      %v5273 = vld [vmem:[%s5070] sm:$0xe]
      %v5274 = vld [vmem:[%s5070 + $0xc] sm:$0xe]
      %v5275 = vld [vmem:[%s5070 + $0x18] sm:$0xe]
      %v5276 = vld [vmem:[%s5070 + $0x24] sm:$0xe]
      %v5277 = vld [vmem:[%s5070 + $0x30] sm:$0xe]
      %v5278 = vld [vmem:[%s5070 + $0x3c] sm:$0xe]
      %v5279 = vld [vmem:[%s5070 + $0x48] sm:$0xe]
      %v5280 = vld [vmem:[%s5070 + $0x54] sm:$0xe]
      %v5281 = vunpack.c.l.bf16 %v5273
      %v5282 = vunpack.c.l.bf16 %v5274
      %v5283 = vunpack.c.l.bf16 %v5275
      %v5284 = vunpack.c.l.bf16 %v5276
      %v5285 = vunpack.c.l.bf16 %v5277
      %v5286 = vunpack.c.l.bf16 %v5278
      %v5287 = vunpack.c.l.bf16 %v5279
      %v5288 = vunpack.c.l.bf16 %v5280
      %v5289 = vperm.slane %v4606, 2
      %v5290 = vmul.f32 %v5281, %v5289
      %v5291 = vmul.f32 %v5088, %v5289
      %v5292 = vmul.f32 %v5144, %v5289
      %v5293 = vmul.f32 %v5282, %v5289
      %v5294 = vmul.f32 %v5090, %v5289
      %v5295 = vmul.f32 %v5145, %v5289
      %v5296 = vmul.f32 %v5283, %v5289
      %v5297 = vmul.f32 %v5092, %v5289
      %v5298 = vmul.f32 %v5146, %v5289
      %v5299 = vmul.f32 %v5284, %v5289
      %v5300 = vmul.f32 %v5094, %v5289
      %v5301 = vmul.f32 %v5147, %v5289
      %v5302 = vmul.f32 %v5285, %v5289
      %v5303 = vmul.f32 %v5096, %v5289
      %v5304 = vmul.f32 %v5148, %v5289
      %v5305 = vmul.f32 %v5286, %v5289
      %v5306 = vmul.f32 %v5098, %v5289
      %v5307 = vmul.f32 %v5149, %v5289
      %v5308 = vmul.f32 %v5287, %v5289
      %v5309 = vmul.f32 %v5100, %v5289
      %v5310 = vmul.f32 %v5150, %v5289
      %v5311 = vmul.f32 %v5288, %v5289
      %v5312 = vmul.f32 %v5102, %v5289
      %v5313 = vmul.f32 %v5151, %v5289
      %v5338 = vrot.slane %v5290, 2
      %v5339 = vrot.slane %v5291, 2
      %v5340 = vsel %vm4859, %v5338, %v5339
      %v5341 = vrot.slane %v5292, 2
      %v5342 = vsel %vm4859, %v5339, %v5341
      %v5343 = vrot.slane %v5293, 2
      %v5344 = vrot.slane %v5294, 2
      %v5345 = vsel %vm4859, %v5343, %v5344
      %v5346 = vrot.slane %v5295, 2
      %v5347 = vsel %vm4859, %v5344, %v5346
      %v5348 = vrot.slane %v5296, 2
      %v5349 = vrot.slane %v5297, 2
      %v5350 = vsel %vm4859, %v5348, %v5349
      %v5351 = vrot.slane %v5298, 2
      %v5352 = vsel %vm4859, %v5349, %v5351
      %v5353 = vrot.slane %v5299, 2
      %v5354 = vrot.slane %v5300, 2
      %v5355 = vsel %vm4859, %v5353, %v5354
      %v5356 = vrot.slane %v5301, 2
      %v5357 = vsel %vm4859, %v5354, %v5356
      %v5358 = vrot.slane %v5302, 2
      %v5359 = vrot.slane %v5303, 2
      %v5360 = vsel %vm4859, %v5358, %v5359
      %v5361 = vrot.slane %v5304, 2
      %v5362 = vsel %vm4859, %v5359, %v5361
      %v5363 = vrot.slane %v5305, 2
      %v5364 = vrot.slane %v5306, 2
      %v5365 = vsel %vm4859, %v5363, %v5364
      %v5366 = vrot.slane %v5307, 2
      %v5367 = vsel %vm4859, %v5364, %v5366
      %v5368 = vrot.slane %v5308, 2
      %v5369 = vrot.slane %v5309, 2
      %v5370 = vsel %vm4859, %v5368, %v5369
      %v5371 = vrot.slane %v5310, 2
      %v5372 = vsel %vm4859, %v5369, %v5371
      %v5373 = vrot.slane %v5311, 2
      %v5374 = vrot.slane %v5312, 2
      %v5375 = vsel %vm4859, %v5373, %v5374
      %v5376 = vrot.slane %v5313, 2
      %v5377 = vsel %vm4859, %v5374, %v5376
      %v5394 = vadd.f32 %v5257, %v5340
      %v5395 = vadd.f32 %v5258, %v5342
      %v5396 = vadd.f32 %v5259, %v5345
      %v5397 = vadd.f32 %v5260, %v5347
      %v5398 = vadd.f32 %v5261, %v5350
      %v5399 = vadd.f32 %v5262, %v5352
      %v5400 = vadd.f32 %v5263, %v5355
      %v5401 = vadd.f32 %v5264, %v5357
      %v5402 = vadd.f32 %v5265, %v5360
      %v5403 = vadd.f32 %v5266, %v5362
      %v5404 = vadd.f32 %v5267, %v5365
      %v5405 = vadd.f32 %v5268, %v5367
      %v5406 = vadd.f32 %v5269, %v5370
      %v5407 = vadd.f32 %v5270, %v5372
      %v5408 = vadd.f32 %v5271, %v5375
      %v5409 = vadd.f32 %v5272, %v5377
      %v5410 = vld [vmem:[%s5070 + $0x8] sm:$0x3]
      %v5411 = vld [vmem:[%s5070 + $0x14] sm:$0x3]
      %v5412 = vld [vmem:[%s5070 + $0x20] sm:$0x3]
      %v5413 = vld [vmem:[%s5070 + $0x2c] sm:$0x3]
      %v5414 = vld [vmem:[%s5070 + $0x38] sm:$0x3]
      %v5415 = vld [vmem:[%s5070 + $0x44] sm:$0x3]
      %v5416 = vld [vmem:[%s5070 + $0x50] sm:$0x3]
      %v5417 = vld [vmem:[%s5070 + $0x5c] sm:$0x3]
      %v5418 = vunpack.c.l.bf16 %v5410
      %v5419 = vunpack.c.l.bf16 %v5411
      %v5420 = vunpack.c.l.bf16 %v5412
      %v5421 = vunpack.c.l.bf16 %v5413
      %v5422 = vunpack.c.l.bf16 %v5414
      %v5423 = vunpack.c.l.bf16 %v5415
      %v5424 = vunpack.c.l.bf16 %v5416
      %v5425 = vunpack.c.l.bf16 %v5417
      %v5426 = vperm.slane %v4606, 3
      %v5427 = vmul.f32 %v5281, %v5426
      %v5428 = vmul.f32 %v5088, %v5426
      %v5429 = vmul.f32 %v5418, %v5426
      %v5430 = vmul.f32 %v5282, %v5426
      %v5431 = vmul.f32 %v5090, %v5426
      %v5432 = vmul.f32 %v5419, %v5426
      %v5433 = vmul.f32 %v5283, %v5426
      %v5434 = vmul.f32 %v5092, %v5426
      %v5435 = vmul.f32 %v5420, %v5426
      %v5436 = vmul.f32 %v5284, %v5426
      %v5437 = vmul.f32 %v5094, %v5426
      %v5438 = vmul.f32 %v5421, %v5426
      %v5439 = vmul.f32 %v5285, %v5426
      %v5440 = vmul.f32 %v5096, %v5426
      %v5441 = vmul.f32 %v5422, %v5426
      %v5442 = vmul.f32 %v5286, %v5426
      %v5443 = vmul.f32 %v5098, %v5426
      %v5444 = vmul.f32 %v5423, %v5426
      %v5445 = vmul.f32 %v5287, %v5426
      %v5446 = vmul.f32 %v5100, %v5426
      %v5447 = vmul.f32 %v5424, %v5426
      %v5448 = vmul.f32 %v5288, %v5426
      %v5449 = vmul.f32 %v5102, %v5426
      %v5450 = vmul.f32 %v5425, %v5426
      %v5475 = vrot.slane %v5427, 3
      %v5476 = vrot.slane %v5428, 3
      %v5477 = vsel %vm4997, %v5475, %v5476
      %v5478 = vrot.slane %v5429, 3
      %v5479 = vsel %vm4997, %v5476, %v5478
      %v5480 = vrot.slane %v5430, 3
      %v5481 = vrot.slane %v5431, 3
      %v5482 = vsel %vm4997, %v5480, %v5481
      %v5483 = vrot.slane %v5432, 3
      %v5484 = vsel %vm4997, %v5481, %v5483
      %v5485 = vrot.slane %v5433, 3
      %v5486 = vrot.slane %v5434, 3
      %v5487 = vsel %vm4997, %v5485, %v5486
      %v5488 = vrot.slane %v5435, 3
      %v5489 = vsel %vm4997, %v5486, %v5488
      %v5490 = vrot.slane %v5436, 3
      %v5491 = vrot.slane %v5437, 3
      %v5492 = vsel %vm4997, %v5490, %v5491
      %v5493 = vrot.slane %v5438, 3
      %v5494 = vsel %vm4997, %v5491, %v5493
      %v5495 = vrot.slane %v5439, 3
      %v5496 = vrot.slane %v5440, 3
      %v5497 = vsel %vm4997, %v5495, %v5496
      %v5498 = vrot.slane %v5441, 3
      %v5499 = vsel %vm4997, %v5496, %v5498
      %v5500 = vrot.slane %v5442, 3
      %v5501 = vrot.slane %v5443, 3
      %v5502 = vsel %vm4997, %v5500, %v5501
      %v5503 = vrot.slane %v5444, 3
      %v5504 = vsel %vm4997, %v5501, %v5503
      %v5505 = vrot.slane %v5445, 3
      %v5506 = vrot.slane %v5446, 3
      %v5507 = vsel %vm4997, %v5505, %v5506
      %v5508 = vrot.slane %v5447, 3
      %v5509 = vsel %vm4997, %v5506, %v5508
      %v5510 = vrot.slane %v5448, 3
      %v5511 = vrot.slane %v5449, 3
      %v5512 = vsel %vm4997, %v5510, %v5511
      %v5513 = vrot.slane %v5450, 3
      %v5514 = vsel %vm4997, %v5511, %v5513
      %v5531 = vadd.f32 %v5394, %v5477
      %v5532 = vadd.f32 %v5395, %v5479
      %v5533 = vadd.f32 %v5396, %v5482
      %v5534 = vadd.f32 %v5397, %v5484
      %v5535 = vadd.f32 %v5398, %v5487
      %v5536 = vadd.f32 %v5399, %v5489
      %v5537 = vadd.f32 %v5400, %v5492
      %v5538 = vadd.f32 %v5401, %v5494
      %v5539 = vadd.f32 %v5402, %v5497
      %v5540 = vadd.f32 %v5403, %v5499
      %v5541 = vadd.f32 %v5404, %v5502
      %v5542 = vadd.f32 %v5405, %v5504
      %v5543 = vadd.f32 %v5406, %v5507
      %v5544 = vadd.f32 %v5407, %v5509
      %v5545 = vadd.f32 %v5408, %v5512
      %v5546 = vadd.f32 %v5409, %v5514
      %v5547 = vadd.f32 %v5531, %v4530
      %v5548 = vadd.f32 %v5532, %v4531
      %v5549 = vadd.f32 %v5533, %v4534
      %v5550 = vadd.f32 %v5534, %v4535
      %v5551 = vadd.f32 %v5535, %v4538
      %v5552 = vadd.f32 %v5536, %v4539
      %v5553 = vadd.f32 %v5537, %v4542
      %v5554 = vadd.f32 %v5538, %v4543
      %v5555 = vadd.f32 %v5539, %v4546
      %v5556 = vadd.f32 %v5540, %v4547
      %v5557 = vadd.f32 %v5541, %v4550
      %v5558 = vadd.f32 %v5542, %v4551
      %v5559 = vadd.f32 %v5543, %v4554
      %v5560 = vadd.f32 %v5544, %v4555
      %v5561 = vadd.f32 %v5545, %v4558
      %v5562 = vadd.f32 %v5546, %v4559
      %s5563 = scalar_lea.vmem [#allocation2], 24
      %5564 = vst [vmem:[%s5563 + $0x1] sm:$0xff] %v5547
      %5565 = vst [vmem:[%s5563 + $0x9] sm:$0xff] %v5548
      %5566 = vst [vmem:[%s5563 + $0x31] sm:$0xff] %v5549
      %5567 = vst [vmem:[%s5563 + $0x39] sm:$0xff] %v5550
      %5568 = vst [vmem:[%s5563 + $0x61] sm:$0xff] %v5551
      %5569 = vst [vmem:[%s5563 + $0x69] sm:$0xff] %v5552
      %5570 = vst [vmem:[%s5563 + $0x91] sm:$0xff] %v5553
      %5571 = vst [vmem:[%s5563 + $0x99] sm:$0xff] %v5554
      %5572 = vst [vmem:[%s5563 + $0xc1] sm:$0xff] %v5555
      %5573 = vst [vmem:[%s5563 + $0xc9] sm:$0xff] %v5556
      %5574 = vst [vmem:[%s5563 + $0xf1] sm:$0xff] %v5557
      %5575 = vst [vmem:[%s5563 + $0xf9] sm:$0xff] %v5558
      %5576 = vst [vmem:[%s5563 + $0x121] sm:$0xff] %v5559
      %5577 = vst [vmem:[%s5563 + $0x129] sm:$0xff] %v5560
      %5578 = vst [vmem:[%s5563 + $0x151] sm:$0xff] %v5561
      %5579 = vst [vmem:[%s5563 + $0x159] sm:$0xff] %v5562
      %v5580 = vld [vmem:[%s5070] sm:$0xf]
      %v5581 = vld [vmem:[%s5070 + $0x4] sm:$0xf]
      %v5582 = vld [vmem:[%s5070 + $0xc] sm:$0xf]
      %v5583 = vld [vmem:[%s5070 + $0x10] sm:$0xf]
      %v5584 = vld [vmem:[%s5070 + $0x18] sm:$0xf]
      %v5585 = vld [vmem:[%s5070 + $0x1c] sm:$0xf]
      %v5586 = vld [vmem:[%s5070 + $0x24] sm:$0xf]
      %v5587 = vld [vmem:[%s5070 + $0x28] sm:$0xf]
      %v5588 = vld [vmem:[%s5070 + $0x30] sm:$0xf]
      %v5589 = vld [vmem:[%s5070 + $0x34] sm:$0xf]
      %v5590 = vld [vmem:[%s5070 + $0x3c] sm:$0xf]
      %v5591 = vld [vmem:[%s5070 + $0x40] sm:$0xf]
      %v5592 = vld [vmem:[%s5070 + $0x48] sm:$0xf]
      %v5593 = vld [vmem:[%s5070 + $0x4c] sm:$0xf]
      %v5594 = vld [vmem:[%s5070 + $0x54] sm:$0xf]
      %v5595 = vld [vmem:[%s5070 + $0x58] sm:$0xf]
      %v5596 = vunpack.c.l.bf16 %v5580
      %v5597 = vunpack.c.l.bf16 %v5581
      %v5598 = vunpack.c.l.bf16 %v5582
      %v5599 = vunpack.c.l.bf16 %v5583
      %v5600 = vunpack.c.l.bf16 %v5584
      %v5601 = vunpack.c.l.bf16 %v5585
      %v5602 = vunpack.c.l.bf16 %v5586
      %v5603 = vunpack.c.l.bf16 %v5587
      %v5604 = vunpack.c.l.bf16 %v5588
      %v5605 = vunpack.c.l.bf16 %v5589
      %v5606 = vunpack.c.l.bf16 %v5590
      %v5607 = vunpack.c.l.bf16 %v5591
      %v5608 = vunpack.c.l.bf16 %v5592
      %v5609 = vunpack.c.l.bf16 %v5593
      %v5610 = vunpack.c.l.bf16 %v5594
      %v5611 = vunpack.c.l.bf16 %v5595
      %v5612 = vperm.slane %v4605, 4
      %v5613 = vmul.f32 %v5596, %v5612
      %v5614 = vmul.f32 %v5597, %v5612
      %v5615 = vmul.f32 %v5598, %v5612
      %v5616 = vmul.f32 %v5599, %v5612
      %v5617 = vmul.f32 %v5600, %v5612
      %v5618 = vmul.f32 %v5601, %v5612
      %v5619 = vmul.f32 %v5602, %v5612
      %v5620 = vmul.f32 %v5603, %v5612
      %v5621 = vmul.f32 %v5604, %v5612
      %v5622 = vmul.f32 %v5605, %v5612
      %v5623 = vmul.f32 %v5606, %v5612
      %v5624 = vmul.f32 %v5607, %v5612
      %v5625 = vmul.f32 %v5608, %v5612
      %v5626 = vmul.f32 %v5609, %v5612
      %v5627 = vmul.f32 %v5610, %v5612
      %v5628 = vmul.f32 %v5611, %v5612
      %v5629 = vld [vmem:[%s5070 + $0x8] sm:$0x1]
      %v5630 = vld [vmem:[%s5070 + $0x14] sm:$0x1]
      %v5631 = vld [vmem:[%s5070 + $0x20] sm:$0x1]
      %v5632 = vld [vmem:[%s5070 + $0x2c] sm:$0x1]
      %v5633 = vld [vmem:[%s5070 + $0x38] sm:$0x1]
      %v5634 = vld [vmem:[%s5070 + $0x44] sm:$0x1]
      %v5635 = vld [vmem:[%s5070 + $0x50] sm:$0x1]
      %v5636 = vld [vmem:[%s5070 + $0x5c] sm:$0x1]
      %v5637 = vunpack.c.l.bf16 %v5629
      %v5638 = vunpack.c.l.bf16 %v5630
      %v5639 = vunpack.c.l.bf16 %v5631
      %v5640 = vunpack.c.l.bf16 %v5632
      %v5641 = vunpack.c.l.bf16 %v5633
      %v5642 = vunpack.c.l.bf16 %v5634
      %v5643 = vunpack.c.l.bf16 %v5635
      %v5644 = vunpack.c.l.bf16 %v5636
      %v5645 = vperm.slane %v4605, 5
      %v5646 = vmul.f32 %v5596, %v5645
      %v5647 = vmul.f32 %v5597, %v5645
      %v5648 = vmul.f32 %v5637, %v5645
      %v5649 = vmul.f32 %v5598, %v5645
      %v5650 = vmul.f32 %v5599, %v5645
      %v5651 = vmul.f32 %v5638, %v5645
      %v5652 = vmul.f32 %v5600, %v5645
      %v5653 = vmul.f32 %v5601, %v5645
      %v5654 = vmul.f32 %v5639, %v5645
      %v5655 = vmul.f32 %v5602, %v5645
      %v5656 = vmul.f32 %v5603, %v5645
      %v5657 = vmul.f32 %v5640, %v5645
      %v5658 = vmul.f32 %v5604, %v5645
      %v5659 = vmul.f32 %v5605, %v5645
      %v5660 = vmul.f32 %v5641, %v5645
      %v5661 = vmul.f32 %v5606, %v5645
      %v5662 = vmul.f32 %v5607, %v5645
      %v5663 = vmul.f32 %v5642, %v5645
      %v5664 = vmul.f32 %v5608, %v5645
      %v5665 = vmul.f32 %v5609, %v5645
      %v5666 = vmul.f32 %v5643, %v5645
      %v5667 = vmul.f32 %v5610, %v5645
      %v5668 = vmul.f32 %v5611, %v5645
      %v5669 = vmul.f32 %v5644, %v5645
      %v5694 = vrot.slane %v5646, 1
      %v5695 = vrot.slane %v5647, 1
      %v5696 = vsel %vm4721, %v5694, %v5695
      %v5697 = vrot.slane %v5648, 1
      %v5698 = vsel %vm4721, %v5695, %v5697
      %v5699 = vrot.slane %v5649, 1
      %v5700 = vrot.slane %v5650, 1
      %v5701 = vsel %vm4721, %v5699, %v5700
      %v5702 = vrot.slane %v5651, 1
      %v5703 = vsel %vm4721, %v5700, %v5702
      %v5704 = vrot.slane %v5652, 1
      %v5705 = vrot.slane %v5653, 1
      %v5706 = vsel %vm4721, %v5704, %v5705
      %v5707 = vrot.slane %v5654, 1
      %v5708 = vsel %vm4721, %v5705, %v5707
      %v5709 = vrot.slane %v5655, 1
      %v5710 = vrot.slane %v5656, 1
      %v5711 = vsel %vm4721, %v5709, %v5710
      %v5712 = vrot.slane %v5657, 1
      %v5713 = vsel %vm4721, %v5710, %v5712
      %v5714 = vrot.slane %v5658, 1
      %v5715 = vrot.slane %v5659, 1
      %v5716 = vsel %vm4721, %v5714, %v5715
      %v5717 = vrot.slane %v5660, 1
      %v5718 = vsel %vm4721, %v5715, %v5717
      %v5719 = vrot.slane %v5661, 1
      %v5720 = vrot.slane %v5662, 1
      %v5721 = vsel %vm4721, %v5719, %v5720
      %v5722 = vrot.slane %v5663, 1
      %v5723 = vsel %vm4721, %v5720, %v5722
      %v5724 = vrot.slane %v5664, 1
      %v5725 = vrot.slane %v5665, 1
      %v5726 = vsel %vm4721, %v5724, %v5725
      %v5727 = vrot.slane %v5666, 1
      %v5728 = vsel %vm4721, %v5725, %v5727
      %v5729 = vrot.slane %v5667, 1
      %v5730 = vrot.slane %v5668, 1
      %v5731 = vsel %vm4721, %v5729, %v5730
      %v5732 = vrot.slane %v5669, 1
      %v5733 = vsel %vm4721, %v5730, %v5732
      %v5750 = vadd.f32 %v5613, %v5696
      %v5751 = vadd.f32 %v5614, %v5698
      %v5752 = vadd.f32 %v5615, %v5701
      %v5753 = vadd.f32 %v5616, %v5703
      %v5754 = vadd.f32 %v5617, %v5706
      %v5755 = vadd.f32 %v5618, %v5708
      %v5756 = vadd.f32 %v5619, %v5711
      %v5757 = vadd.f32 %v5620, %v5713
      %v5758 = vadd.f32 %v5621, %v5716
      %v5759 = vadd.f32 %v5622, %v5718
      %v5760 = vadd.f32 %v5623, %v5721
      %v5761 = vadd.f32 %v5624, %v5723
      %v5762 = vadd.f32 %v5625, %v5726
      %v5763 = vadd.f32 %v5626, %v5728
      %v5764 = vadd.f32 %v5627, %v5731
      %v5765 = vadd.f32 %v5628, %v5733
      %v5766 = vld [vmem:[%s5070] sm:$0xe]
      %v5767 = vld [vmem:[%s5070 + $0xc] sm:$0xe]
      %v5768 = vld [vmem:[%s5070 + $0x18] sm:$0xe]
      %v5769 = vld [vmem:[%s5070 + $0x24] sm:$0xe]
      %v5770 = vld [vmem:[%s5070 + $0x30] sm:$0xe]
      %v5771 = vld [vmem:[%s5070 + $0x3c] sm:$0xe]
      %v5772 = vld [vmem:[%s5070 + $0x48] sm:$0xe]
      %v5773 = vld [vmem:[%s5070 + $0x54] sm:$0xe]
      %v5774 = vunpack.c.l.bf16 %v5766
      %v5775 = vunpack.c.l.bf16 %v5767
      %v5776 = vunpack.c.l.bf16 %v5768
      %v5777 = vunpack.c.l.bf16 %v5769
      %v5778 = vunpack.c.l.bf16 %v5770
      %v5779 = vunpack.c.l.bf16 %v5771
      %v5780 = vunpack.c.l.bf16 %v5772
      %v5781 = vunpack.c.l.bf16 %v5773
      %v5782 = vperm.slane %v4605, 6
      %v5783 = vmul.f32 %v5774, %v5782
      %v5784 = vmul.f32 %v5597, %v5782
      %v5785 = vmul.f32 %v5637, %v5782
      %v5786 = vmul.f32 %v5775, %v5782
      %v5787 = vmul.f32 %v5599, %v5782
      %v5788 = vmul.f32 %v5638, %v5782
      %v5789 = vmul.f32 %v5776, %v5782
      %v5790 = vmul.f32 %v5601, %v5782
      %v5791 = vmul.f32 %v5639, %v5782
      %v5792 = vmul.f32 %v5777, %v5782
      %v5793 = vmul.f32 %v5603, %v5782
      %v5794 = vmul.f32 %v5640, %v5782
      %v5795 = vmul.f32 %v5778, %v5782
      %v5796 = vmul.f32 %v5605, %v5782
      %v5797 = vmul.f32 %v5641, %v5782
      %v5798 = vmul.f32 %v5779, %v5782
      %v5799 = vmul.f32 %v5607, %v5782
      %v5800 = vmul.f32 %v5642, %v5782
      %v5801 = vmul.f32 %v5780, %v5782
      %v5802 = vmul.f32 %v5609, %v5782
      %v5803 = vmul.f32 %v5643, %v5782
      %v5804 = vmul.f32 %v5781, %v5782
      %v5805 = vmul.f32 %v5611, %v5782
      %v5806 = vmul.f32 %v5644, %v5782
      %v5831 = vrot.slane %v5783, 2
      %v5832 = vrot.slane %v5784, 2
      %v5833 = vsel %vm4859, %v5831, %v5832
      %v5834 = vrot.slane %v5785, 2
      %v5835 = vsel %vm4859, %v5832, %v5834
      %v5836 = vrot.slane %v5786, 2
      %v5837 = vrot.slane %v5787, 2
      %v5838 = vsel %vm4859, %v5836, %v5837
      %v5839 = vrot.slane %v5788, 2
      %v5840 = vsel %vm4859, %v5837, %v5839
      %v5841 = vrot.slane %v5789, 2
      %v5842 = vrot.slane %v5790, 2
      %v5843 = vsel %vm4859, %v5841, %v5842
      %v5844 = vrot.slane %v5791, 2
      %v5845 = vsel %vm4859, %v5842, %v5844
      %v5846 = vrot.slane %v5792, 2
      %v5847 = vrot.slane %v5793, 2
      %v5848 = vsel %vm4859, %v5846, %v5847
      %v5849 = vrot.slane %v5794, 2
      %v5850 = vsel %vm4859, %v5847, %v5849
      %v5851 = vrot.slane %v5795, 2
      %v5852 = vrot.slane %v5796, 2
      %v5853 = vsel %vm4859, %v5851, %v5852
      %v5854 = vrot.slane %v5797, 2
      %v5855 = vsel %vm4859, %v5852, %v5854
      %v5856 = vrot.slane %v5798, 2
      %v5857 = vrot.slane %v5799, 2
      %v5858 = vsel %vm4859, %v5856, %v5857
      %v5859 = vrot.slane %v5800, 2
      %v5860 = vsel %vm4859, %v5857, %v5859
      %v5861 = vrot.slane %v5801, 2
      %v5862 = vrot.slane %v5802, 2
      %v5863 = vsel %vm4859, %v5861, %v5862
      %v5864 = vrot.slane %v5803, 2
      %v5865 = vsel %vm4859, %v5862, %v5864
      %v5866 = vrot.slane %v5804, 2
      %v5867 = vrot.slane %v5805, 2
      %v5868 = vsel %vm4859, %v5866, %v5867
      %v5869 = vrot.slane %v5806, 2
      %v5870 = vsel %vm4859, %v5867, %v5869
      %v5887 = vadd.f32 %v5750, %v5833
      %v5888 = vadd.f32 %v5751, %v5835
      %v5889 = vadd.f32 %v5752, %v5838
      %v5890 = vadd.f32 %v5753, %v5840
      %v5891 = vadd.f32 %v5754, %v5843
      %v5892 = vadd.f32 %v5755, %v5845
      %v5893 = vadd.f32 %v5756, %v5848
      %v5894 = vadd.f32 %v5757, %v5850
      %v5895 = vadd.f32 %v5758, %v5853
      %v5896 = vadd.f32 %v5759, %v5855
      %v5897 = vadd.f32 %v5760, %v5858
      %v5898 = vadd.f32 %v5761, %v5860
      %v5899 = vadd.f32 %v5762, %v5863
      %v5900 = vadd.f32 %v5763, %v5865
      %v5901 = vadd.f32 %v5764, %v5868
      %v5902 = vadd.f32 %v5765, %v5870
      %v5903 = vld [vmem:[%s5070 + $0x8] sm:$0x3]
      %v5904 = vld [vmem:[%s5070 + $0x14] sm:$0x3]
      %v5905 = vld [vmem:[%s5070 + $0x20] sm:$0x3]
      %v5906 = vld [vmem:[%s5070 + $0x2c] sm:$0x3]
      %v5907 = vld [vmem:[%s5070 + $0x38] sm:$0x3]
      %v5908 = vld [vmem:[%s5070 + $0x44] sm:$0x3]
      %v5909 = vld [vmem:[%s5070 + $0x50] sm:$0x3]
      %v5910 = vld [vmem:[%s5070 + $0x5c] sm:$0x3]
      %v5911 = vunpack.c.l.bf16 %v5903
      %v5912 = vunpack.c.l.bf16 %v5904
      %v5913 = vunpack.c.l.bf16 %v5905
      %v5914 = vunpack.c.l.bf16 %v5906
      %v5915 = vunpack.c.l.bf16 %v5907
      %v5916 = vunpack.c.l.bf16 %v5908
      %v5917 = vunpack.c.l.bf16 %v5909
      %v5918 = vunpack.c.l.bf16 %v5910
      %v5919 = vperm.slane %v4605, 7
      %v5920 = vmul.f32 %v5774, %v5919
      %v5921 = vmul.f32 %v5597, %v5919
      %v5922 = vmul.f32 %v5911, %v5919
      %v5923 = vmul.f32 %v5775, %v5919
      %v5924 = vmul.f32 %v5599, %v5919
      %v5925 = vmul.f32 %v5912, %v5919
      %v5926 = vmul.f32 %v5776, %v5919
      %v5927 = vmul.f32 %v5601, %v5919
      %v5928 = vmul.f32 %v5913, %v5919
      %v5929 = vmul.f32 %v5777, %v5919
      %v5930 = vmul.f32 %v5603, %v5919
      %v5931 = vmul.f32 %v5914, %v5919
      %v5932 = vmul.f32 %v5778, %v5919
      %v5933 = vmul.f32 %v5605, %v5919
      %v5934 = vmul.f32 %v5915, %v5919
      %v5935 = vmul.f32 %v5779, %v5919
      %v5936 = vmul.f32 %v5607, %v5919
      %v5937 = vmul.f32 %v5916, %v5919
      %v5938 = vmul.f32 %v5780, %v5919
      %v5939 = vmul.f32 %v5609, %v5919
      %v5940 = vmul.f32 %v5917, %v5919
      %v5941 = vmul.f32 %v5781, %v5919
      %v5942 = vmul.f32 %v5611, %v5919
      %v5943 = vmul.f32 %v5918, %v5919
      %v5968 = vrot.slane %v5920, 3
      %v5969 = vrot.slane %v5921, 3
      %v5970 = vsel %vm4997, %v5968, %v5969
      %v5971 = vrot.slane %v5922, 3
      %v5972 = vsel %vm4997, %v5969, %v5971
      %v5973 = vrot.slane %v5923, 3
      %v5974 = vrot.slane %v5924, 3
      %v5975 = vsel %vm4997, %v5973, %v5974
      %v5976 = vrot.slane %v5925, 3
      %v5977 = vsel %vm4997, %v5974, %v5976
      %v5978 = vrot.slane %v5926, 3
      %v5979 = vrot.slane %v5927, 3
      %v5980 = vsel %vm4997, %v5978, %v5979
      %v5981 = vrot.slane %v5928, 3
      %v5982 = vsel %vm4997, %v5979, %v5981
      %v5983 = vrot.slane %v5929, 3
      %v5984 = vrot.slane %v5930, 3
      %v5985 = vsel %vm4997, %v5983, %v5984
      %v5986 = vrot.slane %v5931, 3
      %v5987 = vsel %vm4997, %v5984, %v5986
      %v5988 = vrot.slane %v5932, 3
      %v5989 = vrot.slane %v5933, 3
      %v5990 = vsel %vm4997, %v5988, %v5989
      %v5991 = vrot.slane %v5934, 3
      %v5992 = vsel %vm4997, %v5989, %v5991
      %v5993 = vrot.slane %v5935, 3
      %v5994 = vrot.slane %v5936, 3
      %v5995 = vsel %vm4997, %v5993, %v5994
      %v5996 = vrot.slane %v5937, 3
      %v5997 = vsel %vm4997, %v5994, %v5996
      %v5998 = vrot.slane %v5938, 3
      %v5999 = vrot.slane %v5939, 3
      %v6000 = vsel %vm4997, %v5998, %v5999
      %v6001 = vrot.slane %v5940, 3
      %v6002 = vsel %vm4997, %v5999, %v6001
      %v6003 = vrot.slane %v5941, 3
      %v6004 = vrot.slane %v5942, 3
      %v6005 = vsel %vm4997, %v6003, %v6004
      %v6006 = vrot.slane %v5943, 3
      %v6007 = vsel %vm4997, %v6004, %v6006
      %v6024 = vadd.f32 %v5887, %v5970
      %v6025 = vadd.f32 %v5888, %v5972
      %v6026 = vadd.f32 %v5889, %v5975
      %v6027 = vadd.f32 %v5890, %v5977
      %v6028 = vadd.f32 %v5891, %v5980
      %v6029 = vadd.f32 %v5892, %v5982
      %v6030 = vadd.f32 %v5893, %v5985
      %v6031 = vadd.f32 %v5894, %v5987
      %v6032 = vadd.f32 %v5895, %v5990
      %v6033 = vadd.f32 %v5896, %v5992
      %v6034 = vadd.f32 %v5897, %v5995
      %v6035 = vadd.f32 %v5898, %v5997
      %v6036 = vadd.f32 %v5899, %v6000
      %v6037 = vadd.f32 %v5900, %v6002
      %v6038 = vadd.f32 %v5901, %v6005
      %v6039 = vadd.f32 %v5902, %v6007
      %s6040 = scalar_lea.vmem %s342, 24
      %v6041 = vld [vmem:[%s6040] sm:$0xf]
      %v6042 = vld [vmem:[%s6040 + $0x4] sm:$0xf]
      %v6043 = vld [vmem:[%s6040 + $0xc] sm:$0xf]
      %v6044 = vld [vmem:[%s6040 + $0x10] sm:$0xf]
      %v6045 = vld [vmem:[%s6040 + $0x18] sm:$0xf]
      %v6046 = vld [vmem:[%s6040 + $0x1c] sm:$0xf]
      %v6047 = vld [vmem:[%s6040 + $0x24] sm:$0xf]
      %v6048 = vld [vmem:[%s6040 + $0x28] sm:$0xf]
      %v6049 = vld [vmem:[%s6040 + $0x30] sm:$0xf]
      %v6050 = vld [vmem:[%s6040 + $0x34] sm:$0xf]
      %v6051 = vld [vmem:[%s6040 + $0x3c] sm:$0xf]
      %v6052 = vld [vmem:[%s6040 + $0x40] sm:$0xf]
      %v6053 = vld [vmem:[%s6040 + $0x48] sm:$0xf]
      %v6054 = vld [vmem:[%s6040 + $0x4c] sm:$0xf]
      %v6055 = vld [vmem:[%s6040 + $0x54] sm:$0xf]
      %v6056 = vld [vmem:[%s6040 + $0x58] sm:$0xf]
      %v6057 = vunpack.c.l.bf16 %v6041
      %v6058 = vunpack.c.l.bf16 %v6042
      %v6059 = vunpack.c.l.bf16 %v6043
      %v6060 = vunpack.c.l.bf16 %v6044
      %v6061 = vunpack.c.l.bf16 %v6045
      %v6062 = vunpack.c.l.bf16 %v6046
      %v6063 = vunpack.c.l.bf16 %v6047
      %v6064 = vunpack.c.l.bf16 %v6048
      %v6065 = vunpack.c.l.bf16 %v6049
      %v6066 = vunpack.c.l.bf16 %v6050
      %v6067 = vunpack.c.l.bf16 %v6051
      %v6068 = vunpack.c.l.bf16 %v6052
      %v6069 = vunpack.c.l.bf16 %v6053
      %v6070 = vunpack.c.l.bf16 %v6054
      %v6071 = vunpack.c.l.bf16 %v6055
      %v6072 = vunpack.c.l.bf16 %v6056
      %v6073 = vperm.slane %v4606, 4
      %v6074 = vmul.f32 %v6057, %v6073
      %v6075 = vmul.f32 %v6058, %v6073
      %v6076 = vmul.f32 %v6059, %v6073
      %v6077 = vmul.f32 %v6060, %v6073
      %v6078 = vmul.f32 %v6061, %v6073
      %v6079 = vmul.f32 %v6062, %v6073
      %v6080 = vmul.f32 %v6063, %v6073
      %v6081 = vmul.f32 %v6064, %v6073
      %v6082 = vmul.f32 %v6065, %v6073
      %v6083 = vmul.f32 %v6066, %v6073
      %v6084 = vmul.f32 %v6067, %v6073
      %v6085 = vmul.f32 %v6068, %v6073
      %v6086 = vmul.f32 %v6069, %v6073
      %v6087 = vmul.f32 %v6070, %v6073
      %v6088 = vmul.f32 %v6071, %v6073
      %v6089 = vmul.f32 %v6072, %v6073
      %v6090 = vadd.f32 %v6024, %v6074
      %v6091 = vadd.f32 %v6025, %v6075
      %v6092 = vadd.f32 %v6026, %v6076
      %v6093 = vadd.f32 %v6027, %v6077
      %v6094 = vadd.f32 %v6028, %v6078
      %v6095 = vadd.f32 %v6029, %v6079
      %v6096 = vadd.f32 %v6030, %v6080
      %v6097 = vadd.f32 %v6031, %v6081
      %v6098 = vadd.f32 %v6032, %v6082
      %v6099 = vadd.f32 %v6033, %v6083
      %v6100 = vadd.f32 %v6034, %v6084
      %v6101 = vadd.f32 %v6035, %v6085
      %v6102 = vadd.f32 %v6036, %v6086
      %v6103 = vadd.f32 %v6037, %v6087
      %v6104 = vadd.f32 %v6038, %v6088
      %v6105 = vadd.f32 %v6039, %v6089
      %v6106 = vld [vmem:[%s6040 + $0x8] sm:$0x1]
      %v6107 = vld [vmem:[%s6040 + $0x14] sm:$0x1]
      %v6108 = vld [vmem:[%s6040 + $0x20] sm:$0x1]
      %v6109 = vld [vmem:[%s6040 + $0x2c] sm:$0x1]
      %v6110 = vld [vmem:[%s6040 + $0x38] sm:$0x1]
      %v6111 = vld [vmem:[%s6040 + $0x44] sm:$0x1]
      %v6112 = vld [vmem:[%s6040 + $0x50] sm:$0x1]
      %v6113 = vld [vmem:[%s6040 + $0x5c] sm:$0x1]
      %v6114 = vunpack.c.l.bf16 %v6106
      %v6115 = vunpack.c.l.bf16 %v6107
      %v6116 = vunpack.c.l.bf16 %v6108
      %v6117 = vunpack.c.l.bf16 %v6109
      %v6118 = vunpack.c.l.bf16 %v6110
      %v6119 = vunpack.c.l.bf16 %v6111
      %v6120 = vunpack.c.l.bf16 %v6112
      %v6121 = vunpack.c.l.bf16 %v6113
      %v6122 = vperm.slane %v4606, 5
      %v6123 = vmul.f32 %v6057, %v6122
      %v6124 = vmul.f32 %v6058, %v6122
      %v6125 = vmul.f32 %v6114, %v6122
      %v6126 = vmul.f32 %v6059, %v6122
      %v6127 = vmul.f32 %v6060, %v6122
      %v6128 = vmul.f32 %v6115, %v6122
      %v6129 = vmul.f32 %v6061, %v6122
      %v6130 = vmul.f32 %v6062, %v6122
      %v6131 = vmul.f32 %v6116, %v6122
      %v6132 = vmul.f32 %v6063, %v6122
      %v6133 = vmul.f32 %v6064, %v6122
      %v6134 = vmul.f32 %v6117, %v6122
      %v6135 = vmul.f32 %v6065, %v6122
      %v6136 = vmul.f32 %v6066, %v6122
      %v6137 = vmul.f32 %v6118, %v6122
      %v6138 = vmul.f32 %v6067, %v6122
      %v6139 = vmul.f32 %v6068, %v6122
      %v6140 = vmul.f32 %v6119, %v6122
      %v6141 = vmul.f32 %v6069, %v6122
      %v6142 = vmul.f32 %v6070, %v6122
      %v6143 = vmul.f32 %v6120, %v6122
      %v6144 = vmul.f32 %v6071, %v6122
      %v6145 = vmul.f32 %v6072, %v6122
      %v6146 = vmul.f32 %v6121, %v6122
      %v6171 = vrot.slane %v6123, 1
      %v6172 = vrot.slane %v6124, 1
      %v6173 = vsel %vm4721, %v6171, %v6172
      %v6174 = vrot.slane %v6125, 1
      %v6175 = vsel %vm4721, %v6172, %v6174
      %v6176 = vrot.slane %v6126, 1
      %v6177 = vrot.slane %v6127, 1
      %v6178 = vsel %vm4721, %v6176, %v6177
      %v6179 = vrot.slane %v6128, 1
      %v6180 = vsel %vm4721, %v6177, %v6179
      %v6181 = vrot.slane %v6129, 1
      %v6182 = vrot.slane %v6130, 1
      %v6183 = vsel %vm4721, %v6181, %v6182
      %v6184 = vrot.slane %v6131, 1
      %v6185 = vsel %vm4721, %v6182, %v6184
      %v6186 = vrot.slane %v6132, 1
      %v6187 = vrot.slane %v6133, 1
      %v6188 = vsel %vm4721, %v6186, %v6187
      %v6189 = vrot.slane %v6134, 1
      %v6190 = vsel %vm4721, %v6187, %v6189
      %v6191 = vrot.slane %v6135, 1
      %v6192 = vrot.slane %v6136, 1
      %v6193 = vsel %vm4721, %v6191, %v6192
      %v6194 = vrot.slane %v6137, 1
      %v6195 = vsel %vm4721, %v6192, %v6194
      %v6196 = vrot.slane %v6138, 1
      %v6197 = vrot.slane %v6139, 1
      %v6198 = vsel %vm4721, %v6196, %v6197
      %v6199 = vrot.slane %v6140, 1
      %v6200 = vsel %vm4721, %v6197, %v6199
      %v6201 = vrot.slane %v6141, 1
      %v6202 = vrot.slane %v6142, 1
      %v6203 = vsel %vm4721, %v6201, %v6202
      %v6204 = vrot.slane %v6143, 1
      %v6205 = vsel %vm4721, %v6202, %v6204
      %v6206 = vrot.slane %v6144, 1
      %v6207 = vrot.slane %v6145, 1
      %v6208 = vsel %vm4721, %v6206, %v6207
      %v6209 = vrot.slane %v6146, 1
      %v6210 = vsel %vm4721, %v6207, %v6209
      %v6227 = vadd.f32 %v6090, %v6173
      %v6228 = vadd.f32 %v6091, %v6175
      %v6229 = vadd.f32 %v6092, %v6178
      %v6230 = vadd.f32 %v6093, %v6180
      %v6231 = vadd.f32 %v6094, %v6183
      %v6232 = vadd.f32 %v6095, %v6185
      %v6233 = vadd.f32 %v6096, %v6188
      %v6234 = vadd.f32 %v6097, %v6190
      %v6235 = vadd.f32 %v6098, %v6193
      %v6236 = vadd.f32 %v6099, %v6195
      %v6237 = vadd.f32 %v6100, %v6198
      %v6238 = vadd.f32 %v6101, %v6200
      %v6239 = vadd.f32 %v6102, %v6203
      %v6240 = vadd.f32 %v6103, %v6205
      %v6241 = vadd.f32 %v6104, %v6208
      %v6242 = vadd.f32 %v6105, %v6210
      %v6243 = vld [vmem:[%s6040] sm:$0xe]
      %v6244 = vld [vmem:[%s6040 + $0xc] sm:$0xe]
      %v6245 = vld [vmem:[%s6040 + $0x18] sm:$0xe]
      %v6246 = vld [vmem:[%s6040 + $0x24] sm:$0xe]
      %v6247 = vld [vmem:[%s6040 + $0x30] sm:$0xe]
      %v6248 = vld [vmem:[%s6040 + $0x3c] sm:$0xe]
      %v6249 = vld [vmem:[%s6040 + $0x48] sm:$0xe]
      %v6250 = vld [vmem:[%s6040 + $0x54] sm:$0xe]
      %v6251 = vunpack.c.l.bf16 %v6243
      %v6252 = vunpack.c.l.bf16 %v6244
      %v6253 = vunpack.c.l.bf16 %v6245
      %v6254 = vunpack.c.l.bf16 %v6246
      %v6255 = vunpack.c.l.bf16 %v6247
      %v6256 = vunpack.c.l.bf16 %v6248
      %v6257 = vunpack.c.l.bf16 %v6249
      %v6258 = vunpack.c.l.bf16 %v6250
      %v6259 = vperm.slane %v4606, 6
      %v6260 = vmul.f32 %v6251, %v6259
      %v6261 = vmul.f32 %v6058, %v6259
      %v6262 = vmul.f32 %v6114, %v6259
      %v6263 = vmul.f32 %v6252, %v6259
      %v6264 = vmul.f32 %v6060, %v6259
      %v6265 = vmul.f32 %v6115, %v6259
      %v6266 = vmul.f32 %v6253, %v6259
      %v6267 = vmul.f32 %v6062, %v6259
      %v6268 = vmul.f32 %v6116, %v6259
      %v6269 = vmul.f32 %v6254, %v6259
      %v6270 = vmul.f32 %v6064, %v6259
      %v6271 = vmul.f32 %v6117, %v6259
      %v6272 = vmul.f32 %v6255, %v6259
      %v6273 = vmul.f32 %v6066, %v6259
      %v6274 = vmul.f32 %v6118, %v6259
      %v6275 = vmul.f32 %v6256, %v6259
      %v6276 = vmul.f32 %v6068, %v6259
      %v6277 = vmul.f32 %v6119, %v6259
      %v6278 = vmul.f32 %v6257, %v6259
      %v6279 = vmul.f32 %v6070, %v6259
      %v6280 = vmul.f32 %v6120, %v6259
      %v6281 = vmul.f32 %v6258, %v6259
      %v6282 = vmul.f32 %v6072, %v6259
      %v6283 = vmul.f32 %v6121, %v6259
      %v6308 = vrot.slane %v6260, 2
      %v6309 = vrot.slane %v6261, 2
      %v6310 = vsel %vm4859, %v6308, %v6309
      %v6311 = vrot.slane %v6262, 2
      %v6312 = vsel %vm4859, %v6309, %v6311
      %v6313 = vrot.slane %v6263, 2
      %v6314 = vrot.slane %v6264, 2
      %v6315 = vsel %vm4859, %v6313, %v6314
      %v6316 = vrot.slane %v6265, 2
      %v6317 = vsel %vm4859, %v6314, %v6316
      %v6318 = vrot.slane %v6266, 2
      %v6319 = vrot.slane %v6267, 2
      %v6320 = vsel %vm4859, %v6318, %v6319
      %v6321 = vrot.slane %v6268, 2
      %v6322 = vsel %vm4859, %v6319, %v6321
      %v6323 = vrot.slane %v6269, 2
      %v6324 = vrot.slane %v6270, 2
      %v6325 = vsel %vm4859, %v6323, %v6324
      %v6326 = vrot.slane %v6271, 2
      %v6327 = vsel %vm4859, %v6324, %v6326
      %v6328 = vrot.slane %v6272, 2
      %v6329 = vrot.slane %v6273, 2
      %v6330 = vsel %vm4859, %v6328, %v6329
      %v6331 = vrot.slane %v6274, 2
      %v6332 = vsel %vm4859, %v6329, %v6331
      %v6333 = vrot.slane %v6275, 2
      %v6334 = vrot.slane %v6276, 2
      %v6335 = vsel %vm4859, %v6333, %v6334
      %v6336 = vrot.slane %v6277, 2
      %v6337 = vsel %vm4859, %v6334, %v6336
      %v6338 = vrot.slane %v6278, 2
      %v6339 = vrot.slane %v6279, 2
      %v6340 = vsel %vm4859, %v6338, %v6339
      %v6341 = vrot.slane %v6280, 2
      %v6342 = vsel %vm4859, %v6339, %v6341
      %v6343 = vrot.slane %v6281, 2
      %v6344 = vrot.slane %v6282, 2
      %v6345 = vsel %vm4859, %v6343, %v6344
      %v6346 = vrot.slane %v6283, 2
      %v6347 = vsel %vm4859, %v6344, %v6346
      %v6364 = vadd.f32 %v6227, %v6310
      %v6365 = vadd.f32 %v6228, %v6312
      %v6366 = vadd.f32 %v6229, %v6315
      %v6367 = vadd.f32 %v6230, %v6317
      %v6368 = vadd.f32 %v6231, %v6320
      %v6369 = vadd.f32 %v6232, %v6322
      %v6370 = vadd.f32 %v6233, %v6325
      %v6371 = vadd.f32 %v6234, %v6327
      %v6372 = vadd.f32 %v6235, %v6330
      %v6373 = vadd.f32 %v6236, %v6332
      %v6374 = vadd.f32 %v6237, %v6335
      %v6375 = vadd.f32 %v6238, %v6337
      %v6376 = vadd.f32 %v6239, %v6340
      %v6377 = vadd.f32 %v6240, %v6342
      %v6378 = vadd.f32 %v6241, %v6345
      %v6379 = vadd.f32 %v6242, %v6347
      %v6380 = vld [vmem:[%s6040 + $0x8] sm:$0x3]
      %v6381 = vld [vmem:[%s6040 + $0x14] sm:$0x3]
      %v6382 = vld [vmem:[%s6040 + $0x20] sm:$0x3]
      %v6383 = vld [vmem:[%s6040 + $0x2c] sm:$0x3]
      %v6384 = vld [vmem:[%s6040 + $0x38] sm:$0x3]
      %v6385 = vld [vmem:[%s6040 + $0x44] sm:$0x3]
      %v6386 = vld [vmem:[%s6040 + $0x50] sm:$0x3]
      %v6387 = vld [vmem:[%s6040 + $0x5c] sm:$0x3]
      %v6388 = vunpack.c.l.bf16 %v6380
      %v6389 = vunpack.c.l.bf16 %v6381
      %v6390 = vunpack.c.l.bf16 %v6382
      %v6391 = vunpack.c.l.bf16 %v6383
      %v6392 = vunpack.c.l.bf16 %v6384
      %v6393 = vunpack.c.l.bf16 %v6385
      %v6394 = vunpack.c.l.bf16 %v6386
      %v6395 = vunpack.c.l.bf16 %v6387
      %v6396 = vperm.slane %v4606, 7
      %v6397 = vmul.f32 %v6251, %v6396
      %v6398 = vmul.f32 %v6058, %v6396
      %v6399 = vmul.f32 %v6388, %v6396
      %v6400 = vmul.f32 %v6252, %v6396
      %v6401 = vmul.f32 %v6060, %v6396
      %v6402 = vmul.f32 %v6389, %v6396
      %v6403 = vmul.f32 %v6253, %v6396
      %v6404 = vmul.f32 %v6062, %v6396
      %v6405 = vmul.f32 %v6390, %v6396
      %v6406 = vmul.f32 %v6254, %v6396
      %v6407 = vmul.f32 %v6064, %v6396
      %v6408 = vmul.f32 %v6391, %v6396
      %v6409 = vmul.f32 %v6255, %v6396
      %v6410 = vmul.f32 %v6066, %v6396
      %v6411 = vmul.f32 %v6392, %v6396
      %v6412 = vmul.f32 %v6256, %v6396
      %v6413 = vmul.f32 %v6068, %v6396
      %v6414 = vmul.f32 %v6393, %v6396
      %v6415 = vmul.f32 %v6257, %v6396
      %v6416 = vmul.f32 %v6070, %v6396
      %v6417 = vmul.f32 %v6394, %v6396
      %v6418 = vmul.f32 %v6258, %v6396
      %v6419 = vmul.f32 %v6072, %v6396
      %v6420 = vmul.f32 %v6395, %v6396
      %v6445 = vrot.slane %v6397, 3
      %v6446 = vrot.slane %v6398, 3
      %v6447 = vsel %vm4997, %v6445, %v6446
      %v6448 = vrot.slane %v6399, 3
      %v6449 = vsel %vm4997, %v6446, %v6448
      %v6450 = vrot.slane %v6400, 3
      %v6451 = vrot.slane %v6401, 3
      %v6452 = vsel %vm4997, %v6450, %v6451
      %v6453 = vrot.slane %v6402, 3
      %v6454 = vsel %vm4997, %v6451, %v6453
      %v6455 = vrot.slane %v6403, 3
      %v6456 = vrot.slane %v6404, 3
      %v6457 = vsel %vm4997, %v6455, %v6456
      %v6458 = vrot.slane %v6405, 3
      %v6459 = vsel %vm4997, %v6456, %v6458
      %v6460 = vrot.slane %v6406, 3
      %v6461 = vrot.slane %v6407, 3
      %v6462 = vsel %vm4997, %v6460, %v6461
      %v6463 = vrot.slane %v6408, 3
      %v6464 = vsel %vm4997, %v6461, %v6463
      %v6465 = vrot.slane %v6409, 3
      %v6466 = vrot.slane %v6410, 3
      %v6467 = vsel %vm4997, %v6465, %v6466
      %v6468 = vrot.slane %v6411, 3
      %v6469 = vsel %vm4997, %v6466, %v6468
      %v6470 = vrot.slane %v6412, 3
      %v6471 = vrot.slane %v6413, 3
      %v6472 = vsel %vm4997, %v6470, %v6471
      %v6473 = vrot.slane %v6414, 3
      %v6474 = vsel %vm4997, %v6471, %v6473
      %v6475 = vrot.slane %v6415, 3
      %v6476 = vrot.slane %v6416, 3
      %v6477 = vsel %vm4997, %v6475, %v6476
      %v6478 = vrot.slane %v6417, 3
      %v6479 = vsel %vm4997, %v6476, %v6478
      %v6480 = vrot.slane %v6418, 3
      %v6481 = vrot.slane %v6419, 3
      %v6482 = vsel %vm4997, %v6480, %v6481
      %v6483 = vrot.slane %v6420, 3
      %v6484 = vsel %vm4997, %v6481, %v6483
      %v6501 = vadd.f32 %v6364, %v6447
      %v6502 = vadd.f32 %v6365, %v6449
      %v6503 = vadd.f32 %v6366, %v6452
      %v6504 = vadd.f32 %v6367, %v6454
      %v6505 = vadd.f32 %v6368, %v6457
      %v6506 = vadd.f32 %v6369, %v6459
      %v6507 = vadd.f32 %v6370, %v6462
      %v6508 = vadd.f32 %v6371, %v6464
      %v6509 = vadd.f32 %v6372, %v6467
      %v6510 = vadd.f32 %v6373, %v6469
      %v6511 = vadd.f32 %v6374, %v6472
      %v6512 = vadd.f32 %v6375, %v6474
      %v6513 = vadd.f32 %v6376, %v6477
      %v6514 = vadd.f32 %v6377, %v6479
      %v6515 = vadd.f32 %v6378, %v6482
      %v6516 = vadd.f32 %v6379, %v6484
      %v6517 = vadd.f32 %v6501, %v4532
      %v6518 = vadd.f32 %v6502, %v4533
      %v6519 = vadd.f32 %v6503, %v4536
      %v6520 = vadd.f32 %v6504, %v4537
      %v6521 = vadd.f32 %v6505, %v4540
      %v6522 = vadd.f32 %v6506, %v4541
      %v6523 = vadd.f32 %v6507, %v4544
      %v6524 = vadd.f32 %v6508, %v4545
      %v6525 = vadd.f32 %v6509, %v4548
      %v6526 = vadd.f32 %v6510, %v4549
      %v6527 = vadd.f32 %v6511, %v4552
      %v6528 = vadd.f32 %v6512, %v4553
      %v6529 = vadd.f32 %v6513, %v4556
      %v6530 = vadd.f32 %v6514, %v4557
      %v6531 = vadd.f32 %v6515, %v4560
      %v6532 = vadd.f32 %v6516, %v4561
      %s6533 = scalar_lea.vmem [#allocation2], 48
      %6534 = vst [vmem:[%s6533 + $0x1] sm:$0xff] %v6517
      %6535 = vst [vmem:[%s6533 + $0x9] sm:$0xff] %v6518
      %6536 = vst [vmem:[%s6533 + $0x31] sm:$0xff] %v6519
      %6537 = vst [vmem:[%s6533 + $0x39] sm:$0xff] %v6520
      %6538 = vst [vmem:[%s6533 + $0x61] sm:$0xff] %v6521
      %6539 = vst [vmem:[%s6533 + $0x69] sm:$0xff] %v6522
      %6540 = vst [vmem:[%s6533 + $0x91] sm:$0xff] %v6523
      %6541 = vst [vmem:[%s6533 + $0x99] sm:$0xff] %v6524
      %6542 = vst [vmem:[%s6533 + $0xc1] sm:$0xff] %v6525
      %6543 = vst [vmem:[%s6533 + $0xc9] sm:$0xff] %v6526
      %6544 = vst [vmem:[%s6533 + $0xf1] sm:$0xff] %v6527
      %6545 = vst [vmem:[%s6533 + $0xf9] sm:$0xff] %v6528
      %6546 = vst [vmem:[%s6533 + $0x121] sm:$0xff] %v6529
      %6547 = vst [vmem:[%s6533 + $0x129] sm:$0xff] %v6530
      %6548 = vst [vmem:[%s6533 + $0x151] sm:$0xff] %v6531
      %6549 = vst [vmem:[%s6533 + $0x159] sm:$0xff] %v6532
      %v6550 = vld [vmem:[#allocation2] sm:$0xff]
      %v6551 = vld [vmem:[#allocation2 + $0x8] sm:$0xff]
      %v6552 = vld [vmem:[#allocation2 + $0x10] sm:$0x3]
      %v6553 = vld [vmem:[#allocation2 + $0x18] sm:$0xff]
      %v6554 = vld [vmem:[#allocation2 + $0x20] sm:$0xff]
      %v6555 = vld [vmem:[#allocation2 + $0x28] sm:$0x3]
      %v6556 = vld [vmem:[#allocation2 + $0x30] sm:$0xff]
      %v6557 = vld [vmem:[#allocation2 + $0x38] sm:$0xff]
      %v6558 = vld [vmem:[#allocation2 + $0x40] sm:$0x3]
      %v6559 = vld [vmem:[#allocation2 + $0x48] sm:$0xff]
      %v6560 = vld [vmem:[#allocation2 + $0x50] sm:$0xff]
      %v6561 = vld [vmem:[#allocation2 + $0x58] sm:$0x3]
      %v6562 = vld [vmem:[#allocation2 + $0x60] sm:$0xff]
      %v6563 = vld [vmem:[#allocation2 + $0x68] sm:$0xff]
      %v6564 = vld [vmem:[#allocation2 + $0x70] sm:$0x3]
      %v6565 = vld [vmem:[#allocation2 + $0x78] sm:$0xff]
      %v6566 = vld [vmem:[#allocation2 + $0x80] sm:$0xff]
      %v6567 = vld [vmem:[#allocation2 + $0x88] sm:$0x3]
      %v6568 = vld [vmem:[#allocation2 + $0x90] sm:$0xff]
      %v6569 = vld [vmem:[#allocation2 + $0x98] sm:$0xff]
      %v6570 = vld [vmem:[#allocation2 + $0xa0] sm:$0x3]
      %v6571 = vld [vmem:[#allocation2 + $0xa8] sm:$0xff]
      %v6572 = vld [vmem:[#allocation2 + $0xb0] sm:$0xff]
      %v6573 = vld [vmem:[#allocation2 + $0xb8] sm:$0x3]
      %v6574 = vld [vmem:[#allocation2 + $0xc0] sm:$0xff]
      %v6575 = vld [vmem:[#allocation2 + $0xc8] sm:$0xff]
      %v6576 = vld [vmem:[#allocation2 + $0xd0] sm:$0x3]
      %v6577 = vld [vmem:[#allocation2 + $0xd8] sm:$0xff]
      %v6578 = vld [vmem:[#allocation2 + $0xe0] sm:$0xff]
      %v6579 = vld [vmem:[#allocation2 + $0xe8] sm:$0x3]
      %v6580 = vld [vmem:[#allocation2 + $0xf0] sm:$0xff]
      %v6581 = vld [vmem:[#allocation2 + $0xf8] sm:$0xff]
      %v6582 = vld [vmem:[#allocation2 + $0x100] sm:$0x3]
      %v6583 = vld [vmem:[#allocation2 + $0x108] sm:$0xff]
      %v6584 = vld [vmem:[#allocation2 + $0x110] sm:$0xff]
      %v6585 = vld [vmem:[#allocation2 + $0x118] sm:$0x3]
      %v6586 = vld [vmem:[#allocation2 + $0x120] sm:$0xff]
      %v6587 = vld [vmem:[#allocation2 + $0x128] sm:$0xff]
      %v6588 = vld [vmem:[#allocation2 + $0x130] sm:$0x3]
      %v6589 = vld [vmem:[#allocation2 + $0x138] sm:$0xff]
      %v6590 = vld [vmem:[#allocation2 + $0x140] sm:$0xff]
      %v6591 = vld [vmem:[#allocation2 + $0x148] sm:$0x3]
      %v6592 = vld [vmem:[#allocation2 + $0x150] sm:$0xff]
      %v6593 = vld [vmem:[#allocation2 + $0x158] sm:$0xff]
      %v6594 = vld [vmem:[#allocation2 + $0x160] sm:$0x3]
      %v6595 = vld [vmem:[#allocation2 + $0x168] sm:$0xff]
      %v6596 = vld [vmem:[#allocation2 + $0x170] sm:$0xff]
      %v6597 = vld [vmem:[#allocation2 + $0x178] sm:$0x3]
      %v6598 = vld [vmem:[#allocation2 + $0x180] sm:$0xff]
      %v6599 = vld [vmem:[#allocation2 + $0x188] sm:$0xff]
      %v6600 = vld [vmem:[#allocation2 + $0x190] sm:$0x3]
      %v6601 = vld [vmem:[#allocation2 + $0x198] sm:$0xff]
      %v6602 = vld [vmem:[#allocation2 + $0x1a0] sm:$0xff]
      %v6603 = vld [vmem:[#allocation2 + $0x1a8] sm:$0x3]
      %v6604 = vpack.c.bf16 %v6550, %v6550
      %v6605 = vpack.c.bf16 %v6551, %v6551
      %v6606 = vpack.c.bf16 %v6552, %v6552
      %v6607 = vpack.c.bf16 %v6553, %v6553
      %v6608 = vpack.c.bf16 %v6554, %v6554
      %v6609 = vpack.c.bf16 %v6555, %v6555
      %v6610 = vpack.c.bf16 %v6556, %v6556
      %v6611 = vpack.c.bf16 %v6557, %v6557
      %v6612 = vpack.c.bf16 %v6558, %v6558
      %v6613 = vpack.c.bf16 %v6559, %v6559
      %v6614 = vpack.c.bf16 %v6560, %v6560
      %v6615 = vpack.c.bf16 %v6561, %v6561
      %v6616 = vpack.c.bf16 %v6562, %v6562
      %v6617 = vpack.c.bf16 %v6563, %v6563
      %v6618 = vpack.c.bf16 %v6564, %v6564
      %v6619 = vpack.c.bf16 %v6565, %v6565
      %v6620 = vpack.c.bf16 %v6566, %v6566
      %v6621 = vpack.c.bf16 %v6567, %v6567
      %v6622 = vpack.c.bf16 %v6568, %v6568
      %v6623 = vpack.c.bf16 %v6569, %v6569
      %v6624 = vpack.c.bf16 %v6570, %v6570
      %v6625 = vpack.c.bf16 %v6571, %v6571
      %v6626 = vpack.c.bf16 %v6572, %v6572
      %v6627 = vpack.c.bf16 %v6573, %v6573
      %v6628 = vpack.c.bf16 %v6574, %v6574
      %v6629 = vpack.c.bf16 %v6575, %v6575
      %v6630 = vpack.c.bf16 %v6576, %v6576
      %v6631 = vpack.c.bf16 %v6577, %v6577
      %v6632 = vpack.c.bf16 %v6578, %v6578
      %v6633 = vpack.c.bf16 %v6579, %v6579
      %v6634 = vpack.c.bf16 %v6580, %v6580
      %v6635 = vpack.c.bf16 %v6581, %v6581
      %v6636 = vpack.c.bf16 %v6582, %v6582
      %v6637 = vpack.c.bf16 %v6583, %v6583
      %v6638 = vpack.c.bf16 %v6584, %v6584
      %v6639 = vpack.c.bf16 %v6585, %v6585
      %v6640 = vpack.c.bf16 %v6586, %v6586
      %v6641 = vpack.c.bf16 %v6587, %v6587
      %v6642 = vpack.c.bf16 %v6588, %v6588
      %v6643 = vpack.c.bf16 %v6589, %v6589
      %v6644 = vpack.c.bf16 %v6590, %v6590
      %v6645 = vpack.c.bf16 %v6591, %v6591
      %v6646 = vpack.c.bf16 %v6592, %v6592
      %v6647 = vpack.c.bf16 %v6593, %v6593
      %v6648 = vpack.c.bf16 %v6594, %v6594
      %v6649 = vpack.c.bf16 %v6595, %v6595
      %v6650 = vpack.c.bf16 %v6596, %v6596
      %v6651 = vpack.c.bf16 %v6597, %v6597
      %v6652 = vpack.c.bf16 %v6598, %v6598
      %v6653 = vpack.c.bf16 %v6599, %v6599
      %v6654 = vpack.c.bf16 %v6600, %v6600
      %v6655 = vpack.c.bf16 %v6601, %v6601
      %v6656 = vpack.c.bf16 %v6602, %v6602
      %v6657 = vpack.c.bf16 %v6603, %v6603
      %6658 = vst [vmem:[#allocation4] sm:$0xf] %v6604
      %6659 = vst [vmem:[#allocation4 + $0x24] sm:$0xf] %v6605
      %6660 = vst [vmem:[#allocation4 + $0x48] sm:$0xf] %v6607
      %6661 = vst [vmem:[#allocation4 + $0x6c] sm:$0xf] %v6608
      %6662 = vst [vmem:[#allocation4 + $0x90] sm:$0xf] %v6610
      %6663 = vst [vmem:[#allocation4 + $0xb4] sm:$0xf] %v6611
      %6664 = vst [vmem:[#allocation4 + $0xd8] sm:$0xf] %v6613
      %6665 = vst [vmem:[#allocation4 + $0xfc] sm:$0xf] %v6614
      %6666 = vst [vmem:[#allocation4 + $0x120] sm:$0xf] %v6616
      %6667 = vst [vmem:[#allocation4 + $0x144] sm:$0xf] %v6617
      %6668 = vst [vmem:[#allocation4 + $0x168] sm:$0xf] %v6619
      %6669 = vst [vmem:[#allocation4 + $0x18c] sm:$0xf] %v6620
      %6670 = vst [vmem:[#allocation4 + $0x1b0] sm:$0xf] %v6622
      %6671 = vst [vmem:[#allocation4 + $0x1d4] sm:$0xf] %v6623
      %6672 = vst [vmem:[#allocation4 + $0x1f8] sm:$0xf] %v6625
      %6673 = vst [vmem:[#allocation4 + $0x21c] sm:$0xf] %v6626
      %6674 = vst [vmem:[#allocation4 + $0x240] sm:$0xf] %v6628
      %6675 = vst [vmem:[#allocation4 + $0x264] sm:$0xf] %v6629
      %6676 = vst [vmem:[#allocation4 + $0x288] sm:$0xf] %v6631
      %6677 = vst [vmem:[#allocation4 + $0x2ac] sm:$0xf] %v6632
      %6678 = vst [vmem:[#allocation4 + $0x2d0] sm:$0xf] %v6634
      %6679 = vst [vmem:[#allocation4 + $0x2f4] sm:$0xf] %v6635
      %6680 = vst [vmem:[#allocation4 + $0x318] sm:$0xf] %v6637
      %6681 = vst [vmem:[#allocation4 + $0x33c] sm:$0xf] %v6638
      %6682 = vst [vmem:[#allocation4 + $0x360] sm:$0xf] %v6640
      %6683 = vst [vmem:[#allocation4 + $0x384] sm:$0xf] %v6641
      %6684 = vst [vmem:[#allocation4 + $0x3a8] sm:$0xf] %v6643
      %6685 = vst [vmem:[#allocation4 + $0x3cc] sm:$0xf] %v6644
      %6686 = vst [vmem:[#allocation4 + $0x3f0] sm:$0xf] %v6646
      %6687 = vst [vmem:[#allocation4 + $0x414] sm:$0xf] %v6647
      %6688 = vst [vmem:[#allocation4 + $0x438] sm:$0xf] %v6649
      %6689 = vst [vmem:[#allocation4 + $0x45c] sm:$0xf] %v6650
      %v6691 = vshrl.u32 %v6604, 16
      %v6693 = vrot.slane %v6691, 4
      %v6694 = vshll.u32 %v6604, 16
      %v6696 = vrot.slane %v6694, 5
      %v6697 = vor.u32 %v6693, %v6696
      %v6698 = vrot.slane %v6697, 4
      %v6700 = vshll.u32 %v6605, 16
      %v6702 = vrot.slane %v6700, 5
      %v6703 = vsel %vm469, %v6698, %v6702
      %v6704 = vshrl.u32 %v6605, 16
      %v6706 = vrot.slane %v6704, 4
      %v6707 = vor.u32 %v6706, %v6702
      %v6708 = vrot.slane %v6707, 4
      %v6710 = vshll.u32 %v6606, 16
      %v6712 = vrot.slane %v6710, 5
      %v6713 = vsel %vm469, %v6708, %v6712
      %v6715 = vshrl.u32 %v6607, 16
      %v6717 = vrot.slane %v6715, 4
      %v6718 = vshll.u32 %v6607, 16
      %v6720 = vrot.slane %v6718, 5
      %v6721 = vor.u32 %v6717, %v6720
      %v6722 = vrot.slane %v6721, 4
      %v6724 = vshll.u32 %v6608, 16
      %v6726 = vrot.slane %v6724, 5
      %v6727 = vsel %vm469, %v6722, %v6726
      %v6728 = vshrl.u32 %v6608, 16
      %v6730 = vrot.slane %v6728, 4
      %v6731 = vor.u32 %v6730, %v6726
      %v6732 = vrot.slane %v6731, 4
      %v6734 = vshll.u32 %v6609, 16
      %v6736 = vrot.slane %v6734, 5
      %v6737 = vsel %vm469, %v6732, %v6736
      %v6739 = vshrl.u32 %v6610, 16
      %v6741 = vrot.slane %v6739, 4
      %v6742 = vshll.u32 %v6610, 16
      %v6744 = vrot.slane %v6742, 5
      %v6745 = vor.u32 %v6741, %v6744
      %v6746 = vrot.slane %v6745, 4
      %v6748 = vshll.u32 %v6611, 16
      %v6750 = vrot.slane %v6748, 5
      %v6751 = vsel %vm469, %v6746, %v6750
      %v6752 = vshrl.u32 %v6611, 16
      %v6754 = vrot.slane %v6752, 4
      %v6755 = vor.u32 %v6754, %v6750
      %v6756 = vrot.slane %v6755, 4
      %v6758 = vshll.u32 %v6612, 16
      %v6760 = vrot.slane %v6758, 5
      %v6761 = vsel %vm469, %v6756, %v6760
      %v6763 = vshrl.u32 %v6613, 16
      %v6765 = vrot.slane %v6763, 4
      %v6766 = vshll.u32 %v6613, 16
      %v6768 = vrot.slane %v6766, 5
      %v6769 = vor.u32 %v6765, %v6768
      %v6770 = vrot.slane %v6769, 4
      %v6772 = vshll.u32 %v6614, 16
      %v6774 = vrot.slane %v6772, 5
      %v6775 = vsel %vm469, %v6770, %v6774
      %v6776 = vshrl.u32 %v6614, 16
      %v6778 = vrot.slane %v6776, 4
      %v6779 = vor.u32 %v6778, %v6774
      %v6780 = vrot.slane %v6779, 4
      %v6782 = vshll.u32 %v6615, 16
      %v6784 = vrot.slane %v6782, 5
      %v6785 = vsel %vm469, %v6780, %v6784
      %v6787 = vshrl.u32 %v6616, 16
      %v6789 = vrot.slane %v6787, 4
      %v6790 = vshll.u32 %v6616, 16
      %v6792 = vrot.slane %v6790, 5
      %v6793 = vor.u32 %v6789, %v6792
      %v6794 = vrot.slane %v6793, 4
      %v6796 = vshll.u32 %v6617, 16
      %v6798 = vrot.slane %v6796, 5
      %v6799 = vsel %vm469, %v6794, %v6798
      %v6800 = vshrl.u32 %v6617, 16
      %v6802 = vrot.slane %v6800, 4
      %v6803 = vor.u32 %v6802, %v6798
      %v6804 = vrot.slane %v6803, 4
      %v6806 = vshll.u32 %v6618, 16
      %v6808 = vrot.slane %v6806, 5
      %v6809 = vsel %vm469, %v6804, %v6808
      %v6811 = vshrl.u32 %v6619, 16
      %v6813 = vrot.slane %v6811, 4
      %v6814 = vshll.u32 %v6619, 16
      %v6816 = vrot.slane %v6814, 5
      %v6817 = vor.u32 %v6813, %v6816
      %v6818 = vrot.slane %v6817, 4
      %v6820 = vshll.u32 %v6620, 16
      %v6822 = vrot.slane %v6820, 5
      %v6823 = vsel %vm469, %v6818, %v6822
      %v6824 = vshrl.u32 %v6620, 16
      %v6826 = vrot.slane %v6824, 4
      %v6827 = vor.u32 %v6826, %v6822
      %v6828 = vrot.slane %v6827, 4
      %v6830 = vshll.u32 %v6621, 16
      %v6832 = vrot.slane %v6830, 5
      %v6833 = vsel %vm469, %v6828, %v6832
      %v6835 = vshrl.u32 %v6622, 16
      %v6837 = vrot.slane %v6835, 4
      %v6838 = vshll.u32 %v6622, 16
      %v6840 = vrot.slane %v6838, 5
      %v6841 = vor.u32 %v6837, %v6840
      %v6842 = vrot.slane %v6841, 4
      %v6844 = vshll.u32 %v6623, 16
      %v6846 = vrot.slane %v6844, 5
      %v6847 = vsel %vm469, %v6842, %v6846
      %v6848 = vshrl.u32 %v6623, 16
      %v6850 = vrot.slane %v6848, 4
      %v6851 = vor.u32 %v6850, %v6846
      %v6852 = vrot.slane %v6851, 4
      %v6854 = vshll.u32 %v6624, 16
      %v6856 = vrot.slane %v6854, 5
      %v6857 = vsel %vm469, %v6852, %v6856
      %v6859 = vshrl.u32 %v6625, 16
      %v6861 = vrot.slane %v6859, 4
      %v6862 = vshll.u32 %v6625, 16
      %v6864 = vrot.slane %v6862, 5
      %v6865 = vor.u32 %v6861, %v6864
      %v6866 = vrot.slane %v6865, 4
      %v6868 = vshll.u32 %v6626, 16
      %v6870 = vrot.slane %v6868, 5
      %v6871 = vsel %vm469, %v6866, %v6870
      %v6872 = vshrl.u32 %v6626, 16
      %v6874 = vrot.slane %v6872, 4
      %v6875 = vor.u32 %v6874, %v6870
      %v6876 = vrot.slane %v6875, 4
      %v6878 = vshll.u32 %v6627, 16
      %v6880 = vrot.slane %v6878, 5
      %v6881 = vsel %vm469, %v6876, %v6880
      %v6883 = vshrl.u32 %v6628, 16
      %v6885 = vrot.slane %v6883, 4
      %v6886 = vshll.u32 %v6628, 16
      %v6888 = vrot.slane %v6886, 5
      %v6889 = vor.u32 %v6885, %v6888
      %v6890 = vrot.slane %v6889, 4
      %v6892 = vshll.u32 %v6629, 16
      %v6894 = vrot.slane %v6892, 5
      %v6895 = vsel %vm469, %v6890, %v6894
      %v6896 = vshrl.u32 %v6629, 16
      %v6898 = vrot.slane %v6896, 4
      %v6899 = vor.u32 %v6898, %v6894
      %v6900 = vrot.slane %v6899, 4
      %v6902 = vshll.u32 %v6630, 16
      %v6904 = vrot.slane %v6902, 5
      %v6905 = vsel %vm469, %v6900, %v6904
      %v6907 = vshrl.u32 %v6631, 16
      %v6909 = vrot.slane %v6907, 4
      %v6910 = vshll.u32 %v6631, 16
      %v6912 = vrot.slane %v6910, 5
      %v6913 = vor.u32 %v6909, %v6912
      %v6914 = vrot.slane %v6913, 4
      %v6916 = vshll.u32 %v6632, 16
      %v6918 = vrot.slane %v6916, 5
      %v6919 = vsel %vm469, %v6914, %v6918
      %v6920 = vshrl.u32 %v6632, 16
      %v6922 = vrot.slane %v6920, 4
      %v6923 = vor.u32 %v6922, %v6918
      %v6924 = vrot.slane %v6923, 4
      %v6926 = vshll.u32 %v6633, 16
      %v6928 = vrot.slane %v6926, 5
      %v6929 = vsel %vm469, %v6924, %v6928
      %v6931 = vshrl.u32 %v6634, 16
      %v6933 = vrot.slane %v6931, 4
      %v6934 = vshll.u32 %v6634, 16
      %v6936 = vrot.slane %v6934, 5
      %v6937 = vor.u32 %v6933, %v6936
      %v6938 = vrot.slane %v6937, 4
      %v6940 = vshll.u32 %v6635, 16
      %v6942 = vrot.slane %v6940, 5
      %v6943 = vsel %vm469, %v6938, %v6942
      %v6944 = vshrl.u32 %v6635, 16
      %v6946 = vrot.slane %v6944, 4
      %v6947 = vor.u32 %v6946, %v6942
      %v6948 = vrot.slane %v6947, 4
      %v6950 = vshll.u32 %v6636, 16
      %v6952 = vrot.slane %v6950, 5
      %v6953 = vsel %vm469, %v6948, %v6952
      %v6955 = vshrl.u32 %v6637, 16
      %v6957 = vrot.slane %v6955, 4
      %v6958 = vshll.u32 %v6637, 16
      %v6960 = vrot.slane %v6958, 5
      %v6961 = vor.u32 %v6957, %v6960
      %v6962 = vrot.slane %v6961, 4
      %v6964 = vshll.u32 %v6638, 16
      %v6966 = vrot.slane %v6964, 5
      %v6967 = vsel %vm469, %v6962, %v6966
      %v6968 = vshrl.u32 %v6638, 16
      %v6970 = vrot.slane %v6968, 4
      %v6971 = vor.u32 %v6970, %v6966
      %v6972 = vrot.slane %v6971, 4
      %v6974 = vshll.u32 %v6639, 16
      %v6976 = vrot.slane %v6974, 5
      %v6977 = vsel %vm469, %v6972, %v6976
      %v6979 = vshrl.u32 %v6640, 16
      %v6981 = vrot.slane %v6979, 4
      %v6982 = vshll.u32 %v6640, 16
      %v6984 = vrot.slane %v6982, 5
      %v6985 = vor.u32 %v6981, %v6984
      %v6986 = vrot.slane %v6985, 4
      %v6988 = vshll.u32 %v6641, 16
      %v6990 = vrot.slane %v6988, 5
      %v6991 = vsel %vm469, %v6986, %v6990
      %v6992 = vshrl.u32 %v6641, 16
      %v6994 = vrot.slane %v6992, 4
      %v6995 = vor.u32 %v6994, %v6990
      %v6996 = vrot.slane %v6995, 4
      %v6998 = vshll.u32 %v6642, 16
      %v7000 = vrot.slane %v6998, 5
      %v7001 = vsel %vm469, %v6996, %v7000
      %v7003 = vshrl.u32 %v6643, 16
      %v7005 = vrot.slane %v7003, 4
      %v7006 = vshll.u32 %v6643, 16
      %v7008 = vrot.slane %v7006, 5
      %v7009 = vor.u32 %v7005, %v7008
      %v7010 = vrot.slane %v7009, 4
      %v7012 = vshll.u32 %v6644, 16
      %v7014 = vrot.slane %v7012, 5
      %v7015 = vsel %vm469, %v7010, %v7014
      %v7016 = vshrl.u32 %v6644, 16
      %v7018 = vrot.slane %v7016, 4
      %v7019 = vor.u32 %v7018, %v7014
      %v7020 = vrot.slane %v7019, 4
      %v7022 = vshll.u32 %v6645, 16
      %v7024 = vrot.slane %v7022, 5
      %v7025 = vsel %vm469, %v7020, %v7024
      %v7027 = vshrl.u32 %v6646, 16
      %v7029 = vrot.slane %v7027, 4
      %v7030 = vshll.u32 %v6646, 16
      %v7032 = vrot.slane %v7030, 5
      %v7033 = vor.u32 %v7029, %v7032
      %v7034 = vrot.slane %v7033, 4
      %v7036 = vshll.u32 %v6647, 16
      %v7038 = vrot.slane %v7036, 5
      %v7039 = vsel %vm469, %v7034, %v7038
      %v7040 = vshrl.u32 %v6647, 16
      %v7042 = vrot.slane %v7040, 4
      %v7043 = vor.u32 %v7042, %v7038
      %v7044 = vrot.slane %v7043, 4
      %v7046 = vshll.u32 %v6648, 16
      %v7048 = vrot.slane %v7046, 5
      %v7049 = vsel %vm469, %v7044, %v7048
      %v7051 = vshrl.u32 %v6649, 16
      %v7053 = vrot.slane %v7051, 4
      %v7054 = vshll.u32 %v6649, 16
      %v7056 = vrot.slane %v7054, 5
      %v7057 = vor.u32 %v7053, %v7056
      %v7058 = vrot.slane %v7057, 4
      %v7060 = vshll.u32 %v6650, 16
      %v7062 = vrot.slane %v7060, 5
      %v7063 = vsel %vm469, %v7058, %v7062
      %v7064 = vshrl.u32 %v6650, 16
      %v7066 = vrot.slane %v7064, 4
      %v7067 = vor.u32 %v7066, %v7062
      %v7068 = vrot.slane %v7067, 4
      %v7070 = vshll.u32 %v6651, 16
      %v7072 = vrot.slane %v7070, 5
      %v7073 = vsel %vm469, %v7068, %v7072
      %7106 = vst [vmem:[#allocation4 + $0x4] sm:$0xf] %v6703
      %7107 = vst [vmem:[#allocation4 + $0x28] sm:$0xf] %v6713
      %7108 = vst [vmem:[#allocation4 + $0x4c] sm:$0xf] %v6727
      %7109 = vst [vmem:[#allocation4 + $0x70] sm:$0xf] %v6737
      %7110 = vst [vmem:[#allocation4 + $0x94] sm:$0xf] %v6751
      %7111 = vst [vmem:[#allocation4 + $0xb8] sm:$0xf] %v6761
      %7112 = vst [vmem:[#allocation4 + $0xdc] sm:$0xf] %v6775
      %7113 = vst [vmem:[#allocation4 + $0x100] sm:$0xf] %v6785
      %7114 = vst [vmem:[#allocation4 + $0x124] sm:$0xf] %v6799
      %7115 = vst [vmem:[#allocation4 + $0x148] sm:$0xf] %v6809
      %7116 = vst [vmem:[#allocation4 + $0x16c] sm:$0xf] %v6823
      %7117 = vst [vmem:[#allocation4 + $0x190] sm:$0xf] %v6833
      %7118 = vst [vmem:[#allocation4 + $0x1b4] sm:$0xf] %v6847
      %7119 = vst [vmem:[#allocation4 + $0x1d8] sm:$0xf] %v6857
      %7120 = vst [vmem:[#allocation4 + $0x1fc] sm:$0xf] %v6871
      %7121 = vst [vmem:[#allocation4 + $0x220] sm:$0xf] %v6881
      %7122 = vst [vmem:[#allocation4 + $0x244] sm:$0xf] %v6895
      %7123 = vst [vmem:[#allocation4 + $0x268] sm:$0xf] %v6905
      %7124 = vst [vmem:[#allocation4 + $0x28c] sm:$0xf] %v6919
      %7125 = vst [vmem:[#allocation4 + $0x2b0] sm:$0xf] %v6929
      %7126 = vst [vmem:[#allocation4 + $0x2d4] sm:$0xf] %v6943
      %7127 = vst [vmem:[#allocation4 + $0x2f8] sm:$0xf] %v6953
      %7128 = vst [vmem:[#allocation4 + $0x31c] sm:$0xf] %v6967
      %7129 = vst [vmem:[#allocation4 + $0x340] sm:$0xf] %v6977
      %7130 = vst [vmem:[#allocation4 + $0x364] sm:$0xf] %v6991
      %7131 = vst [vmem:[#allocation4 + $0x388] sm:$0xf] %v7001
      %7132 = vst [vmem:[#allocation4 + $0x3ac] sm:$0xf] %v7015
      %7133 = vst [vmem:[#allocation4 + $0x3d0] sm:$0xf] %v7025
      %7134 = vst [vmem:[#allocation4 + $0x3f4] sm:$0xf] %v7039
      %7135 = vst [vmem:[#allocation4 + $0x418] sm:$0xf] %v7049
      %7136 = vst [vmem:[#allocation4 + $0x43c] sm:$0xf] %v7063
      %7137 = vst [vmem:[#allocation4 + $0x460] sm:$0xf] %v7073
      %v7186 = vrot.slane %v6604, 5
      %v7187 = vrot.slane %v7186, 4
      %v7188 = vrot.slane %v6605, 5
      %v7189 = vsel %vm1081, %v7187, %v7188
      %v7190 = vrot.slane %v7188, 4
      %v7191 = vrot.slane %v6606, 5
      %v7192 = vsel %vm1081, %v7190, %v7191
      %v7193 = vrot.slane %v6607, 5
      %v7194 = vrot.slane %v7193, 4
      %v7195 = vrot.slane %v6608, 5
      %v7196 = vsel %vm1081, %v7194, %v7195
      %v7197 = vrot.slane %v7195, 4
      %v7198 = vrot.slane %v6609, 5
      %v7199 = vsel %vm1081, %v7197, %v7198
      %v7200 = vrot.slane %v6610, 5
      %v7201 = vrot.slane %v7200, 4
      %v7202 = vrot.slane %v6611, 5
      %v7203 = vsel %vm1081, %v7201, %v7202
      %v7204 = vrot.slane %v7202, 4
      %v7205 = vrot.slane %v6612, 5
      %v7206 = vsel %vm1081, %v7204, %v7205
      %v7207 = vrot.slane %v6613, 5
      %v7208 = vrot.slane %v7207, 4
      %v7209 = vrot.slane %v6614, 5
      %v7210 = vsel %vm1081, %v7208, %v7209
      %v7211 = vrot.slane %v7209, 4
      %v7212 = vrot.slane %v6615, 5
      %v7213 = vsel %vm1081, %v7211, %v7212
      %v7214 = vrot.slane %v6616, 5
      %v7215 = vrot.slane %v7214, 4
      %v7216 = vrot.slane %v6617, 5
      %v7217 = vsel %vm1081, %v7215, %v7216
      %v7218 = vrot.slane %v7216, 4
      %v7219 = vrot.slane %v6618, 5
      %v7220 = vsel %vm1081, %v7218, %v7219
      %v7221 = vrot.slane %v6619, 5
      %v7222 = vrot.slane %v7221, 4
      %v7223 = vrot.slane %v6620, 5
      %v7224 = vsel %vm1081, %v7222, %v7223
      %v7225 = vrot.slane %v7223, 4
      %v7226 = vrot.slane %v6621, 5
      %v7227 = vsel %vm1081, %v7225, %v7226
      %v7228 = vrot.slane %v6622, 5
      %v7229 = vrot.slane %v7228, 4
      %v7230 = vrot.slane %v6623, 5
      %v7231 = vsel %vm1081, %v7229, %v7230
      %v7232 = vrot.slane %v7230, 4
      %v7233 = vrot.slane %v6624, 5
      %v7234 = vsel %vm1081, %v7232, %v7233
      %v7235 = vrot.slane %v6625, 5
      %v7236 = vrot.slane %v7235, 4
      %v7237 = vrot.slane %v6626, 5
      %v7238 = vsel %vm1081, %v7236, %v7237
      %v7239 = vrot.slane %v7237, 4
      %v7240 = vrot.slane %v6627, 5
      %v7241 = vsel %vm1081, %v7239, %v7240
      %v7242 = vrot.slane %v6628, 5
      %v7243 = vrot.slane %v7242, 4
      %v7244 = vrot.slane %v6629, 5
      %v7245 = vsel %vm1081, %v7243, %v7244
      %v7246 = vrot.slane %v7244, 4
      %v7247 = vrot.slane %v6630, 5
      %v7248 = vsel %vm1081, %v7246, %v7247
      %v7249 = vrot.slane %v6631, 5
      %v7250 = vrot.slane %v7249, 4
      %v7251 = vrot.slane %v6632, 5
      %v7252 = vsel %vm1081, %v7250, %v7251
      %v7253 = vrot.slane %v7251, 4
      %v7254 = vrot.slane %v6633, 5
      %v7255 = vsel %vm1081, %v7253, %v7254
      %v7256 = vrot.slane %v6634, 5
      %v7257 = vrot.slane %v7256, 4
      %v7258 = vrot.slane %v6635, 5
      %v7259 = vsel %vm1081, %v7257, %v7258
      %v7260 = vrot.slane %v7258, 4
      %v7261 = vrot.slane %v6636, 5
      %v7262 = vsel %vm1081, %v7260, %v7261
      %v7263 = vrot.slane %v6637, 5
      %v7264 = vrot.slane %v7263, 4
      %v7265 = vrot.slane %v6638, 5
      %v7266 = vsel %vm1081, %v7264, %v7265
      %v7267 = vrot.slane %v7265, 4
      %v7268 = vrot.slane %v6639, 5
      %v7269 = vsel %vm1081, %v7267, %v7268
      %v7270 = vrot.slane %v6640, 5
      %v7271 = vrot.slane %v7270, 4
      %v7272 = vrot.slane %v6641, 5
      %v7273 = vsel %vm1081, %v7271, %v7272
      %v7274 = vrot.slane %v7272, 4
      %v7275 = vrot.slane %v6642, 5
      %v7276 = vsel %vm1081, %v7274, %v7275
      %v7277 = vrot.slane %v6643, 5
      %v7278 = vrot.slane %v7277, 4
      %v7279 = vrot.slane %v6644, 5
      %v7280 = vsel %vm1081, %v7278, %v7279
      %v7281 = vrot.slane %v7279, 4
      %v7282 = vrot.slane %v6645, 5
      %v7283 = vsel %vm1081, %v7281, %v7282
      %v7284 = vrot.slane %v6646, 5
      %v7285 = vrot.slane %v7284, 4
      %v7286 = vrot.slane %v6647, 5
      %v7287 = vsel %vm1081, %v7285, %v7286
      %v7288 = vrot.slane %v7286, 4
      %v7289 = vrot.slane %v6648, 5
      %v7290 = vsel %vm1081, %v7288, %v7289
      %v7291 = vrot.slane %v6649, 5
      %v7292 = vrot.slane %v7291, 4
      %v7293 = vrot.slane %v6650, 5
      %v7294 = vsel %vm1081, %v7292, %v7293
      %v7295 = vrot.slane %v7293, 4
      %v7296 = vrot.slane %v6651, 5
      %v7297 = vsel %vm1081, %v7295, %v7296
      %7330 = vst [vmem:[#allocation4 + $0x8] sm:$0xf] %v7189
      %7331 = vst [vmem:[#allocation4 + $0x2c] sm:$0xf] %v7192
      %7332 = vst [vmem:[#allocation4 + $0x50] sm:$0xf] %v7196
      %7333 = vst [vmem:[#allocation4 + $0x74] sm:$0xf] %v7199
      %7334 = vst [vmem:[#allocation4 + $0x98] sm:$0xf] %v7203
      %7335 = vst [vmem:[#allocation4 + $0xbc] sm:$0xf] %v7206
      %7336 = vst [vmem:[#allocation4 + $0xe0] sm:$0xf] %v7210
      %7337 = vst [vmem:[#allocation4 + $0x104] sm:$0xf] %v7213
      %7338 = vst [vmem:[#allocation4 + $0x128] sm:$0xf] %v7217
      %7339 = vst [vmem:[#allocation4 + $0x14c] sm:$0xf] %v7220
      %7340 = vst [vmem:[#allocation4 + $0x170] sm:$0xf] %v7224
      %7341 = vst [vmem:[#allocation4 + $0x194] sm:$0xf] %v7227
      %7342 = vst [vmem:[#allocation4 + $0x1b8] sm:$0xf] %v7231
      %7343 = vst [vmem:[#allocation4 + $0x1dc] sm:$0xf] %v7234
      %7344 = vst [vmem:[#allocation4 + $0x200] sm:$0xf] %v7238
      %7345 = vst [vmem:[#allocation4 + $0x224] sm:$0xf] %v7241
      %7346 = vst [vmem:[#allocation4 + $0x248] sm:$0xf] %v7245
      %7347 = vst [vmem:[#allocation4 + $0x26c] sm:$0xf] %v7248
      %7348 = vst [vmem:[#allocation4 + $0x290] sm:$0xf] %v7252
      %7349 = vst [vmem:[#allocation4 + $0x2b4] sm:$0xf] %v7255
      %7350 = vst [vmem:[#allocation4 + $0x2d8] sm:$0xf] %v7259
      %7351 = vst [vmem:[#allocation4 + $0x2fc] sm:$0xf] %v7262
      %7352 = vst [vmem:[#allocation4 + $0x320] sm:$0xf] %v7266
      %7353 = vst [vmem:[#allocation4 + $0x344] sm:$0xf] %v7269
      %7354 = vst [vmem:[#allocation4 + $0x368] sm:$0xf] %v7273
      %7355 = vst [vmem:[#allocation4 + $0x38c] sm:$0xf] %v7276
      %7356 = vst [vmem:[#allocation4 + $0x3b0] sm:$0xf] %v7280
      %7357 = vst [vmem:[#allocation4 + $0x3d4] sm:$0xf] %v7283
      %7358 = vst [vmem:[#allocation4 + $0x3f8] sm:$0xf] %v7287
      %7359 = vst [vmem:[#allocation4 + $0x41c] sm:$0xf] %v7290
      %7360 = vst [vmem:[#allocation4 + $0x440] sm:$0xf] %v7294
      %7361 = vst [vmem:[#allocation4 + $0x464] sm:$0xf] %v7297
      %7362 = vst [vmem:[#allocation4 + $0xc] sm:$0xf] %v6607
      %7363 = vst [vmem:[#allocation4 + $0x30] sm:$0xf] %v6608
      %7364 = vst [vmem:[#allocation4 + $0x54] sm:$0xf] %v6610
      %7365 = vst [vmem:[#allocation4 + $0x78] sm:$0xf] %v6611
      %7366 = vst [vmem:[#allocation4 + $0x9c] sm:$0xf] %v6613
      %7367 = vst [vmem:[#allocation4 + $0xc0] sm:$0xf] %v6614
      %7368 = vst [vmem:[#allocation4 + $0xe4] sm:$0xf] %v6616
      %7369 = vst [vmem:[#allocation4 + $0x108] sm:$0xf] %v6617
      %7370 = vst [vmem:[#allocation4 + $0x12c] sm:$0xf] %v6619
      %7371 = vst [vmem:[#allocation4 + $0x150] sm:$0xf] %v6620
      %7372 = vst [vmem:[#allocation4 + $0x174] sm:$0xf] %v6622
      %7373 = vst [vmem:[#allocation4 + $0x198] sm:$0xf] %v6623
      %7374 = vst [vmem:[#allocation4 + $0x1bc] sm:$0xf] %v6625
      %7375 = vst [vmem:[#allocation4 + $0x1e0] sm:$0xf] %v6626
      %7376 = vst [vmem:[#allocation4 + $0x204] sm:$0xf] %v6628
      %7377 = vst [vmem:[#allocation4 + $0x228] sm:$0xf] %v6629
      %7378 = vst [vmem:[#allocation4 + $0x24c] sm:$0xf] %v6631
      %7379 = vst [vmem:[#allocation4 + $0x270] sm:$0xf] %v6632
      %7380 = vst [vmem:[#allocation4 + $0x294] sm:$0xf] %v6634
      %7381 = vst [vmem:[#allocation4 + $0x2b8] sm:$0xf] %v6635
      %7382 = vst [vmem:[#allocation4 + $0x2dc] sm:$0xf] %v6637
      %7383 = vst [vmem:[#allocation4 + $0x300] sm:$0xf] %v6638
      %7384 = vst [vmem:[#allocation4 + $0x324] sm:$0xf] %v6640
      %7385 = vst [vmem:[#allocation4 + $0x348] sm:$0xf] %v6641
      %7386 = vst [vmem:[#allocation4 + $0x36c] sm:$0xf] %v6643
      %7387 = vst [vmem:[#allocation4 + $0x390] sm:$0xf] %v6644
      %7388 = vst [vmem:[#allocation4 + $0x3b4] sm:$0xf] %v6646
      %7389 = vst [vmem:[#allocation4 + $0x3d8] sm:$0xf] %v6647
      %7390 = vst [vmem:[#allocation4 + $0x3fc] sm:$0xf] %v6649
      %7391 = vst [vmem:[#allocation4 + $0x420] sm:$0xf] %v6650
      %7392 = vst [vmem:[#allocation4 + $0x444] sm:$0xf] %v6652
      %7393 = vst [vmem:[#allocation4 + $0x468] sm:$0xf] %v6653
      %v7395 = vshrl.u32 %v6652, 16
      %v7397 = vrot.slane %v7395, 4
      %v7398 = vshll.u32 %v6652, 16
      %v7400 = vrot.slane %v7398, 5
      %v7401 = vor.u32 %v7397, %v7400
      %v7402 = vrot.slane %v7401, 4
      %v7404 = vshll.u32 %v6653, 16
      %v7406 = vrot.slane %v7404, 5
      %v7407 = vsel %vm469, %v7402, %v7406
      %v7408 = vshrl.u32 %v6653, 16
      %v7410 = vrot.slane %v7408, 4
      %v7411 = vor.u32 %v7410, %v7406
      %v7412 = vrot.slane %v7411, 4
      %v7414 = vshll.u32 %v6654, 16
      %v7416 = vrot.slane %v7414, 5
      %v7417 = vsel %vm469, %v7412, %v7416
      %7420 = vst [vmem:[#allocation4 + $0x10] sm:$0xf] %v6727
      %7421 = vst [vmem:[#allocation4 + $0x34] sm:$0xf] %v6737
      %7422 = vst [vmem:[#allocation4 + $0x58] sm:$0xf] %v6751
      %7423 = vst [vmem:[#allocation4 + $0x7c] sm:$0xf] %v6761
      %7424 = vst [vmem:[#allocation4 + $0xa0] sm:$0xf] %v6775
      %7425 = vst [vmem:[#allocation4 + $0xc4] sm:$0xf] %v6785
      %7426 = vst [vmem:[#allocation4 + $0xe8] sm:$0xf] %v6799
      %7427 = vst [vmem:[#allocation4 + $0x10c] sm:$0xf] %v6809
      %7428 = vst [vmem:[#allocation4 + $0x130] sm:$0xf] %v6823
      %7429 = vst [vmem:[#allocation4 + $0x154] sm:$0xf] %v6833
      %7430 = vst [vmem:[#allocation4 + $0x178] sm:$0xf] %v6847
      %7431 = vst [vmem:[#allocation4 + $0x19c] sm:$0xf] %v6857
      %7432 = vst [vmem:[#allocation4 + $0x1c0] sm:$0xf] %v6871
      %7433 = vst [vmem:[#allocation4 + $0x1e4] sm:$0xf] %v6881
      %7434 = vst [vmem:[#allocation4 + $0x208] sm:$0xf] %v6895
      %7435 = vst [vmem:[#allocation4 + $0x22c] sm:$0xf] %v6905
      %7436 = vst [vmem:[#allocation4 + $0x250] sm:$0xf] %v6919
      %7437 = vst [vmem:[#allocation4 + $0x274] sm:$0xf] %v6929
      %7438 = vst [vmem:[#allocation4 + $0x298] sm:$0xf] %v6943
      %7439 = vst [vmem:[#allocation4 + $0x2bc] sm:$0xf] %v6953
      %7440 = vst [vmem:[#allocation4 + $0x2e0] sm:$0xf] %v6967
      %7441 = vst [vmem:[#allocation4 + $0x304] sm:$0xf] %v6977
      %7442 = vst [vmem:[#allocation4 + $0x328] sm:$0xf] %v6991
      %7443 = vst [vmem:[#allocation4 + $0x34c] sm:$0xf] %v7001
      %7444 = vst [vmem:[#allocation4 + $0x370] sm:$0xf] %v7015
      %7445 = vst [vmem:[#allocation4 + $0x394] sm:$0xf] %v7025
      %7446 = vst [vmem:[#allocation4 + $0x3b8] sm:$0xf] %v7039
      %7447 = vst [vmem:[#allocation4 + $0x3dc] sm:$0xf] %v7049
      %7448 = vst [vmem:[#allocation4 + $0x400] sm:$0xf] %v7063
      %7449 = vst [vmem:[#allocation4 + $0x424] sm:$0xf] %v7073
      %7450 = vst [vmem:[#allocation4 + $0x448] sm:$0xf] %v7407
      %7451 = vst [vmem:[#allocation4 + $0x46c] sm:$0xf] %v7417
      %v7455 = vrot.slane %v6652, 5
      %v7456 = vrot.slane %v7455, 4
      %v7457 = vrot.slane %v6653, 5
      %v7458 = vsel %vm1081, %v7456, %v7457
      %v7459 = vrot.slane %v7457, 4
      %v7460 = vrot.slane %v6654, 5
      %v7461 = vsel %vm1081, %v7459, %v7460
      %7464 = vst [vmem:[#allocation4 + $0x14] sm:$0xf] %v7196
      %7465 = vst [vmem:[#allocation4 + $0x38] sm:$0xf] %v7199
      %7466 = vst [vmem:[#allocation4 + $0x5c] sm:$0xf] %v7203
      %7467 = vst [vmem:[#allocation4 + $0x80] sm:$0xf] %v7206
      %7468 = vst [vmem:[#allocation4 + $0xa4] sm:$0xf] %v7210
      %7469 = vst [vmem:[#allocation4 + $0xc8] sm:$0xf] %v7213
      %7470 = vst [vmem:[#allocation4 + $0xec] sm:$0xf] %v7217
      %7471 = vst [vmem:[#allocation4 + $0x110] sm:$0xf] %v7220
      %7472 = vst [vmem:[#allocation4 + $0x134] sm:$0xf] %v7224
      %7473 = vst [vmem:[#allocation4 + $0x158] sm:$0xf] %v7227
      %7474 = vst [vmem:[#allocation4 + $0x17c] sm:$0xf] %v7231
      %7475 = vst [vmem:[#allocation4 + $0x1a0] sm:$0xf] %v7234
      %7476 = vst [vmem:[#allocation4 + $0x1c4] sm:$0xf] %v7238
      %7477 = vst [vmem:[#allocation4 + $0x1e8] sm:$0xf] %v7241
      %7478 = vst [vmem:[#allocation4 + $0x20c] sm:$0xf] %v7245
      %7479 = vst [vmem:[#allocation4 + $0x230] sm:$0xf] %v7248
      %7480 = vst [vmem:[#allocation4 + $0x254] sm:$0xf] %v7252
      %7481 = vst [vmem:[#allocation4 + $0x278] sm:$0xf] %v7255
      %7482 = vst [vmem:[#allocation4 + $0x29c] sm:$0xf] %v7259
      %7483 = vst [vmem:[#allocation4 + $0x2c0] sm:$0xf] %v7262
      %7484 = vst [vmem:[#allocation4 + $0x2e4] sm:$0xf] %v7266
      %7485 = vst [vmem:[#allocation4 + $0x308] sm:$0xf] %v7269
      %7486 = vst [vmem:[#allocation4 + $0x32c] sm:$0xf] %v7273
      %7487 = vst [vmem:[#allocation4 + $0x350] sm:$0xf] %v7276
      %7488 = vst [vmem:[#allocation4 + $0x374] sm:$0xf] %v7280
      %7489 = vst [vmem:[#allocation4 + $0x398] sm:$0xf] %v7283
      %7490 = vst [vmem:[#allocation4 + $0x3bc] sm:$0xf] %v7287
      %7491 = vst [vmem:[#allocation4 + $0x3e0] sm:$0xf] %v7290
      %7492 = vst [vmem:[#allocation4 + $0x404] sm:$0xf] %v7294
      %7493 = vst [vmem:[#allocation4 + $0x428] sm:$0xf] %v7297
      %7494 = vst [vmem:[#allocation4 + $0x44c] sm:$0xf] %v7458
      %7495 = vst [vmem:[#allocation4 + $0x470] sm:$0xf] %v7461
      %7496 = vst [vmem:[#allocation4 + $0x18] sm:$0xf] %v6610
      %7497 = vst [vmem:[#allocation4 + $0x3c] sm:$0xf] %v6611
      %7498 = vst [vmem:[#allocation4 + $0x60] sm:$0xf] %v6613
      %7499 = vst [vmem:[#allocation4 + $0x84] sm:$0xf] %v6614
      %7500 = vst [vmem:[#allocation4 + $0xa8] sm:$0xf] %v6616
      %7501 = vst [vmem:[#allocation4 + $0xcc] sm:$0xf] %v6617
      %7502 = vst [vmem:[#allocation4 + $0xf0] sm:$0xf] %v6619
      %7503 = vst [vmem:[#allocation4 + $0x114] sm:$0xf] %v6620
      %7504 = vst [vmem:[#allocation4 + $0x138] sm:$0xf] %v6622
      %7505 = vst [vmem:[#allocation4 + $0x15c] sm:$0xf] %v6623
      %7506 = vst [vmem:[#allocation4 + $0x180] sm:$0xf] %v6625
      %7507 = vst [vmem:[#allocation4 + $0x1a4] sm:$0xf] %v6626
      %7508 = vst [vmem:[#allocation4 + $0x1c8] sm:$0xf] %v6628
      %7509 = vst [vmem:[#allocation4 + $0x1ec] sm:$0xf] %v6629
      %7510 = vst [vmem:[#allocation4 + $0x210] sm:$0xf] %v6631
      %7511 = vst [vmem:[#allocation4 + $0x234] sm:$0xf] %v6632
      %7512 = vst [vmem:[#allocation4 + $0x258] sm:$0xf] %v6634
      %7513 = vst [vmem:[#allocation4 + $0x27c] sm:$0xf] %v6635
      %7514 = vst [vmem:[#allocation4 + $0x2a0] sm:$0xf] %v6637
      %7515 = vst [vmem:[#allocation4 + $0x2c4] sm:$0xf] %v6638
      %7516 = vst [vmem:[#allocation4 + $0x2e8] sm:$0xf] %v6640
      %7517 = vst [vmem:[#allocation4 + $0x30c] sm:$0xf] %v6641
      %7518 = vst [vmem:[#allocation4 + $0x330] sm:$0xf] %v6643
      %7519 = vst [vmem:[#allocation4 + $0x354] sm:$0xf] %v6644
      %7520 = vst [vmem:[#allocation4 + $0x378] sm:$0xf] %v6646
      %7521 = vst [vmem:[#allocation4 + $0x39c] sm:$0xf] %v6647
      %7522 = vst [vmem:[#allocation4 + $0x3c0] sm:$0xf] %v6649
      %7523 = vst [vmem:[#allocation4 + $0x3e4] sm:$0xf] %v6650
      %7524 = vst [vmem:[#allocation4 + $0x408] sm:$0xf] %v6652
      %7525 = vst [vmem:[#allocation4 + $0x42c] sm:$0xf] %v6653
      %7526 = vst [vmem:[#allocation4 + $0x450] sm:$0xf] %v6655
      %7527 = vst [vmem:[#allocation4 + $0x474] sm:$0xf] %v6656
      %v7529 = vshrl.u32 %v6655, 16
      %v7531 = vrot.slane %v7529, 4
      %v7532 = vshll.u32 %v6655, 16
      %v7534 = vrot.slane %v7532, 5
      %v7535 = vor.u32 %v7531, %v7534
      %v7536 = vrot.slane %v7535, 4
      %v7538 = vshll.u32 %v6656, 16
      %v7540 = vrot.slane %v7538, 5
      %v7541 = vsel %vm469, %v7536, %v7540
      %v7542 = vshrl.u32 %v6656, 16
      %v7544 = vrot.slane %v7542, 4
      %v7545 = vor.u32 %v7544, %v7540
      %v7546 = vrot.slane %v7545, 4
      %v7548 = vshll.u32 %v6657, 16
      %v7550 = vrot.slane %v7548, 5
      %v7551 = vsel %vm469, %v7546, %v7550
      %7554 = vst [vmem:[#allocation4 + $0x1c] sm:$0xf] %v6751
      %7555 = vst [vmem:[#allocation4 + $0x40] sm:$0xf] %v6761
      %7556 = vst [vmem:[#allocation4 + $0x64] sm:$0xf] %v6775
      %7557 = vst [vmem:[#allocation4 + $0x88] sm:$0xf] %v6785
      %7558 = vst [vmem:[#allocation4 + $0xac] sm:$0xf] %v6799
      %7559 = vst [vmem:[#allocation4 + $0xd0] sm:$0xf] %v6809
      %7560 = vst [vmem:[#allocation4 + $0xf4] sm:$0xf] %v6823
      %7561 = vst [vmem:[#allocation4 + $0x118] sm:$0xf] %v6833
      %7562 = vst [vmem:[#allocation4 + $0x13c] sm:$0xf] %v6847
      %7563 = vst [vmem:[#allocation4 + $0x160] sm:$0xf] %v6857
      %7564 = vst [vmem:[#allocation4 + $0x184] sm:$0xf] %v6871
      %7565 = vst [vmem:[#allocation4 + $0x1a8] sm:$0xf] %v6881
      %7566 = vst [vmem:[#allocation4 + $0x1cc] sm:$0xf] %v6895
      %7567 = vst [vmem:[#allocation4 + $0x1f0] sm:$0xf] %v6905
      %7568 = vst [vmem:[#allocation4 + $0x214] sm:$0xf] %v6919
      %7569 = vst [vmem:[#allocation4 + $0x238] sm:$0xf] %v6929
      %7570 = vst [vmem:[#allocation4 + $0x25c] sm:$0xf] %v6943
      %7571 = vst [vmem:[#allocation4 + $0x280] sm:$0xf] %v6953
      %7572 = vst [vmem:[#allocation4 + $0x2a4] sm:$0xf] %v6967
      %7573 = vst [vmem:[#allocation4 + $0x2c8] sm:$0xf] %v6977
      %7574 = vst [vmem:[#allocation4 + $0x2ec] sm:$0xf] %v6991
      %7575 = vst [vmem:[#allocation4 + $0x310] sm:$0xf] %v7001
      %7576 = vst [vmem:[#allocation4 + $0x334] sm:$0xf] %v7015
      %7577 = vst [vmem:[#allocation4 + $0x358] sm:$0xf] %v7025
      %7578 = vst [vmem:[#allocation4 + $0x37c] sm:$0xf] %v7039
      %7579 = vst [vmem:[#allocation4 + $0x3a0] sm:$0xf] %v7049
      %7580 = vst [vmem:[#allocation4 + $0x3c4] sm:$0xf] %v7063
      %7581 = vst [vmem:[#allocation4 + $0x3e8] sm:$0xf] %v7073
      %7582 = vst [vmem:[#allocation4 + $0x40c] sm:$0xf] %v7407
      %7583 = vst [vmem:[#allocation4 + $0x430] sm:$0xf] %v7417
      %7584 = vst [vmem:[#allocation4 + $0x454] sm:$0xf] %v7541
      %7585 = vst [vmem:[#allocation4 + $0x478] sm:$0xf] %v7551
      %v7589 = vrot.slane %v6655, 5
      %v7590 = vrot.slane %v7589, 4
      %v7591 = vrot.slane %v6656, 5
      %v7592 = vsel %vm1081, %v7590, %v7591
      %v7593 = vrot.slane %v7591, 4
      %v7594 = vrot.slane %v6657, 5
      %v7595 = vsel %vm1081, %v7593, %v7594
      %7598 = vst [vmem:[#allocation4 + $0x20] sm:$0xf] %v7203
      %7599 = vst [vmem:[#allocation4 + $0x44] sm:$0xf] %v7206
      %7600 = vst [vmem:[#allocation4 + $0x68] sm:$0xf] %v7210
      %7601 = vst [vmem:[#allocation4 + $0x8c] sm:$0xf] %v7213
      %7602 = vst [vmem:[#allocation4 + $0xb0] sm:$0xf] %v7217
      %7603 = vst [vmem:[#allocation4 + $0xd4] sm:$0xf] %v7220
      %7604 = vst [vmem:[#allocation4 + $0xf8] sm:$0xf] %v7224
      %7605 = vst [vmem:[#allocation4 + $0x11c] sm:$0xf] %v7227
      %7606 = vst [vmem:[#allocation4 + $0x140] sm:$0xf] %v7231
      %7607 = vst [vmem:[#allocation4 + $0x164] sm:$0xf] %v7234
      %7608 = vst [vmem:[#allocation4 + $0x188] sm:$0xf] %v7238
      %7609 = vst [vmem:[#allocation4 + $0x1ac] sm:$0xf] %v7241
      %7610 = vst [vmem:[#allocation4 + $0x1d0] sm:$0xf] %v7245
      %7611 = vst [vmem:[#allocation4 + $0x1f4] sm:$0xf] %v7248
      %7612 = vst [vmem:[#allocation4 + $0x218] sm:$0xf] %v7252
      %7613 = vst [vmem:[#allocation4 + $0x23c] sm:$0xf] %v7255
      %7614 = vst [vmem:[#allocation4 + $0x260] sm:$0xf] %v7259
      %7615 = vst [vmem:[#allocation4 + $0x284] sm:$0xf] %v7262
      %7616 = vst [vmem:[#allocation4 + $0x2a8] sm:$0xf] %v7266
      %7617 = vst [vmem:[#allocation4 + $0x2cc] sm:$0xf] %v7269
      %7618 = vst [vmem:[#allocation4 + $0x2f0] sm:$0xf] %v7273
      %7619 = vst [vmem:[#allocation4 + $0x314] sm:$0xf] %v7276
      %7620 = vst [vmem:[#allocation4 + $0x338] sm:$0xf] %v7280
      %7621 = vst [vmem:[#allocation4 + $0x35c] sm:$0xf] %v7283
      %7622 = vst [vmem:[#allocation4 + $0x380] sm:$0xf] %v7287
      %7623 = vst [vmem:[#allocation4 + $0x3a4] sm:$0xf] %v7290
      %7624 = vst [vmem:[#allocation4 + $0x3c8] sm:$0xf] %v7294
      %7625 = vst [vmem:[#allocation4 + $0x3ec] sm:$0xf] %v7297
      %7626 = vst [vmem:[#allocation4 + $0x410] sm:$0xf] %v7458
      %7627 = vst [vmem:[#allocation4 + $0x434] sm:$0xf] %v7461
      %7628 = vst [vmem:[#allocation4 + $0x458] sm:$0xf] %v7592
      %7629 = vst [vmem:[#allocation4 + $0x47c] sm:$0xf] %v7595
      %v7630 = vld [vmem:[#allocation4] sm:$0xff]
      %v7631 = vld [vmem:[#allocation4 + $0x8] sm:$0xff]
      %v7632 = vld [vmem:[#allocation4 + $0x10] sm:$0xff]
      %v7633 = vld [vmem:[#allocation4 + $0x18] sm:$0xff]
      %v7634 = vld [vmem:[#allocation4 + $0x20] sm:$0xf]
      %v7635 = vld [vmem:[#allocation4 + $0x24] sm:$0xff]
      %v7636 = vld [vmem:[#allocation4 + $0x2c] sm:$0xff]
      %v7637 = vld [vmem:[#allocation4 + $0x34] sm:$0xff]
      %v7638 = vld [vmem:[#allocation4 + $0x3c] sm:$0xff]
      %v7639 = vld [vmem:[#allocation4 + $0x44] sm:$0xf]
      %v7640 = vld [vmem:[#allocation4 + $0x48] sm:$0xff]
      %v7641 = vld [vmem:[#allocation4 + $0x50] sm:$0xff]
      %v7642 = vld [vmem:[#allocation4 + $0x58] sm:$0xff]
      %v7643 = vld [vmem:[#allocation4 + $0x60] sm:$0xff]
      %v7644 = vld [vmem:[#allocation4 + $0x68] sm:$0xf]
      %v7645 = vld [vmem:[#allocation4 + $0x6c] sm:$0xff]
      %v7646 = vld [vmem:[#allocation4 + $0x74] sm:$0xff]
      %v7647 = vld [vmem:[#allocation4 + $0x7c] sm:$0xff]
      %v7648 = vld [vmem:[#allocation4 + $0x84] sm:$0xff]
      %v7649 = vld [vmem:[#allocation4 + $0x8c] sm:$0xf]
      %v7650 = vld [vmem:[#allocation4 + $0x90] sm:$0xff]
      %v7651 = vld [vmem:[#allocation4 + $0x98] sm:$0xff]
      %v7652 = vld [vmem:[#allocation4 + $0xa0] sm:$0xff]
      %v7653 = vld [vmem:[#allocation4 + $0xa8] sm:$0xff]
      %v7654 = vld [vmem:[#allocation4 + $0xb0] sm:$0xf]
      %v7655 = vld [vmem:[#allocation4 + $0xb4] sm:$0xff]
      %v7656 = vld [vmem:[#allocation4 + $0xbc] sm:$0xff]
      %v7657 = vld [vmem:[#allocation4 + $0xc4] sm:$0xff]
      %v7658 = vld [vmem:[#allocation4 + $0xcc] sm:$0xff]
      %v7659 = vld [vmem:[#allocation4 + $0xd4] sm:$0xf]
      %v7660 = vld [vmem:[#allocation4 + $0xd8] sm:$0xff]
      %v7661 = vld [vmem:[#allocation4 + $0xe0] sm:$0xff]
      %v7662 = vld [vmem:[#allocation4 + $0xe8] sm:$0xff]
      %v7663 = vld [vmem:[#allocation4 + $0xf0] sm:$0xff]
      %v7664 = vld [vmem:[#allocation4 + $0xf8] sm:$0xf]
      %v7665 = vld [vmem:[#allocation4 + $0xfc] sm:$0xff]
      %v7666 = vld [vmem:[#allocation4 + $0x104] sm:$0xff]
      %v7667 = vld [vmem:[#allocation4 + $0x10c] sm:$0xff]
      %v7668 = vld [vmem:[#allocation4 + $0x114] sm:$0xff]
      %v7669 = vld [vmem:[#allocation4 + $0x11c] sm:$0xf]
      %v7670 = vld [vmem:[#allocation4 + $0x120] sm:$0xff]
      %v7671 = vld [vmem:[#allocation4 + $0x128] sm:$0xff]
      %v7672 = vld [vmem:[#allocation4 + $0x130] sm:$0xff]
      %v7673 = vld [vmem:[#allocation4 + $0x138] sm:$0xff]
      %v7674 = vld [vmem:[#allocation4 + $0x140] sm:$0xf]
      %v7675 = vld [vmem:[#allocation4 + $0x144] sm:$0xff]
      %v7676 = vld [vmem:[#allocation4 + $0x14c] sm:$0xff]
      %v7677 = vld [vmem:[#allocation4 + $0x154] sm:$0xff]
      %v7678 = vld [vmem:[#allocation4 + $0x15c] sm:$0xff]
      %v7679 = vld [vmem:[#allocation4 + $0x164] sm:$0xf]
      %v7680 = vld [vmem:[#allocation4 + $0x168] sm:$0xff]
      %v7681 = vld [vmem:[#allocation4 + $0x170] sm:$0xff]
      %v7682 = vld [vmem:[#allocation4 + $0x178] sm:$0xff]
      %v7683 = vld [vmem:[#allocation4 + $0x180] sm:$0xff]
      %v7684 = vld [vmem:[#allocation4 + $0x188] sm:$0xf]
      %v7685 = vld [vmem:[#allocation4 + $0x18c] sm:$0xff]
      %v7686 = vld [vmem:[#allocation4 + $0x194] sm:$0xff]
      %v7687 = vld [vmem:[#allocation4 + $0x19c] sm:$0xff]
      %v7688 = vld [vmem:[#allocation4 + $0x1a4] sm:$0xff]
      %v7689 = vld [vmem:[#allocation4 + $0x1ac] sm:$0xf]
      %v7690 = vld [vmem:[#allocation4 + $0x1b0] sm:$0xff]
      %v7691 = vld [vmem:[#allocation4 + $0x1b8] sm:$0xff]
      %v7692 = vld [vmem:[#allocation4 + $0x1c0] sm:$0xff]
      %v7693 = vld [vmem:[#allocation4 + $0x1c8] sm:$0xff]
      %v7694 = vld [vmem:[#allocation4 + $0x1d0] sm:$0xf]
      %v7695 = vld [vmem:[#allocation4 + $0x1d4] sm:$0xff]
      %v7696 = vld [vmem:[#allocation4 + $0x1dc] sm:$0xff]
      %v7697 = vld [vmem:[#allocation4 + $0x1e4] sm:$0xff]
      %v7698 = vld [vmem:[#allocation4 + $0x1ec] sm:$0xff]
      %v7699 = vld [vmem:[#allocation4 + $0x1f4] sm:$0xf]
      %v7700 = vld [vmem:[#allocation4 + $0x1f8] sm:$0xff]
      %v7701 = vld [vmem:[#allocation4 + $0x200] sm:$0xff]
      %v7702 = vld [vmem:[#allocation4 + $0x208] sm:$0xff]
      %v7703 = vld [vmem:[#allocation4 + $0x210] sm:$0xff]
      %v7704 = vld [vmem:[#allocation4 + $0x218] sm:$0xf]
      %v7705 = vld [vmem:[#allocation4 + $0x21c] sm:$0xff]
      %v7706 = vld [vmem:[#allocation4 + $0x224] sm:$0xff]
      %v7707 = vld [vmem:[#allocation4 + $0x22c] sm:$0xff]
      %v7708 = vld [vmem:[#allocation4 + $0x234] sm:$0xff]
      %v7709 = vld [vmem:[#allocation4 + $0x23c] sm:$0xf]
      %v7710 = vld [vmem:[#allocation4 + $0x240] sm:$0xff]
      %v7711 = vld [vmem:[#allocation4 + $0x248] sm:$0xff]
      %v7712 = vld [vmem:[#allocation4 + $0x250] sm:$0xff]
      %v7713 = vld [vmem:[#allocation4 + $0x258] sm:$0xff]
      %v7714 = vld [vmem:[#allocation4 + $0x260] sm:$0xf]
      %v7715 = vld [vmem:[#allocation4 + $0x264] sm:$0xff]
      %v7716 = vld [vmem:[#allocation4 + $0x26c] sm:$0xff]
      %v7717 = vld [vmem:[#allocation4 + $0x274] sm:$0xff]
      %v7718 = vld [vmem:[#allocation4 + $0x27c] sm:$0xff]
      %v7719 = vld [vmem:[#allocation4 + $0x284] sm:$0xf]
      %v7720 = vld [vmem:[#allocation4 + $0x288] sm:$0xff]
      %v7721 = vld [vmem:[#allocation4 + $0x290] sm:$0xff]
      %v7722 = vld [vmem:[#allocation4 + $0x298] sm:$0xff]
      %v7723 = vld [vmem:[#allocation4 + $0x2a0] sm:$0xff]
      %v7724 = vld [vmem:[#allocation4 + $0x2a8] sm:$0xf]
      %v7725 = vld [vmem:[#allocation4 + $0x2ac] sm:$0xff]
      %v7726 = vld [vmem:[#allocation4 + $0x2b4] sm:$0xff]
      %v7727 = vld [vmem:[#allocation4 + $0x2bc] sm:$0xff]
      %v7728 = vld [vmem:[#allocation4 + $0x2c4] sm:$0xff]
      %v7729 = vld [vmem:[#allocation4 + $0x2cc] sm:$0xf]
      %v7730 = vld [vmem:[#allocation4 + $0x2d0] sm:$0xff]
      %v7731 = vld [vmem:[#allocation4 + $0x2d8] sm:$0xff]
      %v7732 = vld [vmem:[#allocation4 + $0x2e0] sm:$0xff]
      %v7733 = vld [vmem:[#allocation4 + $0x2e8] sm:$0xff]
      %v7734 = vld [vmem:[#allocation4 + $0x2f0] sm:$0xf]
      %v7735 = vld [vmem:[#allocation4 + $0x2f4] sm:$0xff]
      %v7736 = vld [vmem:[#allocation4 + $0x2fc] sm:$0xff]
      %v7737 = vld [vmem:[#allocation4 + $0x304] sm:$0xff]
      %v7738 = vld [vmem:[#allocation4 + $0x30c] sm:$0xff]
      %v7739 = vld [vmem:[#allocation4 + $0x314] sm:$0xf]
      %v7740 = vld [vmem:[#allocation4 + $0x318] sm:$0xff]
      %v7741 = vld [vmem:[#allocation4 + $0x320] sm:$0xff]
      %v7742 = vld [vmem:[#allocation4 + $0x328] sm:$0xff]
      %v7743 = vld [vmem:[#allocation4 + $0x330] sm:$0xff]
      %v7744 = vld [vmem:[#allocation4 + $0x338] sm:$0xf]
      %v7745 = vld [vmem:[#allocation4 + $0x33c] sm:$0xff]
      %v7746 = vld [vmem:[#allocation4 + $0x344] sm:$0xff]
      %v7747 = vld [vmem:[#allocation4 + $0x34c] sm:$0xff]
      %v7748 = vld [vmem:[#allocation4 + $0x354] sm:$0xff]
      %v7749 = vld [vmem:[#allocation4 + $0x35c] sm:$0xf]
      %v7750 = vld [vmem:[#allocation4 + $0x360] sm:$0xff]
      %v7751 = vld [vmem:[#allocation4 + $0x368] sm:$0xff]
      %v7752 = vld [vmem:[#allocation4 + $0x370] sm:$0xff]
      %v7753 = vld [vmem:[#allocation4 + $0x378] sm:$0xff]
      %v7754 = vld [vmem:[#allocation4 + $0x380] sm:$0xf]
      %v7755 = vld [vmem:[#allocation4 + $0x384] sm:$0xff]
      %v7756 = vld [vmem:[#allocation4 + $0x38c] sm:$0xff]
      %v7757 = vld [vmem:[#allocation4 + $0x394] sm:$0xff]
      %v7758 = vld [vmem:[#allocation4 + $0x39c] sm:$0xff]
      %v7759 = vld [vmem:[#allocation4 + $0x3a4] sm:$0xf]
      %v7760 = vld [vmem:[#allocation4 + $0x3a8] sm:$0xff]
      %v7761 = vld [vmem:[#allocation4 + $0x3b0] sm:$0xff]
      %v7762 = vld [vmem:[#allocation4 + $0x3b8] sm:$0xff]
      %v7763 = vld [vmem:[#allocation4 + $0x3c0] sm:$0xff]
      %v7764 = vld [vmem:[#allocation4 + $0x3c8] sm:$0xf]
      %v7765 = vld [vmem:[#allocation4 + $0x3cc] sm:$0xff]
      %v7766 = vld [vmem:[#allocation4 + $0x3d4] sm:$0xff]
      %v7767 = vld [vmem:[#allocation4 + $0x3dc] sm:$0xff]
      %v7768 = vld [vmem:[#allocation4 + $0x3e4] sm:$0xff]
      %v7769 = vld [vmem:[#allocation4 + $0x3ec] sm:$0xf]
      %v7770 = vld [vmem:[#allocation4 + $0x3f0] sm:$0xff]
      %v7771 = vld [vmem:[#allocation4 + $0x3f8] sm:$0xff]
      %v7772 = vld [vmem:[#allocation4 + $0x400] sm:$0xff]
      %v7773 = vld [vmem:[#allocation4 + $0x408] sm:$0xff]
      %v7774 = vld [vmem:[#allocation4 + $0x410] sm:$0xf]
      %v7775 = vld [vmem:[#allocation4 + $0x414] sm:$0xff]
      %v7776 = vld [vmem:[#allocation4 + $0x41c] sm:$0xff]
      %v7777 = vld [vmem:[#allocation4 + $0x424] sm:$0xff]
      %v7778 = vld [vmem:[#allocation4 + $0x42c] sm:$0xff]
      %v7779 = vld [vmem:[#allocation4 + $0x434] sm:$0xf]
      %v7780 = vld [vmem:[#allocation4 + $0x438] sm:$0xff]
      %v7781 = vld [vmem:[#allocation4 + $0x440] sm:$0xff]
      %v7782 = vld [vmem:[#allocation4 + $0x448] sm:$0xff]
      %v7783 = vld [vmem:[#allocation4 + $0x450] sm:$0xff]
      %v7784 = vld [vmem:[#allocation4 + $0x458] sm:$0xf]
      %v7785 = vld [vmem:[#allocation4 + $0x45c] sm:$0xff]
      %v7786 = vld [vmem:[#allocation4 + $0x464] sm:$0xff]
      %v7787 = vld [vmem:[#allocation4 + $0x46c] sm:$0xff]
      %v7788 = vld [vmem:[#allocation4 + $0x474] sm:$0xff]
      %v7789 = vld [vmem:[#allocation4 + $0x47c] sm:$0xf]
      %v7790 = vld [vmem:[%s6] sm:$0xf]
      %v7791 = vld [vmem:[%s6 + $0x4] sm:$0xf]
      %v7792 = vld [vmem:[%s6 + $0x8] sm:$0xf]
      %v7793 = vld [vmem:[%s6 + $0xc] sm:$0xf]
      %v7794 = vld [vmem:[%s6 + $0x10] sm:$0xf]
      %v7795 = vld [vmem:[%s6 + $0x14] sm:$0xf]
      %v7796 = vld [vmem:[%s6 + $0x18] sm:$0xf]
      %v7797 = vld [vmem:[%s6 + $0x1c] sm:$0xf]
      %v7798 = vld [vmem:[%s6 + $0x20] sm:$0xf]
      %v7799 = vld [vmem:[%s6 + $0x24] sm:$0xf]
      %v7800 = vld [vmem:[%s6 + $0x28] sm:$0xf]
      %v7801 = vld [vmem:[%s6 + $0x2c] sm:$0xf]
      %v7802 = vld [vmem:[%s6 + $0x30] sm:$0xf]
      %v7803 = vld [vmem:[%s6 + $0x34] sm:$0xf]
      %v7804 = vld [vmem:[%s6 + $0x38] sm:$0xf]
      %v7805 = vld [vmem:[%s6 + $0x3c] sm:$0xf]
      %v7806 = vld [vmem:[%s6 + $0x40] sm:$0xf]
      %v7807 = vld [vmem:[%s6 + $0x44] sm:$0xf]
      %v7808 = vld [vmem:[%s6 + $0x48] sm:$0xf]
      %v7809 = vld [vmem:[%s6 + $0x4c] sm:$0xf]
      %v7810 = vld [vmem:[%s6 + $0x50] sm:$0xf]
      %v7811 = vld [vmem:[%s6 + $0x54] sm:$0xf]
      %v7812 = vld [vmem:[%s6 + $0x58] sm:$0xf]
      %v7813 = vld [vmem:[%s6 + $0x5c] sm:$0xf]
      %v7814 = vld [vmem:[%s6 + $0x60] sm:$0xf]
      %v7815 = vld [vmem:[%s6 + $0x64] sm:$0xf]
      %v7816 = vld [vmem:[%s6 + $0x68] sm:$0xf]
      %v7817 = vld [vmem:[%s6 + $0x6c] sm:$0xf]
      %v7818 = vld [vmem:[%s6 + $0x70] sm:$0xf]
      %v7819 = vld [vmem:[%s6 + $0x74] sm:$0xf]
      %v7820 = vld [vmem:[%s6 + $0x78] sm:$0xf]
      %v7821 = vld [vmem:[%s6 + $0x7c] sm:$0xf]
      %v7822 = vld [vmem:[%s6 + $0x80] sm:$0xf]
      %v7823 = vld [vmem:[%s6 + $0x84] sm:$0xf]
      %v7824 = vld [vmem:[%s6 + $0x88] sm:$0xf]
      %v7825 = vld [vmem:[%s6 + $0x8c] sm:$0xf]
      %v7826 = vld [vmem:[%s6 + $0x90] sm:$0xf]
      %v7827 = vld [vmem:[%s6 + $0x94] sm:$0xf]
      %v7828 = vld [vmem:[%s6 + $0x98] sm:$0xf]
      %v7829 = vld [vmem:[%s6 + $0x9c] sm:$0xf]
      %v7830 = vld [vmem:[%s6 + $0xa0] sm:$0xf]
      %v7831 = vld [vmem:[%s6 + $0xa4] sm:$0xf]
      %v7832 = vld [vmem:[%s6 + $0xa8] sm:$0xf]
      %v7833 = vld [vmem:[%s6 + $0xac] sm:$0xf]
      %v7834 = vld [vmem:[%s6 + $0xb0] sm:$0xf]
      %v7835 = vld [vmem:[%s6 + $0xb4] sm:$0xf]
      %v7836 = vld [vmem:[%s6 + $0xb8] sm:$0xf]
      %v7837 = vld [vmem:[%s6 + $0xbc] sm:$0xf]
      %v7838 = vld [vmem:[%s6 + $0xc0] sm:$0xf]
      %v7839 = vld [vmem:[%s6 + $0xc4] sm:$0xf]
      %v7840 = vld [vmem:[%s6 + $0xc8] sm:$0xf]
      %v7841 = vld [vmem:[%s6 + $0xcc] sm:$0xf]
      %v7842 = vld [vmem:[%s6 + $0xd0] sm:$0xf]
      %v7843 = vld [vmem:[%s6 + $0xd4] sm:$0xf]
      %v7844 = vld [vmem:[%s6 + $0xd8] sm:$0xf]
      %v7845 = vld [vmem:[%s6 + $0xdc] sm:$0xf]
      %v7846 = vld [vmem:[%s6 + $0xe0] sm:$0xf]
      %v7847 = vld [vmem:[%s6 + $0xe4] sm:$0xf]
      %v7848 = vld [vmem:[%s6 + $0xe8] sm:$0xf]
      %v7849 = vld [vmem:[%s6 + $0xec] sm:$0xf]
      %v7850 = vld [vmem:[%s6 + $0xf0] sm:$0xf]
      %v7851 = vld [vmem:[%s6 + $0xf4] sm:$0xf]
      %v7852 = vld [vmem:[%s6 + $0xf8] sm:$0xf]
      %v7853 = vld [vmem:[%s6 + $0xfc] sm:$0xf]
      %v7854 = vld [vmem:[%s6 + $0x100] sm:$0xf]
      %v7855 = vld [vmem:[%s6 + $0x104] sm:$0xf]
      %v7856 = vld [vmem:[%s6 + $0x108] sm:$0xf]
      %v7857 = vld [vmem:[%s6 + $0x10c] sm:$0xf]
      %v7858 = vld [vmem:[%s6 + $0x110] sm:$0xf]
      %v7859 = vld [vmem:[%s6 + $0x114] sm:$0xf]
      %v7860 = vld [vmem:[%s6 + $0x118] sm:$0xf]
      %v7861 = vld [vmem:[%s6 + $0x11c] sm:$0xf]
      %v7862 = vld [vmem:[%s6 + $0x120] sm:$0xf]
      %v7863 = vld [vmem:[%s6 + $0x124] sm:$0xf]
      %v7864 = vld [vmem:[%s6 + $0x128] sm:$0xf]
      %v7865 = vld [vmem:[%s6 + $0x12c] sm:$0xf]
      %v7866 = vld [vmem:[%s6 + $0x130] sm:$0xf]
      %v7867 = vld [vmem:[%s6 + $0x134] sm:$0xf]
      %v7868 = vld [vmem:[%s6 + $0x138] sm:$0xf]
      %v7869 = vld [vmem:[%s6 + $0x13c] sm:$0xf]
      %v7870 = vld [vmem:[%s6 + $0x140] sm:$0xf]
      %v7871 = vld [vmem:[%s6 + $0x144] sm:$0xf]
      %v7872 = vld [vmem:[%s6 + $0x148] sm:$0xf]
      %v7873 = vld [vmem:[%s6 + $0x14c] sm:$0xf]
      %v7874 = vld [vmem:[%s6 + $0x150] sm:$0xf]
      %v7875 = vld [vmem:[%s6 + $0x154] sm:$0xf]
      %v7876 = vld [vmem:[%s6 + $0x158] sm:$0xf]
      %v7877 = vld [vmem:[%s6 + $0x15c] sm:$0xf]
      %v7878 = vld [vmem:[%s6 + $0x160] sm:$0xf]
      %v7879 = vld [vmem:[%s6 + $0x164] sm:$0xf]
      %v7880 = vld [vmem:[%s6 + $0x168] sm:$0xf]
      %v7881 = vld [vmem:[%s6 + $0x16c] sm:$0xf]
      %v7882 = vld [vmem:[%s6 + $0x170] sm:$0xf]
      %v7883 = vld [vmem:[%s6 + $0x174] sm:$0xf]
      %v7884 = vld [vmem:[%s6 + $0x178] sm:$0xf]
      %v7885 = vld [vmem:[%s6 + $0x17c] sm:$0xf]
      %v7886 = vld [vmem:[%s6 + $0x180] sm:$0xf]
      %v7887 = vld [vmem:[%s6 + $0x184] sm:$0xf]
      %v7888 = vld [vmem:[%s6 + $0x188] sm:$0xf]
      %v7889 = vld [vmem:[%s6 + $0x18c] sm:$0xf]
      %v7890 = vld [vmem:[%s6 + $0x190] sm:$0xf]
      %v7891 = vld [vmem:[%s6 + $0x194] sm:$0xf]
      %v7892 = vld [vmem:[%s6 + $0x198] sm:$0xf]
      %v7893 = vld [vmem:[%s6 + $0x19c] sm:$0xf]
      %v7894 = vld [vmem:[%s6 + $0x1a0] sm:$0xf]
      %v7895 = vld [vmem:[%s6 + $0x1a4] sm:$0xf]
      %v7896 = vld [vmem:[%s6 + $0x1a8] sm:$0xf]
      %v7897 = vld [vmem:[%s6 + $0x1ac] sm:$0xf]
      %v7898 = vld [vmem:[%s6 + $0x1b0] sm:$0xf]
      %v7899 = vld [vmem:[%s6 + $0x1b4] sm:$0xf]
      %v7900 = vld [vmem:[%s6 + $0x1b8] sm:$0xf]
      %v7901 = vld [vmem:[%s6 + $0x1bc] sm:$0xf]
      %v7902 = vld [vmem:[%s6 + $0x1c0] sm:$0xf]
      %v7903 = vld [vmem:[%s6 + $0x1c4] sm:$0xf]
      %v7904 = vld [vmem:[%s6 + $0x1c8] sm:$0xf]
      %v7905 = vld [vmem:[%s6 + $0x1cc] sm:$0xf]
      %v7906 = vld [vmem:[%s6 + $0x1d0] sm:$0xf]
      %v7907 = vld [vmem:[%s6 + $0x1d4] sm:$0xf]
      %v7908 = vld [vmem:[%s6 + $0x1d8] sm:$0xf]
      %v7909 = vld [vmem:[%s6 + $0x1dc] sm:$0xf]
      %v7910 = vld [vmem:[%s6 + $0x1e0] sm:$0xf]
      %v7911 = vld [vmem:[%s6 + $0x1e4] sm:$0xf]
      %v7912 = vld [vmem:[%s6 + $0x1e8] sm:$0xf]
      %v7913 = vld [vmem:[%s6 + $0x1ec] sm:$0xf]
      %v7914 = vld [vmem:[%s6 + $0x1f0] sm:$0xf]
      %v7915 = vld [vmem:[%s6 + $0x1f4] sm:$0xf]
      %v7916 = vld [vmem:[%s6 + $0x1f8] sm:$0xf]
      %v7917 = vld [vmem:[%s6 + $0x1fc] sm:$0xf]
      %v7918 = vld [vmem:[%s6 + $0x200] sm:$0xf]
      %v7919 = vld [vmem:[%s6 + $0x204] sm:$0xf]
      %v7920 = vld [vmem:[%s6 + $0x208] sm:$0xf]
      %v7921 = vld [vmem:[%s6 + $0x20c] sm:$0xf]
      %v7922 = vld [vmem:[%s6 + $0x210] sm:$0xf]
      %v7923 = vld [vmem:[%s6 + $0x214] sm:$0xf]
      %v7924 = vld [vmem:[%s6 + $0x218] sm:$0xf]
      %v7925 = vld [vmem:[%s6 + $0x21c] sm:$0xf]
      %v7926 = vld [vmem:[%s6 + $0x220] sm:$0xf]
      %v7927 = vld [vmem:[%s6 + $0x224] sm:$0xf]
      %v7928 = vld [vmem:[%s6 + $0x228] sm:$0xf]
      %v7929 = vld [vmem:[%s6 + $0x22c] sm:$0xf]
      %v7930 = vld [vmem:[%s6 + $0x230] sm:$0xf]
      %v7931 = vld [vmem:[%s6 + $0x234] sm:$0xf]
      %v7932 = vld [vmem:[%s6 + $0x238] sm:$0xf]
      %v7933 = vld [vmem:[%s6 + $0x23c] sm:$0xf]
      %v8094 = vunpack.c.l.b16 %v7630
      %v8095 = vunpack.c.h.b16 %v7630
      %v8096 = vunpack.c.l.b16 %v7631
      %v8097 = vunpack.c.h.b16 %v7631
      %v8098 = vunpack.c.l.b16 %v7632
      %v8099 = vunpack.c.h.b16 %v7632
      %v8100 = vunpack.c.l.b16 %v7633
      %v8101 = vunpack.c.h.b16 %v7633
      %v8102 = vunpack.c.l.b16 %v7634
      %v8103 = vunpack.c.l.b16 %v7635
      %v8104 = vunpack.c.h.b16 %v7635
      %v8105 = vunpack.c.l.b16 %v7636
      %v8106 = vunpack.c.h.b16 %v7636
      %v8107 = vunpack.c.l.b16 %v7637
      %v8108 = vunpack.c.h.b16 %v7637
      %v8109 = vunpack.c.l.b16 %v7638
      %v8110 = vunpack.c.h.b16 %v7638
      %v8111 = vunpack.c.l.b16 %v7639
      %v8112 = vunpack.c.l.b16 %v7640
      %v8113 = vunpack.c.h.b16 %v7640
      %v8114 = vunpack.c.l.b16 %v7641
      %v8115 = vunpack.c.h.b16 %v7641
      %v8116 = vunpack.c.l.b16 %v7642
      %v8117 = vunpack.c.h.b16 %v7642
      %v8118 = vunpack.c.l.b16 %v7643
      %v8119 = vunpack.c.h.b16 %v7643
      %v8120 = vunpack.c.l.b16 %v7644
      %v8121 = vunpack.c.l.b16 %v7645
      %v8122 = vunpack.c.h.b16 %v7645
      %v8123 = vunpack.c.l.b16 %v7646
      %v8124 = vunpack.c.h.b16 %v7646
      %v8125 = vunpack.c.l.b16 %v7647
      %v8126 = vunpack.c.h.b16 %v7647
      %v8127 = vunpack.c.l.b16 %v7648
      %v8128 = vunpack.c.h.b16 %v7648
      %v8129 = vunpack.c.l.b16 %v7649
      %v8130 = vunpack.c.l.b16 %v7650
      %v8131 = vunpack.c.h.b16 %v7650
      %v8132 = vunpack.c.l.b16 %v7651
      %v8133 = vunpack.c.h.b16 %v7651
      %v8134 = vunpack.c.l.b16 %v7652
      %v8135 = vunpack.c.h.b16 %v7652
      %v8136 = vunpack.c.l.b16 %v7653
      %v8137 = vunpack.c.h.b16 %v7653
      %v8138 = vunpack.c.l.b16 %v7654
      %v8139 = vunpack.c.l.b16 %v7655
      %v8140 = vunpack.c.h.b16 %v7655
      %v8141 = vunpack.c.l.b16 %v7656
      %v8142 = vunpack.c.h.b16 %v7656
      %v8143 = vunpack.c.l.b16 %v7657
      %v8144 = vunpack.c.h.b16 %v7657
      %v8145 = vunpack.c.l.b16 %v7658
      %v8146 = vunpack.c.h.b16 %v7658
      %v8147 = vunpack.c.l.b16 %v7659
      %v8148 = vunpack.c.l.b16 %v7660
      %v8149 = vunpack.c.h.b16 %v7660
      %v8150 = vunpack.c.l.b16 %v7661
      %v8151 = vunpack.c.h.b16 %v7661
      %v8152 = vunpack.c.l.b16 %v7662
      %v8153 = vunpack.c.h.b16 %v7662
      %v8154 = vunpack.c.l.b16 %v7663
      %v8155 = vunpack.c.h.b16 %v7663
      %v8156 = vunpack.c.l.b16 %v7664
      %v8157 = vunpack.c.l.b16 %v7665
      %v8158 = vunpack.c.h.b16 %v7665
      %v8159 = vunpack.c.l.b16 %v7666
      %v8160 = vunpack.c.h.b16 %v7666
      %v8161 = vunpack.c.l.b16 %v7667
      %v8162 = vunpack.c.h.b16 %v7667
      %v8163 = vunpack.c.l.b16 %v7668
      %v8164 = vunpack.c.h.b16 %v7668
      %v8165 = vunpack.c.l.b16 %v7669
      %v8166 = vunpack.c.l.b16 %v7670
      %v8167 = vunpack.c.h.b16 %v7670
      %v8168 = vunpack.c.l.b16 %v7671
      %v8169 = vunpack.c.h.b16 %v7671
      %v8170 = vunpack.c.l.b16 %v7672
      %v8171 = vunpack.c.h.b16 %v7672
      %v8172 = vunpack.c.l.b16 %v7673
      %v8173 = vunpack.c.h.b16 %v7673
      %v8174 = vunpack.c.l.b16 %v7674
      %v8175 = vunpack.c.l.b16 %v7675
      %v8176 = vunpack.c.h.b16 %v7675
      %v8177 = vunpack.c.l.b16 %v7676
      %v8178 = vunpack.c.h.b16 %v7676
      %v8179 = vunpack.c.l.b16 %v7677
      %v8180 = vunpack.c.h.b16 %v7677
      %v8181 = vunpack.c.l.b16 %v7678
      %v8182 = vunpack.c.h.b16 %v7678
      %v8183 = vunpack.c.l.b16 %v7679
      %v8184 = vunpack.c.l.b16 %v7680
      %v8185 = vunpack.c.h.b16 %v7680
      %v8186 = vunpack.c.l.b16 %v7681
      %v8187 = vunpack.c.h.b16 %v7681
      %v8188 = vunpack.c.l.b16 %v7682
      %v8189 = vunpack.c.h.b16 %v7682
      %v8190 = vunpack.c.l.b16 %v7683
      %v8191 = vunpack.c.h.b16 %v7683
      %v8192 = vunpack.c.l.b16 %v7684
      %v8193 = vunpack.c.l.b16 %v7685
      %v8194 = vunpack.c.h.b16 %v7685
      %v8195 = vunpack.c.l.b16 %v7686
      %v8196 = vunpack.c.h.b16 %v7686
      %v8197 = vunpack.c.l.b16 %v7687
      %v8198 = vunpack.c.h.b16 %v7687
      %v8199 = vunpack.c.l.b16 %v7688
      %v8200 = vunpack.c.h.b16 %v7688
      %v8201 = vunpack.c.l.b16 %v7689
      %v8202 = vunpack.c.l.b16 %v7690
      %v8203 = vunpack.c.h.b16 %v7690
      %v8204 = vunpack.c.l.b16 %v7691
      %v8205 = vunpack.c.h.b16 %v7691
      %v8206 = vunpack.c.l.b16 %v7692
      %v8207 = vunpack.c.h.b16 %v7692
      %v8208 = vunpack.c.l.b16 %v7693
      %v8209 = vunpack.c.h.b16 %v7693
      %v8210 = vunpack.c.l.b16 %v7694
      %v8211 = vunpack.c.l.b16 %v7695
      %v8212 = vunpack.c.h.b16 %v7695
      %v8213 = vunpack.c.l.b16 %v7696
      %v8214 = vunpack.c.h.b16 %v7696
      %v8215 = vunpack.c.l.b16 %v7697
      %v8216 = vunpack.c.h.b16 %v7697
      %v8217 = vunpack.c.l.b16 %v7698
      %v8218 = vunpack.c.h.b16 %v7698
      %v8219 = vunpack.c.l.b16 %v7699
      %v8220 = vunpack.c.l.b16 %v7700
      %v8221 = vunpack.c.h.b16 %v7700
      %v8222 = vunpack.c.l.b16 %v7701
      %v8223 = vunpack.c.h.b16 %v7701
      %v8224 = vunpack.c.l.b16 %v7702
      %v8225 = vunpack.c.h.b16 %v7702
      %v8226 = vunpack.c.l.b16 %v7703
      %v8227 = vunpack.c.h.b16 %v7703
      %v8228 = vunpack.c.l.b16 %v7704
      %v8229 = vunpack.c.l.b16 %v7705
      %v8230 = vunpack.c.h.b16 %v7705
      %v8231 = vunpack.c.l.b16 %v7706
      %v8232 = vunpack.c.h.b16 %v7706
      %v8233 = vunpack.c.l.b16 %v7707
      %v8234 = vunpack.c.h.b16 %v7707
      %v8235 = vunpack.c.l.b16 %v7708
      %v8236 = vunpack.c.h.b16 %v7708
      %v8237 = vunpack.c.l.b16 %v7709
      %v8238 = vunpack.c.l.b16 %v7710
      %v8239 = vunpack.c.h.b16 %v7710
      %v8240 = vunpack.c.l.b16 %v7711
      %v8241 = vunpack.c.h.b16 %v7711
      %v8242 = vunpack.c.l.b16 %v7712
      %v8243 = vunpack.c.h.b16 %v7712
      %v8244 = vunpack.c.l.b16 %v7713
      %v8245 = vunpack.c.h.b16 %v7713
      %v8246 = vunpack.c.l.b16 %v7714
      %v8247 = vunpack.c.l.b16 %v7715
      %v8248 = vunpack.c.h.b16 %v7715
      %v8249 = vunpack.c.l.b16 %v7716
      %v8250 = vunpack.c.h.b16 %v7716
      %v8251 = vunpack.c.l.b16 %v7717
      %v8252 = vunpack.c.h.b16 %v7717
      %v8253 = vunpack.c.l.b16 %v7718
      %v8254 = vunpack.c.h.b16 %v7718
      %v8255 = vunpack.c.l.b16 %v7719
      %v8256 = vunpack.c.l.b16 %v7720
      %v8257 = vunpack.c.h.b16 %v7720
      %v8258 = vunpack.c.l.b16 %v7721
      %v8259 = vunpack.c.h.b16 %v7721
      %v8260 = vunpack.c.l.b16 %v7722
      %v8261 = vunpack.c.h.b16 %v7722
      %v8262 = vunpack.c.l.b16 %v7723
      %v8263 = vunpack.c.h.b16 %v7723
      %v8264 = vunpack.c.l.b16 %v7724
      %v8265 = vunpack.c.l.b16 %v7725
      %v8266 = vunpack.c.h.b16 %v7725
      %v8267 = vunpack.c.l.b16 %v7726
      %v8268 = vunpack.c.h.b16 %v7726
      %v8269 = vunpack.c.l.b16 %v7727
      %v8270 = vunpack.c.h.b16 %v7727
      %v8271 = vunpack.c.l.b16 %v7728
      %v8272 = vunpack.c.h.b16 %v7728
      %v8273 = vunpack.c.l.b16 %v7729
      %v8274 = vunpack.c.l.b16 %v7730
      %v8275 = vunpack.c.h.b16 %v7730
      %v8276 = vunpack.c.l.b16 %v7731
      %v8277 = vunpack.c.h.b16 %v7731
      %v8278 = vunpack.c.l.b16 %v7732
      %v8279 = vunpack.c.h.b16 %v7732
      %v8280 = vunpack.c.l.b16 %v7733
      %v8281 = vunpack.c.h.b16 %v7733
      %v8282 = vunpack.c.l.b16 %v7734
      %v8283 = vunpack.c.l.b16 %v7735
      %v8284 = vunpack.c.h.b16 %v7735
      %v8285 = vunpack.c.l.b16 %v7736
      %v8286 = vunpack.c.h.b16 %v7736
      %v8287 = vunpack.c.l.b16 %v7737
      %v8288 = vunpack.c.h.b16 %v7737
      %v8289 = vunpack.c.l.b16 %v7738
      %v8290 = vunpack.c.h.b16 %v7738
      %v8291 = vunpack.c.l.b16 %v7739
      %v8292 = vunpack.c.l.b16 %v7740
      %v8293 = vunpack.c.h.b16 %v7740
      %v8294 = vunpack.c.l.b16 %v7741
      %v8295 = vunpack.c.h.b16 %v7741
      %v8296 = vunpack.c.l.b16 %v7742
      %v8297 = vunpack.c.h.b16 %v7742
      %v8298 = vunpack.c.l.b16 %v7743
      %v8299 = vunpack.c.h.b16 %v7743
      %v8300 = vunpack.c.l.b16 %v7744
      %v8301 = vunpack.c.l.b16 %v7745
      %v8302 = vunpack.c.h.b16 %v7745
      %v8303 = vunpack.c.l.b16 %v7746
      %v8304 = vunpack.c.h.b16 %v7746
      %v8305 = vunpack.c.l.b16 %v7747
      %v8306 = vunpack.c.h.b16 %v7747
      %v8307 = vunpack.c.l.b16 %v7748
      %v8308 = vunpack.c.h.b16 %v7748
      %v8309 = vunpack.c.l.b16 %v7749
      %v8310 = vunpack.c.l.b16 %v7750
      %v8311 = vunpack.c.h.b16 %v7750
      %v8312 = vunpack.c.l.b16 %v7751
      %v8313 = vunpack.c.h.b16 %v7751
      %v8314 = vunpack.c.l.b16 %v7752
      %v8315 = vunpack.c.h.b16 %v7752
      %v8316 = vunpack.c.l.b16 %v7753
      %v8317 = vunpack.c.h.b16 %v7753
      %v8318 = vunpack.c.l.b16 %v7754
      %v8319 = vunpack.c.l.b16 %v7755
      %v8320 = vunpack.c.h.b16 %v7755
      %v8321 = vunpack.c.l.b16 %v7756
      %v8322 = vunpack.c.h.b16 %v7756
      %v8323 = vunpack.c.l.b16 %v7757
      %v8324 = vunpack.c.h.b16 %v7757
      %v8325 = vunpack.c.l.b16 %v7758
      %v8326 = vunpack.c.h.b16 %v7758
      %v8327 = vunpack.c.l.b16 %v7759
      %v8328 = vunpack.c.l.b16 %v7760
      %v8329 = vunpack.c.h.b16 %v7760
      %v8330 = vunpack.c.l.b16 %v7761
      %v8331 = vunpack.c.h.b16 %v7761
      %v8332 = vunpack.c.l.b16 %v7762
      %v8333 = vunpack.c.h.b16 %v7762
      %v8334 = vunpack.c.l.b16 %v7763
      %v8335 = vunpack.c.h.b16 %v7763
      %v8336 = vunpack.c.l.b16 %v7764
      %v8337 = vunpack.c.l.b16 %v7765
      %v8338 = vunpack.c.h.b16 %v7765
      %v8339 = vunpack.c.l.b16 %v7766
      %v8340 = vunpack.c.h.b16 %v7766
      %v8341 = vunpack.c.l.b16 %v7767
      %v8342 = vunpack.c.h.b16 %v7767
      %v8343 = vunpack.c.l.b16 %v7768
      %v8344 = vunpack.c.h.b16 %v7768
      %v8345 = vunpack.c.l.b16 %v7769
      %v8346 = vunpack.c.l.b16 %v7770
      %v8347 = vunpack.c.h.b16 %v7770
      %v8348 = vunpack.c.l.b16 %v7771
      %v8349 = vunpack.c.h.b16 %v7771
      %v8350 = vunpack.c.l.b16 %v7772
      %v8351 = vunpack.c.h.b16 %v7772
      %v8352 = vunpack.c.l.b16 %v7773
      %v8353 = vunpack.c.h.b16 %v7773
      %v8354 = vunpack.c.l.b16 %v7774
      %v8355 = vunpack.c.l.b16 %v7775
      %v8356 = vunpack.c.h.b16 %v7775
      %v8357 = vunpack.c.l.b16 %v7776
      %v8358 = vunpack.c.h.b16 %v7776
      %v8359 = vunpack.c.l.b16 %v7777
      %v8360 = vunpack.c.h.b16 %v7777
      %v8361 = vunpack.c.l.b16 %v7778
      %v8362 = vunpack.c.h.b16 %v7778
      %v8363 = vunpack.c.l.b16 %v7779
      %v8364 = vunpack.c.l.b16 %v7780
      %v8365 = vunpack.c.h.b16 %v7780
      %v8366 = vunpack.c.l.b16 %v7781
      %v8367 = vunpack.c.h.b16 %v7781
      %v8368 = vunpack.c.l.b16 %v7782
      %v8369 = vunpack.c.h.b16 %v7782
      %v8370 = vunpack.c.l.b16 %v7783
      %v8371 = vunpack.c.h.b16 %v7783
      %v8372 = vunpack.c.l.b16 %v7784
      %v8373 = vunpack.c.l.b16 %v7785
      %v8374 = vunpack.c.h.b16 %v7785
      %v8375 = vunpack.c.l.b16 %v7786
      %v8376 = vunpack.c.h.b16 %v7786
      %v8377 = vunpack.c.l.b16 %v7787
      %v8378 = vunpack.c.h.b16 %v7787
      %v8379 = vunpack.c.l.b16 %v7788
      %v8380 = vunpack.c.h.b16 %v7788
      %v8381 = vunpack.c.l.b16 %v7789
      %v8382 = vpack.c.b16 %v8103, %v8094
      %v8383 = vpack.c.b16 %v8104, %v8095
      %v8384 = vpack.c.b16 %v8105, %v8096
      %v8385 = vpack.c.b16 %v8106, %v8097
      %v8386 = vpack.c.b16 %v8107, %v8098
      %v8387 = vpack.c.b16 %v8108, %v8099
      %v8388 = vpack.c.b16 %v8109, %v8100
      %v8389 = vpack.c.b16 %v8110, %v8101
      %v8390 = vpack.c.b16 %v8111, %v8102
      %v8391 = vpack.c.b16 %v8121, %v8112
      %v8392 = vpack.c.b16 %v8122, %v8113
      %v8393 = vpack.c.b16 %v8123, %v8114
      %v8394 = vpack.c.b16 %v8124, %v8115
      %v8395 = vpack.c.b16 %v8125, %v8116
      %v8396 = vpack.c.b16 %v8126, %v8117
      %v8397 = vpack.c.b16 %v8127, %v8118
      %v8398 = vpack.c.b16 %v8128, %v8119
      %v8399 = vpack.c.b16 %v8129, %v8120
      %v8400 = vpack.c.b16 %v8139, %v8130
      %v8401 = vpack.c.b16 %v8140, %v8131
      %v8402 = vpack.c.b16 %v8141, %v8132
      %v8403 = vpack.c.b16 %v8142, %v8133
      %v8404 = vpack.c.b16 %v8143, %v8134
      %v8405 = vpack.c.b16 %v8144, %v8135
      %v8406 = vpack.c.b16 %v8145, %v8136
      %v8407 = vpack.c.b16 %v8146, %v8137
      %v8408 = vpack.c.b16 %v8147, %v8138
      %v8409 = vpack.c.b16 %v8157, %v8148
      %v8410 = vpack.c.b16 %v8158, %v8149
      %v8411 = vpack.c.b16 %v8159, %v8150
      %v8412 = vpack.c.b16 %v8160, %v8151
      %v8413 = vpack.c.b16 %v8161, %v8152
      %v8414 = vpack.c.b16 %v8162, %v8153
      %v8415 = vpack.c.b16 %v8163, %v8154
      %v8416 = vpack.c.b16 %v8164, %v8155
      %v8417 = vpack.c.b16 %v8165, %v8156
      %v8418 = vpack.c.b16 %v8175, %v8166
      %v8419 = vpack.c.b16 %v8176, %v8167
      %v8420 = vpack.c.b16 %v8177, %v8168
      %v8421 = vpack.c.b16 %v8178, %v8169
      %v8422 = vpack.c.b16 %v8179, %v8170
      %v8423 = vpack.c.b16 %v8180, %v8171
      %v8424 = vpack.c.b16 %v8181, %v8172
      %v8425 = vpack.c.b16 %v8182, %v8173
      %v8426 = vpack.c.b16 %v8183, %v8174
      %v8427 = vpack.c.b16 %v8193, %v8184
      %v8428 = vpack.c.b16 %v8194, %v8185
      %v8429 = vpack.c.b16 %v8195, %v8186
      %v8430 = vpack.c.b16 %v8196, %v8187
      %v8431 = vpack.c.b16 %v8197, %v8188
      %v8432 = vpack.c.b16 %v8198, %v8189
      %v8433 = vpack.c.b16 %v8199, %v8190
      %v8434 = vpack.c.b16 %v8200, %v8191
      %v8435 = vpack.c.b16 %v8201, %v8192
      %v8436 = vpack.c.b16 %v8211, %v8202
      %v8437 = vpack.c.b16 %v8212, %v8203
      %v8438 = vpack.c.b16 %v8213, %v8204
      %v8439 = vpack.c.b16 %v8214, %v8205
      %v8440 = vpack.c.b16 %v8215, %v8206
      %v8441 = vpack.c.b16 %v8216, %v8207
      %v8442 = vpack.c.b16 %v8217, %v8208
      %v8443 = vpack.c.b16 %v8218, %v8209
      %v8444 = vpack.c.b16 %v8219, %v8210
      %v8445 = vpack.c.b16 %v8229, %v8220
      %v8446 = vpack.c.b16 %v8230, %v8221
      %v8447 = vpack.c.b16 %v8231, %v8222
      %v8448 = vpack.c.b16 %v8232, %v8223
      %v8449 = vpack.c.b16 %v8233, %v8224
      %v8450 = vpack.c.b16 %v8234, %v8225
      %v8451 = vpack.c.b16 %v8235, %v8226
      %v8452 = vpack.c.b16 %v8236, %v8227
      %v8453 = vpack.c.b16 %v8237, %v8228
      %v8454 = vpack.c.b16 %v8247, %v8238
      %v8455 = vpack.c.b16 %v8248, %v8239
      %v8456 = vpack.c.b16 %v8249, %v8240
      %v8457 = vpack.c.b16 %v8250, %v8241
      %v8458 = vpack.c.b16 %v8251, %v8242
      %v8459 = vpack.c.b16 %v8252, %v8243
      %v8460 = vpack.c.b16 %v8253, %v8244
      %v8461 = vpack.c.b16 %v8254, %v8245
      %v8462 = vpack.c.b16 %v8255, %v8246
      %v8463 = vpack.c.b16 %v8265, %v8256
      %v8464 = vpack.c.b16 %v8266, %v8257
      %v8465 = vpack.c.b16 %v8267, %v8258
      %v8466 = vpack.c.b16 %v8268, %v8259
      %v8467 = vpack.c.b16 %v8269, %v8260
      %v8468 = vpack.c.b16 %v8270, %v8261
      %v8469 = vpack.c.b16 %v8271, %v8262
      %v8470 = vpack.c.b16 %v8272, %v8263
      %v8471 = vpack.c.b16 %v8273, %v8264
      %v8472 = vpack.c.b16 %v8283, %v8274
      %v8473 = vpack.c.b16 %v8284, %v8275
      %v8474 = vpack.c.b16 %v8285, %v8276
      %v8475 = vpack.c.b16 %v8286, %v8277
      %v8476 = vpack.c.b16 %v8287, %v8278
      %v8477 = vpack.c.b16 %v8288, %v8279
      %v8478 = vpack.c.b16 %v8289, %v8280
      %v8479 = vpack.c.b16 %v8290, %v8281
      %v8480 = vpack.c.b16 %v8291, %v8282
      %v8481 = vpack.c.b16 %v8301, %v8292
      %v8482 = vpack.c.b16 %v8302, %v8293
      %v8483 = vpack.c.b16 %v8303, %v8294
      %v8484 = vpack.c.b16 %v8304, %v8295
      %v8485 = vpack.c.b16 %v8305, %v8296
      %v8486 = vpack.c.b16 %v8306, %v8297
      %v8487 = vpack.c.b16 %v8307, %v8298
      %v8488 = vpack.c.b16 %v8308, %v8299
      %v8489 = vpack.c.b16 %v8309, %v8300
      %v8490 = vpack.c.b16 %v8319, %v8310
      %v8491 = vpack.c.b16 %v8320, %v8311
      %v8492 = vpack.c.b16 %v8321, %v8312
      %v8493 = vpack.c.b16 %v8322, %v8313
      %v8494 = vpack.c.b16 %v8323, %v8314
      %v8495 = vpack.c.b16 %v8324, %v8315
      %v8496 = vpack.c.b16 %v8325, %v8316
      %v8497 = vpack.c.b16 %v8326, %v8317
      %v8498 = vpack.c.b16 %v8327, %v8318
      %v8499 = vpack.c.b16 %v8337, %v8328
      %v8500 = vpack.c.b16 %v8338, %v8329
      %v8501 = vpack.c.b16 %v8339, %v8330
      %v8502 = vpack.c.b16 %v8340, %v8331
      %v8503 = vpack.c.b16 %v8341, %v8332
      %v8504 = vpack.c.b16 %v8342, %v8333
      %v8505 = vpack.c.b16 %v8343, %v8334
      %v8506 = vpack.c.b16 %v8344, %v8335
      %v8507 = vpack.c.b16 %v8345, %v8336
      %v8508 = vpack.c.b16 %v8355, %v8346
      %v8509 = vpack.c.b16 %v8356, %v8347
      %v8510 = vpack.c.b16 %v8357, %v8348
      %v8511 = vpack.c.b16 %v8358, %v8349
      %v8512 = vpack.c.b16 %v8359, %v8350
      %v8513 = vpack.c.b16 %v8360, %v8351
      %v8514 = vpack.c.b16 %v8361, %v8352
      %v8515 = vpack.c.b16 %v8362, %v8353
      %v8516 = vpack.c.b16 %v8363, %v8354
      %v8517 = vpack.c.b16 %v8373, %v8364
      %v8518 = vpack.c.b16 %v8374, %v8365
      %v8519 = vpack.c.b16 %v8375, %v8366
      %v8520 = vpack.c.b16 %v8376, %v8367
      %v8521 = vpack.c.b16 %v8377, %v8368
      %v8522 = vpack.c.b16 %v8378, %v8369
      %v8523 = vpack.c.b16 %v8379, %v8370
      %v8524 = vpack.c.b16 %v8380, %v8371
      %v8525 = vpack.c.b16 %v8381, %v8372
      %v8814 = vunpack.c.l.b16 %v7790
      %v8815 = vunpack.c.l.b16 %v7791
      %v8816 = vunpack.c.l.b16 %v7792
      %v8817 = vunpack.c.l.b16 %v7793
      %v8818 = vunpack.c.l.b16 %v7794
      %v8819 = vunpack.c.l.b16 %v7795
      %v8820 = vunpack.c.l.b16 %v7796
      %v8821 = vunpack.c.l.b16 %v7797
      %v8822 = vunpack.c.l.b16 %v7798
      %v8823 = vunpack.c.l.b16 %v7799
      %v8824 = vunpack.c.l.b16 %v7800
      %v8825 = vunpack.c.l.b16 %v7801
      %v8826 = vunpack.c.l.b16 %v7802
      %v8827 = vunpack.c.l.b16 %v7803
      %v8828 = vunpack.c.l.b16 %v7804
      %v8829 = vunpack.c.l.b16 %v7805
      %v8830 = vunpack.c.l.b16 %v7806
      %v8831 = vunpack.c.l.b16 %v7807
      %v8832 = vunpack.c.l.b16 %v7808
      %v8833 = vunpack.c.l.b16 %v7809
      %v8834 = vunpack.c.l.b16 %v7810
      %v8835 = vunpack.c.l.b16 %v7811
      %v8836 = vunpack.c.l.b16 %v7812
      %v8837 = vunpack.c.l.b16 %v7813
      %v8838 = vunpack.c.l.b16 %v7814
      %v8839 = vunpack.c.l.b16 %v7815
      %v8840 = vunpack.c.l.b16 %v7816
      %v8841 = vunpack.c.l.b16 %v7817
      %v8842 = vunpack.c.l.b16 %v7818
      %v8843 = vunpack.c.l.b16 %v7819
      %v8844 = vunpack.c.l.b16 %v7820
      %v8845 = vunpack.c.l.b16 %v7821
      %v8846 = vunpack.c.l.b16 %v7822
      %v8847 = vunpack.c.l.b16 %v7823
      %v8848 = vunpack.c.l.b16 %v7824
      %v8849 = vunpack.c.l.b16 %v7825
      %v8850 = vunpack.c.l.b16 %v7826
      %v8851 = vunpack.c.l.b16 %v7827
      %v8852 = vunpack.c.l.b16 %v7828
      %v8853 = vunpack.c.l.b16 %v7829
      %v8854 = vunpack.c.l.b16 %v7830
      %v8855 = vunpack.c.l.b16 %v7831
      %v8856 = vunpack.c.l.b16 %v7832
      %v8857 = vunpack.c.l.b16 %v7833
      %v8858 = vunpack.c.l.b16 %v7834
      %v8859 = vunpack.c.l.b16 %v7835
      %v8860 = vunpack.c.l.b16 %v7836
      %v8861 = vunpack.c.l.b16 %v7837
      %v8862 = vunpack.c.l.b16 %v7838
      %v8863 = vunpack.c.l.b16 %v7839
      %v8864 = vunpack.c.l.b16 %v7840
      %v8865 = vunpack.c.l.b16 %v7841
      %v8866 = vunpack.c.l.b16 %v7842
      %v8867 = vunpack.c.l.b16 %v7843
      %v8868 = vunpack.c.l.b16 %v7844
      %v8869 = vunpack.c.l.b16 %v7845
      %v8870 = vunpack.c.l.b16 %v7846
      %v8871 = vunpack.c.l.b16 %v7847
      %v8872 = vunpack.c.l.b16 %v7848
      %v8873 = vunpack.c.l.b16 %v7849
      %v8874 = vunpack.c.l.b16 %v7850
      %v8875 = vunpack.c.l.b16 %v7851
      %v8876 = vunpack.c.l.b16 %v7852
      %v8877 = vunpack.c.l.b16 %v7853
      %v8878 = vunpack.c.l.b16 %v7854
      %v8879 = vunpack.c.l.b16 %v7855
      %v8880 = vunpack.c.l.b16 %v7856
      %v8881 = vunpack.c.l.b16 %v7857
      %v8882 = vunpack.c.l.b16 %v7858
      %v8883 = vunpack.c.l.b16 %v7859
      %v8884 = vunpack.c.l.b16 %v7860
      %v8885 = vunpack.c.l.b16 %v7861
      %v8886 = vunpack.c.l.b16 %v7862
      %v8887 = vunpack.c.l.b16 %v7863
      %v8888 = vunpack.c.l.b16 %v7864
      %v8889 = vunpack.c.l.b16 %v7865
      %v8890 = vunpack.c.l.b16 %v7866
      %v8891 = vunpack.c.l.b16 %v7867
      %v8892 = vunpack.c.l.b16 %v7868
      %v8893 = vunpack.c.l.b16 %v7869
      %v8894 = vunpack.c.l.b16 %v7870
      %v8895 = vunpack.c.l.b16 %v7871
      %v8896 = vunpack.c.l.b16 %v7872
      %v8897 = vunpack.c.l.b16 %v7873
      %v8898 = vunpack.c.l.b16 %v7874
      %v8899 = vunpack.c.l.b16 %v7875
      %v8900 = vunpack.c.l.b16 %v7876
      %v8901 = vunpack.c.l.b16 %v7877
      %v8902 = vunpack.c.l.b16 %v7878
      %v8903 = vunpack.c.l.b16 %v7879
      %v8904 = vunpack.c.l.b16 %v7880
      %v8905 = vunpack.c.l.b16 %v7881
      %v8906 = vunpack.c.l.b16 %v7882
      %v8907 = vunpack.c.l.b16 %v7883
      %v8908 = vunpack.c.l.b16 %v7884
      %v8909 = vunpack.c.l.b16 %v7885
      %v8910 = vunpack.c.l.b16 %v7886
      %v8911 = vunpack.c.l.b16 %v7887
      %v8912 = vunpack.c.l.b16 %v7888
      %v8913 = vunpack.c.l.b16 %v7889
      %v8914 = vunpack.c.l.b16 %v7890
      %v8915 = vunpack.c.l.b16 %v7891
      %v8916 = vunpack.c.l.b16 %v7892
      %v8917 = vunpack.c.l.b16 %v7893
      %v8918 = vunpack.c.l.b16 %v7894
      %v8919 = vunpack.c.l.b16 %v7895
      %v8920 = vunpack.c.l.b16 %v7896
      %v8921 = vunpack.c.l.b16 %v7897
      %v8922 = vunpack.c.l.b16 %v7898
      %v8923 = vunpack.c.l.b16 %v7899
      %v8924 = vunpack.c.l.b16 %v7900
      %v8925 = vunpack.c.l.b16 %v7901
      %v8926 = vunpack.c.l.b16 %v7902
      %v8927 = vunpack.c.l.b16 %v7903
      %v8928 = vunpack.c.l.b16 %v7904
      %v8929 = vunpack.c.l.b16 %v7905
      %v8930 = vunpack.c.l.b16 %v7906
      %v8931 = vunpack.c.l.b16 %v7907
      %v8932 = vunpack.c.l.b16 %v7908
      %v8933 = vunpack.c.l.b16 %v7909
      %v8934 = vunpack.c.l.b16 %v7910
      %v8935 = vunpack.c.l.b16 %v7911
      %v8936 = vunpack.c.l.b16 %v7912
      %v8937 = vunpack.c.l.b16 %v7913
      %v8938 = vunpack.c.l.b16 %v7914
      %v8939 = vunpack.c.l.b16 %v7915
      %v8940 = vunpack.c.l.b16 %v7916
      %v8941 = vunpack.c.l.b16 %v7917
      %v8942 = vunpack.c.l.b16 %v7918
      %v8943 = vunpack.c.l.b16 %v7919
      %v8944 = vunpack.c.l.b16 %v7920
      %v8945 = vunpack.c.l.b16 %v7921
      %v8946 = vunpack.c.l.b16 %v7922
      %v8947 = vunpack.c.l.b16 %v7923
      %v8948 = vunpack.c.l.b16 %v7924
      %v8949 = vunpack.c.l.b16 %v7925
      %v8950 = vunpack.c.l.b16 %v7926
      %v8951 = vunpack.c.l.b16 %v7927
      %v8952 = vunpack.c.l.b16 %v7928
      %v8953 = vunpack.c.l.b16 %v7929
      %v8954 = vunpack.c.l.b16 %v7930
      %v8955 = vunpack.c.l.b16 %v7931
      %v8956 = vunpack.c.l.b16 %v7932
      %v8957 = vunpack.c.l.b16 %v7933
      %v8958 = vpack.c.b16 %v8815, %v8814
      %v8959 = vpack.c.b16 %v8817, %v8816
      %v8960 = vpack.c.b16 %v8819, %v8818
      %v8961 = vpack.c.b16 %v8821, %v8820
      %v8962 = vpack.c.b16 %v8823, %v8822
      %v8963 = vpack.c.b16 %v8825, %v8824
      %v8964 = vpack.c.b16 %v8827, %v8826
      %v8965 = vpack.c.b16 %v8829, %v8828
      %v8966 = vpack.c.b16 %v8831, %v8830
      %v8967 = vpack.c.b16 %v8833, %v8832
      %v8968 = vpack.c.b16 %v8835, %v8834
      %v8969 = vpack.c.b16 %v8837, %v8836
      %v8970 = vpack.c.b16 %v8839, %v8838
      %v8971 = vpack.c.b16 %v8841, %v8840
      %v8972 = vpack.c.b16 %v8843, %v8842
      %v8973 = vpack.c.b16 %v8845, %v8844
      %v8974 = vpack.c.b16 %v8847, %v8846
      %v8975 = vpack.c.b16 %v8849, %v8848
      %v8976 = vpack.c.b16 %v8851, %v8850
      %v8977 = vpack.c.b16 %v8853, %v8852
      %v8978 = vpack.c.b16 %v8855, %v8854
      %v8979 = vpack.c.b16 %v8857, %v8856
      %v8980 = vpack.c.b16 %v8859, %v8858
      %v8981 = vpack.c.b16 %v8861, %v8860
      %v8982 = vpack.c.b16 %v8863, %v8862
      %v8983 = vpack.c.b16 %v8865, %v8864
      %v8984 = vpack.c.b16 %v8867, %v8866
      %v8985 = vpack.c.b16 %v8869, %v8868
      %v8986 = vpack.c.b16 %v8871, %v8870
      %v8987 = vpack.c.b16 %v8873, %v8872
      %v8988 = vpack.c.b16 %v8875, %v8874
      %v8989 = vpack.c.b16 %v8877, %v8876
      %v8990 = vpack.c.b16 %v8879, %v8878
      %v8991 = vpack.c.b16 %v8881, %v8880
      %v8992 = vpack.c.b16 %v8883, %v8882
      %v8993 = vpack.c.b16 %v8885, %v8884
      %v8994 = vpack.c.b16 %v8887, %v8886
      %v8995 = vpack.c.b16 %v8889, %v8888
      %v8996 = vpack.c.b16 %v8891, %v8890
      %v8997 = vpack.c.b16 %v8893, %v8892
      %v8998 = vpack.c.b16 %v8895, %v8894
      %v8999 = vpack.c.b16 %v8897, %v8896
      %v9000 = vpack.c.b16 %v8899, %v8898
      %v9001 = vpack.c.b16 %v8901, %v8900
      %v9002 = vpack.c.b16 %v8903, %v8902
      %v9003 = vpack.c.b16 %v8905, %v8904
      %v9004 = vpack.c.b16 %v8907, %v8906
      %v9005 = vpack.c.b16 %v8909, %v8908
      %v9006 = vpack.c.b16 %v8911, %v8910
      %v9007 = vpack.c.b16 %v8913, %v8912
      %v9008 = vpack.c.b16 %v8915, %v8914
      %v9009 = vpack.c.b16 %v8917, %v8916
      %v9010 = vpack.c.b16 %v8919, %v8918
      %v9011 = vpack.c.b16 %v8921, %v8920
      %v9012 = vpack.c.b16 %v8923, %v8922
      %v9013 = vpack.c.b16 %v8925, %v8924
      %v9014 = vpack.c.b16 %v8927, %v8926
      %v9015 = vpack.c.b16 %v8929, %v8928
      %v9016 = vpack.c.b16 %v8931, %v8930
      %v9017 = vpack.c.b16 %v8933, %v8932
      %v9018 = vpack.c.b16 %v8935, %v8934
      %v9019 = vpack.c.b16 %v8937, %v8936
      %v9020 = vpack.c.b16 %v8939, %v8938
      %v9021 = vpack.c.b16 %v8941, %v8940
      %v9022 = vpack.c.b16 %v8943, %v8942
      %v9023 = vpack.c.b16 %v8945, %v8944
      %v9024 = vpack.c.b16 %v8947, %v8946
      %v9025 = vpack.c.b16 %v8949, %v8948
      %v9026 = vpack.c.b16 %v8951, %v8950
      %v9027 = vpack.c.b16 %v8953, %v8952
      %v9028 = vpack.c.b16 %v8955, %v8954
      %v9029 = vpack.c.b16 %v8957, %v8956
      %9102 = vmatpush.bf16.msra.mxu0 %v8965
      %9103 = vmatpush.bf16.msra.mxu0 %v8964
      %9104 = vmatpush.bf16.msra.mxu0 %v8963
      %9105 = vmatpush.bf16.msra.mxu0 %v8962
      %9106 = vmatpush.bf16.msra.mxu0 %v8961
      %9107 = vmatpush.bf16.msra.mxu0 %v8960
      %9108 = vmatpush.bf16.msra.mxu0 %v8959
      %9109 = vmatpush.bf16.msra.mxu0 %v8958
      %9110 = vmatmul.bf16.gmra.mxu0 %v8382
      %v9111 = vpop.f32.mrf.mxu0
      %v9112 = vadd.f32 0.0, %v9111
      %v9113 = vpop.f32.mrf.mxu0
      %v9114 = vadd.f32 0.0, %v9113
      %9115 = vmatmul.bf16.gmra.mxu0 %v8391
      %v9116 = vpop.f32.mrf.mxu0
      %v9117 = vadd.f32 0.0, %v9116
      %v9118 = vpop.f32.mrf.mxu0
      %v9119 = vadd.f32 0.0, %v9118
      %9120 = vmatmul.bf16.gmra.mxu0 %v8400
      %v9121 = vpop.f32.mrf.mxu0
      %v9122 = vadd.f32 0.0, %v9121
      %v9123 = vpop.f32.mrf.mxu0
      %v9124 = vadd.f32 0.0, %v9123
      %9125 = vmatmul.bf16.gmra.mxu0 %v8409
      %v9126 = vpop.f32.mrf.mxu0
      %v9127 = vadd.f32 0.0, %v9126
      %v9128 = vpop.f32.mrf.mxu0
      %v9129 = vadd.f32 0.0, %v9128
      %9130 = vmatmul.bf16.gmra.mxu0 %v8418
      %v9131 = vpop.f32.mrf.mxu0
      %v9132 = vadd.f32 0.0, %v9131
      %v9133 = vpop.f32.mrf.mxu0
      %v9134 = vadd.f32 0.0, %v9133
      %9135 = vmatmul.bf16.gmra.mxu0 %v8427
      %v9136 = vpop.f32.mrf.mxu0
      %v9137 = vadd.f32 0.0, %v9136
      %v9138 = vpop.f32.mrf.mxu0
      %v9139 = vadd.f32 0.0, %v9138
      %9140 = vmatmul.bf16.gmra.mxu0 %v8436
      %v9141 = vpop.f32.mrf.mxu0
      %v9142 = vadd.f32 0.0, %v9141
      %v9143 = vpop.f32.mrf.mxu0
      %v9144 = vadd.f32 0.0, %v9143
      %9145 = vmatmul.bf16.gmra.mxu0 %v8445
      %v9146 = vpop.f32.mrf.mxu0
      %v9147 = vadd.f32 0.0, %v9146
      %v9148 = vpop.f32.mrf.mxu0
      %v9149 = vadd.f32 0.0, %v9148
      %9150 = vmatmul.bf16.gmra.mxu0 %v8454
      %v9151 = vpop.f32.mrf.mxu0
      %v9152 = vadd.f32 0.0, %v9151
      %v9153 = vpop.f32.mrf.mxu0
      %v9154 = vadd.f32 0.0, %v9153
      %9155 = vmatmul.bf16.gmra.mxu0 %v8463
      %v9156 = vpop.f32.mrf.mxu0
      %v9157 = vadd.f32 0.0, %v9156
      %v9158 = vpop.f32.mrf.mxu0
      %v9159 = vadd.f32 0.0, %v9158
      %9160 = vmatmul.bf16.gmra.mxu0 %v8472
      %v9161 = vpop.f32.mrf.mxu0
      %v9162 = vadd.f32 0.0, %v9161
      %v9163 = vpop.f32.mrf.mxu0
      %v9164 = vadd.f32 0.0, %v9163
      %9165 = vmatmul.bf16.gmra.mxu0 %v8481
      %v9166 = vpop.f32.mrf.mxu0
      %v9167 = vadd.f32 0.0, %v9166
      %v9168 = vpop.f32.mrf.mxu0
      %v9169 = vadd.f32 0.0, %v9168
      %9170 = vmatmul.bf16.gmra.mxu0 %v8490
      %v9171 = vpop.f32.mrf.mxu0
      %v9172 = vadd.f32 0.0, %v9171
      %v9173 = vpop.f32.mrf.mxu0
      %v9174 = vadd.f32 0.0, %v9173
      %9175 = vmatmul.bf16.gmra.mxu0 %v8499
      %v9176 = vpop.f32.mrf.mxu0
      %v9177 = vadd.f32 0.0, %v9176
      %v9178 = vpop.f32.mrf.mxu0
      %v9179 = vadd.f32 0.0, %v9178
      %9180 = vmatmul.bf16.gmra.mxu0 %v8508
      %v9181 = vpop.f32.mrf.mxu0
      %v9182 = vadd.f32 0.0, %v9181
      %v9183 = vpop.f32.mrf.mxu0
      %v9184 = vadd.f32 0.0, %v9183
      %9185 = vmatmul.bf16.gmra.mxu0 %v8517
      %v9186 = vpop.f32.mrf.mxu0
      %v9187 = vadd.f32 0.0, %v9186
      %v9188 = vpop.f32.mrf.mxu0
      %v9189 = vadd.f32 0.0, %v9188
      %9190 = vdwg.mxu0
      %9191 = vmatpush.bf16.msra.mxu0 %v8973
      %9192 = vmatpush.bf16.msra.mxu0 %v8972
      %9193 = vmatpush.bf16.msra.mxu0 %v8971
      %9194 = vmatpush.bf16.msra.mxu0 %v8970
      %9195 = vmatpush.bf16.msra.mxu0 %v8969
      %9196 = vmatpush.bf16.msra.mxu0 %v8968
      %9197 = vmatpush.bf16.msra.mxu0 %v8967
      %9198 = vmatpush.bf16.msra.mxu0 %v8966
      %9199 = vmatmul.bf16.gmra.mxu0 %v8383
      %v9200 = vpop.f32.mrf.mxu0
      %v9201 = vadd.f32 %v9112, %v9200
      %v9202 = vpop.f32.mrf.mxu0
      %v9203 = vadd.f32 %v9114, %v9202
      %9204 = vmatmul.bf16.gmra.mxu0 %v8392
      %v9205 = vpop.f32.mrf.mxu0
      %v9206 = vadd.f32 %v9117, %v9205
      %v9207 = vpop.f32.mrf.mxu0
      %v9208 = vadd.f32 %v9119, %v9207
      %9209 = vmatmul.bf16.gmra.mxu0 %v8401
      %v9210 = vpop.f32.mrf.mxu0
      %v9211 = vadd.f32 %v9122, %v9210
      %v9212 = vpop.f32.mrf.mxu0
      %v9213 = vadd.f32 %v9124, %v9212
      %9214 = vmatmul.bf16.gmra.mxu0 %v8410
      %v9215 = vpop.f32.mrf.mxu0
      %v9216 = vadd.f32 %v9127, %v9215
      %v9217 = vpop.f32.mrf.mxu0
      %v9218 = vadd.f32 %v9129, %v9217
      %9219 = vmatmul.bf16.gmra.mxu0 %v8419
      %v9220 = vpop.f32.mrf.mxu0
      %v9221 = vadd.f32 %v9132, %v9220
      %v9222 = vpop.f32.mrf.mxu0
      %v9223 = vadd.f32 %v9134, %v9222
      %9224 = vmatmul.bf16.gmra.mxu0 %v8428
      %v9225 = vpop.f32.mrf.mxu0
      %v9226 = vadd.f32 %v9137, %v9225
      %v9227 = vpop.f32.mrf.mxu0
      %v9228 = vadd.f32 %v9139, %v9227
      %9229 = vmatmul.bf16.gmra.mxu0 %v8437
      %v9230 = vpop.f32.mrf.mxu0
      %v9231 = vadd.f32 %v9142, %v9230
      %v9232 = vpop.f32.mrf.mxu0
      %v9233 = vadd.f32 %v9144, %v9232
      %9234 = vmatmul.bf16.gmra.mxu0 %v8446
      %v9235 = vpop.f32.mrf.mxu0
      %v9236 = vadd.f32 %v9147, %v9235
      %v9237 = vpop.f32.mrf.mxu0
      %v9238 = vadd.f32 %v9149, %v9237
      %9239 = vmatmul.bf16.gmra.mxu0 %v8455
      %v9240 = vpop.f32.mrf.mxu0
      %v9241 = vadd.f32 %v9152, %v9240
      %v9242 = vpop.f32.mrf.mxu0
      %v9243 = vadd.f32 %v9154, %v9242
      %9244 = vmatmul.bf16.gmra.mxu0 %v8464
      %v9245 = vpop.f32.mrf.mxu0
      %v9246 = vadd.f32 %v9157, %v9245
      %v9247 = vpop.f32.mrf.mxu0
      %v9248 = vadd.f32 %v9159, %v9247
      %9249 = vmatmul.bf16.gmra.mxu0 %v8473
      %v9250 = vpop.f32.mrf.mxu0
      %v9251 = vadd.f32 %v9162, %v9250
      %v9252 = vpop.f32.mrf.mxu0
      %v9253 = vadd.f32 %v9164, %v9252
      %9254 = vmatmul.bf16.gmra.mxu0 %v8482
      %v9255 = vpop.f32.mrf.mxu0
      %v9256 = vadd.f32 %v9167, %v9255
      %v9257 = vpop.f32.mrf.mxu0
      %v9258 = vadd.f32 %v9169, %v9257
      %9259 = vmatmul.bf16.gmra.mxu0 %v8491
      %v9260 = vpop.f32.mrf.mxu0
      %v9261 = vadd.f32 %v9172, %v9260
      %v9262 = vpop.f32.mrf.mxu0
      %v9263 = vadd.f32 %v9174, %v9262
      %9264 = vmatmul.bf16.gmra.mxu0 %v8500
      %v9265 = vpop.f32.mrf.mxu0
      %v9266 = vadd.f32 %v9177, %v9265
      %v9267 = vpop.f32.mrf.mxu0
      %v9268 = vadd.f32 %v9179, %v9267
      %9269 = vmatmul.bf16.gmra.mxu0 %v8509
      %v9270 = vpop.f32.mrf.mxu0
      %v9271 = vadd.f32 %v9182, %v9270
      %v9272 = vpop.f32.mrf.mxu0
      %v9273 = vadd.f32 %v9184, %v9272
      %9274 = vmatmul.bf16.gmra.mxu0 %v8518
      %v9275 = vpop.f32.mrf.mxu0
      %v9276 = vadd.f32 %v9187, %v9275
      %v9277 = vpop.f32.mrf.mxu0
      %v9278 = vadd.f32 %v9189, %v9277
      %9279 = vdwg.mxu0
      %9280 = vmatpush.bf16.msra.mxu0 %v8981
      %9281 = vmatpush.bf16.msra.mxu0 %v8980
      %9282 = vmatpush.bf16.msra.mxu0 %v8979
      %9283 = vmatpush.bf16.msra.mxu0 %v8978
      %9284 = vmatpush.bf16.msra.mxu0 %v8977
      %9285 = vmatpush.bf16.msra.mxu0 %v8976
      %9286 = vmatpush.bf16.msra.mxu0 %v8975
      %9287 = vmatpush.bf16.msra.mxu0 %v8974
      %9288 = vmatmul.bf16.gmra.mxu0 %v8384
      %v9289 = vpop.f32.mrf.mxu0
      %v9290 = vadd.f32 %v9201, %v9289
      %v9291 = vpop.f32.mrf.mxu0
      %v9292 = vadd.f32 %v9203, %v9291
      %9293 = vmatmul.bf16.gmra.mxu0 %v8393
      %v9294 = vpop.f32.mrf.mxu0
      %v9295 = vadd.f32 %v9206, %v9294
      %v9296 = vpop.f32.mrf.mxu0
      %v9297 = vadd.f32 %v9208, %v9296
      %9298 = vmatmul.bf16.gmra.mxu0 %v8402
      %v9299 = vpop.f32.mrf.mxu0
      %v9300 = vadd.f32 %v9211, %v9299
      %v9301 = vpop.f32.mrf.mxu0
      %v9302 = vadd.f32 %v9213, %v9301
      %9303 = vmatmul.bf16.gmra.mxu0 %v8411
      %v9304 = vpop.f32.mrf.mxu0
      %v9305 = vadd.f32 %v9216, %v9304
      %v9306 = vpop.f32.mrf.mxu0
      %v9307 = vadd.f32 %v9218, %v9306
      %9308 = vmatmul.bf16.gmra.mxu0 %v8420
      %v9309 = vpop.f32.mrf.mxu0
      %v9310 = vadd.f32 %v9221, %v9309
      %v9311 = vpop.f32.mrf.mxu0
      %v9312 = vadd.f32 %v9223, %v9311
      %9313 = vmatmul.bf16.gmra.mxu0 %v8429
      %v9314 = vpop.f32.mrf.mxu0
      %v9315 = vadd.f32 %v9226, %v9314
      %v9316 = vpop.f32.mrf.mxu0
      %v9317 = vadd.f32 %v9228, %v9316
      %9318 = vmatmul.bf16.gmra.mxu0 %v8438
      %v9319 = vpop.f32.mrf.mxu0
      %v9320 = vadd.f32 %v9231, %v9319
      %v9321 = vpop.f32.mrf.mxu0
      %v9322 = vadd.f32 %v9233, %v9321
      %9323 = vmatmul.bf16.gmra.mxu0 %v8447
      %v9324 = vpop.f32.mrf.mxu0
      %v9325 = vadd.f32 %v9236, %v9324
      %v9326 = vpop.f32.mrf.mxu0
      %v9327 = vadd.f32 %v9238, %v9326
      %9328 = vmatmul.bf16.gmra.mxu0 %v8456
      %v9329 = vpop.f32.mrf.mxu0
      %v9330 = vadd.f32 %v9241, %v9329
      %v9331 = vpop.f32.mrf.mxu0
      %v9332 = vadd.f32 %v9243, %v9331
      %9333 = vmatmul.bf16.gmra.mxu0 %v8465
      %v9334 = vpop.f32.mrf.mxu0
      %v9335 = vadd.f32 %v9246, %v9334
      %v9336 = vpop.f32.mrf.mxu0
      %v9337 = vadd.f32 %v9248, %v9336
      %9338 = vmatmul.bf16.gmra.mxu0 %v8474
      %v9339 = vpop.f32.mrf.mxu0
      %v9340 = vadd.f32 %v9251, %v9339
      %v9341 = vpop.f32.mrf.mxu0
      %v9342 = vadd.f32 %v9253, %v9341
      %9343 = vmatmul.bf16.gmra.mxu0 %v8483
      %v9344 = vpop.f32.mrf.mxu0
      %v9345 = vadd.f32 %v9256, %v9344
      %v9346 = vpop.f32.mrf.mxu0
      %v9347 = vadd.f32 %v9258, %v9346
      %9348 = vmatmul.bf16.gmra.mxu0 %v8492
      %v9349 = vpop.f32.mrf.mxu0
      %v9350 = vadd.f32 %v9261, %v9349
      %v9351 = vpop.f32.mrf.mxu0
      %v9352 = vadd.f32 %v9263, %v9351
      %9353 = vmatmul.bf16.gmra.mxu0 %v8501
      %v9354 = vpop.f32.mrf.mxu0
      %v9355 = vadd.f32 %v9266, %v9354
      %v9356 = vpop.f32.mrf.mxu0
      %v9357 = vadd.f32 %v9268, %v9356
      %9358 = vmatmul.bf16.gmra.mxu0 %v8510
      %v9359 = vpop.f32.mrf.mxu0
      %v9360 = vadd.f32 %v9271, %v9359
      %v9361 = vpop.f32.mrf.mxu0
      %v9362 = vadd.f32 %v9273, %v9361
      %9363 = vmatmul.bf16.gmra.mxu0 %v8519
      %v9364 = vpop.f32.mrf.mxu0
      %v9365 = vadd.f32 %v9276, %v9364
      %v9366 = vpop.f32.mrf.mxu0
      %v9367 = vadd.f32 %v9278, %v9366
      %9368 = vdwg.mxu0
      %9369 = vmatpush.bf16.msra.mxu0 %v8989
      %9370 = vmatpush.bf16.msra.mxu0 %v8988
      %9371 = vmatpush.bf16.msra.mxu0 %v8987
      %9372 = vmatpush.bf16.msra.mxu0 %v8986
      %9373 = vmatpush.bf16.msra.mxu0 %v8985
      %9374 = vmatpush.bf16.msra.mxu0 %v8984
      %9375 = vmatpush.bf16.msra.mxu0 %v8983
      %9376 = vmatpush.bf16.msra.mxu0 %v8982
      %9377 = vmatmul.bf16.gmra.mxu0 %v8385
      %v9378 = vpop.f32.mrf.mxu0
      %v9379 = vadd.f32 %v9290, %v9378
      %v9380 = vpop.f32.mrf.mxu0
      %v9381 = vadd.f32 %v9292, %v9380
      %9382 = vmatmul.bf16.gmra.mxu0 %v8394
      %v9383 = vpop.f32.mrf.mxu0
      %v9384 = vadd.f32 %v9295, %v9383
      %v9385 = vpop.f32.mrf.mxu0
      %v9386 = vadd.f32 %v9297, %v9385
      %9387 = vmatmul.bf16.gmra.mxu0 %v8403
      %v9388 = vpop.f32.mrf.mxu0
      %v9389 = vadd.f32 %v9300, %v9388
      %v9390 = vpop.f32.mrf.mxu0
      %v9391 = vadd.f32 %v9302, %v9390
      %9392 = vmatmul.bf16.gmra.mxu0 %v8412
      %v9393 = vpop.f32.mrf.mxu0
      %v9394 = vadd.f32 %v9305, %v9393
      %v9395 = vpop.f32.mrf.mxu0
      %v9396 = vadd.f32 %v9307, %v9395
      %9397 = vmatmul.bf16.gmra.mxu0 %v8421
      %v9398 = vpop.f32.mrf.mxu0
      %v9399 = vadd.f32 %v9310, %v9398
      %v9400 = vpop.f32.mrf.mxu0
      %v9401 = vadd.f32 %v9312, %v9400
      %9402 = vmatmul.bf16.gmra.mxu0 %v8430
      %v9403 = vpop.f32.mrf.mxu0
      %v9404 = vadd.f32 %v9315, %v9403
      %v9405 = vpop.f32.mrf.mxu0
      %v9406 = vadd.f32 %v9317, %v9405
      %9407 = vmatmul.bf16.gmra.mxu0 %v8439
      %v9408 = vpop.f32.mrf.mxu0
      %v9409 = vadd.f32 %v9320, %v9408
      %v9410 = vpop.f32.mrf.mxu0
      %v9411 = vadd.f32 %v9322, %v9410
      %9412 = vmatmul.bf16.gmra.mxu0 %v8448
      %v9413 = vpop.f32.mrf.mxu0
      %v9414 = vadd.f32 %v9325, %v9413
      %v9415 = vpop.f32.mrf.mxu0
      %v9416 = vadd.f32 %v9327, %v9415
      %9417 = vmatmul.bf16.gmra.mxu0 %v8457
      %v9418 = vpop.f32.mrf.mxu0
      %v9419 = vadd.f32 %v9330, %v9418
      %v9420 = vpop.f32.mrf.mxu0
      %v9421 = vadd.f32 %v9332, %v9420
      %9422 = vmatmul.bf16.gmra.mxu0 %v8466
      %v9423 = vpop.f32.mrf.mxu0
      %v9424 = vadd.f32 %v9335, %v9423
      %v9425 = vpop.f32.mrf.mxu0
      %v9426 = vadd.f32 %v9337, %v9425
      %9427 = vmatmul.bf16.gmra.mxu0 %v8475
      %v9428 = vpop.f32.mrf.mxu0
      %v9429 = vadd.f32 %v9340, %v9428
      %v9430 = vpop.f32.mrf.mxu0
      %v9431 = vadd.f32 %v9342, %v9430
      %9432 = vmatmul.bf16.gmra.mxu0 %v8484
      %v9433 = vpop.f32.mrf.mxu0
      %v9434 = vadd.f32 %v9345, %v9433
      %v9435 = vpop.f32.mrf.mxu0
      %v9436 = vadd.f32 %v9347, %v9435
      %9437 = vmatmul.bf16.gmra.mxu0 %v8493
      %v9438 = vpop.f32.mrf.mxu0
      %v9439 = vadd.f32 %v9350, %v9438
      %v9440 = vpop.f32.mrf.mxu0
      %v9441 = vadd.f32 %v9352, %v9440
      %9442 = vmatmul.bf16.gmra.mxu0 %v8502
      %v9443 = vpop.f32.mrf.mxu0
      %v9444 = vadd.f32 %v9355, %v9443
      %v9445 = vpop.f32.mrf.mxu0
      %v9446 = vadd.f32 %v9357, %v9445
      %9447 = vmatmul.bf16.gmra.mxu0 %v8511
      %v9448 = vpop.f32.mrf.mxu0
      %v9449 = vadd.f32 %v9360, %v9448
      %v9450 = vpop.f32.mrf.mxu0
      %v9451 = vadd.f32 %v9362, %v9450
      %9452 = vmatmul.bf16.gmra.mxu0 %v8520
      %v9453 = vpop.f32.mrf.mxu0
      %v9454 = vadd.f32 %v9365, %v9453
      %v9455 = vpop.f32.mrf.mxu0
      %v9456 = vadd.f32 %v9367, %v9455
      %9457 = vdwg.mxu0
      %9458 = vmatpush.bf16.msra.mxu0 %v8997
      %9459 = vmatpush.bf16.msra.mxu0 %v8996
      %9460 = vmatpush.bf16.msra.mxu0 %v8995
      %9461 = vmatpush.bf16.msra.mxu0 %v8994
      %9462 = vmatpush.bf16.msra.mxu0 %v8993
      %9463 = vmatpush.bf16.msra.mxu0 %v8992
      %9464 = vmatpush.bf16.msra.mxu0 %v8991
      %9465 = vmatpush.bf16.msra.mxu0 %v8990
      %9466 = vmatmul.bf16.gmra.mxu0 %v8386
      %v9467 = vpop.f32.mrf.mxu0
      %v9468 = vadd.f32 %v9379, %v9467
      %v9469 = vpop.f32.mrf.mxu0
      %v9470 = vadd.f32 %v9381, %v9469
      %9471 = vmatmul.bf16.gmra.mxu0 %v8395
      %v9472 = vpop.f32.mrf.mxu0
      %v9473 = vadd.f32 %v9384, %v9472
      %v9474 = vpop.f32.mrf.mxu0
      %v9475 = vadd.f32 %v9386, %v9474
      %9476 = vmatmul.bf16.gmra.mxu0 %v8404
      %v9477 = vpop.f32.mrf.mxu0
      %v9478 = vadd.f32 %v9389, %v9477
      %v9479 = vpop.f32.mrf.mxu0
      %v9480 = vadd.f32 %v9391, %v9479
      %9481 = vmatmul.bf16.gmra.mxu0 %v8413
      %v9482 = vpop.f32.mrf.mxu0
      %v9483 = vadd.f32 %v9394, %v9482
      %v9484 = vpop.f32.mrf.mxu0
      %v9485 = vadd.f32 %v9396, %v9484
      %9486 = vmatmul.bf16.gmra.mxu0 %v8422
      %v9487 = vpop.f32.mrf.mxu0
      %v9488 = vadd.f32 %v9399, %v9487
      %v9489 = vpop.f32.mrf.mxu0
      %v9490 = vadd.f32 %v9401, %v9489
      %9491 = vmatmul.bf16.gmra.mxu0 %v8431
      %v9492 = vpop.f32.mrf.mxu0
      %v9493 = vadd.f32 %v9404, %v9492
      %v9494 = vpop.f32.mrf.mxu0
      %v9495 = vadd.f32 %v9406, %v9494
      %9496 = vmatmul.bf16.gmra.mxu0 %v8440
      %v9497 = vpop.f32.mrf.mxu0
      %v9498 = vadd.f32 %v9409, %v9497
      %v9499 = vpop.f32.mrf.mxu0
      %v9500 = vadd.f32 %v9411, %v9499
      %9501 = vmatmul.bf16.gmra.mxu0 %v8449
      %v9502 = vpop.f32.mrf.mxu0
      %v9503 = vadd.f32 %v9414, %v9502
      %v9504 = vpop.f32.mrf.mxu0
      %v9505 = vadd.f32 %v9416, %v9504
      %9506 = vmatmul.bf16.gmra.mxu0 %v8458
      %v9507 = vpop.f32.mrf.mxu0
      %v9508 = vadd.f32 %v9419, %v9507
      %v9509 = vpop.f32.mrf.mxu0
      %v9510 = vadd.f32 %v9421, %v9509
      %9511 = vmatmul.bf16.gmra.mxu0 %v8467
      %v9512 = vpop.f32.mrf.mxu0
      %v9513 = vadd.f32 %v9424, %v9512
      %v9514 = vpop.f32.mrf.mxu0
      %v9515 = vadd.f32 %v9426, %v9514
      %9516 = vmatmul.bf16.gmra.mxu0 %v8476
      %v9517 = vpop.f32.mrf.mxu0
      %v9518 = vadd.f32 %v9429, %v9517
      %v9519 = vpop.f32.mrf.mxu0
      %v9520 = vadd.f32 %v9431, %v9519
      %9521 = vmatmul.bf16.gmra.mxu0 %v8485
      %v9522 = vpop.f32.mrf.mxu0
      %v9523 = vadd.f32 %v9434, %v9522
      %v9524 = vpop.f32.mrf.mxu0
      %v9525 = vadd.f32 %v9436, %v9524
      %9526 = vmatmul.bf16.gmra.mxu0 %v8494
      %v9527 = vpop.f32.mrf.mxu0
      %v9528 = vadd.f32 %v9439, %v9527
      %v9529 = vpop.f32.mrf.mxu0
      %v9530 = vadd.f32 %v9441, %v9529
      %9531 = vmatmul.bf16.gmra.mxu0 %v8503
      %v9532 = vpop.f32.mrf.mxu0
      %v9533 = vadd.f32 %v9444, %v9532
      %v9534 = vpop.f32.mrf.mxu0
      %v9535 = vadd.f32 %v9446, %v9534
      %9536 = vmatmul.bf16.gmra.mxu0 %v8512
      %v9537 = vpop.f32.mrf.mxu0
      %v9538 = vadd.f32 %v9449, %v9537
      %v9539 = vpop.f32.mrf.mxu0
      %v9540 = vadd.f32 %v9451, %v9539
      %9541 = vmatmul.bf16.gmra.mxu0 %v8521
      %v9542 = vpop.f32.mrf.mxu0
      %v9543 = vadd.f32 %v9454, %v9542
      %v9544 = vpop.f32.mrf.mxu0
      %v9545 = vadd.f32 %v9456, %v9544
      %9546 = vdwg.mxu0
      %9547 = vmatpush.bf16.msra.mxu0 %v9005
      %9548 = vmatpush.bf16.msra.mxu0 %v9004
      %9549 = vmatpush.bf16.msra.mxu0 %v9003
      %9550 = vmatpush.bf16.msra.mxu0 %v9002
      %9551 = vmatpush.bf16.msra.mxu0 %v9001
      %9552 = vmatpush.bf16.msra.mxu0 %v9000
      %9553 = vmatpush.bf16.msra.mxu0 %v8999
      %9554 = vmatpush.bf16.msra.mxu0 %v8998
      %9555 = vmatmul.bf16.gmra.mxu0 %v8387
      %v9556 = vpop.f32.mrf.mxu0
      %v9557 = vadd.f32 %v9468, %v9556
      %v9558 = vpop.f32.mrf.mxu0
      %v9559 = vadd.f32 %v9470, %v9558
      %9560 = vmatmul.bf16.gmra.mxu0 %v8396
      %v9561 = vpop.f32.mrf.mxu0
      %v9562 = vadd.f32 %v9473, %v9561
      %v9563 = vpop.f32.mrf.mxu0
      %v9564 = vadd.f32 %v9475, %v9563
      %9565 = vmatmul.bf16.gmra.mxu0 %v8405
      %v9566 = vpop.f32.mrf.mxu0
      %v9567 = vadd.f32 %v9478, %v9566
      %v9568 = vpop.f32.mrf.mxu0
      %v9569 = vadd.f32 %v9480, %v9568
      %9570 = vmatmul.bf16.gmra.mxu0 %v8414
      %v9571 = vpop.f32.mrf.mxu0
      %v9572 = vadd.f32 %v9483, %v9571
      %v9573 = vpop.f32.mrf.mxu0
      %v9574 = vadd.f32 %v9485, %v9573
      %9575 = vmatmul.bf16.gmra.mxu0 %v8423
      %v9576 = vpop.f32.mrf.mxu0
      %v9577 = vadd.f32 %v9488, %v9576
      %v9578 = vpop.f32.mrf.mxu0
      %v9579 = vadd.f32 %v9490, %v9578
      %9580 = vmatmul.bf16.gmra.mxu0 %v8432
      %v9581 = vpop.f32.mrf.mxu0
      %v9582 = vadd.f32 %v9493, %v9581
      %v9583 = vpop.f32.mrf.mxu0
      %v9584 = vadd.f32 %v9495, %v9583
      %9585 = vmatmul.bf16.gmra.mxu0 %v8441
      %v9586 = vpop.f32.mrf.mxu0
      %v9587 = vadd.f32 %v9498, %v9586
      %v9588 = vpop.f32.mrf.mxu0
      %v9589 = vadd.f32 %v9500, %v9588
      %9590 = vmatmul.bf16.gmra.mxu0 %v8450
      %v9591 = vpop.f32.mrf.mxu0
      %v9592 = vadd.f32 %v9503, %v9591
      %v9593 = vpop.f32.mrf.mxu0
      %v9594 = vadd.f32 %v9505, %v9593
      %9595 = vmatmul.bf16.gmra.mxu0 %v8459
      %v9596 = vpop.f32.mrf.mxu0
      %v9597 = vadd.f32 %v9508, %v9596
      %v9598 = vpop.f32.mrf.mxu0
      %v9599 = vadd.f32 %v9510, %v9598
      %9600 = vmatmul.bf16.gmra.mxu0 %v8468
      %v9601 = vpop.f32.mrf.mxu0
      %v9602 = vadd.f32 %v9513, %v9601
      %v9603 = vpop.f32.mrf.mxu0
      %v9604 = vadd.f32 %v9515, %v9603
      %9605 = vmatmul.bf16.gmra.mxu0 %v8477
      %v9606 = vpop.f32.mrf.mxu0
      %v9607 = vadd.f32 %v9518, %v9606
      %v9608 = vpop.f32.mrf.mxu0
      %v9609 = vadd.f32 %v9520, %v9608
      %9610 = vmatmul.bf16.gmra.mxu0 %v8486
      %v9611 = vpop.f32.mrf.mxu0
      %v9612 = vadd.f32 %v9523, %v9611
      %v9613 = vpop.f32.mrf.mxu0
      %v9614 = vadd.f32 %v9525, %v9613
      %9615 = vmatmul.bf16.gmra.mxu0 %v8495
      %v9616 = vpop.f32.mrf.mxu0
      %v9617 = vadd.f32 %v9528, %v9616
      %v9618 = vpop.f32.mrf.mxu0
      %v9619 = vadd.f32 %v9530, %v9618
      %9620 = vmatmul.bf16.gmra.mxu0 %v8504
      %v9621 = vpop.f32.mrf.mxu0
      %v9622 = vadd.f32 %v9533, %v9621
      %v9623 = vpop.f32.mrf.mxu0
      %v9624 = vadd.f32 %v9535, %v9623
      %9625 = vmatmul.bf16.gmra.mxu0 %v8513
      %v9626 = vpop.f32.mrf.mxu0
      %v9627 = vadd.f32 %v9538, %v9626
      %v9628 = vpop.f32.mrf.mxu0
      %v9629 = vadd.f32 %v9540, %v9628
      %9630 = vmatmul.bf16.gmra.mxu0 %v8522
      %v9631 = vpop.f32.mrf.mxu0
      %v9632 = vadd.f32 %v9543, %v9631
      %v9633 = vpop.f32.mrf.mxu0
      %v9634 = vadd.f32 %v9545, %v9633
      %9635 = vdwg.mxu0
      %9636 = vmatpush.bf16.msra.mxu0 %v9013
      %9637 = vmatpush.bf16.msra.mxu0 %v9012
      %9638 = vmatpush.bf16.msra.mxu0 %v9011
      %9639 = vmatpush.bf16.msra.mxu0 %v9010
      %9640 = vmatpush.bf16.msra.mxu0 %v9009
      %9641 = vmatpush.bf16.msra.mxu0 %v9008
      %9642 = vmatpush.bf16.msra.mxu0 %v9007
      %9643 = vmatpush.bf16.msra.mxu0 %v9006
      %9644 = vmatmul.bf16.gmra.mxu0 %v8388
      %v9645 = vpop.f32.mrf.mxu0
      %v9646 = vadd.f32 %v9557, %v9645
      %v9647 = vpop.f32.mrf.mxu0
      %v9648 = vadd.f32 %v9559, %v9647
      %9649 = vmatmul.bf16.gmra.mxu0 %v8397
      %v9650 = vpop.f32.mrf.mxu0
      %v9651 = vadd.f32 %v9562, %v9650
      %v9652 = vpop.f32.mrf.mxu0
      %v9653 = vadd.f32 %v9564, %v9652
      %9654 = vmatmul.bf16.gmra.mxu0 %v8406
      %v9655 = vpop.f32.mrf.mxu0
      %v9656 = vadd.f32 %v9567, %v9655
      %v9657 = vpop.f32.mrf.mxu0
      %v9658 = vadd.f32 %v9569, %v9657
      %9659 = vmatmul.bf16.gmra.mxu0 %v8415
      %v9660 = vpop.f32.mrf.mxu0
      %v9661 = vadd.f32 %v9572, %v9660
      %v9662 = vpop.f32.mrf.mxu0
      %v9663 = vadd.f32 %v9574, %v9662
      %9664 = vmatmul.bf16.gmra.mxu0 %v8424
      %v9665 = vpop.f32.mrf.mxu0
      %v9666 = vadd.f32 %v9577, %v9665
      %v9667 = vpop.f32.mrf.mxu0
      %v9668 = vadd.f32 %v9579, %v9667
      %9669 = vmatmul.bf16.gmra.mxu0 %v8433
      %v9670 = vpop.f32.mrf.mxu0
      %v9671 = vadd.f32 %v9582, %v9670
      %v9672 = vpop.f32.mrf.mxu0
      %v9673 = vadd.f32 %v9584, %v9672
      %9674 = vmatmul.bf16.gmra.mxu0 %v8442
      %v9675 = vpop.f32.mrf.mxu0
      %v9676 = vadd.f32 %v9587, %v9675
      %v9677 = vpop.f32.mrf.mxu0
      %v9678 = vadd.f32 %v9589, %v9677
      %9679 = vmatmul.bf16.gmra.mxu0 %v8451
      %v9680 = vpop.f32.mrf.mxu0
      %v9681 = vadd.f32 %v9592, %v9680
      %v9682 = vpop.f32.mrf.mxu0
      %v9683 = vadd.f32 %v9594, %v9682
      %9684 = vmatmul.bf16.gmra.mxu0 %v8460
      %v9685 = vpop.f32.mrf.mxu0
      %v9686 = vadd.f32 %v9597, %v9685
      %v9687 = vpop.f32.mrf.mxu0
      %v9688 = vadd.f32 %v9599, %v9687
      %9689 = vmatmul.bf16.gmra.mxu0 %v8469
      %v9690 = vpop.f32.mrf.mxu0
      %v9691 = vadd.f32 %v9602, %v9690
      %v9692 = vpop.f32.mrf.mxu0
      %v9693 = vadd.f32 %v9604, %v9692
      %9694 = vmatmul.bf16.gmra.mxu0 %v8478
      %v9695 = vpop.f32.mrf.mxu0
      %v9696 = vadd.f32 %v9607, %v9695
      %v9697 = vpop.f32.mrf.mxu0
      %v9698 = vadd.f32 %v9609, %v9697
      %9699 = vmatmul.bf16.gmra.mxu0 %v8487
      %v9700 = vpop.f32.mrf.mxu0
      %v9701 = vadd.f32 %v9612, %v9700
      %v9702 = vpop.f32.mrf.mxu0
      %v9703 = vadd.f32 %v9614, %v9702
      %9704 = vmatmul.bf16.gmra.mxu0 %v8496
      %v9705 = vpop.f32.mrf.mxu0
      %v9706 = vadd.f32 %v9617, %v9705
      %v9707 = vpop.f32.mrf.mxu0
      %v9708 = vadd.f32 %v9619, %v9707
      %9709 = vmatmul.bf16.gmra.mxu0 %v8505
      %v9710 = vpop.f32.mrf.mxu0
      %v9711 = vadd.f32 %v9622, %v9710
      %v9712 = vpop.f32.mrf.mxu0
      %v9713 = vadd.f32 %v9624, %v9712
      %9714 = vmatmul.bf16.gmra.mxu0 %v8514
      %v9715 = vpop.f32.mrf.mxu0
      %v9716 = vadd.f32 %v9627, %v9715
      %v9717 = vpop.f32.mrf.mxu0
      %v9718 = vadd.f32 %v9629, %v9717
      %9719 = vmatmul.bf16.gmra.mxu0 %v8523
      %v9720 = vpop.f32.mrf.mxu0
      %v9721 = vadd.f32 %v9632, %v9720
      %v9722 = vpop.f32.mrf.mxu0
      %v9723 = vadd.f32 %v9634, %v9722
      %9724 = vdwg.mxu0
      %9725 = vmatpush.bf16.msra.mxu0 %v9021
      %9726 = vmatpush.bf16.msra.mxu0 %v9020
      %9727 = vmatpush.bf16.msra.mxu0 %v9019
      %9728 = vmatpush.bf16.msra.mxu0 %v9018
      %9729 = vmatpush.bf16.msra.mxu0 %v9017
      %9730 = vmatpush.bf16.msra.mxu0 %v9016
      %9731 = vmatpush.bf16.msra.mxu0 %v9015
      %9732 = vmatpush.bf16.msra.mxu0 %v9014
      %9733 = vmatmul.bf16.gmra.mxu0 %v8389
      %v9734 = vpop.f32.mrf.mxu0
      %v9735 = vadd.f32 %v9646, %v9734
      %v9736 = vpop.f32.mrf.mxu0
      %v9737 = vadd.f32 %v9648, %v9736
      %9738 = vmatmul.bf16.gmra.mxu0 %v8398
      %v9739 = vpop.f32.mrf.mxu0
      %v9740 = vadd.f32 %v9651, %v9739
      %v9741 = vpop.f32.mrf.mxu0
      %v9742 = vadd.f32 %v9653, %v9741
      %9743 = vmatmul.bf16.gmra.mxu0 %v8407
      %v9744 = vpop.f32.mrf.mxu0
      %v9745 = vadd.f32 %v9656, %v9744
      %v9746 = vpop.f32.mrf.mxu0
      %v9747 = vadd.f32 %v9658, %v9746
      %9748 = vmatmul.bf16.gmra.mxu0 %v8416
      %v9749 = vpop.f32.mrf.mxu0
      %v9750 = vadd.f32 %v9661, %v9749
      %v9751 = vpop.f32.mrf.mxu0
      %v9752 = vadd.f32 %v9663, %v9751
      %9753 = vmatmul.bf16.gmra.mxu0 %v8425
      %v9754 = vpop.f32.mrf.mxu0
      %v9755 = vadd.f32 %v9666, %v9754
      %v9756 = vpop.f32.mrf.mxu0
      %v9757 = vadd.f32 %v9668, %v9756
      %9758 = vmatmul.bf16.gmra.mxu0 %v8434
      %v9759 = vpop.f32.mrf.mxu0
      %v9760 = vadd.f32 %v9671, %v9759
      %v9761 = vpop.f32.mrf.mxu0
      %v9762 = vadd.f32 %v9673, %v9761
      %9763 = vmatmul.bf16.gmra.mxu0 %v8443
      %v9764 = vpop.f32.mrf.mxu0
      %v9765 = vadd.f32 %v9676, %v9764
      %v9766 = vpop.f32.mrf.mxu0
      %v9767 = vadd.f32 %v9678, %v9766
      %9768 = vmatmul.bf16.gmra.mxu0 %v8452
      %v9769 = vpop.f32.mrf.mxu0
      %v9770 = vadd.f32 %v9681, %v9769
      %v9771 = vpop.f32.mrf.mxu0
      %v9772 = vadd.f32 %v9683, %v9771
      %9773 = vmatmul.bf16.gmra.mxu0 %v8461
      %v9774 = vpop.f32.mrf.mxu0
      %v9775 = vadd.f32 %v9686, %v9774
      %v9776 = vpop.f32.mrf.mxu0
      %v9777 = vadd.f32 %v9688, %v9776
      %9778 = vmatmul.bf16.gmra.mxu0 %v8470
      %v9779 = vpop.f32.mrf.mxu0
      %v9780 = vadd.f32 %v9691, %v9779
      %v9781 = vpop.f32.mrf.mxu0
      %v9782 = vadd.f32 %v9693, %v9781
      %9783 = vmatmul.bf16.gmra.mxu0 %v8479
      %v9784 = vpop.f32.mrf.mxu0
      %v9785 = vadd.f32 %v9696, %v9784
      %v9786 = vpop.f32.mrf.mxu0
      %v9787 = vadd.f32 %v9698, %v9786
      %9788 = vmatmul.bf16.gmra.mxu0 %v8488
      %v9789 = vpop.f32.mrf.mxu0
      %v9790 = vadd.f32 %v9701, %v9789
      %v9791 = vpop.f32.mrf.mxu0
      %v9792 = vadd.f32 %v9703, %v9791
      %9793 = vmatmul.bf16.gmra.mxu0 %v8497
      %v9794 = vpop.f32.mrf.mxu0
      %v9795 = vadd.f32 %v9706, %v9794
      %v9796 = vpop.f32.mrf.mxu0
      %v9797 = vadd.f32 %v9708, %v9796
      %9798 = vmatmul.bf16.gmra.mxu0 %v8506
      %v9799 = vpop.f32.mrf.mxu0
      %v9800 = vadd.f32 %v9711, %v9799
      %v9801 = vpop.f32.mrf.mxu0
      %v9802 = vadd.f32 %v9713, %v9801
      %9803 = vmatmul.bf16.gmra.mxu0 %v8515
      %v9804 = vpop.f32.mrf.mxu0
      %v9805 = vadd.f32 %v9716, %v9804
      %v9806 = vpop.f32.mrf.mxu0
      %v9807 = vadd.f32 %v9718, %v9806
      %9808 = vmatmul.bf16.gmra.mxu0 %v8524
      %v9809 = vpop.f32.mrf.mxu0
      %v9810 = vadd.f32 %v9721, %v9809
      %v9811 = vpop.f32.mrf.mxu0
      %v9812 = vadd.f32 %v9723, %v9811
      %9813 = vdwg.mxu0
      %9814 = vmatpush.bf16.msra.mxu0 %v9029
      %9815 = vmatpush.bf16.msra.mxu0 %v9028
      %9816 = vmatpush.bf16.msra.mxu0 %v9027
      %9817 = vmatpush.bf16.msra.mxu0 %v9026
      %9818 = vmatpush.bf16.msra.mxu0 %v9025
      %9819 = vmatpush.bf16.msra.mxu0 %v9024
      %9820 = vmatpush.bf16.msra.mxu0 %v9023
      %9821 = vmatpush.bf16.msra.mxu0 %v9022
      %9822 = vmatmul.bf16.gmra.mxu0 %v8390
      %v9823 = vpop.f32.mrf.mxu0
      %v9824 = vadd.f32 %v9735, %v9823
      %v9825 = vpop.f32.mrf.mxu0
      %v9826 = vadd.f32 %v9737, %v9825
      %9827 = vmatmul.bf16.gmra.mxu0 %v8399
      %v9828 = vpop.f32.mrf.mxu0
      %v9829 = vadd.f32 %v9740, %v9828
      %v9830 = vpop.f32.mrf.mxu0
      %v9831 = vadd.f32 %v9742, %v9830
      %9832 = vmatmul.bf16.gmra.mxu0 %v8408
      %v9833 = vpop.f32.mrf.mxu0
      %v9834 = vadd.f32 %v9745, %v9833
      %v9835 = vpop.f32.mrf.mxu0
      %v9836 = vadd.f32 %v9747, %v9835
      %9837 = vmatmul.bf16.gmra.mxu0 %v8417
      %v9838 = vpop.f32.mrf.mxu0
      %v9839 = vadd.f32 %v9750, %v9838
      %v9840 = vpop.f32.mrf.mxu0
      %v9841 = vadd.f32 %v9752, %v9840
      %9842 = vmatmul.bf16.gmra.mxu0 %v8426
      %v9843 = vpop.f32.mrf.mxu0
      %v9844 = vadd.f32 %v9755, %v9843
      %v9845 = vpop.f32.mrf.mxu0
      %v9846 = vadd.f32 %v9757, %v9845
      %9847 = vmatmul.bf16.gmra.mxu0 %v8435
      %v9848 = vpop.f32.mrf.mxu0
      %v9849 = vadd.f32 %v9760, %v9848
      %v9850 = vpop.f32.mrf.mxu0
      %v9851 = vadd.f32 %v9762, %v9850
      %9852 = vmatmul.bf16.gmra.mxu0 %v8444
      %v9853 = vpop.f32.mrf.mxu0
      %v9854 = vadd.f32 %v9765, %v9853
      %v9855 = vpop.f32.mrf.mxu0
      %v9856 = vadd.f32 %v9767, %v9855
      %9857 = vmatmul.bf16.gmra.mxu0 %v8453
      %v9858 = vpop.f32.mrf.mxu0
      %v9859 = vadd.f32 %v9770, %v9858
      %v9860 = vpop.f32.mrf.mxu0
      %v9861 = vadd.f32 %v9772, %v9860
      %9862 = vmatmul.bf16.gmra.mxu0 %v8462
      %v9863 = vpop.f32.mrf.mxu0
      %v9864 = vadd.f32 %v9775, %v9863
      %v9865 = vpop.f32.mrf.mxu0
      %v9866 = vadd.f32 %v9777, %v9865
      %9867 = vmatmul.bf16.gmra.mxu0 %v8471
      %v9868 = vpop.f32.mrf.mxu0
      %v9869 = vadd.f32 %v9780, %v9868
      %v9870 = vpop.f32.mrf.mxu0
      %v9871 = vadd.f32 %v9782, %v9870
      %9872 = vmatmul.bf16.gmra.mxu0 %v8480
      %v9873 = vpop.f32.mrf.mxu0
      %v9874 = vadd.f32 %v9785, %v9873
      %v9875 = vpop.f32.mrf.mxu0
      %v9876 = vadd.f32 %v9787, %v9875
      %9877 = vmatmul.bf16.gmra.mxu0 %v8489
      %v9878 = vpop.f32.mrf.mxu0
      %v9879 = vadd.f32 %v9790, %v9878
      %v9880 = vpop.f32.mrf.mxu0
      %v9881 = vadd.f32 %v9792, %v9880
      %9882 = vmatmul.bf16.gmra.mxu0 %v8498
      %v9883 = vpop.f32.mrf.mxu0
      %v9884 = vadd.f32 %v9795, %v9883
      %v9885 = vpop.f32.mrf.mxu0
      %v9886 = vadd.f32 %v9797, %v9885
      %9887 = vmatmul.bf16.gmra.mxu0 %v8507
      %v9888 = vpop.f32.mrf.mxu0
      %v9889 = vadd.f32 %v9800, %v9888
      %v9890 = vpop.f32.mrf.mxu0
      %v9891 = vadd.f32 %v9802, %v9890
      %9892 = vmatmul.bf16.gmra.mxu0 %v8516
      %v9893 = vpop.f32.mrf.mxu0
      %v9894 = vadd.f32 %v9805, %v9893
      %v9895 = vpop.f32.mrf.mxu0
      %v9896 = vadd.f32 %v9807, %v9895
      %9897 = vmatmul.bf16.gmra.mxu0 %v8525
      %v9898 = vpop.f32.mrf.mxu0
      %v9899 = vadd.f32 %v9810, %v9898
      %v9900 = vpop.f32.mrf.mxu0
      %v9901 = vadd.f32 %v9812, %v9900
      %9902 = vdwg.mxu0
      %v9903 = vld [vmem:[%s7] sm:$0x1]
      %v9905 = vperm.slane %v9903, 0
      %v9907 = vmul.f32 %v9824, %v9905
      %v9908 = vmul.f32 %v9826, %v9905
      %v9909 = vmul.f32 %v9829, %v9905
      %v9910 = vmul.f32 %v9831, %v9905
      %v9911 = vmul.f32 %v9834, %v9905
      %v9912 = vmul.f32 %v9836, %v9905
      %v9913 = vmul.f32 %v9839, %v9905
      %v9914 = vmul.f32 %v9841, %v9905
      %v9915 = vmul.f32 %v9844, %v9905
      %v9916 = vmul.f32 %v9846, %v9905
      %v9917 = vmul.f32 %v9849, %v9905
      %v9918 = vmul.f32 %v9851, %v9905
      %v9919 = vmul.f32 %v9854, %v9905
      %v9920 = vmul.f32 %v9856, %v9905
      %v9921 = vmul.f32 %v9859, %v9905
      %v9922 = vmul.f32 %v9861, %v9905
      %v9923 = vmul.f32 %v9864, %v9905
      %v9924 = vmul.f32 %v9866, %v9905
      %v9925 = vmul.f32 %v9869, %v9905
      %v9926 = vmul.f32 %v9871, %v9905
      %v9927 = vmul.f32 %v9874, %v9905
      %v9928 = vmul.f32 %v9876, %v9905
      %v9929 = vmul.f32 %v9879, %v9905
      %v9930 = vmul.f32 %v9881, %v9905
      %v9931 = vmul.f32 %v9884, %v9905
      %v9932 = vmul.f32 %v9886, %v9905
      %v9933 = vmul.f32 %v9889, %v9905
      %v9934 = vmul.f32 %v9891, %v9905
      %v9935 = vmul.f32 %v9894, %v9905
      %v9936 = vmul.f32 %v9896, %v9905
      %v9937 = vmul.f32 %v9899, %v9905
      %v9938 = vmul.f32 %v9901, %v9905
      %v9939 = vld [vmem:[%s8] sm:$0x1]
      %v9941 = vperm.slane %v9939, 0
      %v9943 = vadd.f32 %v9907, %v9941
      %v9944 = vadd.f32 %v9908, %v9941
      %v9945 = vadd.f32 %v9909, %v9941
      %v9946 = vadd.f32 %v9910, %v9941
      %v9947 = vadd.f32 %v9911, %v9941
      %v9948 = vadd.f32 %v9912, %v9941
      %v9949 = vadd.f32 %v9913, %v9941
      %v9950 = vadd.f32 %v9914, %v9941
      %v9951 = vadd.f32 %v9915, %v9941
      %v9952 = vadd.f32 %v9916, %v9941
      %v9953 = vadd.f32 %v9917, %v9941
      %v9954 = vadd.f32 %v9918, %v9941
      %v9955 = vadd.f32 %v9919, %v9941
      %v9956 = vadd.f32 %v9920, %v9941
      %v9957 = vadd.f32 %v9921, %v9941
      %v9958 = vadd.f32 %v9922, %v9941
      %v9959 = vadd.f32 %v9923, %v9941
      %v9960 = vadd.f32 %v9924, %v9941
      %v9961 = vadd.f32 %v9925, %v9941
      %v9962 = vadd.f32 %v9926, %v9941
      %v9963 = vadd.f32 %v9927, %v9941
      %v9964 = vadd.f32 %v9928, %v9941
      %v9965 = vadd.f32 %v9929, %v9941
      %v9966 = vadd.f32 %v9930, %v9941
      %v9967 = vadd.f32 %v9931, %v9941
      %v9968 = vadd.f32 %v9932, %v9941
      %v9969 = vadd.f32 %v9933, %v9941
      %v9970 = vadd.f32 %v9934, %v9941
      %v9971 = vadd.f32 %v9935, %v9941
      %v9972 = vadd.f32 %v9936, %v9941
      %v9973 = vadd.f32 %v9937, %v9941
      %v9974 = vadd.f32 %v9938, %v9941
      %v9975 = vmax.f32 %v9943, 0.0
      %v9976 = vmax.f32 %v9944, 0.0
      %v9977 = vmax.f32 %v9945, 0.0
      %v9978 = vmax.f32 %v9946, 0.0
      %v9979 = vmax.f32 %v9947, 0.0
      %v9980 = vmax.f32 %v9948, 0.0
      %v9981 = vmax.f32 %v9949, 0.0
      %v9982 = vmax.f32 %v9950, 0.0
      %v9983 = vmax.f32 %v9951, 0.0
      %v9984 = vmax.f32 %v9952, 0.0
      %v9985 = vmax.f32 %v9953, 0.0
      %v9986 = vmax.f32 %v9954, 0.0
      %v9987 = vmax.f32 %v9955, 0.0
      %v9988 = vmax.f32 %v9956, 0.0
      %v9989 = vmax.f32 %v9957, 0.0
      %v9990 = vmax.f32 %v9958, 0.0
      %v9991 = vmax.f32 %v9959, 0.0
      %v9992 = vmax.f32 %v9960, 0.0
      %v9993 = vmax.f32 %v9961, 0.0
      %v9994 = vmax.f32 %v9962, 0.0
      %v9995 = vmax.f32 %v9963, 0.0
      %v9996 = vmax.f32 %v9964, 0.0
      %v9997 = vmax.f32 %v9965, 0.0
      %v9998 = vmax.f32 %v9966, 0.0
      %v9999 = vmax.f32 %v9967, 0.0
      %v10000 = vmax.f32 %v9968, 0.0
      %v10001 = vmax.f32 %v9969, 0.0
      %v10002 = vmax.f32 %v9970, 0.0
      %v10003 = vmax.f32 %v9971, 0.0
      %v10004 = vmax.f32 %v9972, 0.0
      %v10005 = vmax.f32 %v9973, 0.0
      %v10006 = vmax.f32 %v9974, 0.0
      %v10007 = vpack.c.bf16 %v9975, %v9975
      %v10008 = vpack.c.bf16 %v9976, %v9976
      %v10009 = vpack.c.bf16 %v9977, %v9977
      %v10010 = vpack.c.bf16 %v9978, %v9978
      %v10011 = vpack.c.bf16 %v9979, %v9979
      %v10012 = vpack.c.bf16 %v9980, %v9980
      %v10013 = vpack.c.bf16 %v9981, %v9981
      %v10014 = vpack.c.bf16 %v9982, %v9982
      %v10015 = vpack.c.bf16 %v9983, %v9983
      %v10016 = vpack.c.bf16 %v9984, %v9984
      %v10017 = vpack.c.bf16 %v9985, %v9985
      %v10018 = vpack.c.bf16 %v9986, %v9986
      %v10019 = vpack.c.bf16 %v9987, %v9987
      %v10020 = vpack.c.bf16 %v9988, %v9988
      %v10021 = vpack.c.bf16 %v9989, %v9989
      %v10022 = vpack.c.bf16 %v9990, %v9990
      %v10023 = vpack.c.bf16 %v9991, %v9991
      %v10024 = vpack.c.bf16 %v9992, %v9992
      %v10025 = vpack.c.bf16 %v9993, %v9993
      %v10026 = vpack.c.bf16 %v9994, %v9994
      %v10027 = vpack.c.bf16 %v9995, %v9995
      %v10028 = vpack.c.bf16 %v9996, %v9996
      %v10029 = vpack.c.bf16 %v9997, %v9997
      %v10030 = vpack.c.bf16 %v9998, %v9998
      %v10031 = vpack.c.bf16 %v9999, %v9999
      %v10032 = vpack.c.bf16 %v10000, %v10000
      %v10033 = vpack.c.bf16 %v10001, %v10001
      %v10034 = vpack.c.bf16 %v10002, %v10002
      %v10035 = vpack.c.bf16 %v10003, %v10003
      %v10036 = vpack.c.bf16 %v10004, %v10004
      %v10037 = vpack.c.bf16 %v10005, %v10005
      %v10038 = vpack.c.bf16 %v10006, %v10006
      %10039 = vst [vmem:[%s352] sm:$0xf] %v10007
      %10040 = vst [vmem:[%s352 + $0x4] sm:$0xf] %v10008
      %10041 = vst [vmem:[%s352 + $0x8] sm:$0xf] %v10009
      %10042 = vst [vmem:[%s352 + $0xc] sm:$0xf] %v10010
      %10043 = vst [vmem:[%s352 + $0x10] sm:$0xf] %v10011
      %10044 = vst [vmem:[%s352 + $0x14] sm:$0xf] %v10012
      %10045 = vst [vmem:[%s352 + $0x18] sm:$0xf] %v10013
      %10046 = vst [vmem:[%s352 + $0x1c] sm:$0xf] %v10014
      %10047 = vst [vmem:[%s352 + $0x20] sm:$0xf] %v10015
      %10048 = vst [vmem:[%s352 + $0x24] sm:$0xf] %v10016
      %10049 = vst [vmem:[%s352 + $0x28] sm:$0xf] %v10017
      %10050 = vst [vmem:[%s352 + $0x2c] sm:$0xf] %v10018
      %10051 = vst [vmem:[%s352 + $0x30] sm:$0xf] %v10019
      %10052 = vst [vmem:[%s352 + $0x34] sm:$0xf] %v10020
      %10053 = vst [vmem:[%s352 + $0x38] sm:$0xf] %v10021
      %10054 = vst [vmem:[%s352 + $0x3c] sm:$0xf] %v10022
      %10055 = vst [vmem:[%s352 + $0x40] sm:$0xf] %v10023
      %10056 = vst [vmem:[%s352 + $0x44] sm:$0xf] %v10024
      %10057 = vst [vmem:[%s352 + $0x48] sm:$0xf] %v10025
      %10058 = vst [vmem:[%s352 + $0x4c] sm:$0xf] %v10026
      %10059 = vst [vmem:[%s352 + $0x50] sm:$0xf] %v10027
      %10060 = vst [vmem:[%s352 + $0x54] sm:$0xf] %v10028
      %10061 = vst [vmem:[%s352 + $0x58] sm:$0xf] %v10029
      %10062 = vst [vmem:[%s352 + $0x5c] sm:$0xf] %v10030
      %10063 = vst [vmem:[%s352 + $0x60] sm:$0xf] %v10031
      %10064 = vst [vmem:[%s352 + $0x64] sm:$0xf] %v10032
      %10065 = vst [vmem:[%s352 + $0x68] sm:$0xf] %v10033
      %10066 = vst [vmem:[%s352 + $0x6c] sm:$0xf] %v10034
      %10067 = vst [vmem:[%s352 + $0x70] sm:$0xf] %v10035
      %10068 = vst [vmem:[%s352 + $0x74] sm:$0xf] %v10036
      %10069 = vst [vmem:[%s352 + $0x78] sm:$0xf] %v10037
      %10070 = vst [vmem:[%s352 + $0x7c] sm:$0xf] %v10038
      %p10071 = scmp.lt.s32.totalorder %s20, 1
      %s10072 = scalar_select %p10071, %s20, 1
      %s10073 = smul.addr %s10072, 32
      %s10074 = smul.addr %s10073, 4
      %s10075 = scalar_lea.vmem %s9, %s10074
      // Predicated region
      $region57: #{_lambda_.1} parent=55 // pred_check
        %p10076 = pneg %p237
      $region58: #{_lambda_.1} parent=55 // pred_check_branch
        %10078 = sbr.rel (%p10076) target = $region60
      $region59: #{_lambda_.1} parent=55 // pred_region
        _
      $region60: #{_lambda_.1} parent=55 // pred_fallthru
        _
    $region56: #{_lambda_.1} parent=5 // pred_fallthru
      _
    %p10079 = scmp.le.s32.totalorder 2, %s15
    // Predicated region
    $region61: #{_lambda_.1} parent=5 // pred_check
      %p10080 = pneg %p10079
    $region62: #{_lambda_.1} parent=5 // pred_check_branch
      %10082 = sbr.rel (%p10080) target = $region64
    $region63: #{_lambda_.1} parent=5 // pred_region
      %s10083 = ssub.s32 %s15, 2
      // Predicated region
      $region65: #{_lambda_.1} parent=63 // pred_check
        %p10084 = pneg %p243
      $region66: #{_lambda_.1} parent=63 // pred_check_branch
        %10086 = sbr.rel (%p10084) target = $region68
      $region67: #{_lambda_.1} parent=63 // pred_region
        %p10087 = scmp.lt.s32.totalorder %s21, 1
        %s10088 = scalar_select %p10087, %s21, 1
        %s10089 = smul.addr %s10088, 32
        %s10090 = smul.addr %s10089, 4
        %s10091 = scalar_lea.vmem %s9, %s10090
      $region68: #{_lambda_.1} parent=63 // pred_fallthru
        _
    $region64: #{_lambda_.1} parent=5 // pred_fallthru
      _
  $region6: #{_lambda_.1} parent=0 // loop_footer
    %s19 = sadd.s32 1, %s15
  $region7: #{_lambda_.1} parent=0 // loop_footer_branch
    %14 = sbr.rel target = $region3
  $region8: #{_lambda_.1} parent=0 // loop_exit
    _

</llo_original>
